<compile_context>
chip_gen: v7x
topology: tpu7x:2x2x1
jax: 0.10.0
libtpu: 0.0.40
codegen_flags: <defaults>
</compile_context>

<pallas_src>
import functools

import jax
import jax.numpy as jnp
from jax.experimental import pallas as pl
from jax.experimental.pallas import tpu as pltpu


DIM = 192                      # C
NUM_HEADS = 12                 # H
HEAD_DIM = DIM // NUM_HEADS    # 16
SCALE = HEAD_DIM ** (-0.5)     # 0.25 -> folding into W_q is bit-exact

# Scoped-VMEM budget that is safe on every generation (v5e/v6e: 128 MiB
# physical, v7x: 64 MiB physical; 32 MiB is the default scoped limit on all).
_VMEM_LIMIT_BYTES = 32 * 1024 * 1024


def _msa_kernel(x_ref, wqkv_ref, wp_ref, b_ref, out_ref, *, num_heads,
                approx_recip, fused_merge):
    # x_ref:    (BB, N, C)   block of whole batch elements
    # wqkv_ref: (C, 3C)      fused qkv weight (scale folded into the Q third)
    # wp_ref:   (C, C)       output-projection weight (pre-transposed)
    # b_ref:    (1, C)       output-projection bias (f32)
    # out_ref:  (BB, N, C)
    BB, N, C = x_ref.shape
    H = num_heads
    hd = C // H
    cdt = wqkv_ref.dtype                       # MXU compute dtype (bf16 or f32)

    x2d = x_ref[...].reshape(BB * N, C)
    if x2d.dtype != cdt:
        x2d = x2d.astype(cdt)

    # --- Fused Q/K/V projection: one (BB*N, C) @ (C, 3C) MXU matmul,
    #     f32 accumulation. 576-wide output fills the MXU result path.
    qkv = jnp.dot(x2d, wqkv_ref[...], preferred_element_type=jnp.float32)
    qkv = qkv.reshape(BB, N, 3 * C)

    def split_heads(base):
        # Per-head lane slices stacked head-major along the (untiled) leading
        # axis -> (H*BB, N, hd). Pure in-register slicing/concat, no VMEM
        # scratch round trip, no masked partial stores.
        parts = [qkv[:, :, base + h * hd: base + (h + 1) * hd]
                 for h in range(H)]
        return jnp.concatenate(parts, axis=0).astype(cdt)

    q3 = split_heads(0)          # (H*BB, N, hd), scale already applied via W_q
    k3 = split_heads(C)
    v3 = split_heads(2 * C)

    # --- Batched attention over all (head, batch) groups; softmax strictly f32.
    s = jnp.einsum("gqd,gkd->gqk", q3, k3,
                   preferred_element_type=jnp.float32)            # (G, N, N)
    s = s - jnp.max(s, axis=-1, keepdims=True)
    p = jnp.exp(s)
    denom = jnp.sum(p, axis=-1, keepdims=True)                    # (G, N, 1)
    o = jnp.einsum("gqk,gkd->gqd", p.astype(cdt), v3,
                   preferred_element_type=jnp.float32)            # (G, N, hd)
    # Deferred normalization: scale p@v by the row reciprocal (EUP slot).
    o = o * pl.reciprocal(denom, approx=approx_recip)

    # --- Head merge + output projection.
    if fused_merge:
        # Merge heads along the lane dim -> (BB, N, C), then a single K=C=192
        # contraction and one lane-dense 192-wide store of the whole block.
        merged = jnp.concatenate(
            [o[h * BB:(h + 1) * BB] for h in range(H)], axis=-1)  # (BB, N, C)
        y = jnp.dot(merged.reshape(BB * N, C).astype(cdt), wp_ref[...],
                    preferred_element_type=jnp.float32)           # (BB*N, C)
    else:
        # Fallback (previously validated form): per-head K=hd contractions
        # summed over heads. Only used if lane-dim concat fails to lower.
        o_r = o.reshape(H, BB, N, hd).reshape(H, BB * N, hd).astype(cdt)
        wp3 = wp_ref[...].reshape(H, hd, C)
        yh = jnp.einsum("hrd,hdc->hrc", o_r, wp3,
                        preferred_element_type=jnp.float32)       # (H, BB*N, C)
        y = jnp.sum(yh, axis=0)

    y = y + b_ref[...]
    out_ref[...] = y.reshape(BB, N, C).astype(out_ref.dtype)


def _estimate_step_vmem_bytes(bb, N, C, H, cdt_bytes, out_bytes):
    """Rough per-grid-step working-set estimate (lane padding included)."""
    lanes = 128
    rows = bb * N
    n_pad = max(N, lanes)
    x_blk = 2 * rows * C * cdt_bytes              # double-buffered input block
    o_blk = 2 * rows * C * out_bytes              # double-buffered output block
    qkv = rows * 3 * C * 4                        # fused projection (f32)
    heads = 3 * bb * H * N * lanes * cdt_bytes    # q/k/v heads (hd -> 128 lanes)
    sp = 2 * bb * H * N * n_pad * 4               # scores + probs (f32)
    o_attn = bb * H * N * lanes * 4               # attention output (f32)
    merged = rows * C * 4                         # merged heads (f32)
    return x_blk + o_blk + qkv + heads + sp + o_attn + merged


def _pick_block_b(B, N, C, H, cdt_bytes, out_bytes, *, target_rows=512,
                  vmem_limit=_VMEM_LIMIT_BYTES):
    """Whole batch elements per grid step.

    Target ~512 MXU rows per step (per-step overhead ~0.35us dominates small
    tiles). Do NOT force a multi-step split on single-TensorCore chips
    (v5e/v6e); on v7x keep the grid-step count even so both TensorCores get
    work. Shrink until the per-step working set fits the scoped-VMEM budget.
    """
    kind = ""
    try:
        kind = jax.devices()[0].device_kind.lower()
    except Exception:
        pass
    dual_tc = "v7" in kind

    def round_down_divisor(bb):
        bb = max(1, min(bb, B))
        while B % bb:
            bb -= 1
        return bb

    bb = round_down_divisor(max(1, target_rows // max(N, 1)))
    if dual_tc and B > 1:
        while bb > 1 and (B // bb) % 2 != 0:
            bb = round_down_divisor(bb - 1)
    while bb > 1 and _estimate_step_vmem_bytes(
            bb, N, C, H, cdt_bytes, out_bytes) > 0.6 * vmem_limit:
        bb = round_down_divisor(bb - 1)
    return bb


def msa_prepare_params(w_qkv, w_proj, b_proj, compute_dtype=jnp.bfloat16):
    """One-time host-side parameter transform.

    w_qkv:  (C, 3C) fused qkv weight, pre-transposed (qkv_bias=False)
    w_proj: (C, C)  proj weight, pre-transposed
    b_proj: (C,)    proj bias
    Returns (w_qkv_fused, w_proj, bias2d): attention scale folded into the Q
    columns (exact, scale=0.25), weights cast to the MXU compute dtype
    (bf16 by default on every generation -- v5e's bf16 limitation only applies
    to VPU/EUP math, which the kernel keeps in f32).
    """
    C = w_proj.shape[0]
    w_qkv = jnp.asarray(w_qkv, jnp.float32)
    w_fused = jnp.concatenate([w_qkv[:, :C] * SCALE, w_qkv[:, C:]], axis=1)
    return (w_fused.astype(compute_dtype),
            jnp.asarray(w_proj).astype(compute_dtype),
            jnp.asarray(b_proj).reshape(1, C).astype(jnp.float32))


@functools.partial(jax.jit,
                   static_argnames=("approx_recip", "block_b", "fused_merge"))
def msa_forward(x, w_qkv_fused, w_proj, b2d, *, approx_recip=True,
                block_b=None, fused_merge=True):
    B, N, C = x.shape
    H = NUM_HEADS
    assert C % H == 0
    assert w_qkv_fused.shape == (C, 3 * C) and w_proj.shape == (C, C)

    cdt = w_qkv_fused.dtype          # MXU compute dtype from prepared weights
    out_dtype = x.dtype
    cdt_bytes = jnp.dtype(cdt).itemsize
    out_bytes = jnp.dtype(out_dtype).itemsize

    bb = (_pick_block_b(B, N, C, H, cdt_bytes, out_bytes)
          if block_b is None else block_b)
    assert B % bb == 0  # TODO(synk): ragged batch sizes are unsupported.

    # Stream activations in the compute dtype (bf16 halves the x DMA bytes and
    # removes the in-kernel VPU convert); output stays in the caller's dtype.
    x_in = x if x.dtype == cdt else x.astype(cdt)

    kernel = functools.partial(_msa_kernel, num_heads=H,
                               approx_recip=approx_recip,
                               fused_merge=fused_merge)

    return pl.pallas_call(
        kernel,
        out_shape=jax.ShapeDtypeStruct((B, N, C), out_dtype),
        grid_spec=pltpu.PrefetchScalarGridSpec(
            num_scalar_prefetch=0,
            grid=(B // bb,),
            in_specs=[
                pl.BlockSpec((bb, N, C), lambda i: (i, 0, 0)),      # x block
                pl.BlockSpec((C, 3 * C), lambda i: (0, 0)),         # W_qkv
                pl.BlockSpec((C, C), lambda i: (0, 0)),             # W_proj
                pl.BlockSpec((1, C), lambda i: (0, 0)),             # bias
            ],
            out_specs=pl.BlockSpec((bb, N, C), lambda i: (i, 0, 0)),
        ),
        compiler_params=pltpu.CompilerParams(
            dimension_semantics=("parallel",),
            vmem_limit_bytes=_VMEM_LIMIT_BYTES),
    )(x_in, w_qkv_fused, w_proj, b2d)


def msa_reference(x, w_qkv, w_proj, b_proj):
    """Pure-JAX reference mirroring the PyTorch forward."""
    B, N, C = x.shape
    H, hd = NUM_HEADS, HEAD_DIM
    qkv = x @ w_qkv                                               # (B, N, 3C)
    qkv = qkv.reshape(B, N, 3, H, hd).transpose(2, 0, 3, 1, 4)    # (3,B,H,N,hd)
    q, k, v = qkv[0], qkv[1], qkv[2]
    attn = jnp.einsum('bhqd,bhkd->bhqk', q, k) * SCALE
    attn = jax.nn.softmax(attn, axis=-1)
    out = jnp.einsum('bhqk,bhkd->bhqd', attn, v)                  # (B,H,N,hd)
    out = out.transpose(0, 2, 1, 3).reshape(B, N, C)
    return out @ w_proj + b_proj


if __name__ == "__main__":
    key = jax.random.PRNGKey(0)
    kx, kqkv, kproj, kb = jax.random.split(key, 4)

    B, N, C = 2, 16, DIM
    x = jax.random.normal(kx, (B, N, C), dtype=jnp.float32)

    # nn.Linear(dim, 3*dim, bias=False) weight (3C, C), stored transposed (C, 3C).
    w_qkv = (jax.random.normal(kqkv, (C, 3 * C), dtype=jnp.float32)
             * (1.0 / jnp.sqrt(float(C))))
    # nn.Linear(dim, dim) weight (C, C) (transposed here), bias (C,).
    w_proj = (jax.random.normal(kproj, (C, C), dtype=jnp.float32)
              * (1.0 / jnp.sqrt(float(C))))
    b_proj = jax.random.normal(kb, (C,), dtype=jnp.float32) * 0.01

    y_ref = msa_reference(x, w_qkv, w_proj, b_proj)

    p32 = msa_prepare_params(w_qkv, w_proj, b_proj, compute_dtype=jnp.float32)
    pbf = msa_prepare_params(w_qkv, w_proj, b_proj, compute_dtype=jnp.bfloat16)

    # 1) f32 MXU path + exact reciprocal: tight correctness check.
    fused_merge = True
    try:
        y32 = jax.block_until_ready(
            msa_forward(x, *p32, approx_recip=False, fused_merge=True))
        assert y32.shape == (B, N, C)
        assert jnp.allclose(y32, y_ref, rtol=2e-4, atol=2e-4), (
            float(jnp.max(jnp.abs(y32 - y_ref))))
    except Exception:
        # TODO(synk): fallback for Mosaic builds without unaligned lane-dim
        # concatenation; keeps the head merge as per-head contractions.
        fused_merge = False
        y32 = jax.block_until_ready(
            msa_forward(x, *p32, approx_recip=False, fused_merge=False))
        assert y32.shape == (B, N, C)
        assert jnp.allclose(y32, y_ref, rtol=2e-4, atol=2e-4), (
            float(jnp.max(jnp.abs(y32 - y_ref))))

    # 2) bf16 MXU + bf16 activation streaming + EUP approx reciprocal
    #    (the fast path on every generation, incl. v5e): loose check vs f32 ref.
    ybf = jax.block_until_ready(
        msa_forward(x, *pbf, approx_recip=True, fused_merge=fused_merge))
    assert ybf.shape == (B, N, C)
    rel = float(jnp.linalg.norm(ybf.astype(jnp.float32) - y_ref)
                / jnp.linalg.norm(y_ref))
    assert rel < 0.15, rel

    print("KERNEL_OK")
</pallas_src>

<mosaic_0001>
module attributes {stable_mosaic.version = 11 : i64} {
  func.func @_msa_kernel(%arg0: i32, %arg1: memref<2x16x192xf32, #tpu.memory_space<vmem>>, %arg2: memref<192x576xf32, #tpu.memory_space<vmem>>, %arg3: memref<192x192xf32, #tpu.memory_space<vmem>>, %arg4: memref<1x192xf32, #tpu.memory_space<vmem>>, %arg5: memref<2x16x192xf32, #tpu.memory_space<vmem>>) attributes {dimension_semantics = [#tpu.dimension_semantics<parallel>], iteration_bounds = array<i64: 1>, scalar_prefetch = 0 : i64, scratch_operands = 0 : i64, tpu.core_type = #tpu.core_type<tc>, window_params = [{transform_indices = @transform_0, window_bounds = array<i64: 2, 16, 192>}, {pipeline_mode = #tpu.pipeline_mode<synchronous>, transform_indices = @transform_1, window_bounds = array<i64: 192, 576>}, {pipeline_mode = #tpu.pipeline_mode<synchronous>, transform_indices = @transform_2, window_bounds = array<i64: 192, 192>}, {pipeline_mode = #tpu.pipeline_mode<synchronous>, transform_indices = @transform_3, window_bounds = array<i64: 1, 192>}, {transform_indices = @transform_4, window_bounds = array<i64: 2, 16, 192>}]} {
    %c0 = arith.constant 0 : index
    %c0_0 = arith.constant 0 : index
    %c0_1 = arith.constant 0 : index
    %0 = vector.load %arg1[%c0, %c0_0, %c0_1] : memref<2x16x192xf32, #tpu.memory_space<vmem>>, vector<2x16x192xf32>
    %1 = vector.shape_cast %0 : vector<2x16x192xf32> to vector<32x192xf32>
    %c0_2 = arith.constant 0 : index
    %c0_3 = arith.constant 0 : index
    %2 = vector.load %arg2[%c0_2, %c0_3] : memref<192x576xf32, #tpu.memory_space<vmem>>, vector<192x576xf32>
    %cst = arith.constant dense<0.000000e+00> : vector<32x576xf32>
    %3 = tpu.matmul %1, %2, %cst {dimension_numbers = #tpu.dot_dimension_numbers<[1], [0], [0], [1], [0, 0, 1, 1], [], []>} : vector<32x192xf32>, vector<192x576xf32>, vector<32x576xf32> -> vector<32x576xf32>
    %4 = vector.shape_cast %3 : vector<32x576xf32> to vector<2x16x576xf32>
    %5 = vector.extract_strided_slice %4 {offsets = [0, 0, 0], sizes = [2, 16, 16], strides = [1, 1, 1]} : vector<2x16x576xf32> to vector<2x16x16xf32>
    %6 = vector.extract_strided_slice %4 {offsets = [0, 0, 16], sizes = [2, 16, 16], strides = [1, 1, 1]} : vector<2x16x576xf32> to vector<2x16x16xf32>
    %7 = vector.extract_strided_slice %4 {offsets = [0, 0, 32], sizes = [2, 16, 16], strides = [1, 1, 1]} : vector<2x16x576xf32> to vector<2x16x16xf32>
    %8 = vector.extract_strided_slice %4 {offsets = [0, 0, 48], sizes = [2, 16, 16], strides = [1, 1, 1]} : vector<2x16x576xf32> to vector<2x16x16xf32>
    %9 = vector.extract_strided_slice %4 {offsets = [0, 0, 64], sizes = [2, 16, 16], strides = [1, 1, 1]} : vector<2x16x576xf32> to vector<2x16x16xf32>
    %10 = vector.extract_strided_slice %4 {offsets = [0, 0, 80], sizes = [2, 16, 16], strides = [1, 1, 1]} : vector<2x16x576xf32> to vector<2x16x16xf32>
    %11 = vector.extract_strided_slice %4 {offsets = [0, 0, 96], sizes = [2, 16, 16], strides = [1, 1, 1]} : vector<2x16x576xf32> to vector<2x16x16xf32>
    %12 = vector.extract_strided_slice %4 {offsets = [0, 0, 112], sizes = [2, 16, 16], strides = [1, 1, 1]} : vector<2x16x576xf32> to vector<2x16x16xf32>
    %13 = vector.extract_strided_slice %4 {offsets = [0, 0, 128], sizes = [2, 16, 16], strides = [1, 1, 1]} : vector<2x16x576xf32> to vector<2x16x16xf32>
    %14 = vector.extract_strided_slice %4 {offsets = [0, 0, 144], sizes = [2, 16, 16], strides = [1, 1, 1]} : vector<2x16x576xf32> to vector<2x16x16xf32>
    %15 = vector.extract_strided_slice %4 {offsets = [0, 0, 160], sizes = [2, 16, 16], strides = [1, 1, 1]} : vector<2x16x576xf32> to vector<2x16x16xf32>
    %16 = vector.extract_strided_slice %4 {offsets = [0, 0, 176], sizes = [2, 16, 16], strides = [1, 1, 1]} : vector<2x16x576xf32> to vector<2x16x16xf32>
    %17 = tpu.concatenate %5, %6, %7, %8, %9, %10, %11, %12, %13, %14, %15, %16 in 0 : vector<2x16x16xf32>, vector<2x16x16xf32>, vector<2x16x16xf32>, vector<2x16x16xf32>, vector<2x16x16xf32>, vector<2x16x16xf32>, vector<2x16x16xf32>, vector<2x16x16xf32>, vector<2x16x16xf32>, vector<2x16x16xf32>, vector<2x16x16xf32>, vector<2x16x16xf32> -> vector<24x16x16xf32>
    %18 = vector.extract_strided_slice %4 {offsets = [0, 0, 192], sizes = [2, 16, 16], strides = [1, 1, 1]} : vector<2x16x576xf32> to vector<2x16x16xf32>
    %19 = vector.extract_strided_slice %4 {offsets = [0, 0, 208], sizes = [2, 16, 16], strides = [1, 1, 1]} : vector<2x16x576xf32> to vector<2x16x16xf32>
    %20 = vector.extract_strided_slice %4 {offsets = [0, 0, 224], sizes = [2, 16, 16], strides = [1, 1, 1]} : vector<2x16x576xf32> to vector<2x16x16xf32>
    %21 = vector.extract_strided_slice %4 {offsets = [0, 0, 240], sizes = [2, 16, 16], strides = [1, 1, 1]} : vector<2x16x576xf32> to vector<2x16x16xf32>
    %22 = vector.extract_strided_slice %4 {offsets = [0, 0, 256], sizes = [2, 16, 16], strides = [1, 1, 1]} : vector<2x16x576xf32> to vector<2x16x16xf32>
    %23 = vector.extract_strided_slice %4 {offsets = [0, 0, 272], sizes = [2, 16, 16], strides = [1, 1, 1]} : vector<2x16x576xf32> to vector<2x16x16xf32>
    %24 = vector.extract_strided_slice %4 {offsets = [0, 0, 288], sizes = [2, 16, 16], strides = [1, 1, 1]} : vector<2x16x576xf32> to vector<2x16x16xf32>
    %25 = vector.extract_strided_slice %4 {offsets = [0, 0, 304], sizes = [2, 16, 16], strides = [1, 1, 1]} : vector<2x16x576xf32> to vector<2x16x16xf32>
    %26 = vector.extract_strided_slice %4 {offsets = [0, 0, 320], sizes = [2, 16, 16], strides = [1, 1, 1]} : vector<2x16x576xf32> to vector<2x16x16xf32>
    %27 = vector.extract_strided_slice %4 {offsets = [0, 0, 336], sizes = [2, 16, 16], strides = [1, 1, 1]} : vector<2x16x576xf32> to vector<2x16x16xf32>
    %28 = vector.extract_strided_slice %4 {offsets = [0, 0, 352], sizes = [2, 16, 16], strides = [1, 1, 1]} : vector<2x16x576xf32> to vector<2x16x16xf32>
    %29 = vector.extract_strided_slice %4 {offsets = [0, 0, 368], sizes = [2, 16, 16], strides = [1, 1, 1]} : vector<2x16x576xf32> to vector<2x16x16xf32>
    %30 = tpu.concatenate %18, %19, %20, %21, %22, %23, %24, %25, %26, %27, %28, %29 in 0 : vector<2x16x16xf32>, vector<2x16x16xf32>, vector<2x16x16xf32>, vector<2x16x16xf32>, vector<2x16x16xf32>, vector<2x16x16xf32>, vector<2x16x16xf32>, vector<2x16x16xf32>, vector<2x16x16xf32>, vector<2x16x16xf32>, vector<2x16x16xf32>, vector<2x16x16xf32> -> vector<24x16x16xf32>
    %31 = vector.extract_strided_slice %4 {offsets = [0, 0, 384], sizes = [2, 16, 16], strides = [1, 1, 1]} : vector<2x16x576xf32> to vector<2x16x16xf32>
    %32 = vector.extract_strided_slice %4 {offsets = [0, 0, 400], sizes = [2, 16, 16], strides = [1, 1, 1]} : vector<2x16x576xf32> to vector<2x16x16xf32>
    %33 = vector.extract_strided_slice %4 {offsets = [0, 0, 416], sizes = [2, 16, 16], strides = [1, 1, 1]} : vector<2x16x576xf32> to vector<2x16x16xf32>
    %34 = vector.extract_strided_slice %4 {offsets = [0, 0, 432], sizes = [2, 16, 16], strides = [1, 1, 1]} : vector<2x16x576xf32> to vector<2x16x16xf32>
    %35 = vector.extract_strided_slice %4 {offsets = [0, 0, 448], sizes = [2, 16, 16], strides = [1, 1, 1]} : vector<2x16x576xf32> to vector<2x16x16xf32>
    %36 = vector.extract_strided_slice %4 {offsets = [0, 0, 464], sizes = [2, 16, 16], strides = [1, 1, 1]} : vector<2x16x576xf32> to vector<2x16x16xf32>
    %37 = vector.extract_strided_slice %4 {offsets = [0, 0, 480], sizes = [2, 16, 16], strides = [1, 1, 1]} : vector<2x16x576xf32> to vector<2x16x16xf32>
    %38 = vector.extract_strided_slice %4 {offsets = [0, 0, 496], sizes = [2, 16, 16], strides = [1, 1, 1]} : vector<2x16x576xf32> to vector<2x16x16xf32>
    %39 = vector.extract_strided_slice %4 {offsets = [0, 0, 512], sizes = [2, 16, 16], strides = [1, 1, 1]} : vector<2x16x576xf32> to vector<2x16x16xf32>
    %40 = vector.extract_strided_slice %4 {offsets = [0, 0, 528], sizes = [2, 16, 16], strides = [1, 1, 1]} : vector<2x16x576xf32> to vector<2x16x16xf32>
    %41 = vector.extract_strided_slice %4 {offsets = [0, 0, 544], sizes = [2, 16, 16], strides = [1, 1, 1]} : vector<2x16x576xf32> to vector<2x16x16xf32>
    %42 = vector.extract_strided_slice %4 {offsets = [0, 0, 560], sizes = [2, 16, 16], strides = [1, 1, 1]} : vector<2x16x576xf32> to vector<2x16x16xf32>
    %43 = tpu.concatenate %31, %32, %33, %34, %35, %36, %37, %38, %39, %40, %41, %42 in 0 : vector<2x16x16xf32>, vector<2x16x16xf32>, vector<2x16x16xf32>, vector<2x16x16xf32>, vector<2x16x16xf32>, vector<2x16x16xf32>, vector<2x16x16xf32>, vector<2x16x16xf32>, vector<2x16x16xf32>, vector<2x16x16xf32>, vector<2x16x16xf32>, vector<2x16x16xf32> -> vector<24x16x16xf32>
    "tpu.trace_start"() <{level = 10 : i32, message = "gqd,gkd->gqk"}> : () -> ()
    %cst_4 = arith.constant dense<0.000000e+00> : vector<24x16x16xf32>
    %44 = tpu.matmul %17, %30, %cst_4 {dimension_numbers = #tpu.dot_dimension_numbers<[2], [2], [1], [1], [0, 0, 0, 1, 1, 1], [0], [0]>} : vector<24x16x16xf32>, vector<24x16x16xf32>, vector<24x16x16xf32> -> vector<24x16x16xf32>
    "tpu.trace_stop"() : () -> ()
    %cst_5 = arith.constant dense<0xFF800000> : vector<24x16xf32>
    %45 = vector.multi_reduction <maximumf>, %44, %cst_5 [2] : vector<24x16x16xf32> to vector<24x16xf32>
    %46 = vector.shape_cast %45 : vector<24x16xf32> to vector<24x16x1xf32>
    %47 = vector.broadcast %46 : vector<24x16x1xf32> to vector<24x16x16xf32>
    %48 = arith.subf %44, %47 : vector<24x16x16xf32>
    %49 = math.exp %48 : vector<24x16x16xf32>
    %cst_6 = arith.constant dense<0.000000e+00> : vector<24x16xf32>
    %50 = vector.multi_reduction <add>, %49, %cst_6 [2] : vector<24x16x16xf32> to vector<24x16xf32>
    %51 = vector.shape_cast %50 : vector<24x16xf32> to vector<24x16x1xf32>
    "tpu.trace_start"() <{level = 10 : i32, message = "gqk,gkd->gqd"}> : () -> ()
    %cst_7 = arith.constant dense<0.000000e+00> : vector<24x16x16xf32>
    %52 = tpu.matmul %49, %43, %cst_7 {dimension_numbers = #tpu.dot_dimension_numbers<[2], [1], [1], [2], [0, 0, 0, 1, 1, 2], [0], [0]>} : vector<24x16x16xf32>, vector<24x16x16xf32>, vector<24x16x16xf32> -> vector<24x16x16xf32>
    "tpu.trace_stop"() : () -> ()
    %53 = tpu.reciprocal %51 : vector<24x16x1xf32> -> vector<24x16x1xf32>
    %54 = vector.broadcast %53 : vector<24x16x1xf32> to vector<24x16x16xf32>
    %55 = arith.mulf %52, %54 : vector<24x16x16xf32>
    %56 = vector.extract_strided_slice %55 {offsets = [0, 0, 0], sizes = [2, 16, 16], strides = [1, 1, 1]} : vector<24x16x16xf32> to vector<2x16x16xf32>
    %57 = vector.extract_strided_slice %55 {offsets = [2, 0, 0], sizes = [2, 16, 16], strides = [1, 1, 1]} : vector<24x16x16xf32> to vector<2x16x16xf32>
    %58 = vector.extract_strided_slice %55 {offsets = [4, 0, 0], sizes = [2, 16, 16], strides = [1, 1, 1]} : vector<24x16x16xf32> to vector<2x16x16xf32>
    %59 = vector.extract_strided_slice %55 {offsets = [6, 0, 0], sizes = [2, 16, 16], strides = [1, 1, 1]} : vector<24x16x16xf32> to vector<2x16x16xf32>
    %60 = vector.extract_strided_slice %55 {offsets = [8, 0, 0], sizes = [2, 16, 16], strides = [1, 1, 1]} : vector<24x16x16xf32> to vector<2x16x16xf32>
    %61 = vector.extract_strided_slice %55 {offsets = [10, 0, 0], sizes = [2, 16, 16], strides = [1, 1, 1]} : vector<24x16x16xf32> to vector<2x16x16xf32>
    %62 = vector.extract_strided_slice %55 {offsets = [12, 0, 0], sizes = [2, 16, 16], strides = [1, 1, 1]} : vector<24x16x16xf32> to vector<2x16x16xf32>
    %63 = vector.extract_strided_slice %55 {offsets = [14, 0, 0], sizes = [2, 16, 16], strides = [1, 1, 1]} : vector<24x16x16xf32> to vector<2x16x16xf32>
    %64 = vector.extract_strided_slice %55 {offsets = [16, 0, 0], sizes = [2, 16, 16], strides = [1, 1, 1]} : vector<24x16x16xf32> to vector<2x16x16xf32>
    %65 = vector.extract_strided_slice %55 {offsets = [18, 0, 0], sizes = [2, 16, 16], strides = [1, 1, 1]} : vector<24x16x16xf32> to vector<2x16x16xf32>
    %66 = vector.extract_strided_slice %55 {offsets = [20, 0, 0], sizes = [2, 16, 16], strides = [1, 1, 1]} : vector<24x16x16xf32> to vector<2x16x16xf32>
    %67 = vector.extract_strided_slice %55 {offsets = [22, 0, 0], sizes = [2, 16, 16], strides = [1, 1, 1]} : vector<24x16x16xf32> to vector<2x16x16xf32>
    %68 = tpu.concatenate %56, %57, %58, %59, %60, %61, %62, %63, %64, %65, %66, %67 in 2 : vector<2x16x16xf32>, vector<2x16x16xf32>, vector<2x16x16xf32>, vector<2x16x16xf32>, vector<2x16x16xf32>, vector<2x16x16xf32>, vector<2x16x16xf32>, vector<2x16x16xf32>, vector<2x16x16xf32>, vector<2x16x16xf32>, vector<2x16x16xf32>, vector<2x16x16xf32> -> vector<2x16x192xf32>
    %69 = vector.shape_cast %68 : vector<2x16x192xf32> to vector<32x192xf32>
    %c0_8 = arith.constant 0 : index
    %c0_9 = arith.constant 0 : index
    %70 = vector.load %arg3[%c0_8, %c0_9] : memref<192x192xf32, #tpu.memory_space<vmem>>, vector<192x192xf32>
    %cst_10 = arith.constant dense<0.000000e+00> : vector<32x192xf32>
    %71 = tpu.matmul %69, %70, %cst_10 {dimension_numbers = #tpu.dot_dimension_numbers<[1], [0], [0], [1], [0, 0, 1, 1], [], []>} : vector<32x192xf32>, vector<192x192xf32>, vector<32x192xf32> -> vector<32x192xf32>
    %c0_11 = arith.constant 0 : index
    %c0_12 = arith.constant 0 : index
    %72 = vector.load %arg4[%c0_11, %c0_12] : memref<1x192xf32, #tpu.memory_space<vmem>>, vector<1x192xf32>
    %73 = vector.broadcast %72 : vector<1x192xf32> to vector<32x192xf32>
    %74 = arith.addf %71, %73 : vector<32x192xf32>
    %75 = vector.shape_cast %74 : vector<32x192xf32> to vector<2x16x192xf32>
    %c0_13 = arith.constant 0 : index
    %c0_14 = arith.constant 0 : index
    %c0_15 = arith.constant 0 : index
    %76 = vector.load %arg5[%c0_13, %c0_14, %c0_15] : memref<2x16x192xf32, #tpu.memory_space<vmem>>, vector<2x16x192xf32>
    tpu.vector_store %arg5[%c0_13, %c0_14, %c0_15], %75 {strides = array<i32>} : memref<2x16x192xf32, #tpu.memory_space<vmem>>, vector<2x16x192xf32>,
    return
  }
  func.func @transform_0(%arg0: i32) -> (i32, i32, i32) {
    %c0_i32 = arith.constant 0 : i32
    %c0_i32_0 = arith.constant 0 : i32
    %c0_i32_1 = arith.constant 0 : i32
    return %arg0, %c0_i32, %c0_i32_0 : i32, i32, i32
  }
  func.func @transform_1(%arg0: i32) -> (i32, i32) {
    %c0_i32 = arith.constant 0 : i32
    %c0_i32_0 = arith.constant 0 : i32
    %c0_i32_1 = arith.constant 0 : i32
    return %c0_i32, %c0_i32_0 : i32, i32
  }
  func.func @transform_2(%arg0: i32) -> (i32, i32) {
    %c0_i32 = arith.constant 0 : i32
    %c0_i32_0 = arith.constant 0 : i32
    %c0_i32_1 = arith.constant 0 : i32
    return %c0_i32, %c0_i32_0 : i32, i32
  }
  func.func @transform_3(%arg0: i32) -> (i32, i32) {
    %c0_i32 = arith.constant 0 : i32
    %c0_i32_0 = arith.constant 0 : i32
    %c0_i32_1 = arith.constant 0 : i32
    return %c0_i32, %c0_i32_0 : i32, i32
  }
  func.func @transform_4(%arg0: i32) -> (i32, i32, i32) {
    %c0_i32 = arith.constant 0 : i32
    %c0_i32_0 = arith.constant 0 : i32
    %c0_i32_1 = arith.constant 0 : i32
    return %arg0, %c0_i32, %c0_i32_0 : i32, i32, i32
  }
}

module attributes {stable_mosaic.version = 11 : i64} {
  func.func @_msa_kernel(%arg0: i32, %arg1: memref<2x16x192xf32, #tpu.memory_space<vmem>>, %arg2: memref<192x576xf32, #tpu.memory_space<vmem>>, %arg3: memref<192x192xf32, #tpu.memory_space<vmem>>, %arg4: memref<1x192xf32, #tpu.memory_space<vmem>>, %arg5: memref<2x16x192xf32, #tpu.memory_space<vmem>>) attributes {dimension_semantics = [#tpu.dimension_semantics<parallel>], iteration_bounds = array<i64: 1>, scalar_prefetch = 0 : i64, scratch_operands = 0 : i64, tpu.core_type = #tpu.core_type<tc>, window_params = [{transform_indices = @transform_0, window_bounds = array<i64: 2, 16, 192>}, {pipeline_mode = #tpu.pipeline_mode<synchronous>, transform_indices = @transform_1, window_bounds = array<i64: 192, 576>}, {pipeline_mode = #tpu.pipeline_mode<synchronous>, transform_indices = @transform_2, window_bounds = array<i64: 192, 192>}, {pipeline_mode = #tpu.pipeline_mode<synchronous>, transform_indices = @transform_3, window_bounds = array<i64: 1, 192>}, {transform_indices = @transform_4, window_bounds = array<i64: 2, 16, 192>}]} {
    %c0 = arith.constant 0 : index
    %c0_0 = arith.constant 0 : index
    %c0_1 = arith.constant 0 : index
    %0 = vector.load %arg1[%c0, %c0_0, %c0_1] : memref<2x16x192xf32, #tpu.memory_space<vmem>>, vector<2x16x192xf32>
    %1 = vector.shape_cast %0 : vector<2x16x192xf32> to vector<32x192xf32>
    %c0_2 = arith.constant 0 : index
    %c0_3 = arith.constant 0 : index
    %2 = vector.load %arg2[%c0_2, %c0_3] : memref<192x576xf32, #tpu.memory_space<vmem>>, vector<192x576xf32>
    %cst = arith.constant dense<0.000000e+00> : vector<32x576xf32>
    %3 = tpu.matmul %1, %2, %cst {dimension_numbers = #tpu.dot_dimension_numbers<[1], [0], [0], [1], [0, 0, 1, 1], [], []>} : vector<32x192xf32>, vector<192x576xf32>, vector<32x576xf32> -> vector<32x576xf32>
    %4 = vector.shape_cast %3 : vector<32x576xf32> to vector<2x16x576xf32>
    %5 = vector.extract_strided_slice %4 {offsets = [0, 0, 0], sizes = [2, 16, 16], strides = [1, 1, 1]} : vector<2x16x576xf32> to vector<2x16x16xf32>
    %6 = vector.extract_strided_slice %4 {offsets = [0, 0, 16], sizes = [2, 16, 16], strides = [1, 1, 1]} : vector<2x16x576xf32> to vector<2x16x16xf32>
    %7 = vector.extract_strided_slice %4 {offsets = [0, 0, 32], sizes = [2, 16, 16], strides = [1, 1, 1]} : vector<2x16x576xf32> to vector<2x16x16xf32>
    %8 = vector.extract_strided_slice %4 {offsets = [0, 0, 48], sizes = [2, 16, 16], strides = [1, 1, 1]} : vector<2x16x576xf32> to vector<2x16x16xf32>
    %9 = vector.extract_strided_slice %4 {offsets = [0, 0, 64], sizes = [2, 16, 16], strides = [1, 1, 1]} : vector<2x16x576xf32> to vector<2x16x16xf32>
    %10 = vector.extract_strided_slice %4 {offsets = [0, 0, 80], sizes = [2, 16, 16], strides = [1, 1, 1]} : vector<2x16x576xf32> to vector<2x16x16xf32>
    %11 = vector.extract_strided_slice %4 {offsets = [0, 0, 96], sizes = [2, 16, 16], strides = [1, 1, 1]} : vector<2x16x576xf32> to vector<2x16x16xf32>
    %12 = vector.extract_strided_slice %4 {offsets = [0, 0, 112], sizes = [2, 16, 16], strides = [1, 1, 1]} : vector<2x16x576xf32> to vector<2x16x16xf32>
    %13 = vector.extract_strided_slice %4 {offsets = [0, 0, 128], sizes = [2, 16, 16], strides = [1, 1, 1]} : vector<2x16x576xf32> to vector<2x16x16xf32>
    %14 = vector.extract_strided_slice %4 {offsets = [0, 0, 144], sizes = [2, 16, 16], strides = [1, 1, 1]} : vector<2x16x576xf32> to vector<2x16x16xf32>
    %15 = vector.extract_strided_slice %4 {offsets = [0, 0, 160], sizes = [2, 16, 16], strides = [1, 1, 1]} : vector<2x16x576xf32> to vector<2x16x16xf32>
    %16 = vector.extract_strided_slice %4 {offsets = [0, 0, 176], sizes = [2, 16, 16], strides = [1, 1, 1]} : vector<2x16x576xf32> to vector<2x16x16xf32>
    %17 = tpu.concatenate %5, %6, %7, %8, %9, %10, %11, %12, %13, %14, %15, %16 in 0 : vector<2x16x16xf32>, vector<2x16x16xf32>, vector<2x16x16xf32>, vector<2x16x16xf32>, vector<2x16x16xf32>, vector<2x16x16xf32>, vector<2x16x16xf32>, vector<2x16x16xf32>, vector<2x16x16xf32>, vector<2x16x16xf32>, vector<2x16x16xf32>, vector<2x16x16xf32> -> vector<24x16x16xf32>
    %18 = vector.extract_strided_slice %4 {offsets = [0, 0, 192], sizes = [2, 16, 16], strides = [1, 1, 1]} : vector<2x16x576xf32> to vector<2x16x16xf32>
    %19 = vector.extract_strided_slice %4 {offsets = [0, 0, 208], sizes = [2, 16, 16], strides = [1, 1, 1]} : vector<2x16x576xf32> to vector<2x16x16xf32>
    %20 = vector.extract_strided_slice %4 {offsets = [0, 0, 224], sizes = [2, 16, 16], strides = [1, 1, 1]} : vector<2x16x576xf32> to vector<2x16x16xf32>
    %21 = vector.extract_strided_slice %4 {offsets = [0, 0, 240], sizes = [2, 16, 16], strides = [1, 1, 1]} : vector<2x16x576xf32> to vector<2x16x16xf32>
    %22 = vector.extract_strided_slice %4 {offsets = [0, 0, 256], sizes = [2, 16, 16], strides = [1, 1, 1]} : vector<2x16x576xf32> to vector<2x16x16xf32>
    %23 = vector.extract_strided_slice %4 {offsets = [0, 0, 272], sizes = [2, 16, 16], strides = [1, 1, 1]} : vector<2x16x576xf32> to vector<2x16x16xf32>
    %24 = vector.extract_strided_slice %4 {offsets = [0, 0, 288], sizes = [2, 16, 16], strides = [1, 1, 1]} : vector<2x16x576xf32> to vector<2x16x16xf32>
    %25 = vector.extract_strided_slice %4 {offsets = [0, 0, 304], sizes = [2, 16, 16], strides = [1, 1, 1]} : vector<2x16x576xf32> to vector<2x16x16xf32>
    %26 = vector.extract_strided_slice %4 {offsets = [0, 0, 320], sizes = [2, 16, 16], strides = [1, 1, 1]} : vector<2x16x576xf32> to vector<2x16x16xf32>
    %27 = vector.extract_strided_slice %4 {offsets = [0, 0, 336], sizes = [2, 16, 16], strides = [1, 1, 1]} : vector<2x16x576xf32> to vector<2x16x16xf32>
    %28 = vector.extract_strided_slice %4 {offsets = [0, 0, 352], sizes = [2, 16, 16], strides = [1, 1, 1]} : vector<2x16x576xf32> to vector<2x16x16xf32>
    %29 = vector.extract_strided_slice %4 {offsets = [0, 0, 368], sizes = [2, 16, 16], strides = [1, 1, 1]} : vector<2x16x576xf32> to vector<2x16x16xf32>
    %30 = tpu.concatenate %18, %19, %20, %21, %22, %23, %24, %25, %26, %27, %28, %29 in 0 : vector<2x16x16xf32>, vector<2x16x16xf32>, vector<2x16x16xf32>, vector<2x16x16xf32>, vector<2x16x16xf32>, vector<2x16x16xf32>, vector<2x16x16xf32>, vector<2x16x16xf32>, vector<2x16x16xf32>, vector<2x16x16xf32>, vector<2x16x16xf32>, vector<2x16x16xf32> -> vector<24x16x16xf32>
    %31 = vector.extract_strided_slice %4 {offsets = [0, 0, 384], sizes = [2, 16, 16], strides = [1, 1, 1]} : vector<2x16x576xf32> to vector<2x16x16xf32>
    %32 = vector.extract_strided_slice %4 {offsets = [0, 0, 400], sizes = [2, 16, 16], strides = [1, 1, 1]} : vector<2x16x576xf32> to vector<2x16x16xf32>
    %33 = vector.extract_strided_slice %4 {offsets = [0, 0, 416], sizes = [2, 16, 16], strides = [1, 1, 1]} : vector<2x16x576xf32> to vector<2x16x16xf32>
    %34 = vector.extract_strided_slice %4 {offsets = [0, 0, 432], sizes = [2, 16, 16], strides = [1, 1, 1]} : vector<2x16x576xf32> to vector<2x16x16xf32>
    %35 = vector.extract_strided_slice %4 {offsets = [0, 0, 448], sizes = [2, 16, 16], strides = [1, 1, 1]} : vector<2x16x576xf32> to vector<2x16x16xf32>
    %36 = vector.extract_strided_slice %4 {offsets = [0, 0, 464], sizes = [2, 16, 16], strides = [1, 1, 1]} : vector<2x16x576xf32> to vector<2x16x16xf32>
    %37 = vector.extract_strided_slice %4 {offsets = [0, 0, 480], sizes = [2, 16, 16], strides = [1, 1, 1]} : vector<2x16x576xf32> to vector<2x16x16xf32>
    %38 = vector.extract_strided_slice %4 {offsets = [0, 0, 496], sizes = [2, 16, 16], strides = [1, 1, 1]} : vector<2x16x576xf32> to vector<2x16x16xf32>
    %39 = vector.extract_strided_slice %4 {offsets = [0, 0, 512], sizes = [2, 16, 16], strides = [1, 1, 1]} : vector<2x16x576xf32> to vector<2x16x16xf32>
    %40 = vector.extract_strided_slice %4 {offsets = [0, 0, 528], sizes = [2, 16, 16], strides = [1, 1, 1]} : vector<2x16x576xf32> to vector<2x16x16xf32>
    %41 = vector.extract_strided_slice %4 {offsets = [0, 0, 544], sizes = [2, 16, 16], strides = [1, 1, 1]} : vector<2x16x576xf32> to vector<2x16x16xf32>
    %42 = vector.extract_strided_slice %4 {offsets = [0, 0, 560], sizes = [2, 16, 16], strides = [1, 1, 1]} : vector<2x16x576xf32> to vector<2x16x16xf32>
    %43 = tpu.concatenate %31, %32, %33, %34, %35, %36, %37, %38, %39, %40, %41, %42 in 0 : vector<2x16x16xf32>, vector<2x16x16xf32>, vector<2x16x16xf32>, vector<2x16x16xf32>, vector<2x16x16xf32>, vector<2x16x16xf32>, vector<2x16x16xf32>, vector<2x16x16xf32>, vector<2x16x16xf32>, vector<2x16x16xf32>, vector<2x16x16xf32>, vector<2x16x16xf32> -> vector<24x16x16xf32>
    "tpu.trace_start"() <{level = 10 : i32, message = "gqd,gkd->gqk"}> : () -> ()
    %cst_4 = arith.constant dense<0.000000e+00> : vector<24x16x16xf32>
    %44 = tpu.matmul %17, %30, %cst_4 {dimension_numbers = #tpu.dot_dimension_numbers<[2], [2], [1], [1], [0, 0, 0, 1, 1, 1], [0], [0]>} : vector<24x16x16xf32>, vector<24x16x16xf32>, vector<24x16x16xf32> -> vector<24x16x16xf32>
    "tpu.trace_stop"() : () -> ()
    %cst_5 = arith.constant dense<0xFF800000> : vector<24x16xf32>
    %45 = vector.multi_reduction <maximumf>, %44, %cst_5 [2] : vector<24x16x16xf32> to vector<24x16xf32>
    %46 = vector.shape_cast %45 : vector<24x16xf32> to vector<24x16x1xf32>
    %47 = vector.broadcast %46 : vector<24x16x1xf32> to vector<24x16x16xf32>
    %48 = arith.subf %44, %47 : vector<24x16x16xf32>
    %49 = math.exp %48 : vector<24x16x16xf32>
    %cst_6 = arith.constant dense<0.000000e+00> : vector<24x16xf32>
    %50 = vector.multi_reduction <add>, %49, %cst_6 [2] : vector<24x16x16xf32> to vector<24x16xf32>
    %51 = vector.shape_cast %50 : vector<24x16xf32> to vector<24x16x1xf32>
    "tpu.trace_start"() <{level = 10 : i32, message = "gqk,gkd->gqd"}> : () -> ()
    %cst_7 = arith.constant dense<0.000000e+00> : vector<24x16x16xf32>
    %52 = tpu.matmul %49, %43, %cst_7 {dimension_numbers = #tpu.dot_dimension_numbers<[2], [1], [1], [2], [0, 0, 0, 1, 1, 2], [0], [0]>} : vector<24x16x16xf32>, vector<24x16x16xf32>, vector<24x16x16xf32> -> vector<24x16x16xf32>
    "tpu.trace_stop"() : () -> ()
    %53 = tpu.reciprocal %51 : vector<24x16x1xf32> -> vector<24x16x1xf32>
    %54 = vector.broadcast %53 : vector<24x16x1xf32> to vector<24x16x16xf32>
    %55 = arith.mulf %52, %54 : vector<24x16x16xf32>
    %56 = vector.shape_cast %55 : vector<24x16x16xf32> to vector<12x2x16x16xf32>
    %57 = vector.shape_cast %56 : vector<12x2x16x16xf32> to vector<12x32x16xf32>
    %c0_8 = arith.constant 0 : index
    %c0_9 = arith.constant 0 : index
    %58 = vector.load %arg3[%c0_8, %c0_9] : memref<192x192xf32, #tpu.memory_space<vmem>>, vector<192x192xf32>
    %59 = vector.shape_cast %58 : vector<192x192xf32> to vector<12x16x192xf32>
    "tpu.trace_start"() <{level = 10 : i32, message = "hrd,hdc->hrc"}> : () -> ()
    %cst_10 = arith.constant dense<0.000000e+00> : vector<12x32x192xf32>
    %60 = tpu.matmul %57, %59, %cst_10 {dimension_numbers = #tpu.dot_dimension_numbers<[2], [1], [1], [2], [0, 0, 0, 1, 1, 2], [0], [0]>} : vector<12x32x16xf32>, vector<12x16x192xf32>, vector<12x32x192xf32> -> vector<12x32x192xf32>
    "tpu.trace_stop"() : () -> ()
    %cst_11 = arith.constant dense<0.000000e+00> : vector<32x192xf32>
    %61 = vector.multi_reduction <add>, %60, %cst_11 [0] : vector<12x32x192xf32> to vector<32x192xf32>
    %c0_12 = arith.constant 0 : index
    %c0_13 = arith.constant 0 : index
    %62 = vector.load %arg4[%c0_12, %c0_13] : memref<1x192xf32, #tpu.memory_space<vmem>>, vector<1x192xf32>
    %63 = vector.broadcast %62 : vector<1x192xf32> to vector<32x192xf32>
    %64 = arith.addf %61, %63 : vector<32x192xf32>
    %65 = vector.shape_cast %64 : vector<32x192xf32> to vector<2x16x192xf32>
    %c0_14 = arith.constant 0 : index
    %c0_15 = arith.constant 0 : index
    %c0_16 = arith.constant 0 : index
    %66 = vector.load %arg5[%c0_14, %c0_15, %c0_16] : memref<2x16x192xf32, #tpu.memory_space<vmem>>, vector<2x16x192xf32>
    tpu.vector_store %arg5[%c0_14, %c0_15, %c0_16], %65 {strides = array<i32>} : memref<2x16x192xf32, #tpu.memory_space<vmem>>, vector<2x16x192xf32>,
    return
  }
  func.func @transform_0(%arg0: i32) -> (i32, i32, i32) {
    %c0_i32 = arith.constant 0 : i32
    %c0_i32_0 = arith.constant 0 : i32
    %c0_i32_1 = arith.constant 0 : i32
    return %arg0, %c0_i32, %c0_i32_0 : i32, i32, i32
  }
  func.func @transform_1(%arg0: i32) -> (i32, i32) {
    %c0_i32 = arith.constant 0 : i32
    %c0_i32_0 = arith.constant 0 : i32
    %c0_i32_1 = arith.constant 0 : i32
    return %c0_i32, %c0_i32_0 : i32, i32
  }
  func.func @transform_2(%arg0: i32) -> (i32, i32) {
    %c0_i32 = arith.constant 0 : i32
    %c0_i32_0 = arith.constant 0 : i32
    %c0_i32_1 = arith.constant 0 : i32
    return %c0_i32, %c0_i32_0 : i32, i32
  }
  func.func @transform_3(%arg0: i32) -> (i32, i32) {
    %c0_i32 = arith.constant 0 : i32
    %c0_i32_0 = arith.constant 0 : i32
    %c0_i32_1 = arith.constant 0 : i32
    return %c0_i32, %c0_i32_0 : i32, i32
  }
  func.func @transform_4(%arg0: i32) -> (i32, i32, i32) {
    %c0_i32 = arith.constant 0 : i32
    %c0_i32_0 = arith.constant 0 : i32
    %c0_i32_1 = arith.constant 0 : i32
    return %arg0, %c0_i32, %c0_i32_0 : i32, i32, i32
  }
}

</mosaic_0001>

<llo_original>
// kernel: msa_forward.1
$region0: #{msa_forward.1}
  #allocation0 [shape = 'u32[]', space=smem, size = 0x4, offset = 0x4, fixed_abs, tag = 'smem constant byte address 0x4 - core index']
  #allocation1 [shape = 'u32[144,128]{1,0:T(1,128)}', space=vmem, size = 0x12000, scoped, tag = 'internal scratch']
  %s0 = inlined_call_operand.hbm [shape: f32[2,16,192], index: 0, kind: input, shape index: {}]
  %s1 = inlined_call_operand.hbm [shape: f32[192,576], index: 1, kind: input, shape index: {}]
  %s2 = inlined_call_operand.hbm [shape: f32[192,192], index: 2, kind: input, shape index: {}]
  %s3 = inlined_call_operand.vmem [shape: f32[1,192], index: 3, kind: input, shape index: {}]
  %s4 = inlined_call_operand.hbm [shape: f32[2,16,192], index: 4, kind: output, shape index: {}]
  %s5 = sld [smem:[#allocation0]]
  $region38: #{msa_forward.1} parent=0
    _
  %s7 = ssub.s32 1, %s5
  %s8 = scalar_select 0, %s7, %s5
  $region1: #{msa_forward.1} parent=0
    #allocation2 [shape = 'u8[32768]{0}', space=vmem, size = 0x8000, scoped, tag = 'input window, operand 0, single buffered']
    #allocation3 [shape = 's32[1]{0}', space=sflag, size = 0x4, scoped, tag = 'scoped memory for msa_forward.1']
    #allocation4 [shape = 's32[1]{0}', space=sflag, size = 0x4, scoped, tag = 'scoped memory for msa_forward.1']
    #allocation5 [shape = 'u8[491520]{0}', space=vmem, size = 0x78000, scoped, tag = 'input window, operand 1, single buffered']
    #allocation6 [shape = 's32[1]{0}', space=sflag, size = 0x4, scoped, tag = 'scoped memory for msa_forward.1']
    #allocation7 [shape = 'u8[196608]{0}', space=vmem, size = 0x30000, scoped, tag = 'input window, operand 2, single buffered']
    #allocation8 [shape = 'u8[32768]{0}', space=vmem, size = 0x8000, scoped, tag = 'output window, operand 0, single buffered']
    %9 = vsyncpa [#allocation3], 0
    %10 = vsyncpa [#allocation6], 0
    %11 = vsyncpa [#allocation4], 0
    // Predicated region
    $region2: #{msa_forward.1} parent=1 // pred_check
      _
    $region3: #{msa_forward.1} parent=1 // pred_check_branch
      %13 = sbr.rel (0) target = $region5
    $region4: #{msa_forward.1} parent=1 // pred_region
      %s15 = ssub.s32 1024, 1024
      %16 = vsyncadd [#allocation3], %s15
      %s17 = sshll.u32 [#allocation2], 4
      %s18 = int_to_ptr.vmem [resolvable:$true] %s17
      %23 = dma.hbm_to_vmem [thread:$0]  %s0, 1024, %s18, [#allocation3], 256, 256, 16
    $region5: #{msa_forward.1} parent=1 // pred_fallthru
      _
    // Predicated region
    $region6: #{msa_forward.1} parent=1 // pred_check
      _
    $region7: #{msa_forward.1} parent=1 // pred_check_branch
      %25 = sbr.rel (0) target = $region9
    $region8: #{msa_forward.1} parent=1 // pred_region
      %s27 = ssub.s32 15360, 15360
      %28 = vsyncadd [#allocation6], %s27
      %s29 = sshll.u32 [#allocation5], 4
      %s30 = int_to_ptr.vmem [resolvable:$true] %s29
      %35 = dma.hbm_to_vmem [thread:$0]  %s1, 15360, %s30, [#allocation6], 640, 640, 40
    $region9: #{msa_forward.1} parent=1 // pred_fallthru
      _
    // Predicated region
    $region10: #{msa_forward.1} parent=1 // pred_check
      _
    $region11: #{msa_forward.1} parent=1 // pred_check_branch
      %37 = sbr.rel (0) target = $region13
    $region12: #{msa_forward.1} parent=1 // pred_region
      %s39 = ssub.s32 6144, 6144
      %40 = vsyncadd [#allocation6], %s39
      %s41 = sshll.u32 [#allocation7], 4
      %s42 = int_to_ptr.vmem [resolvable:$true] %s41
      %47 = dma.hbm_to_vmem [thread:$0]  %s2, 6144, %s42, [#allocation6], 256, 256, 16
    $region13: #{msa_forward.1} parent=1 // pred_fallthru
      _
    // Predicated region
    $region14: #{msa_forward.1} parent=1 // pred_check
      _
    $region15: #{msa_forward.1} parent=1 // pred_check_branch
      %49 = sbr.rel (0) target = $region17
    $region16: #{msa_forward.1} parent=1 // pred_region
      _
    $region17: #{msa_forward.1} parent=1 // pred_fallthru
      _
    // Predicated region
    $region18: #{msa_forward.1} parent=1 // pred_check
      _
    $region19: #{msa_forward.1} parent=1 // pred_check_branch
      %51 = sbr.rel (0) target = $region21
    $region20: #{msa_forward.1} parent=1 // pred_region
      %52 = dma.done [#allocation3], 1024
    $region21: #{msa_forward.1} parent=1 // pred_fallthru
      _
    // Predicated region
    $region22: #{msa_forward.1} parent=1 // pred_check
      _
    $region23: #{msa_forward.1} parent=1 // pred_check_branch
      %54 = sbr.rel (0) target = $region25
    $region24: #{msa_forward.1} parent=1 // pred_region
      %55 = dma.done [#allocation6], 15360
    $region25: #{msa_forward.1} parent=1 // pred_fallthru
      _
    // Predicated region
    $region26: #{msa_forward.1} parent=1 // pred_check
      _
    $region27: #{msa_forward.1} parent=1 // pred_check_branch
      %57 = sbr.rel (0) target = $region29
    $region28: #{msa_forward.1} parent=1 // pred_region
      %58 = dma.done [#allocation6], 6144
    $region29: #{msa_forward.1} parent=1 // pred_fallthru
      _
    %v59 = vld [vmem:[#allocation2] sm:$0xff]
    %v60 = vld [vmem:[#allocation2 + $0x8] sm:$0xff]
    %v61 = vld [vmem:[#allocation2 + $0x10] sm:$0xff]
    %v62 = vld [vmem:[#allocation2 + $0x18] sm:$0xff]
    %v63 = vld [vmem:[#allocation2 + $0x20] sm:$0xff]
    %v64 = vld [vmem:[#allocation2 + $0x28] sm:$0xff]
    %v65 = vld [vmem:[#allocation2 + $0x30] sm:$0xff]
    %v66 = vld [vmem:[#allocation2 + $0x38] sm:$0xff]
    %v67 = vld [vmem:[#allocation5] sm:$0xff]
    %v68 = vld [vmem:[#allocation5 + $0x8] sm:$0xff]
    %v69 = vld [vmem:[#allocation5 + $0x10] sm:$0xff]
    %v70 = vld [vmem:[#allocation5 + $0x18] sm:$0xff]
    %v71 = vld [vmem:[#allocation5 + $0x20] sm:$0xff]
    %v72 = vld [vmem:[#allocation5 + $0x28] sm:$0xff]
    %v73 = vld [vmem:[#allocation5 + $0x30] sm:$0xff]
    %v74 = vld [vmem:[#allocation5 + $0x38] sm:$0xff]
    %v75 = vld [vmem:[#allocation5 + $0x40] sm:$0xff]
    %v76 = vld [vmem:[#allocation5 + $0x48] sm:$0xff]
    %v77 = vld [vmem:[#allocation5 + $0x50] sm:$0xff]
    %v78 = vld [vmem:[#allocation5 + $0x58] sm:$0xff]
    %v79 = vld [vmem:[#allocation5 + $0x60] sm:$0xff]
    %v80 = vld [vmem:[#allocation5 + $0x68] sm:$0xff]
    %v81 = vld [vmem:[#allocation5 + $0x70] sm:$0xff]
    %v82 = vld [vmem:[#allocation5 + $0x78] sm:$0xff]
    %v83 = vld [vmem:[#allocation5 + $0x80] sm:$0xff]
    %v84 = vld [vmem:[#allocation5 + $0x88] sm:$0xff]
    %v85 = vld [vmem:[#allocation5 + $0x90] sm:$0xff]
    %v86 = vld [vmem:[#allocation5 + $0x98] sm:$0xff]
    %v87 = vld [vmem:[#allocation5 + $0xa0] sm:$0xff]
    %v88 = vld [vmem:[#allocation5 + $0xa8] sm:$0xff]
    %v89 = vld [vmem:[#allocation5 + $0xb0] sm:$0xff]
    %v90 = vld [vmem:[#allocation5 + $0xb8] sm:$0xff]
    %v91 = vld [vmem:[#allocation5 + $0xc0] sm:$0xff]
    %v92 = vld [vmem:[#allocation5 + $0xc8] sm:$0xff]
    %v93 = vld [vmem:[#allocation5 + $0xd0] sm:$0xff]
    %v94 = vld [vmem:[#allocation5 + $0xd8] sm:$0xff]
    %v95 = vld [vmem:[#allocation5 + $0xe0] sm:$0xff]
    %v96 = vld [vmem:[#allocation5 + $0xe8] sm:$0xff]
    %v97 = vld [vmem:[#allocation5 + $0xf0] sm:$0xff]
    %v98 = vld [vmem:[#allocation5 + $0xf8] sm:$0xff]
    %v99 = vld [vmem:[#allocation5 + $0x100] sm:$0xff]
    %v100 = vld [vmem:[#allocation5 + $0x108] sm:$0xff]
    %v101 = vld [vmem:[#allocation5 + $0x110] sm:$0xff]
    %v102 = vld [vmem:[#allocation5 + $0x118] sm:$0xff]
    %v103 = vld [vmem:[#allocation5 + $0x120] sm:$0xff]
    %v104 = vld [vmem:[#allocation5 + $0x128] sm:$0xff]
    %v105 = vld [vmem:[#allocation5 + $0x130] sm:$0xff]
    %v106 = vld [vmem:[#allocation5 + $0x138] sm:$0xff]
    %v107 = vld [vmem:[#allocation5 + $0x140] sm:$0xff]
    %v108 = vld [vmem:[#allocation5 + $0x148] sm:$0xff]
    %v109 = vld [vmem:[#allocation5 + $0x150] sm:$0xff]
    %v110 = vld [vmem:[#allocation5 + $0x158] sm:$0xff]
    %v111 = vld [vmem:[#allocation5 + $0x160] sm:$0xff]
    %v112 = vld [vmem:[#allocation5 + $0x168] sm:$0xff]
    %v113 = vld [vmem:[#allocation5 + $0x170] sm:$0xff]
    %v114 = vld [vmem:[#allocation5 + $0x178] sm:$0xff]
    %v115 = vld [vmem:[#allocation5 + $0x180] sm:$0xff]
    %v116 = vld [vmem:[#allocation5 + $0x188] sm:$0xff]
    %v117 = vld [vmem:[#allocation5 + $0x190] sm:$0xff]
    %v118 = vld [vmem:[#allocation5 + $0x198] sm:$0xff]
    %v119 = vld [vmem:[#allocation5 + $0x1a0] sm:$0xff]
    %v120 = vld [vmem:[#allocation5 + $0x1a8] sm:$0xff]
    %v121 = vld [vmem:[#allocation5 + $0x1b0] sm:$0xff]
    %v122 = vld [vmem:[#allocation5 + $0x1b8] sm:$0xff]
    %v123 = vld [vmem:[#allocation5 + $0x1c0] sm:$0xff]
    %v124 = vld [vmem:[#allocation5 + $0x1c8] sm:$0xff]
    %v125 = vld [vmem:[#allocation5 + $0x1d0] sm:$0xff]
    %v126 = vld [vmem:[#allocation5 + $0x1d8] sm:$0xff]
    %v127 = vld [vmem:[#allocation5 + $0x1e0] sm:$0xff]
    %v128 = vld [vmem:[#allocation5 + $0x1e8] sm:$0xff]
    %v129 = vld [vmem:[#allocation5 + $0x1f0] sm:$0xff]
    %v130 = vld [vmem:[#allocation5 + $0x1f8] sm:$0xff]
    %v131 = vld [vmem:[#allocation5 + $0x200] sm:$0xff]
    %v132 = vld [vmem:[#allocation5 + $0x208] sm:$0xff]
    %v133 = vld [vmem:[#allocation5 + $0x210] sm:$0xff]
    %v134 = vld [vmem:[#allocation5 + $0x218] sm:$0xff]
    %v135 = vld [vmem:[#allocation5 + $0x220] sm:$0xff]
    %v136 = vld [vmem:[#allocation5 + $0x228] sm:$0xff]
    %v137 = vld [vmem:[#allocation5 + $0x230] sm:$0xff]
    %v138 = vld [vmem:[#allocation5 + $0x238] sm:$0xff]
    %v139 = vld [vmem:[#allocation5 + $0x240] sm:$0xff]
    %v140 = vld [vmem:[#allocation5 + $0x248] sm:$0xff]
    %v141 = vld [vmem:[#allocation5 + $0x250] sm:$0xff]
    %v142 = vld [vmem:[#allocation5 + $0x258] sm:$0xff]
    %v143 = vld [vmem:[#allocation5 + $0x260] sm:$0xff]
    %v144 = vld [vmem:[#allocation5 + $0x268] sm:$0xff]
    %v145 = vld [vmem:[#allocation5 + $0x270] sm:$0xff]
    %v146 = vld [vmem:[#allocation5 + $0x278] sm:$0xff]
    %v147 = vld [vmem:[#allocation5 + $0x280] sm:$0xff]
    %v148 = vld [vmem:[#allocation5 + $0x288] sm:$0xff]
    %v149 = vld [vmem:[#allocation5 + $0x290] sm:$0xff]
    %v150 = vld [vmem:[#allocation5 + $0x298] sm:$0xff]
    %v151 = vld [vmem:[#allocation5 + $0x2a0] sm:$0xff]
    %v152 = vld [vmem:[#allocation5 + $0x2a8] sm:$0xff]
    %v153 = vld [vmem:[#allocation5 + $0x2b0] sm:$0xff]
    %v154 = vld [vmem:[#allocation5 + $0x2b8] sm:$0xff]
    %v155 = vld [vmem:[#allocation5 + $0x2c0] sm:$0xff]
    %v156 = vld [vmem:[#allocation5 + $0x2c8] sm:$0xff]
    %v157 = vld [vmem:[#allocation5 + $0x2d0] sm:$0xff]
    %v158 = vld [vmem:[#allocation5 + $0x2d8] sm:$0xff]
    %v159 = vld [vmem:[#allocation5 + $0x2e0] sm:$0xff]
    %v160 = vld [vmem:[#allocation5 + $0x2e8] sm:$0xff]
    %v161 = vld [vmem:[#allocation5 + $0x2f0] sm:$0xff]
    %v162 = vld [vmem:[#allocation5 + $0x2f8] sm:$0xff]
    %v163 = vld [vmem:[#allocation5 + $0x300] sm:$0xff]
    %v164 = vld [vmem:[#allocation5 + $0x308] sm:$0xff]
    %v165 = vld [vmem:[#allocation5 + $0x310] sm:$0xff]
    %v166 = vld [vmem:[#allocation5 + $0x318] sm:$0xff]
    %v167 = vld [vmem:[#allocation5 + $0x320] sm:$0xff]
    %v168 = vld [vmem:[#allocation5 + $0x328] sm:$0xff]
    %v169 = vld [vmem:[#allocation5 + $0x330] sm:$0xff]
    %v170 = vld [vmem:[#allocation5 + $0x338] sm:$0xff]
    %v171 = vld [vmem:[#allocation5 + $0x340] sm:$0xff]
    %v172 = vld [vmem:[#allocation5 + $0x348] sm:$0xff]
    %v173 = vld [vmem:[#allocation5 + $0x350] sm:$0xff]
    %v174 = vld [vmem:[#allocation5 + $0x358] sm:$0xff]
    %v175 = vld [vmem:[#allocation5 + $0x360] sm:$0xff]
    %v176 = vld [vmem:[#allocation5 + $0x368] sm:$0xff]
    %v177 = vld [vmem:[#allocation5 + $0x370] sm:$0xff]
    %v178 = vld [vmem:[#allocation5 + $0x378] sm:$0xff]
    %v179 = vld [vmem:[#allocation5 + $0x380] sm:$0xff]
    %v180 = vld [vmem:[#allocation5 + $0x388] sm:$0xff]
    %v181 = vld [vmem:[#allocation5 + $0x390] sm:$0xff]
    %v182 = vld [vmem:[#allocation5 + $0x398] sm:$0xff]
    %v183 = vld [vmem:[#allocation5 + $0x3a0] sm:$0xff]
    %v184 = vld [vmem:[#allocation5 + $0x3a8] sm:$0xff]
    %v185 = vld [vmem:[#allocation5 + $0x3b0] sm:$0xff]
    %v186 = vld [vmem:[#allocation5 + $0x3b8] sm:$0xff]
    %vm187 = vcmask 523264
    %v189 = vsel %vm187, %v60, 0
    %v192 = vsel %vm187, %v62, 0
    %v195 = vsel %vm187, %v64, 0
    %v198 = vsel %vm187, %v66, 0
    %200 = vmatprep.subr.mxu0 %v68
    %201 = vmatpush1.msra.mxu0 %v67
    %202 = vmatprep.subr.mxu0 %v73
    %203 = vmatpush1.msra.mxu0 %v72
    %204 = vmatprep.subr.mxu0 %v78
    %205 = vmatpush1.msra.mxu0 %v77
    %206 = vmatprep.subr.mxu0 %v83
    %207 = vmatpush1.msra.mxu0 %v82
    %208 = vmatprep.subr.mxu0 %v88
    %209 = vmatpush1.msra.mxu0 %v87
    %210 = vmatprep.subr.mxu0 %v93
    %211 = vmatpush1.msra.mxu0 %v92
    %212 = vmatprep.subr.mxu0 %v98
    %213 = vmatpush1.msra.mxu0 %v97
    %214 = vmatprep.subr.mxu0 %v103
    %215 = vmatpush1.msra.mxu0 %v102
    %216 = vmatprep.subr.mxu0 %v108
    %217 = vmatpush1.msra.mxu0 %v107
    %218 = vmatprep.subr.mxu0 %v113
    %219 = vmatpush1.msra.mxu0 %v112
    %220 = vmatprep.subr.mxu0 %v118
    %221 = vmatpush1.msra.mxu0 %v117
    %222 = vmatprep.subr.mxu0 %v123
    %223 = vmatpush1.msra.mxu0 %v122
    %224 = vmatprep.subr.mxu0 %v128
    %225 = vmatpush1.msra.mxu0 %v127
    %226 = vmatprep.subr.mxu0 %v133
    %227 = vmatpush1.msra.mxu0 %v132
    %228 = vmatprep.subr.mxu0 %v138
    %229 = vmatpush1.msra.mxu0 %v137
    %230 = vmatprep.subr.mxu0 %v143
    %231 = vmatpush1.msra.mxu0 %v142
    %232 = vmatprep.subr.mxu0 %v148
    %233 = vmatpush1.msra.mxu0 %v147
    %234 = vmatprep.subr.mxu0 %v153
    %235 = vmatpush1.msra.mxu0 %v152
    %236 = vmatprep.subr.mxu0 %v158
    %237 = vmatpush1.msra.mxu0 %v157
    %238 = vmatprep.subr.mxu0 %v163
    %239 = vmatpush1.msra.mxu0 %v162
    %240 = vmatprep.subr.mxu0 %v168
    %241 = vmatpush1.msra.mxu0 %v167
    %242 = vmatprep.subr.mxu0 %v173
    %243 = vmatpush1.msra.mxu0 %v172
    %244 = vmatprep.subr.mxu0 %v178
    %245 = vmatpush1.msra.mxu0 %v177
    %246 = vmatprep.subr.mxu0 %v183
    %247 = vmatpush1.msra.mxu0 %v182
    %248 = vmatprep.subr.mxu0 0.0
    %249 = vmatpush1.msra.mxu0 0.0
    %250 = vmatprep.subr.mxu0 0.0
    %251 = vmatpush1.msra.mxu0 0.0
    %252 = vmatprep.subr.mxu0 0.0
    %253 = vmatpush1.msra.mxu0 0.0
    %254 = vmatprep.subr.mxu0 0.0
    %255 = vmatpush1.msra.mxu0 0.0
    %256 = vmatprep.subr.mxu0 0.0
    %257 = vmatpush1.msra.mxu0 0.0
    %258 = vmatprep.subr.mxu0 0.0
    %259 = vmatpush1.msra.mxu0 0.0
    %260 = vmatprep.subr.mxu0 0.0
    %261 = vmatpush1.msra.mxu0 0.0
    %262 = vmatprep.subr.mxu0 0.0
    %263 = vmatpush1.msra.mxu0 0.0
    %264 = vmatprep.mubr.f32.mxu0 %v189
    %265 = vmatmul.mubr.f32.gmra.mrb[0].mxu0 %v59
    %v266 = vpop.f32.mrb[0].mxu0
    %v267 = vadd.f32 0.0, %v266
    %v268 = vpop.f32.mrb[0].mxu0
    %v269 = vadd.f32 0.0, %v268
    %270 = vmatprep.mubr.f32.mxu0 %v192
    %271 = vmatmul.mubr.f32.gmra.mrb[0].mxu0 %v61
    %v272 = vpop.f32.mrb[0].mxu0
    %v273 = vadd.f32 0.0, %v272
    %v274 = vpop.f32.mrb[0].mxu0
    %v275 = vadd.f32 0.0, %v274
    %276 = vmatprep.mubr.f32.mxu0 %v195
    %277 = vmatmul.mubr.f32.gmra.mrb[0].mxu0 %v63
    %v278 = vpop.f32.mrb[0].mxu0
    %v279 = vadd.f32 0.0, %v278
    %v280 = vpop.f32.mrb[0].mxu0
    %v281 = vadd.f32 0.0, %v280
    %282 = vmatprep.mubr.f32.mxu0 %v198
    %283 = vmatmul.mubr.f32.gmra.mrb[0].mxu0 %v65
    %v284 = vpop.f32.mrb[0].mxu0
    %v285 = vadd.f32 0.0, %v284
    %v286 = vpop.f32.mrb[0].mxu0
    %v287 = vadd.f32 0.0, %v286
    %288 = vdwg.mxu0
    %289 = vmatprep.subr.mxu0 %v70
    %290 = vmatpush1.msra.mxu0 %v69
    %291 = vmatprep.subr.mxu0 %v75
    %292 = vmatpush1.msra.mxu0 %v74
    %293 = vmatprep.subr.mxu0 %v80
    %294 = vmatpush1.msra.mxu0 %v79
    %295 = vmatprep.subr.mxu0 %v85
    %296 = vmatpush1.msra.mxu0 %v84
    %297 = vmatprep.subr.mxu0 %v90
    %298 = vmatpush1.msra.mxu0 %v89
    %299 = vmatprep.subr.mxu0 %v95
    %300 = vmatpush1.msra.mxu0 %v94
    %301 = vmatprep.subr.mxu0 %v100
    %302 = vmatpush1.msra.mxu0 %v99
    %303 = vmatprep.subr.mxu0 %v105
    %304 = vmatpush1.msra.mxu0 %v104
    %305 = vmatprep.subr.mxu0 %v110
    %306 = vmatpush1.msra.mxu0 %v109
    %307 = vmatprep.subr.mxu0 %v115
    %308 = vmatpush1.msra.mxu0 %v114
    %309 = vmatprep.subr.mxu0 %v120
    %310 = vmatpush1.msra.mxu0 %v119
    %311 = vmatprep.subr.mxu0 %v125
    %312 = vmatpush1.msra.mxu0 %v124
    %313 = vmatprep.subr.mxu0 %v130
    %314 = vmatpush1.msra.mxu0 %v129
    %315 = vmatprep.subr.mxu0 %v135
    %316 = vmatpush1.msra.mxu0 %v134
    %317 = vmatprep.subr.mxu0 %v140
    %318 = vmatpush1.msra.mxu0 %v139
    %319 = vmatprep.subr.mxu0 %v145
    %320 = vmatpush1.msra.mxu0 %v144
    %321 = vmatprep.subr.mxu0 %v150
    %322 = vmatpush1.msra.mxu0 %v149
    %323 = vmatprep.subr.mxu0 %v155
    %324 = vmatpush1.msra.mxu0 %v154
    %325 = vmatprep.subr.mxu0 %v160
    %326 = vmatpush1.msra.mxu0 %v159
    %327 = vmatprep.subr.mxu0 %v165
    %328 = vmatpush1.msra.mxu0 %v164
    %329 = vmatprep.subr.mxu0 %v170
    %330 = vmatpush1.msra.mxu0 %v169
    %331 = vmatprep.subr.mxu0 %v175
    %332 = vmatpush1.msra.mxu0 %v174
    %333 = vmatprep.subr.mxu0 %v180
    %334 = vmatpush1.msra.mxu0 %v179
    %335 = vmatprep.subr.mxu0 %v185
    %336 = vmatpush1.msra.mxu0 %v184
    %337 = vmatprep.subr.mxu0 0.0
    %338 = vmatpush1.msra.mxu0 0.0
    %339 = vmatprep.subr.mxu0 0.0
    %340 = vmatpush1.msra.mxu0 0.0
    %341 = vmatprep.subr.mxu0 0.0
    %342 = vmatpush1.msra.mxu0 0.0
    %343 = vmatprep.subr.mxu0 0.0
    %344 = vmatpush1.msra.mxu0 0.0
    %345 = vmatprep.subr.mxu0 0.0
    %346 = vmatpush1.msra.mxu0 0.0
    %347 = vmatprep.subr.mxu0 0.0
    %348 = vmatpush1.msra.mxu0 0.0
    %349 = vmatprep.subr.mxu0 0.0
    %350 = vmatpush1.msra.mxu0 0.0
    %351 = vmatprep.subr.mxu0 0.0
    %352 = vmatpush1.msra.mxu0 0.0
    %353 = vmatprep.mubr.f32.mxu0 %v189
    %354 = vmatmul.mubr.f32.gmra.mrb[0].mxu0 %v59
    %v355 = vpop.f32.mrb[0].mxu0
    %v356 = vadd.f32 0.0, %v355
    %v357 = vpop.f32.mrb[0].mxu0
    %v358 = vadd.f32 0.0, %v357
    %359 = vmatprep.mubr.f32.mxu0 %v192
    %360 = vmatmul.mubr.f32.gmra.mrb[0].mxu0 %v61
    %v361 = vpop.f32.mrb[0].mxu0
    %v362 = vadd.f32 0.0, %v361
    %v363 = vpop.f32.mrb[0].mxu0
    %v364 = vadd.f32 0.0, %v363
    %365 = vmatprep.mubr.f32.mxu0 %v195
    %366 = vmatmul.mubr.f32.gmra.mrb[0].mxu0 %v63
    %v367 = vpop.f32.mrb[0].mxu0
    %v368 = vadd.f32 0.0, %v367
    %v369 = vpop.f32.mrb[0].mxu0
    %v370 = vadd.f32 0.0, %v369
    %371 = vmatprep.mubr.f32.mxu0 %v198
    %372 = vmatmul.mubr.f32.gmra.mrb[0].mxu0 %v65
    %v373 = vpop.f32.mrb[0].mxu0
    %v374 = vadd.f32 0.0, %v373
    %v375 = vpop.f32.mrb[0].mxu0
    %v376 = vadd.f32 0.0, %v375
    %377 = vdwg.mxu0
    %378 = vmatprep.subr.mxu0 0.0
    %379 = vmatpush1.msra.mxu0 %v71
    %380 = vmatprep.subr.mxu0 0.0
    %381 = vmatpush1.msra.mxu0 %v76
    %382 = vmatprep.subr.mxu0 0.0
    %383 = vmatpush1.msra.mxu0 %v81
    %384 = vmatprep.subr.mxu0 0.0
    %385 = vmatpush1.msra.mxu0 %v86
    %386 = vmatprep.subr.mxu0 0.0
    %387 = vmatpush1.msra.mxu0 %v91
    %388 = vmatprep.subr.mxu0 0.0
    %389 = vmatpush1.msra.mxu0 %v96
    %390 = vmatprep.subr.mxu0 0.0
    %391 = vmatpush1.msra.mxu0 %v101
    %392 = vmatprep.subr.mxu0 0.0
    %393 = vmatpush1.msra.mxu0 %v106
    %394 = vmatprep.subr.mxu0 0.0
    %395 = vmatpush1.msra.mxu0 %v111
    %396 = vmatprep.subr.mxu0 0.0
    %397 = vmatpush1.msra.mxu0 %v116
    %398 = vmatprep.subr.mxu0 0.0
    %399 = vmatpush1.msra.mxu0 %v121
    %400 = vmatprep.subr.mxu0 0.0
    %401 = vmatpush1.msra.mxu0 %v126
    %402 = vmatprep.subr.mxu0 0.0
    %403 = vmatpush1.msra.mxu0 %v131
    %404 = vmatprep.subr.mxu0 0.0
    %405 = vmatpush1.msra.mxu0 %v136
    %406 = vmatprep.subr.mxu0 0.0
    %407 = vmatpush1.msra.mxu0 %v141
    %408 = vmatprep.subr.mxu0 0.0
    %409 = vmatpush1.msra.mxu0 %v146
    %410 = vmatprep.subr.mxu0 0.0
    %411 = vmatpush1.msra.mxu0 %v151
    %412 = vmatprep.subr.mxu0 0.0
    %413 = vmatpush1.msra.mxu0 %v156
    %414 = vmatprep.subr.mxu0 0.0
    %415 = vmatpush1.msra.mxu0 %v161
    %416 = vmatprep.subr.mxu0 0.0
    %417 = vmatpush1.msra.mxu0 %v166
    %418 = vmatprep.subr.mxu0 0.0
    %419 = vmatpush1.msra.mxu0 %v171
    %420 = vmatprep.subr.mxu0 0.0
    %421 = vmatpush1.msra.mxu0 %v176
    %422 = vmatprep.subr.mxu0 0.0
    %423 = vmatpush1.msra.mxu0 %v181
    %424 = vmatprep.subr.mxu0 0.0
    %425 = vmatpush1.msra.mxu0 %v186
    %426 = vmatprep.subr.mxu0 0.0
    %427 = vmatpush1.msra.mxu0 0.0
    %428 = vmatprep.subr.mxu0 0.0
    %429 = vmatpush1.msra.mxu0 0.0
    %430 = vmatprep.subr.mxu0 0.0
    %431 = vmatpush1.msra.mxu0 0.0
    %432 = vmatprep.subr.mxu0 0.0
    %433 = vmatpush1.msra.mxu0 0.0
    %434 = vmatprep.subr.mxu0 0.0
    %435 = vmatpush1.msra.mxu0 0.0
    %436 = vmatprep.subr.mxu0 0.0
    %437 = vmatpush1.msra.mxu0 0.0
    %438 = vmatprep.subr.mxu0 0.0
    %439 = vmatpush1.msra.mxu0 0.0
    %440 = vmatprep.subr.mxu0 0.0
    %441 = vmatpush1.msra.mxu0 0.0
    %442 = vmatprep.mubr.f32.mxu0 %v189
    %443 = vmatmul.mubr.f32.gmra.mrb[0].mxu0 %v59
    %v444 = vpop.f32.mrb[0].mxu0
    %v445 = vadd.f32 0.0, %v444
    %v446 = vpop.f32.mrb[0].mxu0
    %447 = vmatprep.mubr.f32.mxu0 %v192
    %448 = vmatmul.mubr.f32.gmra.mrb[0].mxu0 %v61
    %v449 = vpop.f32.mrb[0].mxu0
    %v450 = vadd.f32 0.0, %v449
    %v451 = vpop.f32.mrb[0].mxu0
    %452 = vmatprep.mubr.f32.mxu0 %v195
    %453 = vmatmul.mubr.f32.gmra.mrb[0].mxu0 %v63
    %v454 = vpop.f32.mrb[0].mxu0
    %v455 = vadd.f32 0.0, %v454
    %v456 = vpop.f32.mrb[0].mxu0
    %457 = vmatprep.mubr.f32.mxu0 %v198
    %458 = vmatmul.mubr.f32.gmra.mrb[0].mxu0 %v65
    %v459 = vpop.f32.mrb[0].mxu0
    %v460 = vadd.f32 0.0, %v459
    %v461 = vpop.f32.mrb[0].mxu0
    %462 = vdwg.mxu0
    %467 = vrot.lane.b32.xlu0 %v267, 112
    %v468 = vpop.permute.xlu0 %467
    %469 = vrot.lane.b32.xlu0 %v273, 112
    %v470 = vpop.permute.xlu0 %469
    %471 = vrot.lane.b32.xlu0 %v279, 112
    %v472 = vpop.permute.xlu0 %471
    %473 = vrot.lane.b32.xlu0 %v285, 112
    %v474 = vpop.permute.xlu0 %473
    %475 = vrot.lane.b32.xlu0 %v267, 96
    %v476 = vpop.permute.xlu0 %475
    %477 = vrot.lane.b32.xlu0 %v273, 96
    %v478 = vpop.permute.xlu0 %477
    %479 = vrot.lane.b32.xlu0 %v279, 96
    %v480 = vpop.permute.xlu0 %479
    %481 = vrot.lane.b32.xlu0 %v285, 96
    %v482 = vpop.permute.xlu0 %481
    %483 = vrot.lane.b32.xlu0 %v267, 80
    %v484 = vpop.permute.xlu0 %483
    %485 = vrot.lane.b32.xlu0 %v273, 80
    %v486 = vpop.permute.xlu0 %485
    %487 = vrot.lane.b32.xlu0 %v279, 80
    %v488 = vpop.permute.xlu0 %487
    %489 = vrot.lane.b32.xlu0 %v285, 80
    %v490 = vpop.permute.xlu0 %489
    %491 = vrot.lane.b32.xlu0 %v267, 64
    %v492 = vpop.permute.xlu0 %491
    %493 = vrot.lane.b32.xlu0 %v273, 64
    %v494 = vpop.permute.xlu0 %493
    %495 = vrot.lane.b32.xlu0 %v279, 64
    %v496 = vpop.permute.xlu0 %495
    %497 = vrot.lane.b32.xlu0 %v285, 64
    %v498 = vpop.permute.xlu0 %497
    %499 = vrot.lane.b32.xlu0 %v267, 48
    %v500 = vpop.permute.xlu0 %499
    %501 = vrot.lane.b32.xlu0 %v273, 48
    %v502 = vpop.permute.xlu0 %501
    %503 = vrot.lane.b32.xlu0 %v279, 48
    %v504 = vpop.permute.xlu0 %503
    %505 = vrot.lane.b32.xlu0 %v285, 48
    %v506 = vpop.permute.xlu0 %505
    %507 = vrot.lane.b32.xlu0 %v267, 32
    %v508 = vpop.permute.xlu0 %507
    %509 = vrot.lane.b32.xlu0 %v273, 32
    %v510 = vpop.permute.xlu0 %509
    %511 = vrot.lane.b32.xlu0 %v279, 32
    %v512 = vpop.permute.xlu0 %511
    %513 = vrot.lane.b32.xlu0 %v285, 32
    %v514 = vpop.permute.xlu0 %513
    %515 = vrot.lane.b32.xlu0 %v267, 16
    %v516 = vpop.permute.xlu0 %515
    %517 = vrot.lane.b32.xlu0 %v273, 16
    %v518 = vpop.permute.xlu0 %517
    %519 = vrot.lane.b32.xlu0 %v279, 16
    %v520 = vpop.permute.xlu0 %519
    %521 = vrot.lane.b32.xlu0 %v285, 16
    %v522 = vpop.permute.xlu0 %521
    %527 = vrot.lane.b32.xlu0 %v269, 112
    %v528 = vpop.permute.xlu0 %527
    %529 = vrot.lane.b32.xlu0 %v275, 112
    %v530 = vpop.permute.xlu0 %529
    %531 = vrot.lane.b32.xlu0 %v281, 112
    %v532 = vpop.permute.xlu0 %531
    %533 = vrot.lane.b32.xlu0 %v287, 112
    %v534 = vpop.permute.xlu0 %533
    %535 = vrot.lane.b32.xlu0 %v269, 96
    %v536 = vpop.permute.xlu0 %535
    %537 = vrot.lane.b32.xlu0 %v275, 96
    %v538 = vpop.permute.xlu0 %537
    %539 = vrot.lane.b32.xlu0 %v281, 96
    %v540 = vpop.permute.xlu0 %539
    %541 = vrot.lane.b32.xlu0 %v287, 96
    %v542 = vpop.permute.xlu0 %541
    %543 = vrot.lane.b32.xlu0 %v269, 80
    %v544 = vpop.permute.xlu0 %543
    %545 = vrot.lane.b32.xlu0 %v275, 80
    %v546 = vpop.permute.xlu0 %545
    %547 = vrot.lane.b32.xlu0 %v281, 80
    %v548 = vpop.permute.xlu0 %547
    %549 = vrot.lane.b32.xlu0 %v287, 80
    %v550 = vpop.permute.xlu0 %549
    %555 = vrot.lane.b32.xlu0 %v356, 64
    %v556 = vpop.permute.xlu0 %555
    %557 = vrot.lane.b32.xlu0 %v362, 64
    %v558 = vpop.permute.xlu0 %557
    %559 = vrot.lane.b32.xlu0 %v368, 64
    %v560 = vpop.permute.xlu0 %559
    %561 = vrot.lane.b32.xlu0 %v374, 64
    %v562 = vpop.permute.xlu0 %561
    %563 = vrot.lane.b32.xlu0 %v356, 48
    %v564 = vpop.permute.xlu0 %563
    %565 = vrot.lane.b32.xlu0 %v362, 48
    %v566 = vpop.permute.xlu0 %565
    %567 = vrot.lane.b32.xlu0 %v368, 48
    %v568 = vpop.permute.xlu0 %567
    %569 = vrot.lane.b32.xlu0 %v374, 48
    %v570 = vpop.permute.xlu0 %569
    %571 = vrot.lane.b32.xlu0 %v356, 32
    %v572 = vpop.permute.xlu0 %571
    %573 = vrot.lane.b32.xlu0 %v362, 32
    %v574 = vpop.permute.xlu0 %573
    %575 = vrot.lane.b32.xlu0 %v368, 32
    %v576 = vpop.permute.xlu0 %575
    %577 = vrot.lane.b32.xlu0 %v374, 32
    %v578 = vpop.permute.xlu0 %577
    %579 = vrot.lane.b32.xlu0 %v356, 16
    %v580 = vpop.permute.xlu0 %579
    %581 = vrot.lane.b32.xlu0 %v362, 16
    %v582 = vpop.permute.xlu0 %581
    %583 = vrot.lane.b32.xlu0 %v368, 16
    %v584 = vpop.permute.xlu0 %583
    %585 = vrot.lane.b32.xlu0 %v374, 16
    %v586 = vpop.permute.xlu0 %585
    %587 = vrot.lane.b32.xlu0 %v356, 112
    %v588 = vpop.permute.xlu0 %587
    %589 = vrot.lane.b32.xlu0 %v362, 112
    %v590 = vpop.permute.xlu0 %589
    %591 = vrot.lane.b32.xlu0 %v368, 112
    %v592 = vpop.permute.xlu0 %591
    %593 = vrot.lane.b32.xlu0 %v374, 112
    %v594 = vpop.permute.xlu0 %593
    %595 = vrot.lane.b32.xlu0 %v356, 96
    %v596 = vpop.permute.xlu0 %595
    %597 = vrot.lane.b32.xlu0 %v362, 96
    %v598 = vpop.permute.xlu0 %597
    %599 = vrot.lane.b32.xlu0 %v368, 96
    %v600 = vpop.permute.xlu0 %599
    %601 = vrot.lane.b32.xlu0 %v374, 96
    %v602 = vpop.permute.xlu0 %601
    %603 = vrot.lane.b32.xlu0 %v356, 80
    %v604 = vpop.permute.xlu0 %603
    %605 = vrot.lane.b32.xlu0 %v362, 80
    %v606 = vpop.permute.xlu0 %605
    %607 = vrot.lane.b32.xlu0 %v368, 80
    %v608 = vpop.permute.xlu0 %607
    %609 = vrot.lane.b32.xlu0 %v374, 80
    %v610 = vpop.permute.xlu0 %609
    %615 = vrot.lane.b32.xlu0 %v358, 112
    %v616 = vpop.permute.xlu0 %615
    %617 = vrot.lane.b32.xlu0 %v364, 112
    %v618 = vpop.permute.xlu0 %617
    %619 = vrot.lane.b32.xlu0 %v370, 112
    %v620 = vpop.permute.xlu0 %619
    %621 = vrot.lane.b32.xlu0 %v376, 112
    %v622 = vpop.permute.xlu0 %621
    %627 = vrot.lane.b32.xlu0 %v358, 96
    %v628 = vpop.permute.xlu0 %627
    %629 = vrot.lane.b32.xlu0 %v364, 96
    %v630 = vpop.permute.xlu0 %629
    %631 = vrot.lane.b32.xlu0 %v370, 96
    %v632 = vpop.permute.xlu0 %631
    %633 = vrot.lane.b32.xlu0 %v376, 96
    %v634 = vpop.permute.xlu0 %633
    %639 = vrot.lane.b32.xlu0 %v358, 80
    %v640 = vpop.permute.xlu0 %639
    %641 = vrot.lane.b32.xlu0 %v364, 80
    %v642 = vpop.permute.xlu0 %641
    %643 = vrot.lane.b32.xlu0 %v370, 80
    %v644 = vpop.permute.xlu0 %643
    %645 = vrot.lane.b32.xlu0 %v376, 80
    %v646 = vpop.permute.xlu0 %645
    %651 = vrot.lane.b32.xlu0 %v358, 64
    %v652 = vpop.permute.xlu0 %651
    %653 = vrot.lane.b32.xlu0 %v364, 64
    %v654 = vpop.permute.xlu0 %653
    %655 = vrot.lane.b32.xlu0 %v370, 64
    %v656 = vpop.permute.xlu0 %655
    %657 = vrot.lane.b32.xlu0 %v376, 64
    %v658 = vpop.permute.xlu0 %657
    %663 = vrot.lane.b32.xlu0 %v358, 48
    %v664 = vpop.permute.xlu0 %663
    %665 = vrot.lane.b32.xlu0 %v364, 48
    %v666 = vpop.permute.xlu0 %665
    %667 = vrot.lane.b32.xlu0 %v370, 48
    %v668 = vpop.permute.xlu0 %667
    %669 = vrot.lane.b32.xlu0 %v376, 48
    %v670 = vpop.permute.xlu0 %669
    %675 = vrot.lane.b32.xlu0 %v358, 32
    %v676 = vpop.permute.xlu0 %675
    %677 = vrot.lane.b32.xlu0 %v364, 32
    %v678 = vpop.permute.xlu0 %677
    %679 = vrot.lane.b32.xlu0 %v370, 32
    %v680 = vpop.permute.xlu0 %679
    %681 = vrot.lane.b32.xlu0 %v376, 32
    %v682 = vpop.permute.xlu0 %681
    %687 = vrot.lane.b32.xlu0 %v358, 16
    %v688 = vpop.permute.xlu0 %687
    %689 = vrot.lane.b32.xlu0 %v364, 16
    %v690 = vpop.permute.xlu0 %689
    %691 = vrot.lane.b32.xlu0 %v370, 16
    %v692 = vpop.permute.xlu0 %691
    %693 = vrot.lane.b32.xlu0 %v376, 16
    %v694 = vpop.permute.xlu0 %693
    %703 = vrot.lane.b32.xlu0 %v445, 112
    %v704 = vpop.permute.xlu0 %703
    %705 = vrot.lane.b32.xlu0 %v450, 112
    %v706 = vpop.permute.xlu0 %705
    %707 = vrot.lane.b32.xlu0 %v455, 112
    %v708 = vpop.permute.xlu0 %707
    %709 = vrot.lane.b32.xlu0 %v460, 112
    %v710 = vpop.permute.xlu0 %709
    %715 = vrot.lane.b32.xlu0 %v445, 96
    %v716 = vpop.permute.xlu0 %715
    %717 = vrot.lane.b32.xlu0 %v450, 96
    %v718 = vpop.permute.xlu0 %717
    %719 = vrot.lane.b32.xlu0 %v455, 96
    %v720 = vpop.permute.xlu0 %719
    %721 = vrot.lane.b32.xlu0 %v460, 96
    %v722 = vpop.permute.xlu0 %721
    %727 = vrot.lane.b32.xlu0 %v445, 80
    %v728 = vpop.permute.xlu0 %727
    %729 = vrot.lane.b32.xlu0 %v450, 80
    %v730 = vpop.permute.xlu0 %729
    %731 = vrot.lane.b32.xlu0 %v455, 80
    %v732 = vpop.permute.xlu0 %731
    %733 = vrot.lane.b32.xlu0 %v460, 80
    %v734 = vpop.permute.xlu0 %733
    %739 = vrot.lane.b32.xlu0 %v269, 64
    %v740 = vpop.permute.xlu0 %739
    %741 = vrot.lane.b32.xlu0 %v275, 64
    %v742 = vpop.permute.xlu0 %741
    %vm743 = vcmask 130048
    %v744 = vsel %vm743, %v267, 0
    %v746 = vsel %vm743, %v273, 0
    %v748 = vsel %vm743, %v740, 0
    %v750 = vsel %vm743, %v742, 0
    %752 = vmatprep.subr.mxu0 0.0
    %753 = vmatpush1.xpose.msra.mxu0 %v748
    %754 = vmatprep.subr.mxu0 0.0
    %755 = vmatpush1.xpose.msra.mxu0 %v750
    %756 = vmatprep.subr.mxu0 0.0
    %757 = vmatpush1.xpose.msra.mxu0 0.0
    %758 = vmatprep.subr.mxu0 0.0
    %759 = vmatpush1.xpose.msra.mxu0 0.0
    %760 = vmatprep.subr.mxu0 0.0
    %761 = vmatpush1.xpose.msra.mxu0 0.0
    %762 = vmatprep.subr.mxu0 0.0
    %763 = vmatpush1.xpose.msra.mxu0 0.0
    %764 = vmatprep.subr.mxu0 0.0
    %765 = vmatpush1.xpose.msra.mxu0 0.0
    %766 = vmatprep.subr.mxu0 0.0
    %767 = vmatpush1.xpose.msra.mxu0 0.0
    %768 = vmatprep.subr.mxu0 0.0
    %769 = vmatpush1.xpose.msra.mxu0 0.0
    %770 = vmatprep.subr.mxu0 0.0
    %771 = vmatpush1.xpose.msra.mxu0 0.0
    %772 = vmatprep.subr.mxu0 0.0
    %773 = vmatpush1.xpose.msra.mxu0 0.0
    %774 = vmatprep.subr.mxu0 0.0
    %775 = vmatpush1.xpose.msra.mxu0 0.0
    %776 = vmatprep.subr.mxu0 0.0
    %777 = vmatpush1.xpose.msra.mxu0 0.0
    %778 = vmatprep.subr.mxu0 0.0
    %779 = vmatpush1.xpose.msra.mxu0 0.0
    %780 = vmatprep.subr.mxu0 0.0
    %781 = vmatpush1.xpose.msra.mxu0 0.0
    %782 = vmatprep.subr.mxu0 0.0
    %783 = vmatpush1.xpose.msra.mxu0 0.0
    %784 = vmatprep.subr.mxu0 0.0
    %785 = vmatpush1.xpose.msra.mxu0 0.0
    %786 = vmatprep.subr.mxu0 0.0
    %787 = vmatpush1.xpose.msra.mxu0 0.0
    %788 = vmatprep.subr.mxu0 0.0
    %789 = vmatpush1.xpose.msra.mxu0 0.0
    %790 = vmatprep.subr.mxu0 0.0
    %791 = vmatpush1.xpose.msra.mxu0 0.0
    %792 = vmatprep.subr.mxu0 0.0
    %793 = vmatpush1.xpose.msra.mxu0 0.0
    %794 = vmatprep.subr.mxu0 0.0
    %795 = vmatpush1.xpose.msra.mxu0 0.0
    %796 = vmatprep.subr.mxu0 0.0
    %797 = vmatpush1.xpose.msra.mxu0 0.0
    %798 = vmatprep.subr.mxu0 0.0
    %799 = vmatpush1.xpose.msra.mxu0 0.0
    %800 = vmatprep.subr.mxu0 0.0
    %801 = vmatpush1.xpose.msra.mxu0 0.0
    %802 = vmatprep.subr.mxu0 0.0
    %803 = vmatpush1.xpose.msra.mxu0 0.0
    %804 = vmatprep.subr.mxu0 0.0
    %805 = vmatpush1.xpose.msra.mxu0 0.0
    %806 = vmatprep.subr.mxu0 0.0
    %807 = vmatpush1.xpose.msra.mxu0 0.0
    %808 = vmatprep.subr.mxu0 0.0
    %809 = vmatpush1.xpose.msra.mxu0 0.0
    %810 = vmatprep.subr.mxu0 0.0
    %811 = vmatpush1.xpose.msra.mxu0 0.0
    %812 = vmatprep.subr.mxu0 0.0
    %813 = vmatpush1.xpose.msra.mxu0 0.0
    %814 = vmatprep.subr.mxu0 0.0
    %815 = vmatpush1.xpose.msra.mxu0 0.0
    %816 = vmatprep.mubr.f32.mxu0 0.0
    %817 = vmatmul.mubr.f32.gmra.mrb[0].mxu0 %v744
    %v818 = vpop.f32.mrb[0].mxu0
    %v819 = vadd.f32 0.0, %v818
    %v820 = vpop.f32.mrb[0].mxu0
    %821 = vmatprep.mubr.f32.mxu0 0.0
    %822 = vmatmul.mubr.f32.gmra.mrb[0].mxu0 %v746
    %v823 = vpop.f32.mrb[0].mxu0
    %v824 = vadd.f32 0.0, %v823
    %v825 = vpop.f32.mrb[0].mxu0
    %826 = vdwg.mxu0
    %827 = vrot.lane.b32.xlu0 %v281, 64
    %v828 = vpop.permute.xlu0 %827
    %829 = vrot.lane.b32.xlu0 %v287, 64
    %v830 = vpop.permute.xlu0 %829
    %v831 = vsel %vm743, %v279, 0
    %v833 = vsel %vm743, %v285, 0
    %v835 = vsel %vm743, %v828, 0
    %v837 = vsel %vm743, %v830, 0
    %839 = vmatprep.subr.mxu0 0.0
    %840 = vmatpush1.xpose.msra.mxu0 %v835
    %841 = vmatprep.subr.mxu0 0.0
    %842 = vmatpush1.xpose.msra.mxu0 %v837
    %843 = vmatprep.subr.mxu0 0.0
    %844 = vmatpush1.xpose.msra.mxu0 0.0
    %845 = vmatprep.subr.mxu0 0.0
    %846 = vmatpush1.xpose.msra.mxu0 0.0
    %847 = vmatprep.subr.mxu0 0.0
    %848 = vmatpush1.xpose.msra.mxu0 0.0
    %849 = vmatprep.subr.mxu0 0.0
    %850 = vmatpush1.xpose.msra.mxu0 0.0
    %851 = vmatprep.subr.mxu0 0.0
    %852 = vmatpush1.xpose.msra.mxu0 0.0
    %853 = vmatprep.subr.mxu0 0.0
    %854 = vmatpush1.xpose.msra.mxu0 0.0
    %855 = vmatprep.subr.mxu0 0.0
    %856 = vmatpush1.xpose.msra.mxu0 0.0
    %857 = vmatprep.subr.mxu0 0.0
    %858 = vmatpush1.xpose.msra.mxu0 0.0
    %859 = vmatprep.subr.mxu0 0.0
    %860 = vmatpush1.xpose.msra.mxu0 0.0
    %861 = vmatprep.subr.mxu0 0.0
    %862 = vmatpush1.xpose.msra.mxu0 0.0
    %863 = vmatprep.subr.mxu0 0.0
    %864 = vmatpush1.xpose.msra.mxu0 0.0
    %865 = vmatprep.subr.mxu0 0.0
    %866 = vmatpush1.xpose.msra.mxu0 0.0
    %867 = vmatprep.subr.mxu0 0.0
    %868 = vmatpush1.xpose.msra.mxu0 0.0
    %869 = vmatprep.subr.mxu0 0.0
    %870 = vmatpush1.xpose.msra.mxu0 0.0
    %871 = vmatprep.subr.mxu0 0.0
    %872 = vmatpush1.xpose.msra.mxu0 0.0
    %873 = vmatprep.subr.mxu0 0.0
    %874 = vmatpush1.xpose.msra.mxu0 0.0
    %875 = vmatprep.subr.mxu0 0.0
    %876 = vmatpush1.xpose.msra.mxu0 0.0
    %877 = vmatprep.subr.mxu0 0.0
    %878 = vmatpush1.xpose.msra.mxu0 0.0
    %879 = vmatprep.subr.mxu0 0.0
    %880 = vmatpush1.xpose.msra.mxu0 0.0
    %881 = vmatprep.subr.mxu0 0.0
    %882 = vmatpush1.xpose.msra.mxu0 0.0
    %883 = vmatprep.subr.mxu0 0.0
    %884 = vmatpush1.xpose.msra.mxu0 0.0
    %885 = vmatprep.subr.mxu0 0.0
    %886 = vmatpush1.xpose.msra.mxu0 0.0
    %887 = vmatprep.subr.mxu0 0.0
    %888 = vmatpush1.xpose.msra.mxu0 0.0
    %889 = vmatprep.subr.mxu0 0.0
    %890 = vmatpush1.xpose.msra.mxu0 0.0
    %891 = vmatprep.subr.mxu0 0.0
    %892 = vmatpush1.xpose.msra.mxu0 0.0
    %893 = vmatprep.subr.mxu0 0.0
    %894 = vmatpush1.xpose.msra.mxu0 0.0
    %895 = vmatprep.subr.mxu0 0.0
    %896 = vmatpush1.xpose.msra.mxu0 0.0
    %897 = vmatprep.subr.mxu0 0.0
    %898 = vmatpush1.xpose.msra.mxu0 0.0
    %899 = vmatprep.subr.mxu0 0.0
    %900 = vmatpush1.xpose.msra.mxu0 0.0
    %901 = vmatprep.subr.mxu0 0.0
    %902 = vmatpush1.xpose.msra.mxu0 0.0
    %903 = vmatprep.mubr.f32.mxu0 0.0
    %904 = vmatmul.mubr.f32.gmra.mrb[0].mxu0 %v831
    %v905 = vpop.f32.mrb[0].mxu0
    %v906 = vadd.f32 0.0, %v905
    %v907 = vpop.f32.mrb[0].mxu0
    %908 = vmatprep.mubr.f32.mxu0 0.0
    %909 = vmatmul.mubr.f32.gmra.mrb[0].mxu0 %v833
    %v910 = vpop.f32.mrb[0].mxu0
    %v911 = vadd.f32 0.0, %v910
    %v912 = vpop.f32.mrb[0].mxu0
    %913 = vdwg.mxu0
    %914 = vrot.lane.b32.xlu0 %v528, 64
    %v915 = vpop.permute.xlu0 %914
    %916 = vrot.lane.b32.xlu0 %v530, 64
    %v917 = vpop.permute.xlu0 %916
    %v918 = vsel %vm743, %v468, 0
    %v920 = vsel %vm743, %v470, 0
    %v922 = vsel %vm743, %v915, 0
    %v924 = vsel %vm743, %v917, 0
    %926 = vmatprep.subr.mxu0 0.0
    %927 = vmatpush1.xpose.msra.mxu0 %v922
    %928 = vmatprep.subr.mxu0 0.0
    %929 = vmatpush1.xpose.msra.mxu0 %v924
    %930 = vmatprep.subr.mxu0 0.0
    %931 = vmatpush1.xpose.msra.mxu0 0.0
    %932 = vmatprep.subr.mxu0 0.0
    %933 = vmatpush1.xpose.msra.mxu0 0.0
    %934 = vmatprep.subr.mxu0 0.0
    %935 = vmatpush1.xpose.msra.mxu0 0.0
    %936 = vmatprep.subr.mxu0 0.0
    %937 = vmatpush1.xpose.msra.mxu0 0.0
    %938 = vmatprep.subr.mxu0 0.0
    %939 = vmatpush1.xpose.msra.mxu0 0.0
    %940 = vmatprep.subr.mxu0 0.0
    %941 = vmatpush1.xpose.msra.mxu0 0.0
    %942 = vmatprep.subr.mxu0 0.0
    %943 = vmatpush1.xpose.msra.mxu0 0.0
    %944 = vmatprep.subr.mxu0 0.0
    %945 = vmatpush1.xpose.msra.mxu0 0.0
    %946 = vmatprep.subr.mxu0 0.0
    %947 = vmatpush1.xpose.msra.mxu0 0.0
    %948 = vmatprep.subr.mxu0 0.0
    %949 = vmatpush1.xpose.msra.mxu0 0.0
    %950 = vmatprep.subr.mxu0 0.0
    %951 = vmatpush1.xpose.msra.mxu0 0.0
    %952 = vmatprep.subr.mxu0 0.0
    %953 = vmatpush1.xpose.msra.mxu0 0.0
    %954 = vmatprep.subr.mxu0 0.0
    %955 = vmatpush1.xpose.msra.mxu0 0.0
    %956 = vmatprep.subr.mxu0 0.0
    %957 = vmatpush1.xpose.msra.mxu0 0.0
    %958 = vmatprep.subr.mxu0 0.0
    %959 = vmatpush1.xpose.msra.mxu0 0.0
    %960 = vmatprep.subr.mxu0 0.0
    %961 = vmatpush1.xpose.msra.mxu0 0.0
    %962 = vmatprep.subr.mxu0 0.0
    %963 = vmatpush1.xpose.msra.mxu0 0.0
    %964 = vmatprep.subr.mxu0 0.0
    %965 = vmatpush1.xpose.msra.mxu0 0.0
    %966 = vmatprep.subr.mxu0 0.0
    %967 = vmatpush1.xpose.msra.mxu0 0.0
    %968 = vmatprep.subr.mxu0 0.0
    %969 = vmatpush1.xpose.msra.mxu0 0.0
    %970 = vmatprep.subr.mxu0 0.0
    %971 = vmatpush1.xpose.msra.mxu0 0.0
    %972 = vmatprep.subr.mxu0 0.0
    %973 = vmatpush1.xpose.msra.mxu0 0.0
    %974 = vmatprep.subr.mxu0 0.0
    %975 = vmatpush1.xpose.msra.mxu0 0.0
    %976 = vmatprep.subr.mxu0 0.0
    %977 = vmatpush1.xpose.msra.mxu0 0.0
    %978 = vmatprep.subr.mxu0 0.0
    %979 = vmatpush1.xpose.msra.mxu0 0.0
    %980 = vmatprep.subr.mxu0 0.0
    %981 = vmatpush1.xpose.msra.mxu0 0.0
    %982 = vmatprep.subr.mxu0 0.0
    %983 = vmatpush1.xpose.msra.mxu0 0.0
    %984 = vmatprep.subr.mxu0 0.0
    %985 = vmatpush1.xpose.msra.mxu0 0.0
    %986 = vmatprep.subr.mxu0 0.0
    %987 = vmatpush1.xpose.msra.mxu0 0.0
    %988 = vmatprep.subr.mxu0 0.0
    %989 = vmatpush1.xpose.msra.mxu0 0.0
    %990 = vmatprep.mubr.f32.mxu0 0.0
    %991 = vmatmul.mubr.f32.gmra.mrb[0].mxu0 %v918
    %v992 = vpop.f32.mrb[0].mxu0
    %v993 = vadd.f32 0.0, %v992
    %v994 = vpop.f32.mrb[0].mxu0
    %995 = vmatprep.mubr.f32.mxu0 0.0
    %996 = vmatmul.mubr.f32.gmra.mrb[0].mxu0 %v920
    %v997 = vpop.f32.mrb[0].mxu0
    %v998 = vadd.f32 0.0, %v997
    %v999 = vpop.f32.mrb[0].mxu0
    %1000 = vdwg.mxu0
    %1001 = vrot.lane.b32.xlu0 %v532, 64
    %v1002 = vpop.permute.xlu0 %1001
    %1003 = vrot.lane.b32.xlu0 %v534, 64
    %v1004 = vpop.permute.xlu0 %1003
    %v1005 = vsel %vm743, %v472, 0
    %v1007 = vsel %vm743, %v474, 0
    %v1009 = vsel %vm743, %v1002, 0
    %v1011 = vsel %vm743, %v1004, 0
    %1013 = vmatprep.subr.mxu0 0.0
    %1014 = vmatpush1.xpose.msra.mxu0 %v1009
    %1015 = vmatprep.subr.mxu0 0.0
    %1016 = vmatpush1.xpose.msra.mxu0 %v1011
    %1017 = vmatprep.subr.mxu0 0.0
    %1018 = vmatpush1.xpose.msra.mxu0 0.0
    %1019 = vmatprep.subr.mxu0 0.0
    %1020 = vmatpush1.xpose.msra.mxu0 0.0
    %1021 = vmatprep.subr.mxu0 0.0
    %1022 = vmatpush1.xpose.msra.mxu0 0.0
    %1023 = vmatprep.subr.mxu0 0.0
    %1024 = vmatpush1.xpose.msra.mxu0 0.0
    %1025 = vmatprep.subr.mxu0 0.0
    %1026 = vmatpush1.xpose.msra.mxu0 0.0
    %1027 = vmatprep.subr.mxu0 0.0
    %1028 = vmatpush1.xpose.msra.mxu0 0.0
    %1029 = vmatprep.subr.mxu0 0.0
    %1030 = vmatpush1.xpose.msra.mxu0 0.0
    %1031 = vmatprep.subr.mxu0 0.0
    %1032 = vmatpush1.xpose.msra.mxu0 0.0
    %1033 = vmatprep.subr.mxu0 0.0
    %1034 = vmatpush1.xpose.msra.mxu0 0.0
    %1035 = vmatprep.subr.mxu0 0.0
    %1036 = vmatpush1.xpose.msra.mxu0 0.0
    %1037 = vmatprep.subr.mxu0 0.0
    %1038 = vmatpush1.xpose.msra.mxu0 0.0
    %1039 = vmatprep.subr.mxu0 0.0
    %1040 = vmatpush1.xpose.msra.mxu0 0.0
    %1041 = vmatprep.subr.mxu0 0.0
    %1042 = vmatpush1.xpose.msra.mxu0 0.0
    %1043 = vmatprep.subr.mxu0 0.0
    %1044 = vmatpush1.xpose.msra.mxu0 0.0
    %1045 = vmatprep.subr.mxu0 0.0
    %1046 = vmatpush1.xpose.msra.mxu0 0.0
    %1047 = vmatprep.subr.mxu0 0.0
    %1048 = vmatpush1.xpose.msra.mxu0 0.0
    %1049 = vmatprep.subr.mxu0 0.0
    %1050 = vmatpush1.xpose.msra.mxu0 0.0
    %1051 = vmatprep.subr.mxu0 0.0
    %1052 = vmatpush1.xpose.msra.mxu0 0.0
    %1053 = vmatprep.subr.mxu0 0.0
    %1054 = vmatpush1.xpose.msra.mxu0 0.0
    %1055 = vmatprep.subr.mxu0 0.0
    %1056 = vmatpush1.xpose.msra.mxu0 0.0
    %1057 = vmatprep.subr.mxu0 0.0
    %1058 = vmatpush1.xpose.msra.mxu0 0.0
    %1059 = vmatprep.subr.mxu0 0.0
    %1060 = vmatpush1.xpose.msra.mxu0 0.0
    %1061 = vmatprep.subr.mxu0 0.0
    %1062 = vmatpush1.xpose.msra.mxu0 0.0
    %1063 = vmatprep.subr.mxu0 0.0
    %1064 = vmatpush1.xpose.msra.mxu0 0.0
    %1065 = vmatprep.subr.mxu0 0.0
    %1066 = vmatpush1.xpose.msra.mxu0 0.0
    %1067 = vmatprep.subr.mxu0 0.0
    %1068 = vmatpush1.xpose.msra.mxu0 0.0
    %1069 = vmatprep.subr.mxu0 0.0
    %1070 = vmatpush1.xpose.msra.mxu0 0.0
    %1071 = vmatprep.subr.mxu0 0.0
    %1072 = vmatpush1.xpose.msra.mxu0 0.0
    %1073 = vmatprep.subr.mxu0 0.0
    %1074 = vmatpush1.xpose.msra.mxu0 0.0
    %1075 = vmatprep.subr.mxu0 0.0
    %1076 = vmatpush1.xpose.msra.mxu0 0.0
    %1077 = vmatprep.mubr.f32.mxu0 0.0
    %1078 = vmatmul.mubr.f32.gmra.mrb[0].mxu0 %v1005
    %v1079 = vpop.f32.mrb[0].mxu0
    %v1080 = vadd.f32 0.0, %v1079
    %v1081 = vpop.f32.mrb[0].mxu0
    %1082 = vmatprep.mubr.f32.mxu0 0.0
    %1083 = vmatmul.mubr.f32.gmra.mrb[0].mxu0 %v1007
    %v1084 = vpop.f32.mrb[0].mxu0
    %v1085 = vadd.f32 0.0, %v1084
    %v1086 = vpop.f32.mrb[0].mxu0
    %1087 = vdwg.mxu0
    %1088 = vrot.lane.b32.xlu0 %v536, 64
    %v1089 = vpop.permute.xlu0 %1088
    %1090 = vrot.lane.b32.xlu0 %v538, 64
    %v1091 = vpop.permute.xlu0 %1090
    %v1092 = vsel %vm743, %v476, 0
    %v1094 = vsel %vm743, %v478, 0
    %v1096 = vsel %vm743, %v1089, 0
    %v1098 = vsel %vm743, %v1091, 0
    %1100 = vmatprep.subr.mxu0 0.0
    %1101 = vmatpush1.xpose.msra.mxu0 %v1096
    %1102 = vmatprep.subr.mxu0 0.0
    %1103 = vmatpush1.xpose.msra.mxu0 %v1098
    %1104 = vmatprep.subr.mxu0 0.0
    %1105 = vmatpush1.xpose.msra.mxu0 0.0
    %1106 = vmatprep.subr.mxu0 0.0
    %1107 = vmatpush1.xpose.msra.mxu0 0.0
    %1108 = vmatprep.subr.mxu0 0.0
    %1109 = vmatpush1.xpose.msra.mxu0 0.0
    %1110 = vmatprep.subr.mxu0 0.0
    %1111 = vmatpush1.xpose.msra.mxu0 0.0
    %1112 = vmatprep.subr.mxu0 0.0
    %1113 = vmatpush1.xpose.msra.mxu0 0.0
    %1114 = vmatprep.subr.mxu0 0.0
    %1115 = vmatpush1.xpose.msra.mxu0 0.0
    %1116 = vmatprep.subr.mxu0 0.0
    %1117 = vmatpush1.xpose.msra.mxu0 0.0
    %1118 = vmatprep.subr.mxu0 0.0
    %1119 = vmatpush1.xpose.msra.mxu0 0.0
    %1120 = vmatprep.subr.mxu0 0.0
    %1121 = vmatpush1.xpose.msra.mxu0 0.0
    %1122 = vmatprep.subr.mxu0 0.0
    %1123 = vmatpush1.xpose.msra.mxu0 0.0
    %1124 = vmatprep.subr.mxu0 0.0
    %1125 = vmatpush1.xpose.msra.mxu0 0.0
    %1126 = vmatprep.subr.mxu0 0.0
    %1127 = vmatpush1.xpose.msra.mxu0 0.0
    %1128 = vmatprep.subr.mxu0 0.0
    %1129 = vmatpush1.xpose.msra.mxu0 0.0
    %1130 = vmatprep.subr.mxu0 0.0
    %1131 = vmatpush1.xpose.msra.mxu0 0.0
    %1132 = vmatprep.subr.mxu0 0.0
    %1133 = vmatpush1.xpose.msra.mxu0 0.0
    %1134 = vmatprep.subr.mxu0 0.0
    %1135 = vmatpush1.xpose.msra.mxu0 0.0
    %1136 = vmatprep.subr.mxu0 0.0
    %1137 = vmatpush1.xpose.msra.mxu0 0.0
    %1138 = vmatprep.subr.mxu0 0.0
    %1139 = vmatpush1.xpose.msra.mxu0 0.0
    %1140 = vmatprep.subr.mxu0 0.0
    %1141 = vmatpush1.xpose.msra.mxu0 0.0
    %1142 = vmatprep.subr.mxu0 0.0
    %1143 = vmatpush1.xpose.msra.mxu0 0.0
    %1144 = vmatprep.subr.mxu0 0.0
    %1145 = vmatpush1.xpose.msra.mxu0 0.0
    %1146 = vmatprep.subr.mxu0 0.0
    %1147 = vmatpush1.xpose.msra.mxu0 0.0
    %1148 = vmatprep.subr.mxu0 0.0
    %1149 = vmatpush1.xpose.msra.mxu0 0.0
    %1150 = vmatprep.subr.mxu0 0.0
    %1151 = vmatpush1.xpose.msra.mxu0 0.0
    %1152 = vmatprep.subr.mxu0 0.0
    %1153 = vmatpush1.xpose.msra.mxu0 0.0
    %1154 = vmatprep.subr.mxu0 0.0
    %1155 = vmatpush1.xpose.msra.mxu0 0.0
    %1156 = vmatprep.subr.mxu0 0.0
    %1157 = vmatpush1.xpose.msra.mxu0 0.0
    %1158 = vmatprep.subr.mxu0 0.0
    %1159 = vmatpush1.xpose.msra.mxu0 0.0
    %1160 = vmatprep.subr.mxu0 0.0
    %1161 = vmatpush1.xpose.msra.mxu0 0.0
    %1162 = vmatprep.subr.mxu0 0.0
    %1163 = vmatpush1.xpose.msra.mxu0 0.0
    %1164 = vmatprep.mubr.f32.mxu0 0.0
    %1165 = vmatmul.mubr.f32.gmra.mrb[0].mxu0 %v1092
    %v1166 = vpop.f32.mrb[0].mxu0
    %v1167 = vadd.f32 0.0, %v1166
    %v1168 = vpop.f32.mrb[0].mxu0
    %1169 = vmatprep.mubr.f32.mxu0 0.0
    %1170 = vmatmul.mubr.f32.gmra.mrb[0].mxu0 %v1094
    %v1171 = vpop.f32.mrb[0].mxu0
    %v1172 = vadd.f32 0.0, %v1171
    %v1173 = vpop.f32.mrb[0].mxu0
    %1174 = vdwg.mxu0
    %1175 = vrot.lane.b32.xlu0 %v540, 64
    %v1176 = vpop.permute.xlu0 %1175
    %1177 = vrot.lane.b32.xlu0 %v542, 64
    %v1178 = vpop.permute.xlu0 %1177
    %v1179 = vsel %vm743, %v480, 0
    %v1181 = vsel %vm743, %v482, 0
    %v1183 = vsel %vm743, %v1176, 0
    %v1185 = vsel %vm743, %v1178, 0
    %1187 = vmatprep.subr.mxu0 0.0
    %1188 = vmatpush1.xpose.msra.mxu0 %v1183
    %1189 = vmatprep.subr.mxu0 0.0
    %1190 = vmatpush1.xpose.msra.mxu0 %v1185
    %1191 = vmatprep.subr.mxu0 0.0
    %1192 = vmatpush1.xpose.msra.mxu0 0.0
    %1193 = vmatprep.subr.mxu0 0.0
    %1194 = vmatpush1.xpose.msra.mxu0 0.0
    %1195 = vmatprep.subr.mxu0 0.0
    %1196 = vmatpush1.xpose.msra.mxu0 0.0
    %1197 = vmatprep.subr.mxu0 0.0
    %1198 = vmatpush1.xpose.msra.mxu0 0.0
    %1199 = vmatprep.subr.mxu0 0.0
    %1200 = vmatpush1.xpose.msra.mxu0 0.0
    %1201 = vmatprep.subr.mxu0 0.0
    %1202 = vmatpush1.xpose.msra.mxu0 0.0
    %1203 = vmatprep.subr.mxu0 0.0
    %1204 = vmatpush1.xpose.msra.mxu0 0.0
    %1205 = vmatprep.subr.mxu0 0.0
    %1206 = vmatpush1.xpose.msra.mxu0 0.0
    %1207 = vmatprep.subr.mxu0 0.0
    %1208 = vmatpush1.xpose.msra.mxu0 0.0
    %1209 = vmatprep.subr.mxu0 0.0
    %1210 = vmatpush1.xpose.msra.mxu0 0.0
    %1211 = vmatprep.subr.mxu0 0.0
    %1212 = vmatpush1.xpose.msra.mxu0 0.0
    %1213 = vmatprep.subr.mxu0 0.0
    %1214 = vmatpush1.xpose.msra.mxu0 0.0
    %1215 = vmatprep.subr.mxu0 0.0
    %1216 = vmatpush1.xpose.msra.mxu0 0.0
    %1217 = vmatprep.subr.mxu0 0.0
    %1218 = vmatpush1.xpose.msra.mxu0 0.0
    %1219 = vmatprep.subr.mxu0 0.0
    %1220 = vmatpush1.xpose.msra.mxu0 0.0
    %1221 = vmatprep.subr.mxu0 0.0
    %1222 = vmatpush1.xpose.msra.mxu0 0.0
    %1223 = vmatprep.subr.mxu0 0.0
    %1224 = vmatpush1.xpose.msra.mxu0 0.0
    %1225 = vmatprep.subr.mxu0 0.0
    %1226 = vmatpush1.xpose.msra.mxu0 0.0
    %1227 = vmatprep.subr.mxu0 0.0
    %1228 = vmatpush1.xpose.msra.mxu0 0.0
    %1229 = vmatprep.subr.mxu0 0.0
    %1230 = vmatpush1.xpose.msra.mxu0 0.0
    %1231 = vmatprep.subr.mxu0 0.0
    %1232 = vmatpush1.xpose.msra.mxu0 0.0
    %1233 = vmatprep.subr.mxu0 0.0
    %1234 = vmatpush1.xpose.msra.mxu0 0.0
    %1235 = vmatprep.subr.mxu0 0.0
    %1236 = vmatpush1.xpose.msra.mxu0 0.0
    %1237 = vmatprep.subr.mxu0 0.0
    %1238 = vmatpush1.xpose.msra.mxu0 0.0
    %1239 = vmatprep.subr.mxu0 0.0
    %1240 = vmatpush1.xpose.msra.mxu0 0.0
    %1241 = vmatprep.subr.mxu0 0.0
    %1242 = vmatpush1.xpose.msra.mxu0 0.0
    %1243 = vmatprep.subr.mxu0 0.0
    %1244 = vmatpush1.xpose.msra.mxu0 0.0
    %1245 = vmatprep.subr.mxu0 0.0
    %1246 = vmatpush1.xpose.msra.mxu0 0.0
    %1247 = vmatprep.subr.mxu0 0.0
    %1248 = vmatpush1.xpose.msra.mxu0 0.0
    %1249 = vmatprep.subr.mxu0 0.0
    %1250 = vmatpush1.xpose.msra.mxu0 0.0
    %1251 = vmatprep.mubr.f32.mxu0 0.0
    %1252 = vmatmul.mubr.f32.gmra.mrb[0].mxu0 %v1179
    %v1253 = vpop.f32.mrb[0].mxu0
    %v1254 = vadd.f32 0.0, %v1253
    %v1255 = vpop.f32.mrb[0].mxu0
    %1256 = vmatprep.mubr.f32.mxu0 0.0
    %1257 = vmatmul.mubr.f32.gmra.mrb[0].mxu0 %v1181
    %v1258 = vpop.f32.mrb[0].mxu0
    %v1259 = vadd.f32 0.0, %v1258
    %v1260 = vpop.f32.mrb[0].mxu0
    %1261 = vdwg.mxu0
    %1262 = vrot.lane.b32.xlu0 %v544, 64
    %v1263 = vpop.permute.xlu0 %1262
    %1264 = vrot.lane.b32.xlu0 %v546, 64
    %v1265 = vpop.permute.xlu0 %1264
    %v1266 = vsel %vm743, %v484, 0
    %v1268 = vsel %vm743, %v486, 0
    %v1270 = vsel %vm743, %v1263, 0
    %v1272 = vsel %vm743, %v1265, 0
    %1274 = vmatprep.subr.mxu0 0.0
    %1275 = vmatpush1.xpose.msra.mxu0 %v1270
    %1276 = vmatprep.subr.mxu0 0.0
    %1277 = vmatpush1.xpose.msra.mxu0 %v1272
    %1278 = vmatprep.subr.mxu0 0.0
    %1279 = vmatpush1.xpose.msra.mxu0 0.0
    %1280 = vmatprep.subr.mxu0 0.0
    %1281 = vmatpush1.xpose.msra.mxu0 0.0
    %1282 = vmatprep.subr.mxu0 0.0
    %1283 = vmatpush1.xpose.msra.mxu0 0.0
    %1284 = vmatprep.subr.mxu0 0.0
    %1285 = vmatpush1.xpose.msra.mxu0 0.0
    %1286 = vmatprep.subr.mxu0 0.0
    %1287 = vmatpush1.xpose.msra.mxu0 0.0
    %1288 = vmatprep.subr.mxu0 0.0
    %1289 = vmatpush1.xpose.msra.mxu0 0.0
    %1290 = vmatprep.subr.mxu0 0.0
    %1291 = vmatpush1.xpose.msra.mxu0 0.0
    %1292 = vmatprep.subr.mxu0 0.0
    %1293 = vmatpush1.xpose.msra.mxu0 0.0
    %1294 = vmatprep.subr.mxu0 0.0
    %1295 = vmatpush1.xpose.msra.mxu0 0.0
    %1296 = vmatprep.subr.mxu0 0.0
    %1297 = vmatpush1.xpose.msra.mxu0 0.0
    %1298 = vmatprep.subr.mxu0 0.0
    %1299 = vmatpush1.xpose.msra.mxu0 0.0
    %1300 = vmatprep.subr.mxu0 0.0
    %1301 = vmatpush1.xpose.msra.mxu0 0.0
    %1302 = vmatprep.subr.mxu0 0.0
    %1303 = vmatpush1.xpose.msra.mxu0 0.0
    %1304 = vmatprep.subr.mxu0 0.0
    %1305 = vmatpush1.xpose.msra.mxu0 0.0
    %1306 = vmatprep.subr.mxu0 0.0
    %1307 = vmatpush1.xpose.msra.mxu0 0.0
    %1308 = vmatprep.subr.mxu0 0.0
    %1309 = vmatpush1.xpose.msra.mxu0 0.0
    %1310 = vmatprep.subr.mxu0 0.0
    %1311 = vmatpush1.xpose.msra.mxu0 0.0
    %1312 = vmatprep.subr.mxu0 0.0
    %1313 = vmatpush1.xpose.msra.mxu0 0.0
    %1314 = vmatprep.subr.mxu0 0.0
    %1315 = vmatpush1.xpose.msra.mxu0 0.0
    %1316 = vmatprep.subr.mxu0 0.0
    %1317 = vmatpush1.xpose.msra.mxu0 0.0
    %1318 = vmatprep.subr.mxu0 0.0
    %1319 = vmatpush1.xpose.msra.mxu0 0.0
    %1320 = vmatprep.subr.mxu0 0.0
    %1321 = vmatpush1.xpose.msra.mxu0 0.0
    %1322 = vmatprep.subr.mxu0 0.0
    %1323 = vmatpush1.xpose.msra.mxu0 0.0
    %1324 = vmatprep.subr.mxu0 0.0
    %1325 = vmatpush1.xpose.msra.mxu0 0.0
    %1326 = vmatprep.subr.mxu0 0.0
    %1327 = vmatpush1.xpose.msra.mxu0 0.0
    %1328 = vmatprep.subr.mxu0 0.0
    %1329 = vmatpush1.xpose.msra.mxu0 0.0
    %1330 = vmatprep.subr.mxu0 0.0
    %1331 = vmatpush1.xpose.msra.mxu0 0.0
    %1332 = vmatprep.subr.mxu0 0.0
    %1333 = vmatpush1.xpose.msra.mxu0 0.0
    %1334 = vmatprep.subr.mxu0 0.0
    %1335 = vmatpush1.xpose.msra.mxu0 0.0
    %1336 = vmatprep.subr.mxu0 0.0
    %1337 = vmatpush1.xpose.msra.mxu0 0.0
    %1338 = vmatprep.mubr.f32.mxu0 0.0
    %1339 = vmatmul.mubr.f32.gmra.mrb[0].mxu0 %v1266
    %v1340 = vpop.f32.mrb[0].mxu0
    %v1341 = vadd.f32 0.0, %v1340
    %v1342 = vpop.f32.mrb[0].mxu0
    %1343 = vmatprep.mubr.f32.mxu0 0.0
    %1344 = vmatmul.mubr.f32.gmra.mrb[0].mxu0 %v1268
    %v1345 = vpop.f32.mrb[0].mxu0
    %v1346 = vadd.f32 0.0, %v1345
    %v1347 = vpop.f32.mrb[0].mxu0
    %1348 = vdwg.mxu0
    %1349 = vrot.lane.b32.xlu0 %v548, 64
    %v1350 = vpop.permute.xlu0 %1349
    %1351 = vrot.lane.b32.xlu0 %v550, 64
    %v1352 = vpop.permute.xlu0 %1351
    %v1353 = vsel %vm743, %v488, 0
    %v1355 = vsel %vm743, %v490, 0
    %v1357 = vsel %vm743, %v1350, 0
    %v1359 = vsel %vm743, %v1352, 0
    %1361 = vmatprep.subr.mxu0 0.0
    %1362 = vmatpush1.xpose.msra.mxu0 %v1357
    %1363 = vmatprep.subr.mxu0 0.0
    %1364 = vmatpush1.xpose.msra.mxu0 %v1359
    %1365 = vmatprep.subr.mxu0 0.0
    %1366 = vmatpush1.xpose.msra.mxu0 0.0
    %1367 = vmatprep.subr.mxu0 0.0
    %1368 = vmatpush1.xpose.msra.mxu0 0.0
    %1369 = vmatprep.subr.mxu0 0.0
    %1370 = vmatpush1.xpose.msra.mxu0 0.0
    %1371 = vmatprep.subr.mxu0 0.0
    %1372 = vmatpush1.xpose.msra.mxu0 0.0
    %1373 = vmatprep.subr.mxu0 0.0
    %1374 = vmatpush1.xpose.msra.mxu0 0.0
    %1375 = vmatprep.subr.mxu0 0.0
    %1376 = vmatpush1.xpose.msra.mxu0 0.0
    %1377 = vmatprep.subr.mxu0 0.0
    %1378 = vmatpush1.xpose.msra.mxu0 0.0
    %1379 = vmatprep.subr.mxu0 0.0
    %1380 = vmatpush1.xpose.msra.mxu0 0.0
    %1381 = vmatprep.subr.mxu0 0.0
    %1382 = vmatpush1.xpose.msra.mxu0 0.0
    %1383 = vmatprep.subr.mxu0 0.0
    %1384 = vmatpush1.xpose.msra.mxu0 0.0
    %1385 = vmatprep.subr.mxu0 0.0
    %1386 = vmatpush1.xpose.msra.mxu0 0.0
    %1387 = vmatprep.subr.mxu0 0.0
    %1388 = vmatpush1.xpose.msra.mxu0 0.0
    %1389 = vmatprep.subr.mxu0 0.0
    %1390 = vmatpush1.xpose.msra.mxu0 0.0
    %1391 = vmatprep.subr.mxu0 0.0
    %1392 = vmatpush1.xpose.msra.mxu0 0.0
    %1393 = vmatprep.subr.mxu0 0.0
    %1394 = vmatpush1.xpose.msra.mxu0 0.0
    %1395 = vmatprep.subr.mxu0 0.0
    %1396 = vmatpush1.xpose.msra.mxu0 0.0
    %1397 = vmatprep.subr.mxu0 0.0
    %1398 = vmatpush1.xpose.msra.mxu0 0.0
    %1399 = vmatprep.subr.mxu0 0.0
    %1400 = vmatpush1.xpose.msra.mxu0 0.0
    %1401 = vmatprep.subr.mxu0 0.0
    %1402 = vmatpush1.xpose.msra.mxu0 0.0
    %1403 = vmatprep.subr.mxu0 0.0
    %1404 = vmatpush1.xpose.msra.mxu0 0.0
    %1405 = vmatprep.subr.mxu0 0.0
    %1406 = vmatpush1.xpose.msra.mxu0 0.0
    %1407 = vmatprep.subr.mxu0 0.0
    %1408 = vmatpush1.xpose.msra.mxu0 0.0
    %1409 = vmatprep.subr.mxu0 0.0
    %1410 = vmatpush1.xpose.msra.mxu0 0.0
    %1411 = vmatprep.subr.mxu0 0.0
    %1412 = vmatpush1.xpose.msra.mxu0 0.0
    %1413 = vmatprep.subr.mxu0 0.0
    %1414 = vmatpush1.xpose.msra.mxu0 0.0
    %1415 = vmatprep.subr.mxu0 0.0
    %1416 = vmatpush1.xpose.msra.mxu0 0.0
    %1417 = vmatprep.subr.mxu0 0.0
    %1418 = vmatpush1.xpose.msra.mxu0 0.0
    %1419 = vmatprep.subr.mxu0 0.0
    %1420 = vmatpush1.xpose.msra.mxu0 0.0
    %1421 = vmatprep.subr.mxu0 0.0
    %1422 = vmatpush1.xpose.msra.mxu0 0.0
    %1423 = vmatprep.subr.mxu0 0.0
    %1424 = vmatpush1.xpose.msra.mxu0 0.0
    %1425 = vmatprep.mubr.f32.mxu0 0.0
    %1426 = vmatmul.mubr.f32.gmra.mrb[0].mxu0 %v1353
    %v1427 = vpop.f32.mrb[0].mxu0
    %v1428 = vadd.f32 0.0, %v1427
    %v1429 = vpop.f32.mrb[0].mxu0
    %1430 = vmatprep.mubr.f32.mxu0 0.0
    %1431 = vmatmul.mubr.f32.gmra.mrb[0].mxu0 %v1355
    %v1432 = vpop.f32.mrb[0].mxu0
    %v1433 = vadd.f32 0.0, %v1432
    %v1434 = vpop.f32.mrb[0].mxu0
    %1435 = vdwg.mxu0
    %1436 = vrot.lane.b32.xlu0 %v556, 64
    %v1437 = vpop.permute.xlu0 %1436
    %1438 = vrot.lane.b32.xlu0 %v558, 64
    %v1439 = vpop.permute.xlu0 %1438
    %v1440 = vsel %vm743, %v492, 0
    %v1442 = vsel %vm743, %v494, 0
    %v1444 = vsel %vm743, %v1437, 0
    %v1446 = vsel %vm743, %v1439, 0
    %1448 = vmatprep.subr.mxu0 0.0
    %1449 = vmatpush1.xpose.msra.mxu0 %v1444
    %1450 = vmatprep.subr.mxu0 0.0
    %1451 = vmatpush1.xpose.msra.mxu0 %v1446
    %1452 = vmatprep.subr.mxu0 0.0
    %1453 = vmatpush1.xpose.msra.mxu0 0.0
    %1454 = vmatprep.subr.mxu0 0.0
    %1455 = vmatpush1.xpose.msra.mxu0 0.0
    %1456 = vmatprep.subr.mxu0 0.0
    %1457 = vmatpush1.xpose.msra.mxu0 0.0
    %1458 = vmatprep.subr.mxu0 0.0
    %1459 = vmatpush1.xpose.msra.mxu0 0.0
    %1460 = vmatprep.subr.mxu0 0.0
    %1461 = vmatpush1.xpose.msra.mxu0 0.0
    %1462 = vmatprep.subr.mxu0 0.0
    %1463 = vmatpush1.xpose.msra.mxu0 0.0
    %1464 = vmatprep.subr.mxu0 0.0
    %1465 = vmatpush1.xpose.msra.mxu0 0.0
    %1466 = vmatprep.subr.mxu0 0.0
    %1467 = vmatpush1.xpose.msra.mxu0 0.0
    %1468 = vmatprep.subr.mxu0 0.0
    %1469 = vmatpush1.xpose.msra.mxu0 0.0
    %1470 = vmatprep.subr.mxu0 0.0
    %1471 = vmatpush1.xpose.msra.mxu0 0.0
    %1472 = vmatprep.subr.mxu0 0.0
    %1473 = vmatpush1.xpose.msra.mxu0 0.0
    %1474 = vmatprep.subr.mxu0 0.0
    %1475 = vmatpush1.xpose.msra.mxu0 0.0
    %1476 = vmatprep.subr.mxu0 0.0
    %1477 = vmatpush1.xpose.msra.mxu0 0.0
    %1478 = vmatprep.subr.mxu0 0.0
    %1479 = vmatpush1.xpose.msra.mxu0 0.0
    %1480 = vmatprep.subr.mxu0 0.0
    %1481 = vmatpush1.xpose.msra.mxu0 0.0
    %1482 = vmatprep.subr.mxu0 0.0
    %1483 = vmatpush1.xpose.msra.mxu0 0.0
    %1484 = vmatprep.subr.mxu0 0.0
    %1485 = vmatpush1.xpose.msra.mxu0 0.0
    %1486 = vmatprep.subr.mxu0 0.0
    %1487 = vmatpush1.xpose.msra.mxu0 0.0
    %1488 = vmatprep.subr.mxu0 0.0
    %1489 = vmatpush1.xpose.msra.mxu0 0.0
    %1490 = vmatprep.subr.mxu0 0.0
    %1491 = vmatpush1.xpose.msra.mxu0 0.0
    %1492 = vmatprep.subr.mxu0 0.0
    %1493 = vmatpush1.xpose.msra.mxu0 0.0
    %1494 = vmatprep.subr.mxu0 0.0
    %1495 = vmatpush1.xpose.msra.mxu0 0.0
    %1496 = vmatprep.subr.mxu0 0.0
    %1497 = vmatpush1.xpose.msra.mxu0 0.0
    %1498 = vmatprep.subr.mxu0 0.0
    %1499 = vmatpush1.xpose.msra.mxu0 0.0
    %1500 = vmatprep.subr.mxu0 0.0
    %1501 = vmatpush1.xpose.msra.mxu0 0.0
    %1502 = vmatprep.subr.mxu0 0.0
    %1503 = vmatpush1.xpose.msra.mxu0 0.0
    %1504 = vmatprep.subr.mxu0 0.0
    %1505 = vmatpush1.xpose.msra.mxu0 0.0
    %1506 = vmatprep.subr.mxu0 0.0
    %1507 = vmatpush1.xpose.msra.mxu0 0.0
    %1508 = vmatprep.subr.mxu0 0.0
    %1509 = vmatpush1.xpose.msra.mxu0 0.0
    %1510 = vmatprep.subr.mxu0 0.0
    %1511 = vmatpush1.xpose.msra.mxu0 0.0
    %1512 = vmatprep.mubr.f32.mxu0 0.0
    %1513 = vmatmul.mubr.f32.gmra.mrb[0].mxu0 %v1440
    %v1514 = vpop.f32.mrb[0].mxu0
    %v1515 = vadd.f32 0.0, %v1514
    %v1516 = vpop.f32.mrb[0].mxu0
    %1517 = vmatprep.mubr.f32.mxu0 0.0
    %1518 = vmatmul.mubr.f32.gmra.mrb[0].mxu0 %v1442
    %v1519 = vpop.f32.mrb[0].mxu0
    %v1520 = vadd.f32 0.0, %v1519
    %v1521 = vpop.f32.mrb[0].mxu0
    %1522 = vdwg.mxu0
    %1523 = vrot.lane.b32.xlu0 %v560, 64
    %v1524 = vpop.permute.xlu0 %1523
    %1525 = vrot.lane.b32.xlu0 %v562, 64
    %v1526 = vpop.permute.xlu0 %1525
    %v1527 = vsel %vm743, %v496, 0
    %v1529 = vsel %vm743, %v498, 0
    %v1531 = vsel %vm743, %v1524, 0
    %v1533 = vsel %vm743, %v1526, 0
    %1535 = vmatprep.subr.mxu0 0.0
    %1536 = vmatpush1.xpose.msra.mxu0 %v1531
    %1537 = vmatprep.subr.mxu0 0.0
    %1538 = vmatpush1.xpose.msra.mxu0 %v1533
    %1539 = vmatprep.subr.mxu0 0.0
    %1540 = vmatpush1.xpose.msra.mxu0 0.0
    %1541 = vmatprep.subr.mxu0 0.0
    %1542 = vmatpush1.xpose.msra.mxu0 0.0
    %1543 = vmatprep.subr.mxu0 0.0
    %1544 = vmatpush1.xpose.msra.mxu0 0.0
    %1545 = vmatprep.subr.mxu0 0.0
    %1546 = vmatpush1.xpose.msra.mxu0 0.0
    %1547 = vmatprep.subr.mxu0 0.0
    %1548 = vmatpush1.xpose.msra.mxu0 0.0
    %1549 = vmatprep.subr.mxu0 0.0
    %1550 = vmatpush1.xpose.msra.mxu0 0.0
    %1551 = vmatprep.subr.mxu0 0.0
    %1552 = vmatpush1.xpose.msra.mxu0 0.0
    %1553 = vmatprep.subr.mxu0 0.0
    %1554 = vmatpush1.xpose.msra.mxu0 0.0
    %1555 = vmatprep.subr.mxu0 0.0
    %1556 = vmatpush1.xpose.msra.mxu0 0.0
    %1557 = vmatprep.subr.mxu0 0.0
    %1558 = vmatpush1.xpose.msra.mxu0 0.0
    %1559 = vmatprep.subr.mxu0 0.0
    %1560 = vmatpush1.xpose.msra.mxu0 0.0
    %1561 = vmatprep.subr.mxu0 0.0
    %1562 = vmatpush1.xpose.msra.mxu0 0.0
    %1563 = vmatprep.subr.mxu0 0.0
    %1564 = vmatpush1.xpose.msra.mxu0 0.0
    %1565 = vmatprep.subr.mxu0 0.0
    %1566 = vmatpush1.xpose.msra.mxu0 0.0
    %1567 = vmatprep.subr.mxu0 0.0
    %1568 = vmatpush1.xpose.msra.mxu0 0.0
    %1569 = vmatprep.subr.mxu0 0.0
    %1570 = vmatpush1.xpose.msra.mxu0 0.0
    %1571 = vmatprep.subr.mxu0 0.0
    %1572 = vmatpush1.xpose.msra.mxu0 0.0
    %1573 = vmatprep.subr.mxu0 0.0
    %1574 = vmatpush1.xpose.msra.mxu0 0.0
    %1575 = vmatprep.subr.mxu0 0.0
    %1576 = vmatpush1.xpose.msra.mxu0 0.0
    %1577 = vmatprep.subr.mxu0 0.0
    %1578 = vmatpush1.xpose.msra.mxu0 0.0
    %1579 = vmatprep.subr.mxu0 0.0
    %1580 = vmatpush1.xpose.msra.mxu0 0.0
    %1581 = vmatprep.subr.mxu0 0.0
    %1582 = vmatpush1.xpose.msra.mxu0 0.0
    %1583 = vmatprep.subr.mxu0 0.0
    %1584 = vmatpush1.xpose.msra.mxu0 0.0
    %1585 = vmatprep.subr.mxu0 0.0
    %1586 = vmatpush1.xpose.msra.mxu0 0.0
    %1587 = vmatprep.subr.mxu0 0.0
    %1588 = vmatpush1.xpose.msra.mxu0 0.0
    %1589 = vmatprep.subr.mxu0 0.0
    %1590 = vmatpush1.xpose.msra.mxu0 0.0
    %1591 = vmatprep.subr.mxu0 0.0
    %1592 = vmatpush1.xpose.msra.mxu0 0.0
    %1593 = vmatprep.subr.mxu0 0.0
    %1594 = vmatpush1.xpose.msra.mxu0 0.0
    %1595 = vmatprep.subr.mxu0 0.0
    %1596 = vmatpush1.xpose.msra.mxu0 0.0
    %1597 = vmatprep.subr.mxu0 0.0
    %1598 = vmatpush1.xpose.msra.mxu0 0.0
    %1599 = vmatprep.mubr.f32.mxu0 0.0
    %1600 = vmatmul.mubr.f32.gmra.mrb[0].mxu0 %v1527
    %v1601 = vpop.f32.mrb[0].mxu0
    %v1602 = vadd.f32 0.0, %v1601
    %v1603 = vpop.f32.mrb[0].mxu0
    %1604 = vmatprep.mubr.f32.mxu0 0.0
    %1605 = vmatmul.mubr.f32.gmra.mrb[0].mxu0 %v1529
    %v1606 = vpop.f32.mrb[0].mxu0
    %v1607 = vadd.f32 0.0, %v1606
    %v1608 = vpop.f32.mrb[0].mxu0
    %1609 = vdwg.mxu0
    %1610 = vrot.lane.b32.xlu0 %v564, 64
    %v1611 = vpop.permute.xlu0 %1610
    %1612 = vrot.lane.b32.xlu0 %v566, 64
    %v1613 = vpop.permute.xlu0 %1612
    %v1614 = vsel %vm743, %v500, 0
    %v1616 = vsel %vm743, %v502, 0
    %v1618 = vsel %vm743, %v1611, 0
    %v1620 = vsel %vm743, %v1613, 0
    %1622 = vmatprep.subr.mxu0 0.0
    %1623 = vmatpush1.xpose.msra.mxu0 %v1618
    %1624 = vmatprep.subr.mxu0 0.0
    %1625 = vmatpush1.xpose.msra.mxu0 %v1620
    %1626 = vmatprep.subr.mxu0 0.0
    %1627 = vmatpush1.xpose.msra.mxu0 0.0
    %1628 = vmatprep.subr.mxu0 0.0
    %1629 = vmatpush1.xpose.msra.mxu0 0.0
    %1630 = vmatprep.subr.mxu0 0.0
    %1631 = vmatpush1.xpose.msra.mxu0 0.0
    %1632 = vmatprep.subr.mxu0 0.0
    %1633 = vmatpush1.xpose.msra.mxu0 0.0
    %1634 = vmatprep.subr.mxu0 0.0
    %1635 = vmatpush1.xpose.msra.mxu0 0.0
    %1636 = vmatprep.subr.mxu0 0.0
    %1637 = vmatpush1.xpose.msra.mxu0 0.0
    %1638 = vmatprep.subr.mxu0 0.0
    %1639 = vmatpush1.xpose.msra.mxu0 0.0
    %1640 = vmatprep.subr.mxu0 0.0
    %1641 = vmatpush1.xpose.msra.mxu0 0.0
    %1642 = vmatprep.subr.mxu0 0.0
    %1643 = vmatpush1.xpose.msra.mxu0 0.0
    %1644 = vmatprep.subr.mxu0 0.0
    %1645 = vmatpush1.xpose.msra.mxu0 0.0
    %1646 = vmatprep.subr.mxu0 0.0
    %1647 = vmatpush1.xpose.msra.mxu0 0.0
    %1648 = vmatprep.subr.mxu0 0.0
    %1649 = vmatpush1.xpose.msra.mxu0 0.0
    %1650 = vmatprep.subr.mxu0 0.0
    %1651 = vmatpush1.xpose.msra.mxu0 0.0
    %1652 = vmatprep.subr.mxu0 0.0
    %1653 = vmatpush1.xpose.msra.mxu0 0.0
    %1654 = vmatprep.subr.mxu0 0.0
    %1655 = vmatpush1.xpose.msra.mxu0 0.0
    %1656 = vmatprep.subr.mxu0 0.0
    %1657 = vmatpush1.xpose.msra.mxu0 0.0
    %1658 = vmatprep.subr.mxu0 0.0
    %1659 = vmatpush1.xpose.msra.mxu0 0.0
    %1660 = vmatprep.subr.mxu0 0.0
    %1661 = vmatpush1.xpose.msra.mxu0 0.0
    %1662 = vmatprep.subr.mxu0 0.0
    %1663 = vmatpush1.xpose.msra.mxu0 0.0
    %1664 = vmatprep.subr.mxu0 0.0
    %1665 = vmatpush1.xpose.msra.mxu0 0.0
    %1666 = vmatprep.subr.mxu0 0.0
    %1667 = vmatpush1.xpose.msra.mxu0 0.0
    %1668 = vmatprep.subr.mxu0 0.0
    %1669 = vmatpush1.xpose.msra.mxu0 0.0
    %1670 = vmatprep.subr.mxu0 0.0
    %1671 = vmatpush1.xpose.msra.mxu0 0.0
    %1672 = vmatprep.subr.mxu0 0.0
    %1673 = vmatpush1.xpose.msra.mxu0 0.0
    %1674 = vmatprep.subr.mxu0 0.0
    %1675 = vmatpush1.xpose.msra.mxu0 0.0
    %1676 = vmatprep.subr.mxu0 0.0
    %1677 = vmatpush1.xpose.msra.mxu0 0.0
    %1678 = vmatprep.subr.mxu0 0.0
    %1679 = vmatpush1.xpose.msra.mxu0 0.0
    %1680 = vmatprep.subr.mxu0 0.0
    %1681 = vmatpush1.xpose.msra.mxu0 0.0
    %1682 = vmatprep.subr.mxu0 0.0
    %1683 = vmatpush1.xpose.msra.mxu0 0.0
    %1684 = vmatprep.subr.mxu0 0.0
    %1685 = vmatpush1.xpose.msra.mxu0 0.0
    %1686 = vmatprep.mubr.f32.mxu0 0.0
    %1687 = vmatmul.mubr.f32.gmra.mrb[0].mxu0 %v1614
    %v1688 = vpop.f32.mrb[0].mxu0
    %v1689 = vadd.f32 0.0, %v1688
    %v1690 = vpop.f32.mrb[0].mxu0
    %1691 = vmatprep.mubr.f32.mxu0 0.0
    %1692 = vmatmul.mubr.f32.gmra.mrb[0].mxu0 %v1616
    %v1693 = vpop.f32.mrb[0].mxu0
    %v1694 = vadd.f32 0.0, %v1693
    %v1695 = vpop.f32.mrb[0].mxu0
    %1696 = vdwg.mxu0
    %1697 = vrot.lane.b32.xlu0 %v568, 64
    %v1698 = vpop.permute.xlu0 %1697
    %1699 = vrot.lane.b32.xlu0 %v570, 64
    %v1700 = vpop.permute.xlu0 %1699
    %v1701 = vsel %vm743, %v504, 0
    %v1703 = vsel %vm743, %v506, 0
    %v1705 = vsel %vm743, %v1698, 0
    %v1707 = vsel %vm743, %v1700, 0
    %1709 = vmatprep.subr.mxu0 0.0
    %1710 = vmatpush1.xpose.msra.mxu0 %v1705
    %1711 = vmatprep.subr.mxu0 0.0
    %1712 = vmatpush1.xpose.msra.mxu0 %v1707
    %1713 = vmatprep.subr.mxu0 0.0
    %1714 = vmatpush1.xpose.msra.mxu0 0.0
    %1715 = vmatprep.subr.mxu0 0.0
    %1716 = vmatpush1.xpose.msra.mxu0 0.0
    %1717 = vmatprep.subr.mxu0 0.0
    %1718 = vmatpush1.xpose.msra.mxu0 0.0
    %1719 = vmatprep.subr.mxu0 0.0
    %1720 = vmatpush1.xpose.msra.mxu0 0.0
    %1721 = vmatprep.subr.mxu0 0.0
    %1722 = vmatpush1.xpose.msra.mxu0 0.0
    %1723 = vmatprep.subr.mxu0 0.0
    %1724 = vmatpush1.xpose.msra.mxu0 0.0
    %1725 = vmatprep.subr.mxu0 0.0
    %1726 = vmatpush1.xpose.msra.mxu0 0.0
    %1727 = vmatprep.subr.mxu0 0.0
    %1728 = vmatpush1.xpose.msra.mxu0 0.0
    %1729 = vmatprep.subr.mxu0 0.0
    %1730 = vmatpush1.xpose.msra.mxu0 0.0
    %1731 = vmatprep.subr.mxu0 0.0
    %1732 = vmatpush1.xpose.msra.mxu0 0.0
    %1733 = vmatprep.subr.mxu0 0.0
    %1734 = vmatpush1.xpose.msra.mxu0 0.0
    %1735 = vmatprep.subr.mxu0 0.0
    %1736 = vmatpush1.xpose.msra.mxu0 0.0
    %1737 = vmatprep.subr.mxu0 0.0
    %1738 = vmatpush1.xpose.msra.mxu0 0.0
    %1739 = vmatprep.subr.mxu0 0.0
    %1740 = vmatpush1.xpose.msra.mxu0 0.0
    %1741 = vmatprep.subr.mxu0 0.0
    %1742 = vmatpush1.xpose.msra.mxu0 0.0
    %1743 = vmatprep.subr.mxu0 0.0
    %1744 = vmatpush1.xpose.msra.mxu0 0.0
    %1745 = vmatprep.subr.mxu0 0.0
    %1746 = vmatpush1.xpose.msra.mxu0 0.0
    %1747 = vmatprep.subr.mxu0 0.0
    %1748 = vmatpush1.xpose.msra.mxu0 0.0
    %1749 = vmatprep.subr.mxu0 0.0
    %1750 = vmatpush1.xpose.msra.mxu0 0.0
    %1751 = vmatprep.subr.mxu0 0.0
    %1752 = vmatpush1.xpose.msra.mxu0 0.0
    %1753 = vmatprep.subr.mxu0 0.0
    %1754 = vmatpush1.xpose.msra.mxu0 0.0
    %1755 = vmatprep.subr.mxu0 0.0
    %1756 = vmatpush1.xpose.msra.mxu0 0.0
    %1757 = vmatprep.subr.mxu0 0.0
    %1758 = vmatpush1.xpose.msra.mxu0 0.0
    %1759 = vmatprep.subr.mxu0 0.0
    %1760 = vmatpush1.xpose.msra.mxu0 0.0
    %1761 = vmatprep.subr.mxu0 0.0
    %1762 = vmatpush1.xpose.msra.mxu0 0.0
    %1763 = vmatprep.subr.mxu0 0.0
    %1764 = vmatpush1.xpose.msra.mxu0 0.0
    %1765 = vmatprep.subr.mxu0 0.0
    %1766 = vmatpush1.xpose.msra.mxu0 0.0
    %1767 = vmatprep.subr.mxu0 0.0
    %1768 = vmatpush1.xpose.msra.mxu0 0.0
    %1769 = vmatprep.subr.mxu0 0.0
    %1770 = vmatpush1.xpose.msra.mxu0 0.0
    %1771 = vmatprep.subr.mxu0 0.0
    %1772 = vmatpush1.xpose.msra.mxu0 0.0
    %1773 = vmatprep.mubr.f32.mxu0 0.0
    %1774 = vmatmul.mubr.f32.gmra.mrb[0].mxu0 %v1701
    %v1775 = vpop.f32.mrb[0].mxu0
    %v1776 = vadd.f32 0.0, %v1775
    %v1777 = vpop.f32.mrb[0].mxu0
    %1778 = vmatprep.mubr.f32.mxu0 0.0
    %1779 = vmatmul.mubr.f32.gmra.mrb[0].mxu0 %v1703
    %v1780 = vpop.f32.mrb[0].mxu0
    %v1781 = vadd.f32 0.0, %v1780
    %v1782 = vpop.f32.mrb[0].mxu0
    %1783 = vdwg.mxu0
    %1784 = vrot.lane.b32.xlu0 %v572, 64
    %v1785 = vpop.permute.xlu0 %1784
    %1786 = vrot.lane.b32.xlu0 %v574, 64
    %v1787 = vpop.permute.xlu0 %1786
    %v1788 = vsel %vm743, %v508, 0
    %v1790 = vsel %vm743, %v510, 0
    %v1792 = vsel %vm743, %v1785, 0
    %v1794 = vsel %vm743, %v1787, 0
    %1796 = vmatprep.subr.mxu0 0.0
    %1797 = vmatpush1.xpose.msra.mxu0 %v1792
    %1798 = vmatprep.subr.mxu0 0.0
    %1799 = vmatpush1.xpose.msra.mxu0 %v1794
    %1800 = vmatprep.subr.mxu0 0.0
    %1801 = vmatpush1.xpose.msra.mxu0 0.0
    %1802 = vmatprep.subr.mxu0 0.0
    %1803 = vmatpush1.xpose.msra.mxu0 0.0
    %1804 = vmatprep.subr.mxu0 0.0
    %1805 = vmatpush1.xpose.msra.mxu0 0.0
    %1806 = vmatprep.subr.mxu0 0.0
    %1807 = vmatpush1.xpose.msra.mxu0 0.0
    %1808 = vmatprep.subr.mxu0 0.0
    %1809 = vmatpush1.xpose.msra.mxu0 0.0
    %1810 = vmatprep.subr.mxu0 0.0
    %1811 = vmatpush1.xpose.msra.mxu0 0.0
    %1812 = vmatprep.subr.mxu0 0.0
    %1813 = vmatpush1.xpose.msra.mxu0 0.0
    %1814 = vmatprep.subr.mxu0 0.0
    %1815 = vmatpush1.xpose.msra.mxu0 0.0
    %1816 = vmatprep.subr.mxu0 0.0
    %1817 = vmatpush1.xpose.msra.mxu0 0.0
    %1818 = vmatprep.subr.mxu0 0.0
    %1819 = vmatpush1.xpose.msra.mxu0 0.0
    %1820 = vmatprep.subr.mxu0 0.0
    %1821 = vmatpush1.xpose.msra.mxu0 0.0
    %1822 = vmatprep.subr.mxu0 0.0
    %1823 = vmatpush1.xpose.msra.mxu0 0.0
    %1824 = vmatprep.subr.mxu0 0.0
    %1825 = vmatpush1.xpose.msra.mxu0 0.0
    %1826 = vmatprep.subr.mxu0 0.0
    %1827 = vmatpush1.xpose.msra.mxu0 0.0
    %1828 = vmatprep.subr.mxu0 0.0
    %1829 = vmatpush1.xpose.msra.mxu0 0.0
    %1830 = vmatprep.subr.mxu0 0.0
    %1831 = vmatpush1.xpose.msra.mxu0 0.0
    %1832 = vmatprep.subr.mxu0 0.0
    %1833 = vmatpush1.xpose.msra.mxu0 0.0
    %1834 = vmatprep.subr.mxu0 0.0
    %1835 = vmatpush1.xpose.msra.mxu0 0.0
    %1836 = vmatprep.subr.mxu0 0.0
    %1837 = vmatpush1.xpose.msra.mxu0 0.0
    %1838 = vmatprep.subr.mxu0 0.0
    %1839 = vmatpush1.xpose.msra.mxu0 0.0
    %1840 = vmatprep.subr.mxu0 0.0
    %1841 = vmatpush1.xpose.msra.mxu0 0.0
    %1842 = vmatprep.subr.mxu0 0.0
    %1843 = vmatpush1.xpose.msra.mxu0 0.0
    %1844 = vmatprep.subr.mxu0 0.0
    %1845 = vmatpush1.xpose.msra.mxu0 0.0
    %1846 = vmatprep.subr.mxu0 0.0
    %1847 = vmatpush1.xpose.msra.mxu0 0.0
    %1848 = vmatprep.subr.mxu0 0.0
    %1849 = vmatpush1.xpose.msra.mxu0 0.0
    %1850 = vmatprep.subr.mxu0 0.0
    %1851 = vmatpush1.xpose.msra.mxu0 0.0
    %1852 = vmatprep.subr.mxu0 0.0
    %1853 = vmatpush1.xpose.msra.mxu0 0.0
    %1854 = vmatprep.subr.mxu0 0.0
    %1855 = vmatpush1.xpose.msra.mxu0 0.0
    %1856 = vmatprep.subr.mxu0 0.0
    %1857 = vmatpush1.xpose.msra.mxu0 0.0
    %1858 = vmatprep.subr.mxu0 0.0
    %1859 = vmatpush1.xpose.msra.mxu0 0.0
    %1860 = vmatprep.mubr.f32.mxu0 0.0
    %1861 = vmatmul.mubr.f32.gmra.mrb[0].mxu0 %v1788
    %v1862 = vpop.f32.mrb[0].mxu0
    %v1863 = vadd.f32 0.0, %v1862
    %v1864 = vpop.f32.mrb[0].mxu0
    %1865 = vmatprep.mubr.f32.mxu0 0.0
    %1866 = vmatmul.mubr.f32.gmra.mrb[0].mxu0 %v1790
    %v1867 = vpop.f32.mrb[0].mxu0
    %v1868 = vadd.f32 0.0, %v1867
    %v1869 = vpop.f32.mrb[0].mxu0
    %1870 = vdwg.mxu0
    %1871 = vrot.lane.b32.xlu0 %v576, 64
    %v1872 = vpop.permute.xlu0 %1871
    %1873 = vrot.lane.b32.xlu0 %v578, 64
    %v1874 = vpop.permute.xlu0 %1873
    %v1875 = vsel %vm743, %v512, 0
    %v1877 = vsel %vm743, %v514, 0
    %v1879 = vsel %vm743, %v1872, 0
    %v1881 = vsel %vm743, %v1874, 0
    %1883 = vmatprep.subr.mxu0 0.0
    %1884 = vmatpush1.xpose.msra.mxu0 %v1879
    %1885 = vmatprep.subr.mxu0 0.0
    %1886 = vmatpush1.xpose.msra.mxu0 %v1881
    %1887 = vmatprep.subr.mxu0 0.0
    %1888 = vmatpush1.xpose.msra.mxu0 0.0
    %1889 = vmatprep.subr.mxu0 0.0
    %1890 = vmatpush1.xpose.msra.mxu0 0.0
    %1891 = vmatprep.subr.mxu0 0.0
    %1892 = vmatpush1.xpose.msra.mxu0 0.0
    %1893 = vmatprep.subr.mxu0 0.0
    %1894 = vmatpush1.xpose.msra.mxu0 0.0
    %1895 = vmatprep.subr.mxu0 0.0
    %1896 = vmatpush1.xpose.msra.mxu0 0.0
    %1897 = vmatprep.subr.mxu0 0.0
    %1898 = vmatpush1.xpose.msra.mxu0 0.0
    %1899 = vmatprep.subr.mxu0 0.0
    %1900 = vmatpush1.xpose.msra.mxu0 0.0
    %1901 = vmatprep.subr.mxu0 0.0
    %1902 = vmatpush1.xpose.msra.mxu0 0.0
    %1903 = vmatprep.subr.mxu0 0.0
    %1904 = vmatpush1.xpose.msra.mxu0 0.0
    %1905 = vmatprep.subr.mxu0 0.0
    %1906 = vmatpush1.xpose.msra.mxu0 0.0
    %1907 = vmatprep.subr.mxu0 0.0
    %1908 = vmatpush1.xpose.msra.mxu0 0.0
    %1909 = vmatprep.subr.mxu0 0.0
    %1910 = vmatpush1.xpose.msra.mxu0 0.0
    %1911 = vmatprep.subr.mxu0 0.0
    %1912 = vmatpush1.xpose.msra.mxu0 0.0
    %1913 = vmatprep.subr.mxu0 0.0
    %1914 = vmatpush1.xpose.msra.mxu0 0.0
    %1915 = vmatprep.subr.mxu0 0.0
    %1916 = vmatpush1.xpose.msra.mxu0 0.0
    %1917 = vmatprep.subr.mxu0 0.0
    %1918 = vmatpush1.xpose.msra.mxu0 0.0
    %1919 = vmatprep.subr.mxu0 0.0
    %1920 = vmatpush1.xpose.msra.mxu0 0.0
    %1921 = vmatprep.subr.mxu0 0.0
    %1922 = vmatpush1.xpose.msra.mxu0 0.0
    %1923 = vmatprep.subr.mxu0 0.0
    %1924 = vmatpush1.xpose.msra.mxu0 0.0
    %1925 = vmatprep.subr.mxu0 0.0
    %1926 = vmatpush1.xpose.msra.mxu0 0.0
    %1927 = vmatprep.subr.mxu0 0.0
    %1928 = vmatpush1.xpose.msra.mxu0 0.0
    %1929 = vmatprep.subr.mxu0 0.0
    %1930 = vmatpush1.xpose.msra.mxu0 0.0
    %1931 = vmatprep.subr.mxu0 0.0
    %1932 = vmatpush1.xpose.msra.mxu0 0.0
    %1933 = vmatprep.subr.mxu0 0.0
    %1934 = vmatpush1.xpose.msra.mxu0 0.0
    %1935 = vmatprep.subr.mxu0 0.0
    %1936 = vmatpush1.xpose.msra.mxu0 0.0
    %1937 = vmatprep.subr.mxu0 0.0
    %1938 = vmatpush1.xpose.msra.mxu0 0.0
    %1939 = vmatprep.subr.mxu0 0.0
    %1940 = vmatpush1.xpose.msra.mxu0 0.0
    %1941 = vmatprep.subr.mxu0 0.0
    %1942 = vmatpush1.xpose.msra.mxu0 0.0
    %1943 = vmatprep.subr.mxu0 0.0
    %1944 = vmatpush1.xpose.msra.mxu0 0.0
    %1945 = vmatprep.subr.mxu0 0.0
    %1946 = vmatpush1.xpose.msra.mxu0 0.0
    %1947 = vmatprep.mubr.f32.mxu0 0.0
    %1948 = vmatmul.mubr.f32.gmra.mrb[0].mxu0 %v1875
    %v1949 = vpop.f32.mrb[0].mxu0
    %v1950 = vadd.f32 0.0, %v1949
    %v1951 = vpop.f32.mrb[0].mxu0
    %1952 = vmatprep.mubr.f32.mxu0 0.0
    %1953 = vmatmul.mubr.f32.gmra.mrb[0].mxu0 %v1877
    %v1954 = vpop.f32.mrb[0].mxu0
    %v1955 = vadd.f32 0.0, %v1954
    %v1956 = vpop.f32.mrb[0].mxu0
    %1957 = vdwg.mxu0
    %1958 = vrot.lane.b32.xlu0 %v580, 64
    %v1959 = vpop.permute.xlu0 %1958
    %1960 = vrot.lane.b32.xlu0 %v582, 64
    %v1961 = vpop.permute.xlu0 %1960
    %v1962 = vsel %vm743, %v516, 0
    %v1964 = vsel %vm743, %v518, 0
    %v1966 = vsel %vm743, %v1959, 0
    %v1968 = vsel %vm743, %v1961, 0
    %1970 = vmatprep.subr.mxu0 0.0
    %1971 = vmatpush1.xpose.msra.mxu0 %v1966
    %1972 = vmatprep.subr.mxu0 0.0
    %1973 = vmatpush1.xpose.msra.mxu0 %v1968
    %1974 = vmatprep.subr.mxu0 0.0
    %1975 = vmatpush1.xpose.msra.mxu0 0.0
    %1976 = vmatprep.subr.mxu0 0.0
    %1977 = vmatpush1.xpose.msra.mxu0 0.0
    %1978 = vmatprep.subr.mxu0 0.0
    %1979 = vmatpush1.xpose.msra.mxu0 0.0
    %1980 = vmatprep.subr.mxu0 0.0
    %1981 = vmatpush1.xpose.msra.mxu0 0.0
    %1982 = vmatprep.subr.mxu0 0.0
    %1983 = vmatpush1.xpose.msra.mxu0 0.0
    %1984 = vmatprep.subr.mxu0 0.0
    %1985 = vmatpush1.xpose.msra.mxu0 0.0
    %1986 = vmatprep.subr.mxu0 0.0
    %1987 = vmatpush1.xpose.msra.mxu0 0.0
    %1988 = vmatprep.subr.mxu0 0.0
    %1989 = vmatpush1.xpose.msra.mxu0 0.0
    %1990 = vmatprep.subr.mxu0 0.0
    %1991 = vmatpush1.xpose.msra.mxu0 0.0
    %1992 = vmatprep.subr.mxu0 0.0
    %1993 = vmatpush1.xpose.msra.mxu0 0.0
    %1994 = vmatprep.subr.mxu0 0.0
    %1995 = vmatpush1.xpose.msra.mxu0 0.0
    %1996 = vmatprep.subr.mxu0 0.0
    %1997 = vmatpush1.xpose.msra.mxu0 0.0
    %1998 = vmatprep.subr.mxu0 0.0
    %1999 = vmatpush1.xpose.msra.mxu0 0.0
    %2000 = vmatprep.subr.mxu0 0.0
    %2001 = vmatpush1.xpose.msra.mxu0 0.0
    %2002 = vmatprep.subr.mxu0 0.0
    %2003 = vmatpush1.xpose.msra.mxu0 0.0
    %2004 = vmatprep.subr.mxu0 0.0
    %2005 = vmatpush1.xpose.msra.mxu0 0.0
    %2006 = vmatprep.subr.mxu0 0.0
    %2007 = vmatpush1.xpose.msra.mxu0 0.0
    %2008 = vmatprep.subr.mxu0 0.0
    %2009 = vmatpush1.xpose.msra.mxu0 0.0
    %2010 = vmatprep.subr.mxu0 0.0
    %2011 = vmatpush1.xpose.msra.mxu0 0.0
    %2012 = vmatprep.subr.mxu0 0.0
    %2013 = vmatpush1.xpose.msra.mxu0 0.0
    %2014 = vmatprep.subr.mxu0 0.0
    %2015 = vmatpush1.xpose.msra.mxu0 0.0
    %2016 = vmatprep.subr.mxu0 0.0
    %2017 = vmatpush1.xpose.msra.mxu0 0.0
    %2018 = vmatprep.subr.mxu0 0.0
    %2019 = vmatpush1.xpose.msra.mxu0 0.0
    %2020 = vmatprep.subr.mxu0 0.0
    %2021 = vmatpush1.xpose.msra.mxu0 0.0
    %2022 = vmatprep.subr.mxu0 0.0
    %2023 = vmatpush1.xpose.msra.mxu0 0.0
    %2024 = vmatprep.subr.mxu0 0.0
    %2025 = vmatpush1.xpose.msra.mxu0 0.0
    %2026 = vmatprep.subr.mxu0 0.0
    %2027 = vmatpush1.xpose.msra.mxu0 0.0
    %2028 = vmatprep.subr.mxu0 0.0
    %2029 = vmatpush1.xpose.msra.mxu0 0.0
    %2030 = vmatprep.subr.mxu0 0.0
    %2031 = vmatpush1.xpose.msra.mxu0 0.0
    %2032 = vmatprep.subr.mxu0 0.0
    %2033 = vmatpush1.xpose.msra.mxu0 0.0
    %2034 = vmatprep.mubr.f32.mxu0 0.0
    %2035 = vmatmul.mubr.f32.gmra.mrb[0].mxu0 %v1962
    %v2036 = vpop.f32.mrb[0].mxu0
    %v2037 = vadd.f32 0.0, %v2036
    %v2038 = vpop.f32.mrb[0].mxu0
    %2039 = vmatprep.mubr.f32.mxu0 0.0
    %2040 = vmatmul.mubr.f32.gmra.mrb[0].mxu0 %v1964
    %v2041 = vpop.f32.mrb[0].mxu0
    %v2042 = vadd.f32 0.0, %v2041
    %v2043 = vpop.f32.mrb[0].mxu0
    %2044 = vdwg.mxu0
    %2045 = vrot.lane.b32.xlu0 %v584, 64
    %v2046 = vpop.permute.xlu0 %2045
    %2047 = vrot.lane.b32.xlu0 %v586, 64
    %v2048 = vpop.permute.xlu0 %2047
    %v2049 = vsel %vm743, %v520, 0
    %v2051 = vsel %vm743, %v522, 0
    %v2053 = vsel %vm743, %v2046, 0
    %v2055 = vsel %vm743, %v2048, 0
    %2057 = vmatprep.subr.mxu0 0.0
    %2058 = vmatpush1.xpose.msra.mxu0 %v2053
    %2059 = vmatprep.subr.mxu0 0.0
    %2060 = vmatpush1.xpose.msra.mxu0 %v2055
    %2061 = vmatprep.subr.mxu0 0.0
    %2062 = vmatpush1.xpose.msra.mxu0 0.0
    %2063 = vmatprep.subr.mxu0 0.0
    %2064 = vmatpush1.xpose.msra.mxu0 0.0
    %2065 = vmatprep.subr.mxu0 0.0
    %2066 = vmatpush1.xpose.msra.mxu0 0.0
    %2067 = vmatprep.subr.mxu0 0.0
    %2068 = vmatpush1.xpose.msra.mxu0 0.0
    %2069 = vmatprep.subr.mxu0 0.0
    %2070 = vmatpush1.xpose.msra.mxu0 0.0
    %2071 = vmatprep.subr.mxu0 0.0
    %2072 = vmatpush1.xpose.msra.mxu0 0.0
    %2073 = vmatprep.subr.mxu0 0.0
    %2074 = vmatpush1.xpose.msra.mxu0 0.0
    %2075 = vmatprep.subr.mxu0 0.0
    %2076 = vmatpush1.xpose.msra.mxu0 0.0
    %2077 = vmatprep.subr.mxu0 0.0
    %2078 = vmatpush1.xpose.msra.mxu0 0.0
    %2079 = vmatprep.subr.mxu0 0.0
    %2080 = vmatpush1.xpose.msra.mxu0 0.0
    %2081 = vmatprep.subr.mxu0 0.0
    %2082 = vmatpush1.xpose.msra.mxu0 0.0
    %2083 = vmatprep.subr.mxu0 0.0
    %2084 = vmatpush1.xpose.msra.mxu0 0.0
    %2085 = vmatprep.subr.mxu0 0.0
    %2086 = vmatpush1.xpose.msra.mxu0 0.0
    %2087 = vmatprep.subr.mxu0 0.0
    %2088 = vmatpush1.xpose.msra.mxu0 0.0
    %2089 = vmatprep.subr.mxu0 0.0
    %2090 = vmatpush1.xpose.msra.mxu0 0.0
    %2091 = vmatprep.subr.mxu0 0.0
    %2092 = vmatpush1.xpose.msra.mxu0 0.0
    %2093 = vmatprep.subr.mxu0 0.0
    %2094 = vmatpush1.xpose.msra.mxu0 0.0
    %2095 = vmatprep.subr.mxu0 0.0
    %2096 = vmatpush1.xpose.msra.mxu0 0.0
    %2097 = vmatprep.subr.mxu0 0.0
    %2098 = vmatpush1.xpose.msra.mxu0 0.0
    %2099 = vmatprep.subr.mxu0 0.0
    %2100 = vmatpush1.xpose.msra.mxu0 0.0
    %2101 = vmatprep.subr.mxu0 0.0
    %2102 = vmatpush1.xpose.msra.mxu0 0.0
    %2103 = vmatprep.subr.mxu0 0.0
    %2104 = vmatpush1.xpose.msra.mxu0 0.0
    %2105 = vmatprep.subr.mxu0 0.0
    %2106 = vmatpush1.xpose.msra.mxu0 0.0
    %2107 = vmatprep.subr.mxu0 0.0
    %2108 = vmatpush1.xpose.msra.mxu0 0.0
    %2109 = vmatprep.subr.mxu0 0.0
    %2110 = vmatpush1.xpose.msra.mxu0 0.0
    %2111 = vmatprep.subr.mxu0 0.0
    %2112 = vmatpush1.xpose.msra.mxu0 0.0
    %2113 = vmatprep.subr.mxu0 0.0
    %2114 = vmatpush1.xpose.msra.mxu0 0.0
    %2115 = vmatprep.subr.mxu0 0.0
    %2116 = vmatpush1.xpose.msra.mxu0 0.0
    %2117 = vmatprep.subr.mxu0 0.0
    %2118 = vmatpush1.xpose.msra.mxu0 0.0
    %2119 = vmatprep.subr.mxu0 0.0
    %2120 = vmatpush1.xpose.msra.mxu0 0.0
    %2121 = vmatprep.mubr.f32.mxu0 0.0
    %2122 = vmatmul.mubr.f32.gmra.mrb[0].mxu0 %v2049
    %v2123 = vpop.f32.mrb[0].mxu0
    %v2124 = vadd.f32 0.0, %v2123
    %v2125 = vpop.f32.mrb[0].mxu0
    %2126 = vmatprep.mubr.f32.mxu0 0.0
    %2127 = vmatmul.mubr.f32.gmra.mrb[0].mxu0 %v2051
    %v2128 = vpop.f32.mrb[0].mxu0
    %v2129 = vadd.f32 0.0, %v2128
    %v2130 = vpop.f32.mrb[0].mxu0
    %2131 = vdwg.mxu0
    %v2132 = vsel %vm743, %v269, 0
    %v2134 = vsel %vm743, %v275, 0
    %v2136 = vsel %vm743, %v556, 0
    %v2138 = vsel %vm743, %v558, 0
    %2140 = vmatprep.subr.mxu0 0.0
    %2141 = vmatpush1.xpose.msra.mxu0 %v2136
    %2142 = vmatprep.subr.mxu0 0.0
    %2143 = vmatpush1.xpose.msra.mxu0 %v2138
    %2144 = vmatprep.subr.mxu0 0.0
    %2145 = vmatpush1.xpose.msra.mxu0 0.0
    %2146 = vmatprep.subr.mxu0 0.0
    %2147 = vmatpush1.xpose.msra.mxu0 0.0
    %2148 = vmatprep.subr.mxu0 0.0
    %2149 = vmatpush1.xpose.msra.mxu0 0.0
    %2150 = vmatprep.subr.mxu0 0.0
    %2151 = vmatpush1.xpose.msra.mxu0 0.0
    %2152 = vmatprep.subr.mxu0 0.0
    %2153 = vmatpush1.xpose.msra.mxu0 0.0
    %2154 = vmatprep.subr.mxu0 0.0
    %2155 = vmatpush1.xpose.msra.mxu0 0.0
    %2156 = vmatprep.subr.mxu0 0.0
    %2157 = vmatpush1.xpose.msra.mxu0 0.0
    %2158 = vmatprep.subr.mxu0 0.0
    %2159 = vmatpush1.xpose.msra.mxu0 0.0
    %2160 = vmatprep.subr.mxu0 0.0
    %2161 = vmatpush1.xpose.msra.mxu0 0.0
    %2162 = vmatprep.subr.mxu0 0.0
    %2163 = vmatpush1.xpose.msra.mxu0 0.0
    %2164 = vmatprep.subr.mxu0 0.0
    %2165 = vmatpush1.xpose.msra.mxu0 0.0
    %2166 = vmatprep.subr.mxu0 0.0
    %2167 = vmatpush1.xpose.msra.mxu0 0.0
    %2168 = vmatprep.subr.mxu0 0.0
    %2169 = vmatpush1.xpose.msra.mxu0 0.0
    %2170 = vmatprep.subr.mxu0 0.0
    %2171 = vmatpush1.xpose.msra.mxu0 0.0
    %2172 = vmatprep.subr.mxu0 0.0
    %2173 = vmatpush1.xpose.msra.mxu0 0.0
    %2174 = vmatprep.subr.mxu0 0.0
    %2175 = vmatpush1.xpose.msra.mxu0 0.0
    %2176 = vmatprep.subr.mxu0 0.0
    %2177 = vmatpush1.xpose.msra.mxu0 0.0
    %2178 = vmatprep.subr.mxu0 0.0
    %2179 = vmatpush1.xpose.msra.mxu0 0.0
    %2180 = vmatprep.subr.mxu0 0.0
    %2181 = vmatpush1.xpose.msra.mxu0 0.0
    %2182 = vmatprep.subr.mxu0 0.0
    %2183 = vmatpush1.xpose.msra.mxu0 0.0
    %2184 = vmatprep.subr.mxu0 0.0
    %2185 = vmatpush1.xpose.msra.mxu0 0.0
    %2186 = vmatprep.subr.mxu0 0.0
    %2187 = vmatpush1.xpose.msra.mxu0 0.0
    %2188 = vmatprep.subr.mxu0 0.0
    %2189 = vmatpush1.xpose.msra.mxu0 0.0
    %2190 = vmatprep.subr.mxu0 0.0
    %2191 = vmatpush1.xpose.msra.mxu0 0.0
    %2192 = vmatprep.subr.mxu0 0.0
    %2193 = vmatpush1.xpose.msra.mxu0 0.0
    %2194 = vmatprep.subr.mxu0 0.0
    %2195 = vmatpush1.xpose.msra.mxu0 0.0
    %2196 = vmatprep.subr.mxu0 0.0
    %2197 = vmatpush1.xpose.msra.mxu0 0.0
    %2198 = vmatprep.subr.mxu0 0.0
    %2199 = vmatpush1.xpose.msra.mxu0 0.0
    %2200 = vmatprep.subr.mxu0 0.0
    %2201 = vmatpush1.xpose.msra.mxu0 0.0
    %2202 = vmatprep.subr.mxu0 0.0
    %2203 = vmatpush1.xpose.msra.mxu0 0.0
    %2204 = vmatprep.mubr.f32.mxu0 0.0
    %2205 = vmatmul.mubr.f32.gmra.mrb[0].mxu0 %v2132
    %v2206 = vpop.f32.mrb[0].mxu0
    %v2207 = vadd.f32 0.0, %v2206
    %v2208 = vpop.f32.mrb[0].mxu0
    %2209 = vmatprep.mubr.f32.mxu0 0.0
    %2210 = vmatmul.mubr.f32.gmra.mrb[0].mxu0 %v2134
    %v2211 = vpop.f32.mrb[0].mxu0
    %v2212 = vadd.f32 0.0, %v2211
    %v2213 = vpop.f32.mrb[0].mxu0
    %2214 = vdwg.mxu0
    %v2215 = vsel %vm743, %v281, 0
    %v2217 = vsel %vm743, %v287, 0
    %v2219 = vsel %vm743, %v560, 0
    %v2221 = vsel %vm743, %v562, 0
    %2223 = vmatprep.subr.mxu0 0.0
    %2224 = vmatpush1.xpose.msra.mxu0 %v2219
    %2225 = vmatprep.subr.mxu0 0.0
    %2226 = vmatpush1.xpose.msra.mxu0 %v2221
    %2227 = vmatprep.subr.mxu0 0.0
    %2228 = vmatpush1.xpose.msra.mxu0 0.0
    %2229 = vmatprep.subr.mxu0 0.0
    %2230 = vmatpush1.xpose.msra.mxu0 0.0
    %2231 = vmatprep.subr.mxu0 0.0
    %2232 = vmatpush1.xpose.msra.mxu0 0.0
    %2233 = vmatprep.subr.mxu0 0.0
    %2234 = vmatpush1.xpose.msra.mxu0 0.0
    %2235 = vmatprep.subr.mxu0 0.0
    %2236 = vmatpush1.xpose.msra.mxu0 0.0
    %2237 = vmatprep.subr.mxu0 0.0
    %2238 = vmatpush1.xpose.msra.mxu0 0.0
    %2239 = vmatprep.subr.mxu0 0.0
    %2240 = vmatpush1.xpose.msra.mxu0 0.0
    %2241 = vmatprep.subr.mxu0 0.0
    %2242 = vmatpush1.xpose.msra.mxu0 0.0
    %2243 = vmatprep.subr.mxu0 0.0
    %2244 = vmatpush1.xpose.msra.mxu0 0.0
    %2245 = vmatprep.subr.mxu0 0.0
    %2246 = vmatpush1.xpose.msra.mxu0 0.0
    %2247 = vmatprep.subr.mxu0 0.0
    %2248 = vmatpush1.xpose.msra.mxu0 0.0
    %2249 = vmatprep.subr.mxu0 0.0
    %2250 = vmatpush1.xpose.msra.mxu0 0.0
    %2251 = vmatprep.subr.mxu0 0.0
    %2252 = vmatpush1.xpose.msra.mxu0 0.0
    %2253 = vmatprep.subr.mxu0 0.0
    %2254 = vmatpush1.xpose.msra.mxu0 0.0
    %2255 = vmatprep.subr.mxu0 0.0
    %2256 = vmatpush1.xpose.msra.mxu0 0.0
    %2257 = vmatprep.subr.mxu0 0.0
    %2258 = vmatpush1.xpose.msra.mxu0 0.0
    %2259 = vmatprep.subr.mxu0 0.0
    %2260 = vmatpush1.xpose.msra.mxu0 0.0
    %2261 = vmatprep.subr.mxu0 0.0
    %2262 = vmatpush1.xpose.msra.mxu0 0.0
    %2263 = vmatprep.subr.mxu0 0.0
    %2264 = vmatpush1.xpose.msra.mxu0 0.0
    %2265 = vmatprep.subr.mxu0 0.0
    %2266 = vmatpush1.xpose.msra.mxu0 0.0
    %2267 = vmatprep.subr.mxu0 0.0
    %2268 = vmatpush1.xpose.msra.mxu0 0.0
    %2269 = vmatprep.subr.mxu0 0.0
    %2270 = vmatpush1.xpose.msra.mxu0 0.0
    %2271 = vmatprep.subr.mxu0 0.0
    %2272 = vmatpush1.xpose.msra.mxu0 0.0
    %2273 = vmatprep.subr.mxu0 0.0
    %2274 = vmatpush1.xpose.msra.mxu0 0.0
    %2275 = vmatprep.subr.mxu0 0.0
    %2276 = vmatpush1.xpose.msra.mxu0 0.0
    %2277 = vmatprep.subr.mxu0 0.0
    %2278 = vmatpush1.xpose.msra.mxu0 0.0
    %2279 = vmatprep.subr.mxu0 0.0
    %2280 = vmatpush1.xpose.msra.mxu0 0.0
    %2281 = vmatprep.subr.mxu0 0.0
    %2282 = vmatpush1.xpose.msra.mxu0 0.0
    %2283 = vmatprep.subr.mxu0 0.0
    %2284 = vmatpush1.xpose.msra.mxu0 0.0
    %2285 = vmatprep.subr.mxu0 0.0
    %2286 = vmatpush1.xpose.msra.mxu0 0.0
    %2287 = vmatprep.mubr.f32.mxu0 0.0
    %2288 = vmatmul.mubr.f32.gmra.mrb[0].mxu0 %v2215
    %v2289 = vpop.f32.mrb[0].mxu0
    %v2290 = vadd.f32 0.0, %v2289
    %v2291 = vpop.f32.mrb[0].mxu0
    %2292 = vmatprep.mubr.f32.mxu0 0.0
    %2293 = vmatmul.mubr.f32.gmra.mrb[0].mxu0 %v2217
    %v2294 = vpop.f32.mrb[0].mxu0
    %v2295 = vadd.f32 0.0, %v2294
    %v2296 = vpop.f32.mrb[0].mxu0
    %2297 = vdwg.mxu0
    %2298 = vrot.lane.b32.xlu0 %v588, 64
    %v2299 = vpop.permute.xlu0 %2298
    %2300 = vrot.lane.b32.xlu0 %v590, 64
    %v2301 = vpop.permute.xlu0 %2300
    %v2302 = vsel %vm743, %v528, 0
    %v2304 = vsel %vm743, %v530, 0
    %v2306 = vsel %vm743, %v2299, 0
    %v2308 = vsel %vm743, %v2301, 0
    %2310 = vmatprep.subr.mxu0 0.0
    %2311 = vmatpush1.xpose.msra.mxu0 %v2306
    %2312 = vmatprep.subr.mxu0 0.0
    %2313 = vmatpush1.xpose.msra.mxu0 %v2308
    %2314 = vmatprep.subr.mxu0 0.0
    %2315 = vmatpush1.xpose.msra.mxu0 0.0
    %2316 = vmatprep.subr.mxu0 0.0
    %2317 = vmatpush1.xpose.msra.mxu0 0.0
    %2318 = vmatprep.subr.mxu0 0.0
    %2319 = vmatpush1.xpose.msra.mxu0 0.0
    %2320 = vmatprep.subr.mxu0 0.0
    %2321 = vmatpush1.xpose.msra.mxu0 0.0
    %2322 = vmatprep.subr.mxu0 0.0
    %2323 = vmatpush1.xpose.msra.mxu0 0.0
    %2324 = vmatprep.subr.mxu0 0.0
    %2325 = vmatpush1.xpose.msra.mxu0 0.0
    %2326 = vmatprep.subr.mxu0 0.0
    %2327 = vmatpush1.xpose.msra.mxu0 0.0
    %2328 = vmatprep.subr.mxu0 0.0
    %2329 = vmatpush1.xpose.msra.mxu0 0.0
    %2330 = vmatprep.subr.mxu0 0.0
    %2331 = vmatpush1.xpose.msra.mxu0 0.0
    %2332 = vmatprep.subr.mxu0 0.0
    %2333 = vmatpush1.xpose.msra.mxu0 0.0
    %2334 = vmatprep.subr.mxu0 0.0
    %2335 = vmatpush1.xpose.msra.mxu0 0.0
    %2336 = vmatprep.subr.mxu0 0.0
    %2337 = vmatpush1.xpose.msra.mxu0 0.0
    %2338 = vmatprep.subr.mxu0 0.0
    %2339 = vmatpush1.xpose.msra.mxu0 0.0
    %2340 = vmatprep.subr.mxu0 0.0
    %2341 = vmatpush1.xpose.msra.mxu0 0.0
    %2342 = vmatprep.subr.mxu0 0.0
    %2343 = vmatpush1.xpose.msra.mxu0 0.0
    %2344 = vmatprep.subr.mxu0 0.0
    %2345 = vmatpush1.xpose.msra.mxu0 0.0
    %2346 = vmatprep.subr.mxu0 0.0
    %2347 = vmatpush1.xpose.msra.mxu0 0.0
    %2348 = vmatprep.subr.mxu0 0.0
    %2349 = vmatpush1.xpose.msra.mxu0 0.0
    %2350 = vmatprep.subr.mxu0 0.0
    %2351 = vmatpush1.xpose.msra.mxu0 0.0
    %2352 = vmatprep.subr.mxu0 0.0
    %2353 = vmatpush1.xpose.msra.mxu0 0.0
    %2354 = vmatprep.subr.mxu0 0.0
    %2355 = vmatpush1.xpose.msra.mxu0 0.0
    %2356 = vmatprep.subr.mxu0 0.0
    %2357 = vmatpush1.xpose.msra.mxu0 0.0
    %2358 = vmatprep.subr.mxu0 0.0
    %2359 = vmatpush1.xpose.msra.mxu0 0.0
    %2360 = vmatprep.subr.mxu0 0.0
    %2361 = vmatpush1.xpose.msra.mxu0 0.0
    %2362 = vmatprep.subr.mxu0 0.0
    %2363 = vmatpush1.xpose.msra.mxu0 0.0
    %2364 = vmatprep.subr.mxu0 0.0
    %2365 = vmatpush1.xpose.msra.mxu0 0.0
    %2366 = vmatprep.subr.mxu0 0.0
    %2367 = vmatpush1.xpose.msra.mxu0 0.0
    %2368 = vmatprep.subr.mxu0 0.0
    %2369 = vmatpush1.xpose.msra.mxu0 0.0
    %2370 = vmatprep.subr.mxu0 0.0
    %2371 = vmatpush1.xpose.msra.mxu0 0.0
    %2372 = vmatprep.subr.mxu0 0.0
    %2373 = vmatpush1.xpose.msra.mxu0 0.0
    %2374 = vmatprep.mubr.f32.mxu0 0.0
    %2375 = vmatmul.mubr.f32.gmra.mrb[0].mxu0 %v2302
    %v2376 = vpop.f32.mrb[0].mxu0
    %v2377 = vadd.f32 0.0, %v2376
    %v2378 = vpop.f32.mrb[0].mxu0
    %2379 = vmatprep.mubr.f32.mxu0 0.0
    %2380 = vmatmul.mubr.f32.gmra.mrb[0].mxu0 %v2304
    %v2381 = vpop.f32.mrb[0].mxu0
    %v2382 = vadd.f32 0.0, %v2381
    %v2383 = vpop.f32.mrb[0].mxu0
    %2384 = vdwg.mxu0
    %2385 = vrot.lane.b32.xlu0 %v592, 64
    %v2386 = vpop.permute.xlu0 %2385
    %2387 = vrot.lane.b32.xlu0 %v594, 64
    %v2388 = vpop.permute.xlu0 %2387
    %v2389 = vsel %vm743, %v532, 0
    %v2391 = vsel %vm743, %v534, 0
    %v2393 = vsel %vm743, %v2386, 0
    %v2395 = vsel %vm743, %v2388, 0
    %2397 = vmatprep.subr.mxu0 0.0
    %2398 = vmatpush1.xpose.msra.mxu0 %v2393
    %2399 = vmatprep.subr.mxu0 0.0
    %2400 = vmatpush1.xpose.msra.mxu0 %v2395
    %2401 = vmatprep.subr.mxu0 0.0
    %2402 = vmatpush1.xpose.msra.mxu0 0.0
    %2403 = vmatprep.subr.mxu0 0.0
    %2404 = vmatpush1.xpose.msra.mxu0 0.0
    %2405 = vmatprep.subr.mxu0 0.0
    %2406 = vmatpush1.xpose.msra.mxu0 0.0
    %2407 = vmatprep.subr.mxu0 0.0
    %2408 = vmatpush1.xpose.msra.mxu0 0.0
    %2409 = vmatprep.subr.mxu0 0.0
    %2410 = vmatpush1.xpose.msra.mxu0 0.0
    %2411 = vmatprep.subr.mxu0 0.0
    %2412 = vmatpush1.xpose.msra.mxu0 0.0
    %2413 = vmatprep.subr.mxu0 0.0
    %2414 = vmatpush1.xpose.msra.mxu0 0.0
    %2415 = vmatprep.subr.mxu0 0.0
    %2416 = vmatpush1.xpose.msra.mxu0 0.0
    %2417 = vmatprep.subr.mxu0 0.0
    %2418 = vmatpush1.xpose.msra.mxu0 0.0
    %2419 = vmatprep.subr.mxu0 0.0
    %2420 = vmatpush1.xpose.msra.mxu0 0.0
    %2421 = vmatprep.subr.mxu0 0.0
    %2422 = vmatpush1.xpose.msra.mxu0 0.0
    %2423 = vmatprep.subr.mxu0 0.0
    %2424 = vmatpush1.xpose.msra.mxu0 0.0
    %2425 = vmatprep.subr.mxu0 0.0
    %2426 = vmatpush1.xpose.msra.mxu0 0.0
    %2427 = vmatprep.subr.mxu0 0.0
    %2428 = vmatpush1.xpose.msra.mxu0 0.0
    %2429 = vmatprep.subr.mxu0 0.0
    %2430 = vmatpush1.xpose.msra.mxu0 0.0
    %2431 = vmatprep.subr.mxu0 0.0
    %2432 = vmatpush1.xpose.msra.mxu0 0.0
    %2433 = vmatprep.subr.mxu0 0.0
    %2434 = vmatpush1.xpose.msra.mxu0 0.0
    %2435 = vmatprep.subr.mxu0 0.0
    %2436 = vmatpush1.xpose.msra.mxu0 0.0
    %2437 = vmatprep.subr.mxu0 0.0
    %2438 = vmatpush1.xpose.msra.mxu0 0.0
    %2439 = vmatprep.subr.mxu0 0.0
    %2440 = vmatpush1.xpose.msra.mxu0 0.0
    %2441 = vmatprep.subr.mxu0 0.0
    %2442 = vmatpush1.xpose.msra.mxu0 0.0
    %2443 = vmatprep.subr.mxu0 0.0
    %2444 = vmatpush1.xpose.msra.mxu0 0.0
    %2445 = vmatprep.subr.mxu0 0.0
    %2446 = vmatpush1.xpose.msra.mxu0 0.0
    %2447 = vmatprep.subr.mxu0 0.0
    %2448 = vmatpush1.xpose.msra.mxu0 0.0
    %2449 = vmatprep.subr.mxu0 0.0
    %2450 = vmatpush1.xpose.msra.mxu0 0.0
    %2451 = vmatprep.subr.mxu0 0.0
    %2452 = vmatpush1.xpose.msra.mxu0 0.0
    %2453 = vmatprep.subr.mxu0 0.0
    %2454 = vmatpush1.xpose.msra.mxu0 0.0
    %2455 = vmatprep.subr.mxu0 0.0
    %2456 = vmatpush1.xpose.msra.mxu0 0.0
    %2457 = vmatprep.subr.mxu0 0.0
    %2458 = vmatpush1.xpose.msra.mxu0 0.0
    %2459 = vmatprep.subr.mxu0 0.0
    %2460 = vmatpush1.xpose.msra.mxu0 0.0
    %2461 = vmatprep.mubr.f32.mxu0 0.0
    %2462 = vmatmul.mubr.f32.gmra.mrb[0].mxu0 %v2389
    %v2463 = vpop.f32.mrb[0].mxu0
    %v2464 = vadd.f32 0.0, %v2463
    %v2465 = vpop.f32.mrb[0].mxu0
    %2466 = vmatprep.mubr.f32.mxu0 0.0
    %2467 = vmatmul.mubr.f32.gmra.mrb[0].mxu0 %v2391
    %v2468 = vpop.f32.mrb[0].mxu0
    %v2469 = vadd.f32 0.0, %v2468
    %v2470 = vpop.f32.mrb[0].mxu0
    %2471 = vdwg.mxu0
    %2472 = vrot.lane.b32.xlu0 %v596, 64
    %v2473 = vpop.permute.xlu0 %2472
    %2474 = vrot.lane.b32.xlu0 %v598, 64
    %v2475 = vpop.permute.xlu0 %2474
    %v2476 = vsel %vm743, %v536, 0
    %v2478 = vsel %vm743, %v538, 0
    %v2480 = vsel %vm743, %v2473, 0
    %v2482 = vsel %vm743, %v2475, 0
    %2484 = vmatprep.subr.mxu0 0.0
    %2485 = vmatpush1.xpose.msra.mxu0 %v2480
    %2486 = vmatprep.subr.mxu0 0.0
    %2487 = vmatpush1.xpose.msra.mxu0 %v2482
    %2488 = vmatprep.subr.mxu0 0.0
    %2489 = vmatpush1.xpose.msra.mxu0 0.0
    %2490 = vmatprep.subr.mxu0 0.0
    %2491 = vmatpush1.xpose.msra.mxu0 0.0
    %2492 = vmatprep.subr.mxu0 0.0
    %2493 = vmatpush1.xpose.msra.mxu0 0.0
    %2494 = vmatprep.subr.mxu0 0.0
    %2495 = vmatpush1.xpose.msra.mxu0 0.0
    %2496 = vmatprep.subr.mxu0 0.0
    %2497 = vmatpush1.xpose.msra.mxu0 0.0
    %2498 = vmatprep.subr.mxu0 0.0
    %2499 = vmatpush1.xpose.msra.mxu0 0.0
    %2500 = vmatprep.subr.mxu0 0.0
    %2501 = vmatpush1.xpose.msra.mxu0 0.0
    %2502 = vmatprep.subr.mxu0 0.0
    %2503 = vmatpush1.xpose.msra.mxu0 0.0
    %2504 = vmatprep.subr.mxu0 0.0
    %2505 = vmatpush1.xpose.msra.mxu0 0.0
    %2506 = vmatprep.subr.mxu0 0.0
    %2507 = vmatpush1.xpose.msra.mxu0 0.0
    %2508 = vmatprep.subr.mxu0 0.0
    %2509 = vmatpush1.xpose.msra.mxu0 0.0
    %2510 = vmatprep.subr.mxu0 0.0
    %2511 = vmatpush1.xpose.msra.mxu0 0.0
    %2512 = vmatprep.subr.mxu0 0.0
    %2513 = vmatpush1.xpose.msra.mxu0 0.0
    %2514 = vmatprep.subr.mxu0 0.0
    %2515 = vmatpush1.xpose.msra.mxu0 0.0
    %2516 = vmatprep.subr.mxu0 0.0
    %2517 = vmatpush1.xpose.msra.mxu0 0.0
    %2518 = vmatprep.subr.mxu0 0.0
    %2519 = vmatpush1.xpose.msra.mxu0 0.0
    %2520 = vmatprep.subr.mxu0 0.0
    %2521 = vmatpush1.xpose.msra.mxu0 0.0
    %2522 = vmatprep.subr.mxu0 0.0
    %2523 = vmatpush1.xpose.msra.mxu0 0.0
    %2524 = vmatprep.subr.mxu0 0.0
    %2525 = vmatpush1.xpose.msra.mxu0 0.0
    %2526 = vmatprep.subr.mxu0 0.0
    %2527 = vmatpush1.xpose.msra.mxu0 0.0
    %2528 = vmatprep.subr.mxu0 0.0
    %2529 = vmatpush1.xpose.msra.mxu0 0.0
    %2530 = vmatprep.subr.mxu0 0.0
    %2531 = vmatpush1.xpose.msra.mxu0 0.0
    %2532 = vmatprep.subr.mxu0 0.0
    %2533 = vmatpush1.xpose.msra.mxu0 0.0
    %2534 = vmatprep.subr.mxu0 0.0
    %2535 = vmatpush1.xpose.msra.mxu0 0.0
    %2536 = vmatprep.subr.mxu0 0.0
    %2537 = vmatpush1.xpose.msra.mxu0 0.0
    %2538 = vmatprep.subr.mxu0 0.0
    %2539 = vmatpush1.xpose.msra.mxu0 0.0
    %2540 = vmatprep.subr.mxu0 0.0
    %2541 = vmatpush1.xpose.msra.mxu0 0.0
    %2542 = vmatprep.subr.mxu0 0.0
    %2543 = vmatpush1.xpose.msra.mxu0 0.0
    %2544 = vmatprep.subr.mxu0 0.0
    %2545 = vmatpush1.xpose.msra.mxu0 0.0
    %2546 = vmatprep.subr.mxu0 0.0
    %2547 = vmatpush1.xpose.msra.mxu0 0.0
    %2548 = vmatprep.mubr.f32.mxu0 0.0
    %2549 = vmatmul.mubr.f32.gmra.mrb[0].mxu0 %v2476
    %v2550 = vpop.f32.mrb[0].mxu0
    %v2551 = vadd.f32 0.0, %v2550
    %v2552 = vpop.f32.mrb[0].mxu0
    %2553 = vmatprep.mubr.f32.mxu0 0.0
    %2554 = vmatmul.mubr.f32.gmra.mrb[0].mxu0 %v2478
    %v2555 = vpop.f32.mrb[0].mxu0
    %v2556 = vadd.f32 0.0, %v2555
    %v2557 = vpop.f32.mrb[0].mxu0
    %2558 = vdwg.mxu0
    %2559 = vrot.lane.b32.xlu0 %v600, 64
    %v2560 = vpop.permute.xlu0 %2559
    %2561 = vrot.lane.b32.xlu0 %v602, 64
    %v2562 = vpop.permute.xlu0 %2561
    %v2563 = vsel %vm743, %v540, 0
    %v2565 = vsel %vm743, %v542, 0
    %v2567 = vsel %vm743, %v2560, 0
    %v2569 = vsel %vm743, %v2562, 0
    %2571 = vmatprep.subr.mxu0 0.0
    %2572 = vmatpush1.xpose.msra.mxu0 %v2567
    %2573 = vmatprep.subr.mxu0 0.0
    %2574 = vmatpush1.xpose.msra.mxu0 %v2569
    %2575 = vmatprep.subr.mxu0 0.0
    %2576 = vmatpush1.xpose.msra.mxu0 0.0
    %2577 = vmatprep.subr.mxu0 0.0
    %2578 = vmatpush1.xpose.msra.mxu0 0.0
    %2579 = vmatprep.subr.mxu0 0.0
    %2580 = vmatpush1.xpose.msra.mxu0 0.0
    %2581 = vmatprep.subr.mxu0 0.0
    %2582 = vmatpush1.xpose.msra.mxu0 0.0
    %2583 = vmatprep.subr.mxu0 0.0
    %2584 = vmatpush1.xpose.msra.mxu0 0.0
    %2585 = vmatprep.subr.mxu0 0.0
    %2586 = vmatpush1.xpose.msra.mxu0 0.0
    %2587 = vmatprep.subr.mxu0 0.0
    %2588 = vmatpush1.xpose.msra.mxu0 0.0
    %2589 = vmatprep.subr.mxu0 0.0
    %2590 = vmatpush1.xpose.msra.mxu0 0.0
    %2591 = vmatprep.subr.mxu0 0.0
    %2592 = vmatpush1.xpose.msra.mxu0 0.0
    %2593 = vmatprep.subr.mxu0 0.0
    %2594 = vmatpush1.xpose.msra.mxu0 0.0
    %2595 = vmatprep.subr.mxu0 0.0
    %2596 = vmatpush1.xpose.msra.mxu0 0.0
    %2597 = vmatprep.subr.mxu0 0.0
    %2598 = vmatpush1.xpose.msra.mxu0 0.0
    %2599 = vmatprep.subr.mxu0 0.0
    %2600 = vmatpush1.xpose.msra.mxu0 0.0
    %2601 = vmatprep.subr.mxu0 0.0
    %2602 = vmatpush1.xpose.msra.mxu0 0.0
    %2603 = vmatprep.subr.mxu0 0.0
    %2604 = vmatpush1.xpose.msra.mxu0 0.0
    %2605 = vmatprep.subr.mxu0 0.0
    %2606 = vmatpush1.xpose.msra.mxu0 0.0
    %2607 = vmatprep.subr.mxu0 0.0
    %2608 = vmatpush1.xpose.msra.mxu0 0.0
    %2609 = vmatprep.subr.mxu0 0.0
    %2610 = vmatpush1.xpose.msra.mxu0 0.0
    %2611 = vmatprep.subr.mxu0 0.0
    %2612 = vmatpush1.xpose.msra.mxu0 0.0
    %2613 = vmatprep.subr.mxu0 0.0
    %2614 = vmatpush1.xpose.msra.mxu0 0.0
    %2615 = vmatprep.subr.mxu0 0.0
    %2616 = vmatpush1.xpose.msra.mxu0 0.0
    %2617 = vmatprep.subr.mxu0 0.0
    %2618 = vmatpush1.xpose.msra.mxu0 0.0
    %2619 = vmatprep.subr.mxu0 0.0
    %2620 = vmatpush1.xpose.msra.mxu0 0.0
    %2621 = vmatprep.subr.mxu0 0.0
    %2622 = vmatpush1.xpose.msra.mxu0 0.0
    %2623 = vmatprep.subr.mxu0 0.0
    %2624 = vmatpush1.xpose.msra.mxu0 0.0
    %2625 = vmatprep.subr.mxu0 0.0
    %2626 = vmatpush1.xpose.msra.mxu0 0.0
    %2627 = vmatprep.subr.mxu0 0.0
    %2628 = vmatpush1.xpose.msra.mxu0 0.0
    %2629 = vmatprep.subr.mxu0 0.0
    %2630 = vmatpush1.xpose.msra.mxu0 0.0
    %2631 = vmatprep.subr.mxu0 0.0
    %2632 = vmatpush1.xpose.msra.mxu0 0.0
    %2633 = vmatprep.subr.mxu0 0.0
    %2634 = vmatpush1.xpose.msra.mxu0 0.0
    %2635 = vmatprep.mubr.f32.mxu0 0.0
    %2636 = vmatmul.mubr.f32.gmra.mrb[0].mxu0 %v2563
    %v2637 = vpop.f32.mrb[0].mxu0
    %v2638 = vadd.f32 0.0, %v2637
    %v2639 = vpop.f32.mrb[0].mxu0
    %2640 = vmatprep.mubr.f32.mxu0 0.0
    %2641 = vmatmul.mubr.f32.gmra.mrb[0].mxu0 %v2565
    %v2642 = vpop.f32.mrb[0].mxu0
    %v2643 = vadd.f32 0.0, %v2642
    %v2644 = vpop.f32.mrb[0].mxu0
    %2645 = vdwg.mxu0
    %2646 = vrot.lane.b32.xlu0 %v604, 64
    %v2647 = vpop.permute.xlu0 %2646
    %2648 = vrot.lane.b32.xlu0 %v606, 64
    %v2649 = vpop.permute.xlu0 %2648
    %v2650 = vsel %vm743, %v544, 0
    %v2652 = vsel %vm743, %v546, 0
    %v2654 = vsel %vm743, %v2647, 0
    %v2656 = vsel %vm743, %v2649, 0
    %2658 = vmatprep.subr.mxu0 0.0
    %2659 = vmatpush1.xpose.msra.mxu0 %v2654
    %2660 = vmatprep.subr.mxu0 0.0
    %2661 = vmatpush1.xpose.msra.mxu0 %v2656
    %2662 = vmatprep.subr.mxu0 0.0
    %2663 = vmatpush1.xpose.msra.mxu0 0.0
    %2664 = vmatprep.subr.mxu0 0.0
    %2665 = vmatpush1.xpose.msra.mxu0 0.0
    %2666 = vmatprep.subr.mxu0 0.0
    %2667 = vmatpush1.xpose.msra.mxu0 0.0
    %2668 = vmatprep.subr.mxu0 0.0
    %2669 = vmatpush1.xpose.msra.mxu0 0.0
    %2670 = vmatprep.subr.mxu0 0.0
    %2671 = vmatpush1.xpose.msra.mxu0 0.0
    %2672 = vmatprep.subr.mxu0 0.0
    %2673 = vmatpush1.xpose.msra.mxu0 0.0
    %2674 = vmatprep.subr.mxu0 0.0
    %2675 = vmatpush1.xpose.msra.mxu0 0.0
    %2676 = vmatprep.subr.mxu0 0.0
    %2677 = vmatpush1.xpose.msra.mxu0 0.0
    %2678 = vmatprep.subr.mxu0 0.0
    %2679 = vmatpush1.xpose.msra.mxu0 0.0
    %2680 = vmatprep.subr.mxu0 0.0
    %2681 = vmatpush1.xpose.msra.mxu0 0.0
    %2682 = vmatprep.subr.mxu0 0.0
    %2683 = vmatpush1.xpose.msra.mxu0 0.0
    %2684 = vmatprep.subr.mxu0 0.0
    %2685 = vmatpush1.xpose.msra.mxu0 0.0
    %2686 = vmatprep.subr.mxu0 0.0
    %2687 = vmatpush1.xpose.msra.mxu0 0.0
    %2688 = vmatprep.subr.mxu0 0.0
    %2689 = vmatpush1.xpose.msra.mxu0 0.0
    %2690 = vmatprep.subr.mxu0 0.0
    %2691 = vmatpush1.xpose.msra.mxu0 0.0
    %2692 = vmatprep.subr.mxu0 0.0
    %2693 = vmatpush1.xpose.msra.mxu0 0.0
    %2694 = vmatprep.subr.mxu0 0.0
    %2695 = vmatpush1.xpose.msra.mxu0 0.0
    %2696 = vmatprep.subr.mxu0 0.0
    %2697 = vmatpush1.xpose.msra.mxu0 0.0
    %2698 = vmatprep.subr.mxu0 0.0
    %2699 = vmatpush1.xpose.msra.mxu0 0.0
    %2700 = vmatprep.subr.mxu0 0.0
    %2701 = vmatpush1.xpose.msra.mxu0 0.0
    %2702 = vmatprep.subr.mxu0 0.0
    %2703 = vmatpush1.xpose.msra.mxu0 0.0
    %2704 = vmatprep.subr.mxu0 0.0
    %2705 = vmatpush1.xpose.msra.mxu0 0.0
    %2706 = vmatprep.subr.mxu0 0.0
    %2707 = vmatpush1.xpose.msra.mxu0 0.0
    %2708 = vmatprep.subr.mxu0 0.0
    %2709 = vmatpush1.xpose.msra.mxu0 0.0
    %2710 = vmatprep.subr.mxu0 0.0
    %2711 = vmatpush1.xpose.msra.mxu0 0.0
    %2712 = vmatprep.subr.mxu0 0.0
    %2713 = vmatpush1.xpose.msra.mxu0 0.0
    %2714 = vmatprep.subr.mxu0 0.0
    %2715 = vmatpush1.xpose.msra.mxu0 0.0
    %2716 = vmatprep.subr.mxu0 0.0
    %2717 = vmatpush1.xpose.msra.mxu0 0.0
    %2718 = vmatprep.subr.mxu0 0.0
    %2719 = vmatpush1.xpose.msra.mxu0 0.0
    %2720 = vmatprep.subr.mxu0 0.0
    %2721 = vmatpush1.xpose.msra.mxu0 0.0
    %2722 = vmatprep.mubr.f32.mxu0 0.0
    %2723 = vmatmul.mubr.f32.gmra.mrb[0].mxu0 %v2650
    %v2724 = vpop.f32.mrb[0].mxu0
    %v2725 = vadd.f32 0.0, %v2724
    %v2726 = vpop.f32.mrb[0].mxu0
    %2727 = vmatprep.mubr.f32.mxu0 0.0
    %2728 = vmatmul.mubr.f32.gmra.mrb[0].mxu0 %v2652
    %v2729 = vpop.f32.mrb[0].mxu0
    %v2730 = vadd.f32 0.0, %v2729
    %v2731 = vpop.f32.mrb[0].mxu0
    %2732 = vdwg.mxu0
    %2733 = vrot.lane.b32.xlu0 %v608, 64
    %v2734 = vpop.permute.xlu0 %2733
    %2735 = vrot.lane.b32.xlu0 %v610, 64
    %v2736 = vpop.permute.xlu0 %2735
    %v2737 = vsel %vm743, %v548, 0
    %v2739 = vsel %vm743, %v550, 0
    %v2741 = vsel %vm743, %v2734, 0
    %v2743 = vsel %vm743, %v2736, 0
    %2745 = vmatprep.subr.mxu0 0.0
    %2746 = vmatpush1.xpose.msra.mxu0 %v2741
    %2747 = vmatprep.subr.mxu0 0.0
    %2748 = vmatpush1.xpose.msra.mxu0 %v2743
    %2749 = vmatprep.subr.mxu0 0.0
    %2750 = vmatpush1.xpose.msra.mxu0 0.0
    %2751 = vmatprep.subr.mxu0 0.0
    %2752 = vmatpush1.xpose.msra.mxu0 0.0
    %2753 = vmatprep.subr.mxu0 0.0
    %2754 = vmatpush1.xpose.msra.mxu0 0.0
    %2755 = vmatprep.subr.mxu0 0.0
    %2756 = vmatpush1.xpose.msra.mxu0 0.0
    %2757 = vmatprep.subr.mxu0 0.0
    %2758 = vmatpush1.xpose.msra.mxu0 0.0
    %2759 = vmatprep.subr.mxu0 0.0
    %2760 = vmatpush1.xpose.msra.mxu0 0.0
    %2761 = vmatprep.subr.mxu0 0.0
    %2762 = vmatpush1.xpose.msra.mxu0 0.0
    %2763 = vmatprep.subr.mxu0 0.0
    %2764 = vmatpush1.xpose.msra.mxu0 0.0
    %2765 = vmatprep.subr.mxu0 0.0
    %2766 = vmatpush1.xpose.msra.mxu0 0.0
    %2767 = vmatprep.subr.mxu0 0.0
    %2768 = vmatpush1.xpose.msra.mxu0 0.0
    %2769 = vmatprep.subr.mxu0 0.0
    %2770 = vmatpush1.xpose.msra.mxu0 0.0
    %2771 = vmatprep.subr.mxu0 0.0
    %2772 = vmatpush1.xpose.msra.mxu0 0.0
    %2773 = vmatprep.subr.mxu0 0.0
    %2774 = vmatpush1.xpose.msra.mxu0 0.0
    %2775 = vmatprep.subr.mxu0 0.0
    %2776 = vmatpush1.xpose.msra.mxu0 0.0
    %2777 = vmatprep.subr.mxu0 0.0
    %2778 = vmatpush1.xpose.msra.mxu0 0.0
    %2779 = vmatprep.subr.mxu0 0.0
    %2780 = vmatpush1.xpose.msra.mxu0 0.0
    %2781 = vmatprep.subr.mxu0 0.0
    %2782 = vmatpush1.xpose.msra.mxu0 0.0
    %2783 = vmatprep.subr.mxu0 0.0
    %2784 = vmatpush1.xpose.msra.mxu0 0.0
    %2785 = vmatprep.subr.mxu0 0.0
    %2786 = vmatpush1.xpose.msra.mxu0 0.0
    %2787 = vmatprep.subr.mxu0 0.0
    %2788 = vmatpush1.xpose.msra.mxu0 0.0
    %2789 = vmatprep.subr.mxu0 0.0
    %2790 = vmatpush1.xpose.msra.mxu0 0.0
    %2791 = vmatprep.subr.mxu0 0.0
    %2792 = vmatpush1.xpose.msra.mxu0 0.0
    %2793 = vmatprep.subr.mxu0 0.0
    %2794 = vmatpush1.xpose.msra.mxu0 0.0
    %2795 = vmatprep.subr.mxu0 0.0
    %2796 = vmatpush1.xpose.msra.mxu0 0.0
    %2797 = vmatprep.subr.mxu0 0.0
    %2798 = vmatpush1.xpose.msra.mxu0 0.0
    %2799 = vmatprep.subr.mxu0 0.0
    %2800 = vmatpush1.xpose.msra.mxu0 0.0
    %2801 = vmatprep.subr.mxu0 0.0
    %2802 = vmatpush1.xpose.msra.mxu0 0.0
    %2803 = vmatprep.subr.mxu0 0.0
    %2804 = vmatpush1.xpose.msra.mxu0 0.0
    %2805 = vmatprep.subr.mxu0 0.0
    %2806 = vmatpush1.xpose.msra.mxu0 0.0
    %2807 = vmatprep.subr.mxu0 0.0
    %2808 = vmatpush1.xpose.msra.mxu0 0.0
    %2809 = vmatprep.mubr.f32.mxu0 0.0
    %2810 = vmatmul.mubr.f32.gmra.mrb[0].mxu0 %v2737
    %v2811 = vpop.f32.mrb[0].mxu0
    %v2812 = vadd.f32 0.0, %v2811
    %v2813 = vpop.f32.mrb[0].mxu0
    %2814 = vmatprep.mubr.f32.mxu0 0.0
    %2815 = vmatmul.mubr.f32.gmra.mrb[0].mxu0 %v2739
    %v2816 = vpop.f32.mrb[0].mxu0
    %v2817 = vadd.f32 0.0, %v2816
    %v2818 = vpop.f32.mrb[0].mxu0
    %2819 = vdwg.mxu0
    %v2820 = vsel %vm743, %v819, -inf
    %2821 = vmax.xlane.f32.xlu0 %v2820
    %v2822 = vpop.xlane.xlu0 %2821
    %v2823 = vsel %vm743, %v824, -inf
    %2824 = vmax.xlane.f32.xlu0 %v2823
    %v2825 = vpop.xlane.xlu0 %2824
    %v2826 = vsel %vm743, %v906, -inf
    %2827 = vmax.xlane.f32.xlu0 %v2826
    %v2828 = vpop.xlane.xlu0 %2827
    %v2829 = vsel %vm743, %v911, -inf
    %2830 = vmax.xlane.f32.xlu0 %v2829
    %v2831 = vpop.xlane.xlu0 %2830
    %v2832 = vsel %vm743, %v993, -inf
    %2833 = vmax.xlane.f32.xlu0 %v2832
    %v2834 = vpop.xlane.xlu0 %2833
    %v2835 = vsel %vm743, %v998, -inf
    %2836 = vmax.xlane.f32.xlu0 %v2835
    %v2837 = vpop.xlane.xlu0 %2836
    %v2838 = vsel %vm743, %v1080, -inf
    %2839 = vmax.xlane.f32.xlu0 %v2838
    %v2840 = vpop.xlane.xlu0 %2839
    %v2841 = vsel %vm743, %v1085, -inf
    %2842 = vmax.xlane.f32.xlu0 %v2841
    %v2843 = vpop.xlane.xlu0 %2842
    %v2844 = vsel %vm743, %v1167, -inf
    %2845 = vmax.xlane.f32.xlu0 %v2844
    %v2846 = vpop.xlane.xlu0 %2845
    %v2847 = vsel %vm743, %v1172, -inf
    %2848 = vmax.xlane.f32.xlu0 %v2847
    %v2849 = vpop.xlane.xlu0 %2848
    %v2850 = vsel %vm743, %v1254, -inf
    %2851 = vmax.xlane.f32.xlu0 %v2850
    %v2852 = vpop.xlane.xlu0 %2851
    %v2853 = vsel %vm743, %v1259, -inf
    %2854 = vmax.xlane.f32.xlu0 %v2853
    %v2855 = vpop.xlane.xlu0 %2854
    %v2856 = vsel %vm743, %v1341, -inf
    %2857 = vmax.xlane.f32.xlu0 %v2856
    %v2858 = vpop.xlane.xlu0 %2857
    %v2859 = vsel %vm743, %v1346, -inf
    %2860 = vmax.xlane.f32.xlu0 %v2859
    %v2861 = vpop.xlane.xlu0 %2860
    %v2862 = vsel %vm743, %v1428, -inf
    %2863 = vmax.xlane.f32.xlu0 %v2862
    %v2864 = vpop.xlane.xlu0 %2863
    %v2865 = vsel %vm743, %v1433, -inf
    %2866 = vmax.xlane.f32.xlu0 %v2865
    %v2867 = vpop.xlane.xlu0 %2866
    %v2868 = vsel %vm743, %v1515, -inf
    %2869 = vmax.xlane.f32.xlu0 %v2868
    %v2870 = vpop.xlane.xlu0 %2869
    %v2871 = vsel %vm743, %v1520, -inf
    %2872 = vmax.xlane.f32.xlu0 %v2871
    %v2873 = vpop.xlane.xlu0 %2872
    %v2874 = vsel %vm743, %v1602, -inf
    %2875 = vmax.xlane.f32.xlu0 %v2874
    %v2876 = vpop.xlane.xlu0 %2875
    %v2877 = vsel %vm743, %v1607, -inf
    %2878 = vmax.xlane.f32.xlu0 %v2877
    %v2879 = vpop.xlane.xlu0 %2878
    %v2880 = vsel %vm743, %v1689, -inf
    %2881 = vmax.xlane.f32.xlu0 %v2880
    %v2882 = vpop.xlane.xlu0 %2881
    %v2883 = vsel %vm743, %v1694, -inf
    %2884 = vmax.xlane.f32.xlu0 %v2883
    %v2885 = vpop.xlane.xlu0 %2884
    %v2886 = vsel %vm743, %v1776, -inf
    %2887 = vmax.xlane.f32.xlu0 %v2886
    %v2888 = vpop.xlane.xlu0 %2887
    %v2889 = vsel %vm743, %v1781, -inf
    %2890 = vmax.xlane.f32.xlu0 %v2889
    %v2891 = vpop.xlane.xlu0 %2890
    %v2892 = vsel %vm743, %v1863, -inf
    %2893 = vmax.xlane.f32.xlu0 %v2892
    %v2894 = vpop.xlane.xlu0 %2893
    %v2895 = vsel %vm743, %v1868, -inf
    %2896 = vmax.xlane.f32.xlu0 %v2895
    %v2897 = vpop.xlane.xlu0 %2896
    %v2898 = vsel %vm743, %v1950, -inf
    %2899 = vmax.xlane.f32.xlu0 %v2898
    %v2900 = vpop.xlane.xlu0 %2899
    %v2901 = vsel %vm743, %v1955, -inf
    %2902 = vmax.xlane.f32.xlu0 %v2901
    %v2903 = vpop.xlane.xlu0 %2902
    %v2904 = vsel %vm743, %v2037, -inf
    %2905 = vmax.xlane.f32.xlu0 %v2904
    %v2906 = vpop.xlane.xlu0 %2905
    %v2907 = vsel %vm743, %v2042, -inf
    %2908 = vmax.xlane.f32.xlu0 %v2907
    %v2909 = vpop.xlane.xlu0 %2908
    %v2910 = vsel %vm743, %v2124, -inf
    %2911 = vmax.xlane.f32.xlu0 %v2910
    %v2912 = vpop.xlane.xlu0 %2911
    %v2913 = vsel %vm743, %v2129, -inf
    %2914 = vmax.xlane.f32.xlu0 %v2913
    %v2915 = vpop.xlane.xlu0 %2914
    %v2916 = vsel %vm743, %v2207, -inf
    %2917 = vmax.xlane.f32.xlu0 %v2916
    %v2918 = vpop.xlane.xlu0 %2917
    %v2919 = vsel %vm743, %v2212, -inf
    %2920 = vmax.xlane.f32.xlu0 %v2919
    %v2921 = vpop.xlane.xlu0 %2920
    %v2922 = vsel %vm743, %v2290, -inf
    %2923 = vmax.xlane.f32.xlu0 %v2922
    %v2924 = vpop.xlane.xlu0 %2923
    %v2925 = vsel %vm743, %v2295, -inf
    %2926 = vmax.xlane.f32.xlu0 %v2925
    %v2927 = vpop.xlane.xlu0 %2926
    %v2928 = vsel %vm743, %v2377, -inf
    %2929 = vmax.xlane.f32.xlu0 %v2928
    %v2930 = vpop.xlane.xlu0 %2929
    %v2931 = vsel %vm743, %v2382, -inf
    %2932 = vmax.xlane.f32.xlu0 %v2931
    %v2933 = vpop.xlane.xlu0 %2932
    %v2934 = vsel %vm743, %v2464, -inf
    %2935 = vmax.xlane.f32.xlu0 %v2934
    %v2936 = vpop.xlane.xlu0 %2935
    %v2937 = vsel %vm743, %v2469, -inf
    %2938 = vmax.xlane.f32.xlu0 %v2937
    %v2939 = vpop.xlane.xlu0 %2938
    %v2940 = vsel %vm743, %v2551, -inf
    %2941 = vmax.xlane.f32.xlu0 %v2940
    %v2942 = vpop.xlane.xlu0 %2941
    %v2943 = vsel %vm743, %v2556, -inf
    %2944 = vmax.xlane.f32.xlu0 %v2943
    %v2945 = vpop.xlane.xlu0 %2944
    %v2946 = vsel %vm743, %v2638, -inf
    %2947 = vmax.xlane.f32.xlu0 %v2946
    %v2948 = vpop.xlane.xlu0 %2947
    %v2949 = vsel %vm743, %v2643, -inf
    %2950 = vmax.xlane.f32.xlu0 %v2949
    %v2951 = vpop.xlane.xlu0 %2950
    %v2952 = vsel %vm743, %v2725, -inf
    %2953 = vmax.xlane.f32.xlu0 %v2952
    %v2954 = vpop.xlane.xlu0 %2953
    %v2955 = vsel %vm743, %v2730, -inf
    %2956 = vmax.xlane.f32.xlu0 %v2955
    %v2957 = vpop.xlane.xlu0 %2956
    %v2958 = vsel %vm743, %v2812, -inf
    %2959 = vmax.xlane.f32.xlu0 %v2958
    %v2960 = vpop.xlane.xlu0 %2959
    %v2961 = vsel %vm743, %v2817, -inf
    %2962 = vmax.xlane.f32.xlu0 %v2961
    %v2963 = vpop.xlane.xlu0 %2962
    %v2964 = vsub.f32 %v819, %v2822
    %v2965 = vsub.f32 %v824, %v2825
    %v2966 = vsub.f32 %v906, %v2828
    %v2967 = vsub.f32 %v911, %v2831
    %v2968 = vsub.f32 %v993, %v2834
    %v2969 = vsub.f32 %v998, %v2837
    %v2970 = vsub.f32 %v1080, %v2840
    %v2971 = vsub.f32 %v1085, %v2843
    %v2972 = vsub.f32 %v1167, %v2846
    %v2973 = vsub.f32 %v1172, %v2849
    %v2974 = vsub.f32 %v1254, %v2852
    %v2975 = vsub.f32 %v1259, %v2855
    %v2976 = vsub.f32 %v1341, %v2858
    %v2977 = vsub.f32 %v1346, %v2861
    %v2978 = vsub.f32 %v1428, %v2864
    %v2979 = vsub.f32 %v1433, %v2867
    %v2980 = vsub.f32 %v1515, %v2870
    %v2981 = vsub.f32 %v1520, %v2873
    %v2982 = vsub.f32 %v1602, %v2876
    %v2983 = vsub.f32 %v1607, %v2879
    %v2984 = vsub.f32 %v1689, %v2882
    %v2985 = vsub.f32 %v1694, %v2885
    %v2986 = vsub.f32 %v1776, %v2888
    %v2987 = vsub.f32 %v1781, %v2891
    %v2988 = vsub.f32 %v1863, %v2894
    %v2989 = vsub.f32 %v1868, %v2897
    %v2990 = vsub.f32 %v1950, %v2900
    %v2991 = vsub.f32 %v1955, %v2903
    %v2992 = vsub.f32 %v2037, %v2906
    %v2993 = vsub.f32 %v2042, %v2909
    %v2994 = vsub.f32 %v2124, %v2912
    %v2995 = vsub.f32 %v2129, %v2915
    %v2996 = vsub.f32 %v2207, %v2918
    %v2997 = vsub.f32 %v2212, %v2921
    %v2998 = vsub.f32 %v2290, %v2924
    %v2999 = vsub.f32 %v2295, %v2927
    %v3000 = vsub.f32 %v2377, %v2930
    %v3001 = vsub.f32 %v2382, %v2933
    %v3002 = vsub.f32 %v2464, %v2936
    %v3003 = vsub.f32 %v2469, %v2939
    %v3004 = vsub.f32 %v2551, %v2942
    %v3005 = vsub.f32 %v2556, %v2945
    %v3006 = vsub.f32 %v2638, %v2948
    %v3007 = vsub.f32 %v2643, %v2951
    %v3008 = vsub.f32 %v2725, %v2954
    %v3009 = vsub.f32 %v2730, %v2957
    %v3010 = vsub.f32 %v2812, %v2960
    %v3011 = vsub.f32 %v2817, %v2963
    %v3012 = vmul.f32 %v2964, 1.442695
    %v3013 = vpow.pop %v3012
    %v3014 = vmul.f32 %v2965, 1.442695
    %v3015 = vpow.pop %v3014
    %v3016 = vmul.f32 %v2966, 1.442695
    %v3017 = vpow.pop %v3016
    %v3018 = vmul.f32 %v2967, 1.442695
    %v3019 = vpow.pop %v3018
    %v3020 = vmul.f32 %v2968, 1.442695
    %v3021 = vpow.pop %v3020
    %v3022 = vmul.f32 %v2969, 1.442695
    %v3023 = vpow.pop %v3022
    %v3024 = vmul.f32 %v2970, 1.442695
    %v3025 = vpow.pop %v3024
    %v3026 = vmul.f32 %v2971, 1.442695
    %v3027 = vpow.pop %v3026
    %v3028 = vmul.f32 %v2972, 1.442695
    %v3029 = vpow.pop %v3028
    %v3030 = vmul.f32 %v2973, 1.442695
    %v3031 = vpow.pop %v3030
    %v3032 = vmul.f32 %v2974, 1.442695
    %v3033 = vpow.pop %v3032
    %v3034 = vmul.f32 %v2975, 1.442695
    %v3035 = vpow.pop %v3034
    %v3036 = vmul.f32 %v2976, 1.442695
    %v3037 = vpow.pop %v3036
    %v3038 = vmul.f32 %v2977, 1.442695
    %v3039 = vpow.pop %v3038
    %v3040 = vmul.f32 %v2978, 1.442695
    %v3041 = vpow.pop %v3040
    %v3042 = vmul.f32 %v2979, 1.442695
    %v3043 = vpow.pop %v3042
    %v3044 = vmul.f32 %v2980, 1.442695
    %v3045 = vpow.pop %v3044
    %v3046 = vmul.f32 %v2981, 1.442695
    %v3047 = vpow.pop %v3046
    %v3048 = vmul.f32 %v2982, 1.442695
    %v3049 = vpow.pop %v3048
    %v3050 = vmul.f32 %v2983, 1.442695
    %v3051 = vpow.pop %v3050
    %v3052 = vmul.f32 %v2984, 1.442695
    %v3053 = vpow.pop %v3052
    %v3054 = vmul.f32 %v2985, 1.442695
    %v3055 = vpow.pop %v3054
    %v3056 = vmul.f32 %v2986, 1.442695
    %v3057 = vpow.pop %v3056
    %v3058 = vmul.f32 %v2987, 1.442695
    %v3059 = vpow.pop %v3058
    %v3060 = vmul.f32 %v2988, 1.442695
    %v3061 = vpow.pop %v3060
    %v3062 = vmul.f32 %v2989, 1.442695
    %v3063 = vpow.pop %v3062
    %v3064 = vmul.f32 %v2990, 1.442695
    %v3065 = vpow.pop %v3064
    %v3066 = vmul.f32 %v2991, 1.442695
    %v3067 = vpow.pop %v3066
    %v3068 = vmul.f32 %v2992, 1.442695
    %v3069 = vpow.pop %v3068
    %v3070 = vmul.f32 %v2993, 1.442695
    %v3071 = vpow.pop %v3070
    %v3072 = vmul.f32 %v2994, 1.442695
    %v3073 = vpow.pop %v3072
    %v3074 = vmul.f32 %v2995, 1.442695
    %v3075 = vpow.pop %v3074
    %v3076 = vmul.f32 %v2996, 1.442695
    %v3077 = vpow.pop %v3076
    %v3078 = vmul.f32 %v2997, 1.442695
    %v3079 = vpow.pop %v3078
    %v3080 = vmul.f32 %v2998, 1.442695
    %v3081 = vpow.pop %v3080
    %v3082 = vmul.f32 %v2999, 1.442695
    %v3083 = vpow.pop %v3082
    %v3084 = vmul.f32 %v3000, 1.442695
    %v3085 = vpow.pop %v3084
    %v3086 = vmul.f32 %v3001, 1.442695
    %v3087 = vpow.pop %v3086
    %v3088 = vmul.f32 %v3002, 1.442695
    %v3089 = vpow.pop %v3088
    %v3090 = vmul.f32 %v3003, 1.442695
    %v3091 = vpow.pop %v3090
    %v3092 = vmul.f32 %v3004, 1.442695
    %v3093 = vpow.pop %v3092
    %v3094 = vmul.f32 %v3005, 1.442695
    %v3095 = vpow.pop %v3094
    %v3096 = vmul.f32 %v3006, 1.442695
    %v3097 = vpow.pop %v3096
    %v3098 = vmul.f32 %v3007, 1.442695
    %v3099 = vpow.pop %v3098
    %v3100 = vmul.f32 %v3008, 1.442695
    %v3101 = vpow.pop %v3100
    %v3102 = vmul.f32 %v3009, 1.442695
    %v3103 = vpow.pop %v3102
    %v3104 = vmul.f32 %v3010, 1.442695
    %v3105 = vpow.pop %v3104
    %v3106 = vmul.f32 %v3011, 1.442695
    %v3107 = vpow.pop %v3106
    %v3108 = vsel %vm743, %v3013, 0.0
    %3109 = vadd.xlane.f32.xlu0 %v3108
    %v3110 = vpop.xlane.xlu0 %3109
    %v3111 = vsel %vm743, %v3015, 0.0
    %3112 = vadd.xlane.f32.xlu0 %v3111
    %v3113 = vpop.xlane.xlu0 %3112
    %v3114 = vsel %vm743, %v3017, 0.0
    %3115 = vadd.xlane.f32.xlu0 %v3114
    %v3116 = vpop.xlane.xlu0 %3115
    %v3117 = vsel %vm743, %v3019, 0.0
    %3118 = vadd.xlane.f32.xlu0 %v3117
    %v3119 = vpop.xlane.xlu0 %3118
    %v3120 = vsel %vm743, %v3021, 0.0
    %3121 = vadd.xlane.f32.xlu0 %v3120
    %v3122 = vpop.xlane.xlu0 %3121
    %v3123 = vsel %vm743, %v3023, 0.0
    %3124 = vadd.xlane.f32.xlu0 %v3123
    %v3125 = vpop.xlane.xlu0 %3124
    %v3126 = vsel %vm743, %v3025, 0.0
    %3127 = vadd.xlane.f32.xlu0 %v3126
    %v3128 = vpop.xlane.xlu0 %3127
    %v3129 = vsel %vm743, %v3027, 0.0
    %3130 = vadd.xlane.f32.xlu0 %v3129
    %v3131 = vpop.xlane.xlu0 %3130
    %v3132 = vsel %vm743, %v3029, 0.0
    %3133 = vadd.xlane.f32.xlu0 %v3132
    %v3134 = vpop.xlane.xlu0 %3133
    %v3135 = vsel %vm743, %v3031, 0.0
    %3136 = vadd.xlane.f32.xlu0 %v3135
    %v3137 = vpop.xlane.xlu0 %3136
    %v3138 = vsel %vm743, %v3033, 0.0
    %3139 = vadd.xlane.f32.xlu0 %v3138
    %v3140 = vpop.xlane.xlu0 %3139
    %v3141 = vsel %vm743, %v3035, 0.0
    %3142 = vadd.xlane.f32.xlu0 %v3141
    %v3143 = vpop.xlane.xlu0 %3142
    %v3144 = vsel %vm743, %v3037, 0.0
    %3145 = vadd.xlane.f32.xlu0 %v3144
    %v3146 = vpop.xlane.xlu0 %3145
    %v3147 = vsel %vm743, %v3039, 0.0
    %3148 = vadd.xlane.f32.xlu0 %v3147
    %v3149 = vpop.xlane.xlu0 %3148
    %v3150 = vsel %vm743, %v3041, 0.0
    %3151 = vadd.xlane.f32.xlu0 %v3150
    %v3152 = vpop.xlane.xlu0 %3151
    %v3153 = vsel %vm743, %v3043, 0.0
    %3154 = vadd.xlane.f32.xlu0 %v3153
    %v3155 = vpop.xlane.xlu0 %3154
    %v3156 = vsel %vm743, %v3045, 0.0
    %3157 = vadd.xlane.f32.xlu0 %v3156
    %v3158 = vpop.xlane.xlu0 %3157
    %v3159 = vsel %vm743, %v3047, 0.0
    %3160 = vadd.xlane.f32.xlu0 %v3159
    %v3161 = vpop.xlane.xlu0 %3160
    %v3162 = vsel %vm743, %v3049, 0.0
    %3163 = vadd.xlane.f32.xlu0 %v3162
    %v3164 = vpop.xlane.xlu0 %3163
    %v3165 = vsel %vm743, %v3051, 0.0
    %3166 = vadd.xlane.f32.xlu0 %v3165
    %v3167 = vpop.xlane.xlu0 %3166
    %v3168 = vsel %vm743, %v3053, 0.0
    %3169 = vadd.xlane.f32.xlu0 %v3168
    %v3170 = vpop.xlane.xlu0 %3169
    %v3171 = vsel %vm743, %v3055, 0.0
    %3172 = vadd.xlane.f32.xlu0 %v3171
    %v3173 = vpop.xlane.xlu0 %3172
    %v3174 = vsel %vm743, %v3057, 0.0
    %3175 = vadd.xlane.f32.xlu0 %v3174
    %v3176 = vpop.xlane.xlu0 %3175
    %v3177 = vsel %vm743, %v3059, 0.0
    %3178 = vadd.xlane.f32.xlu0 %v3177
    %v3179 = vpop.xlane.xlu0 %3178
    %v3180 = vsel %vm743, %v3061, 0.0
    %3181 = vadd.xlane.f32.xlu0 %v3180
    %v3182 = vpop.xlane.xlu0 %3181
    %v3183 = vsel %vm743, %v3063, 0.0
    %3184 = vadd.xlane.f32.xlu0 %v3183
    %v3185 = vpop.xlane.xlu0 %3184
    %v3186 = vsel %vm743, %v3065, 0.0
    %3187 = vadd.xlane.f32.xlu0 %v3186
    %v3188 = vpop.xlane.xlu0 %3187
    %v3189 = vsel %vm743, %v3067, 0.0
    %3190 = vadd.xlane.f32.xlu0 %v3189
    %v3191 = vpop.xlane.xlu0 %3190
    %v3192 = vsel %vm743, %v3069, 0.0
    %3193 = vadd.xlane.f32.xlu0 %v3192
    %v3194 = vpop.xlane.xlu0 %3193
    %v3195 = vsel %vm743, %v3071, 0.0
    %3196 = vadd.xlane.f32.xlu0 %v3195
    %v3197 = vpop.xlane.xlu0 %3196
    %v3198 = vsel %vm743, %v3073, 0.0
    %3199 = vadd.xlane.f32.xlu0 %v3198
    %v3200 = vpop.xlane.xlu0 %3199
    %v3201 = vsel %vm743, %v3075, 0.0
    %3202 = vadd.xlane.f32.xlu0 %v3201
    %v3203 = vpop.xlane.xlu0 %3202
    %v3204 = vsel %vm743, %v3077, 0.0
    %3205 = vadd.xlane.f32.xlu0 %v3204
    %v3206 = vpop.xlane.xlu0 %3205
    %v3207 = vsel %vm743, %v3079, 0.0
    %3208 = vadd.xlane.f32.xlu0 %v3207
    %v3209 = vpop.xlane.xlu0 %3208
    %v3210 = vsel %vm743, %v3081, 0.0
    %3211 = vadd.xlane.f32.xlu0 %v3210
    %v3212 = vpop.xlane.xlu0 %3211
    %v3213 = vsel %vm743, %v3083, 0.0
    %3214 = vadd.xlane.f32.xlu0 %v3213
    %v3215 = vpop.xlane.xlu0 %3214
    %v3216 = vsel %vm743, %v3085, 0.0
    %3217 = vadd.xlane.f32.xlu0 %v3216
    %v3218 = vpop.xlane.xlu0 %3217
    %v3219 = vsel %vm743, %v3087, 0.0
    %3220 = vadd.xlane.f32.xlu0 %v3219
    %v3221 = vpop.xlane.xlu0 %3220
    %v3222 = vsel %vm743, %v3089, 0.0
    %3223 = vadd.xlane.f32.xlu0 %v3222
    %v3224 = vpop.xlane.xlu0 %3223
    %v3225 = vsel %vm743, %v3091, 0.0
    %3226 = vadd.xlane.f32.xlu0 %v3225
    %v3227 = vpop.xlane.xlu0 %3226
    %v3228 = vsel %vm743, %v3093, 0.0
    %3229 = vadd.xlane.f32.xlu0 %v3228
    %v3230 = vpop.xlane.xlu0 %3229
    %v3231 = vsel %vm743, %v3095, 0.0
    %3232 = vadd.xlane.f32.xlu0 %v3231
    %v3233 = vpop.xlane.xlu0 %3232
    %v3234 = vsel %vm743, %v3097, 0.0
    %3235 = vadd.xlane.f32.xlu0 %v3234
    %v3236 = vpop.xlane.xlu0 %3235
    %v3237 = vsel %vm743, %v3099, 0.0
    %3238 = vadd.xlane.f32.xlu0 %v3237
    %v3239 = vpop.xlane.xlu0 %3238
    %v3240 = vsel %vm743, %v3101, 0.0
    %3241 = vadd.xlane.f32.xlu0 %v3240
    %v3242 = vpop.xlane.xlu0 %3241
    %v3243 = vsel %vm743, %v3103, 0.0
    %3244 = vadd.xlane.f32.xlu0 %v3243
    %v3245 = vpop.xlane.xlu0 %3244
    %v3246 = vsel %vm743, %v3105, 0.0
    %3247 = vadd.xlane.f32.xlu0 %v3246
    %v3248 = vpop.xlane.xlu0 %3247
    %v3249 = vsel %vm743, %v3107, 0.0
    %3250 = vadd.xlane.f32.xlu0 %v3249
    %v3251 = vpop.xlane.xlu0 %3250
    %v3253 = vsel %vm743, %v3013, 0
    %v3256 = vsel %vm743, %v3015, 0
    %3258 = vmatprep.subr.mxu0 0.0
    %3259 = vmatpush1.msra.mxu0 %v358
    %3260 = vmatprep.subr.mxu0 0.0
    %3261 = vmatpush1.msra.mxu0 %v364
    %3262 = vmatprep.subr.mxu0 0.0
    %3263 = vmatpush1.msra.mxu0 0.0
    %3264 = vmatprep.subr.mxu0 0.0
    %3265 = vmatpush1.msra.mxu0 0.0
    %3266 = vmatprep.subr.mxu0 0.0
    %3267 = vmatpush1.msra.mxu0 0.0
    %3268 = vmatprep.subr.mxu0 0.0
    %3269 = vmatpush1.msra.mxu0 0.0
    %3270 = vmatprep.subr.mxu0 0.0
    %3271 = vmatpush1.msra.mxu0 0.0
    %3272 = vmatprep.subr.mxu0 0.0
    %3273 = vmatpush1.msra.mxu0 0.0
    %3274 = vmatprep.subr.mxu0 0.0
    %3275 = vmatpush1.msra.mxu0 0.0
    %3276 = vmatprep.subr.mxu0 0.0
    %3277 = vmatpush1.msra.mxu0 0.0
    %3278 = vmatprep.subr.mxu0 0.0
    %3279 = vmatpush1.msra.mxu0 0.0
    %3280 = vmatprep.subr.mxu0 0.0
    %3281 = vmatpush1.msra.mxu0 0.0
    %3282 = vmatprep.subr.mxu0 0.0
    %3283 = vmatpush1.msra.mxu0 0.0
    %3284 = vmatprep.subr.mxu0 0.0
    %3285 = vmatpush1.msra.mxu0 0.0
    %3286 = vmatprep.subr.mxu0 0.0
    %3287 = vmatpush1.msra.mxu0 0.0
    %3288 = vmatprep.subr.mxu0 0.0
    %3289 = vmatpush1.msra.mxu0 0.0
    %3290 = vmatprep.subr.mxu0 0.0
    %3291 = vmatpush1.msra.mxu0 0.0
    %3292 = vmatprep.subr.mxu0 0.0
    %3293 = vmatpush1.msra.mxu0 0.0
    %3294 = vmatprep.subr.mxu0 0.0
    %3295 = vmatpush1.msra.mxu0 0.0
    %3296 = vmatprep.subr.mxu0 0.0
    %3297 = vmatpush1.msra.mxu0 0.0
    %3298 = vmatprep.subr.mxu0 0.0
    %3299 = vmatpush1.msra.mxu0 0.0
    %3300 = vmatprep.subr.mxu0 0.0
    %3301 = vmatpush1.msra.mxu0 0.0
    %3302 = vmatprep.subr.mxu0 0.0
    %3303 = vmatpush1.msra.mxu0 0.0
    %3304 = vmatprep.subr.mxu0 0.0
    %3305 = vmatpush1.msra.mxu0 0.0
    %3306 = vmatprep.subr.mxu0 0.0
    %3307 = vmatpush1.msra.mxu0 0.0
    %3308 = vmatprep.subr.mxu0 0.0
    %3309 = vmatpush1.msra.mxu0 0.0
    %3310 = vmatprep.subr.mxu0 0.0
    %3311 = vmatpush1.msra.mxu0 0.0
    %3312 = vmatprep.subr.mxu0 0.0
    %3313 = vmatpush1.msra.mxu0 0.0
    %3314 = vmatprep.subr.mxu0 0.0
    %3315 = vmatpush1.msra.mxu0 0.0
    %3316 = vmatprep.subr.mxu0 0.0
    %3317 = vmatpush1.msra.mxu0 0.0
    %3318 = vmatprep.subr.mxu0 0.0
    %3319 = vmatpush1.msra.mxu0 0.0
    %3320 = vmatprep.subr.mxu0 0.0
    %3321 = vmatpush1.msra.mxu0 0.0
    %3322 = vmatprep.mubr.f32.mxu0 0.0
    %3323 = vmatmul.mubr.f32.gmra.mrb[0].mxu0 %v3253
    %v3324 = vpop.f32.mrb[0].mxu0
    %v3325 = vadd.f32 0.0, %v3324
    %v3326 = vpop.f32.mrb[0].mxu0
    %3327 = vmatprep.mubr.f32.mxu0 0.0
    %3328 = vmatmul.mubr.f32.gmra.mrb[0].mxu0 %v3256
    %v3329 = vpop.f32.mrb[0].mxu0
    %v3330 = vadd.f32 0.0, %v3329
    %v3331 = vpop.f32.mrb[0].mxu0
    %3332 = vdwg.mxu0
    %v3334 = vsel %vm743, %v3017, 0
    %v3337 = vsel %vm743, %v3019, 0
    %3339 = vmatprep.subr.mxu0 0.0
    %3340 = vmatpush1.msra.mxu0 %v370
    %3341 = vmatprep.subr.mxu0 0.0
    %3342 = vmatpush1.msra.mxu0 %v376
    %3343 = vmatprep.subr.mxu0 0.0
    %3344 = vmatpush1.msra.mxu0 0.0
    %3345 = vmatprep.subr.mxu0 0.0
    %3346 = vmatpush1.msra.mxu0 0.0
    %3347 = vmatprep.subr.mxu0 0.0
    %3348 = vmatpush1.msra.mxu0 0.0
    %3349 = vmatprep.subr.mxu0 0.0
    %3350 = vmatpush1.msra.mxu0 0.0
    %3351 = vmatprep.subr.mxu0 0.0
    %3352 = vmatpush1.msra.mxu0 0.0
    %3353 = vmatprep.subr.mxu0 0.0
    %3354 = vmatpush1.msra.mxu0 0.0
    %3355 = vmatprep.subr.mxu0 0.0
    %3356 = vmatpush1.msra.mxu0 0.0
    %3357 = vmatprep.subr.mxu0 0.0
    %3358 = vmatpush1.msra.mxu0 0.0
    %3359 = vmatprep.subr.mxu0 0.0
    %3360 = vmatpush1.msra.mxu0 0.0
    %3361 = vmatprep.subr.mxu0 0.0
    %3362 = vmatpush1.msra.mxu0 0.0
    %3363 = vmatprep.subr.mxu0 0.0
    %3364 = vmatpush1.msra.mxu0 0.0
    %3365 = vmatprep.subr.mxu0 0.0
    %3366 = vmatpush1.msra.mxu0 0.0
    %3367 = vmatprep.subr.mxu0 0.0
    %3368 = vmatpush1.msra.mxu0 0.0
    %3369 = vmatprep.subr.mxu0 0.0
    %3370 = vmatpush1.msra.mxu0 0.0
    %3371 = vmatprep.subr.mxu0 0.0
    %3372 = vmatpush1.msra.mxu0 0.0
    %3373 = vmatprep.subr.mxu0 0.0
    %3374 = vmatpush1.msra.mxu0 0.0
    %3375 = vmatprep.subr.mxu0 0.0
    %3376 = vmatpush1.msra.mxu0 0.0
    %3377 = vmatprep.subr.mxu0 0.0
    %3378 = vmatpush1.msra.mxu0 0.0
    %3379 = vmatprep.subr.mxu0 0.0
    %3380 = vmatpush1.msra.mxu0 0.0
    %3381 = vmatprep.subr.mxu0 0.0
    %3382 = vmatpush1.msra.mxu0 0.0
    %3383 = vmatprep.subr.mxu0 0.0
    %3384 = vmatpush1.msra.mxu0 0.0
    %3385 = vmatprep.subr.mxu0 0.0
    %3386 = vmatpush1.msra.mxu0 0.0
    %3387 = vmatprep.subr.mxu0 0.0
    %3388 = vmatpush1.msra.mxu0 0.0
    %3389 = vmatprep.subr.mxu0 0.0
    %3390 = vmatpush1.msra.mxu0 0.0
    %3391 = vmatprep.subr.mxu0 0.0
    %3392 = vmatpush1.msra.mxu0 0.0
    %3393 = vmatprep.subr.mxu0 0.0
    %3394 = vmatpush1.msra.mxu0 0.0
    %3395 = vmatprep.subr.mxu0 0.0
    %3396 = vmatpush1.msra.mxu0 0.0
    %3397 = vmatprep.subr.mxu0 0.0
    %3398 = vmatpush1.msra.mxu0 0.0
    %3399 = vmatprep.subr.mxu0 0.0
    %3400 = vmatpush1.msra.mxu0 0.0
    %3401 = vmatprep.subr.mxu0 0.0
    %3402 = vmatpush1.msra.mxu0 0.0
    %3403 = vmatprep.mubr.f32.mxu0 0.0
    %3404 = vmatmul.mubr.f32.gmra.mrb[0].mxu0 %v3334
    %v3405 = vpop.f32.mrb[0].mxu0
    %v3406 = vadd.f32 0.0, %v3405
    %v3407 = vpop.f32.mrb[0].mxu0
    %3408 = vmatprep.mubr.f32.mxu0 0.0
    %3409 = vmatmul.mubr.f32.gmra.mrb[0].mxu0 %v3337
    %v3410 = vpop.f32.mrb[0].mxu0
    %v3411 = vadd.f32 0.0, %v3410
    %v3412 = vpop.f32.mrb[0].mxu0
    %3413 = vdwg.mxu0
    %v3415 = vsel %vm743, %v3021, 0
    %v3418 = vsel %vm743, %v3023, 0
    %3420 = vmatprep.subr.mxu0 0.0
    %3421 = vmatpush1.msra.mxu0 %v616
    %3422 = vmatprep.subr.mxu0 0.0
    %3423 = vmatpush1.msra.mxu0 %v618
    %3424 = vmatprep.subr.mxu0 0.0
    %3425 = vmatpush1.msra.mxu0 0.0
    %3426 = vmatprep.subr.mxu0 0.0
    %3427 = vmatpush1.msra.mxu0 0.0
    %3428 = vmatprep.subr.mxu0 0.0
    %3429 = vmatpush1.msra.mxu0 0.0
    %3430 = vmatprep.subr.mxu0 0.0
    %3431 = vmatpush1.msra.mxu0 0.0
    %3432 = vmatprep.subr.mxu0 0.0
    %3433 = vmatpush1.msra.mxu0 0.0
    %3434 = vmatprep.subr.mxu0 0.0
    %3435 = vmatpush1.msra.mxu0 0.0
    %3436 = vmatprep.subr.mxu0 0.0
    %3437 = vmatpush1.msra.mxu0 0.0
    %3438 = vmatprep.subr.mxu0 0.0
    %3439 = vmatpush1.msra.mxu0 0.0
    %3440 = vmatprep.subr.mxu0 0.0
    %3441 = vmatpush1.msra.mxu0 0.0
    %3442 = vmatprep.subr.mxu0 0.0
    %3443 = vmatpush1.msra.mxu0 0.0
    %3444 = vmatprep.subr.mxu0 0.0
    %3445 = vmatpush1.msra.mxu0 0.0
    %3446 = vmatprep.subr.mxu0 0.0
    %3447 = vmatpush1.msra.mxu0 0.0
    %3448 = vmatprep.subr.mxu0 0.0
    %3449 = vmatpush1.msra.mxu0 0.0
    %3450 = vmatprep.subr.mxu0 0.0
    %3451 = vmatpush1.msra.mxu0 0.0
    %3452 = vmatprep.subr.mxu0 0.0
    %3453 = vmatpush1.msra.mxu0 0.0
    %3454 = vmatprep.subr.mxu0 0.0
    %3455 = vmatpush1.msra.mxu0 0.0
    %3456 = vmatprep.subr.mxu0 0.0
    %3457 = vmatpush1.msra.mxu0 0.0
    %3458 = vmatprep.subr.mxu0 0.0
    %3459 = vmatpush1.msra.mxu0 0.0
    %3460 = vmatprep.subr.mxu0 0.0
    %3461 = vmatpush1.msra.mxu0 0.0
    %3462 = vmatprep.subr.mxu0 0.0
    %3463 = vmatpush1.msra.mxu0 0.0
    %3464 = vmatprep.subr.mxu0 0.0
    %3465 = vmatpush1.msra.mxu0 0.0
    %3466 = vmatprep.subr.mxu0 0.0
    %3467 = vmatpush1.msra.mxu0 0.0
    %3468 = vmatprep.subr.mxu0 0.0
    %3469 = vmatpush1.msra.mxu0 0.0
    %3470 = vmatprep.subr.mxu0 0.0
    %3471 = vmatpush1.msra.mxu0 0.0
    %3472 = vmatprep.subr.mxu0 0.0
    %3473 = vmatpush1.msra.mxu0 0.0
    %3474 = vmatprep.subr.mxu0 0.0
    %3475 = vmatpush1.msra.mxu0 0.0
    %3476 = vmatprep.subr.mxu0 0.0
    %3477 = vmatpush1.msra.mxu0 0.0
    %3478 = vmatprep.subr.mxu0 0.0
    %3479 = vmatpush1.msra.mxu0 0.0
    %3480 = vmatprep.subr.mxu0 0.0
    %3481 = vmatpush1.msra.mxu0 0.0
    %3482 = vmatprep.subr.mxu0 0.0
    %3483 = vmatpush1.msra.mxu0 0.0
    %3484 = vmatprep.mubr.f32.mxu0 0.0
    %3485 = vmatmul.mubr.f32.gmra.mrb[0].mxu0 %v3415
    %v3486 = vpop.f32.mrb[0].mxu0
    %v3487 = vadd.f32 0.0, %v3486
    %v3488 = vpop.f32.mrb[0].mxu0
    %3489 = vmatprep.mubr.f32.mxu0 0.0
    %3490 = vmatmul.mubr.f32.gmra.mrb[0].mxu0 %v3418
    %v3491 = vpop.f32.mrb[0].mxu0
    %v3492 = vadd.f32 0.0, %v3491
    %v3493 = vpop.f32.mrb[0].mxu0
    %3494 = vdwg.mxu0
    %v3496 = vsel %vm743, %v3025, 0
    %v3499 = vsel %vm743, %v3027, 0
    %3501 = vmatprep.subr.mxu0 0.0
    %3502 = vmatpush1.msra.mxu0 %v620
    %3503 = vmatprep.subr.mxu0 0.0
    %3504 = vmatpush1.msra.mxu0 %v622
    %3505 = vmatprep.subr.mxu0 0.0
    %3506 = vmatpush1.msra.mxu0 0.0
    %3507 = vmatprep.subr.mxu0 0.0
    %3508 = vmatpush1.msra.mxu0 0.0
    %3509 = vmatprep.subr.mxu0 0.0
    %3510 = vmatpush1.msra.mxu0 0.0
    %3511 = vmatprep.subr.mxu0 0.0
    %3512 = vmatpush1.msra.mxu0 0.0
    %3513 = vmatprep.subr.mxu0 0.0
    %3514 = vmatpush1.msra.mxu0 0.0
    %3515 = vmatprep.subr.mxu0 0.0
    %3516 = vmatpush1.msra.mxu0 0.0
    %3517 = vmatprep.subr.mxu0 0.0
    %3518 = vmatpush1.msra.mxu0 0.0
    %3519 = vmatprep.subr.mxu0 0.0
    %3520 = vmatpush1.msra.mxu0 0.0
    %3521 = vmatprep.subr.mxu0 0.0
    %3522 = vmatpush1.msra.mxu0 0.0
    %3523 = vmatprep.subr.mxu0 0.0
    %3524 = vmatpush1.msra.mxu0 0.0
    %3525 = vmatprep.subr.mxu0 0.0
    %3526 = vmatpush1.msra.mxu0 0.0
    %3527 = vmatprep.subr.mxu0 0.0
    %3528 = vmatpush1.msra.mxu0 0.0
    %3529 = vmatprep.subr.mxu0 0.0
    %3530 = vmatpush1.msra.mxu0 0.0
    %3531 = vmatprep.subr.mxu0 0.0
    %3532 = vmatpush1.msra.mxu0 0.0
    %3533 = vmatprep.subr.mxu0 0.0
    %3534 = vmatpush1.msra.mxu0 0.0
    %3535 = vmatprep.subr.mxu0 0.0
    %3536 = vmatpush1.msra.mxu0 0.0
    %3537 = vmatprep.subr.mxu0 0.0
    %3538 = vmatpush1.msra.mxu0 0.0
    %3539 = vmatprep.subr.mxu0 0.0
    %3540 = vmatpush1.msra.mxu0 0.0
    %3541 = vmatprep.subr.mxu0 0.0
    %3542 = vmatpush1.msra.mxu0 0.0
    %3543 = vmatprep.subr.mxu0 0.0
    %3544 = vmatpush1.msra.mxu0 0.0
    %3545 = vmatprep.subr.mxu0 0.0
    %3546 = vmatpush1.msra.mxu0 0.0
    %3547 = vmatprep.subr.mxu0 0.0
    %3548 = vmatpush1.msra.mxu0 0.0
    %3549 = vmatprep.subr.mxu0 0.0
    %3550 = vmatpush1.msra.mxu0 0.0
    %3551 = vmatprep.subr.mxu0 0.0
    %3552 = vmatpush1.msra.mxu0 0.0
    %3553 = vmatprep.subr.mxu0 0.0
    %3554 = vmatpush1.msra.mxu0 0.0
    %3555 = vmatprep.subr.mxu0 0.0
    %3556 = vmatpush1.msra.mxu0 0.0
    %3557 = vmatprep.subr.mxu0 0.0
    %3558 = vmatpush1.msra.mxu0 0.0
    %3559 = vmatprep.subr.mxu0 0.0
    %3560 = vmatpush1.msra.mxu0 0.0
    %3561 = vmatprep.subr.mxu0 0.0
    %3562 = vmatpush1.msra.mxu0 0.0
    %3563 = vmatprep.subr.mxu0 0.0
    %3564 = vmatpush1.msra.mxu0 0.0
    %3565 = vmatprep.mubr.f32.mxu0 0.0
    %3566 = vmatmul.mubr.f32.gmra.mrb[0].mxu0 %v3496
    %v3567 = vpop.f32.mrb[0].mxu0
    %v3568 = vadd.f32 0.0, %v3567
    %v3569 = vpop.f32.mrb[0].mxu0
    %3570 = vmatprep.mubr.f32.mxu0 0.0
    %3571 = vmatmul.mubr.f32.gmra.mrb[0].mxu0 %v3499
    %v3572 = vpop.f32.mrb[0].mxu0
    %v3573 = vadd.f32 0.0, %v3572
    %v3574 = vpop.f32.mrb[0].mxu0
    %3575 = vdwg.mxu0
    %v3577 = vsel %vm743, %v3029, 0
    %v3580 = vsel %vm743, %v3031, 0
    %3582 = vmatprep.subr.mxu0 0.0
    %3583 = vmatpush1.msra.mxu0 %v628
    %3584 = vmatprep.subr.mxu0 0.0
    %3585 = vmatpush1.msra.mxu0 %v630
    %3586 = vmatprep.subr.mxu0 0.0
    %3587 = vmatpush1.msra.mxu0 0.0
    %3588 = vmatprep.subr.mxu0 0.0
    %3589 = vmatpush1.msra.mxu0 0.0
    %3590 = vmatprep.subr.mxu0 0.0
    %3591 = vmatpush1.msra.mxu0 0.0
    %3592 = vmatprep.subr.mxu0 0.0
    %3593 = vmatpush1.msra.mxu0 0.0
    %3594 = vmatprep.subr.mxu0 0.0
    %3595 = vmatpush1.msra.mxu0 0.0
    %3596 = vmatprep.subr.mxu0 0.0
    %3597 = vmatpush1.msra.mxu0 0.0
    %3598 = vmatprep.subr.mxu0 0.0
    %3599 = vmatpush1.msra.mxu0 0.0
    %3600 = vmatprep.subr.mxu0 0.0
    %3601 = vmatpush1.msra.mxu0 0.0
    %3602 = vmatprep.subr.mxu0 0.0
    %3603 = vmatpush1.msra.mxu0 0.0
    %3604 = vmatprep.subr.mxu0 0.0
    %3605 = vmatpush1.msra.mxu0 0.0
    %3606 = vmatprep.subr.mxu0 0.0
    %3607 = vmatpush1.msra.mxu0 0.0
    %3608 = vmatprep.subr.mxu0 0.0
    %3609 = vmatpush1.msra.mxu0 0.0
    %3610 = vmatprep.subr.mxu0 0.0
    %3611 = vmatpush1.msra.mxu0 0.0
    %3612 = vmatprep.subr.mxu0 0.0
    %3613 = vmatpush1.msra.mxu0 0.0
    %3614 = vmatprep.subr.mxu0 0.0
    %3615 = vmatpush1.msra.mxu0 0.0
    %3616 = vmatprep.subr.mxu0 0.0
    %3617 = vmatpush1.msra.mxu0 0.0
    %3618 = vmatprep.subr.mxu0 0.0
    %3619 = vmatpush1.msra.mxu0 0.0
    %3620 = vmatprep.subr.mxu0 0.0
    %3621 = vmatpush1.msra.mxu0 0.0
    %3622 = vmatprep.subr.mxu0 0.0
    %3623 = vmatpush1.msra.mxu0 0.0
    %3624 = vmatprep.subr.mxu0 0.0
    %3625 = vmatpush1.msra.mxu0 0.0
    %3626 = vmatprep.subr.mxu0 0.0
    %3627 = vmatpush1.msra.mxu0 0.0
    %3628 = vmatprep.subr.mxu0 0.0
    %3629 = vmatpush1.msra.mxu0 0.0
    %3630 = vmatprep.subr.mxu0 0.0
    %3631 = vmatpush1.msra.mxu0 0.0
    %3632 = vmatprep.subr.mxu0 0.0
    %3633 = vmatpush1.msra.mxu0 0.0
    %3634 = vmatprep.subr.mxu0 0.0
    %3635 = vmatpush1.msra.mxu0 0.0
    %3636 = vmatprep.subr.mxu0 0.0
    %3637 = vmatpush1.msra.mxu0 0.0
    %3638 = vmatprep.subr.mxu0 0.0
    %3639 = vmatpush1.msra.mxu0 0.0
    %3640 = vmatprep.subr.mxu0 0.0
    %3641 = vmatpush1.msra.mxu0 0.0
    %3642 = vmatprep.subr.mxu0 0.0
    %3643 = vmatpush1.msra.mxu0 0.0
    %3644 = vmatprep.subr.mxu0 0.0
    %3645 = vmatpush1.msra.mxu0 0.0
    %3646 = vmatprep.mubr.f32.mxu0 0.0
    %3647 = vmatmul.mubr.f32.gmra.mrb[0].mxu0 %v3577
    %v3648 = vpop.f32.mrb[0].mxu0
    %v3649 = vadd.f32 0.0, %v3648
    %v3650 = vpop.f32.mrb[0].mxu0
    %3651 = vmatprep.mubr.f32.mxu0 0.0
    %3652 = vmatmul.mubr.f32.gmra.mrb[0].mxu0 %v3580
    %v3653 = vpop.f32.mrb[0].mxu0
    %v3654 = vadd.f32 0.0, %v3653
    %v3655 = vpop.f32.mrb[0].mxu0
    %3656 = vdwg.mxu0
    %v3658 = vsel %vm743, %v3033, 0
    %v3661 = vsel %vm743, %v3035, 0
    %3663 = vmatprep.subr.mxu0 0.0
    %3664 = vmatpush1.msra.mxu0 %v632
    %3665 = vmatprep.subr.mxu0 0.0
    %3666 = vmatpush1.msra.mxu0 %v634
    %3667 = vmatprep.subr.mxu0 0.0
    %3668 = vmatpush1.msra.mxu0 0.0
    %3669 = vmatprep.subr.mxu0 0.0
    %3670 = vmatpush1.msra.mxu0 0.0
    %3671 = vmatprep.subr.mxu0 0.0
    %3672 = vmatpush1.msra.mxu0 0.0
    %3673 = vmatprep.subr.mxu0 0.0
    %3674 = vmatpush1.msra.mxu0 0.0
    %3675 = vmatprep.subr.mxu0 0.0
    %3676 = vmatpush1.msra.mxu0 0.0
    %3677 = vmatprep.subr.mxu0 0.0
    %3678 = vmatpush1.msra.mxu0 0.0
    %3679 = vmatprep.subr.mxu0 0.0
    %3680 = vmatpush1.msra.mxu0 0.0
    %3681 = vmatprep.subr.mxu0 0.0
    %3682 = vmatpush1.msra.mxu0 0.0
    %3683 = vmatprep.subr.mxu0 0.0
    %3684 = vmatpush1.msra.mxu0 0.0
    %3685 = vmatprep.subr.mxu0 0.0
    %3686 = vmatpush1.msra.mxu0 0.0
    %3687 = vmatprep.subr.mxu0 0.0
    %3688 = vmatpush1.msra.mxu0 0.0
    %3689 = vmatprep.subr.mxu0 0.0
    %3690 = vmatpush1.msra.mxu0 0.0
    %3691 = vmatprep.subr.mxu0 0.0
    %3692 = vmatpush1.msra.mxu0 0.0
    %3693 = vmatprep.subr.mxu0 0.0
    %3694 = vmatpush1.msra.mxu0 0.0
    %3695 = vmatprep.subr.mxu0 0.0
    %3696 = vmatpush1.msra.mxu0 0.0
    %3697 = vmatprep.subr.mxu0 0.0
    %3698 = vmatpush1.msra.mxu0 0.0
    %3699 = vmatprep.subr.mxu0 0.0
    %3700 = vmatpush1.msra.mxu0 0.0
    %3701 = vmatprep.subr.mxu0 0.0
    %3702 = vmatpush1.msra.mxu0 0.0
    %3703 = vmatprep.subr.mxu0 0.0
    %3704 = vmatpush1.msra.mxu0 0.0
    %3705 = vmatprep.subr.mxu0 0.0
    %3706 = vmatpush1.msra.mxu0 0.0
    %3707 = vmatprep.subr.mxu0 0.0
    %3708 = vmatpush1.msra.mxu0 0.0
    %3709 = vmatprep.subr.mxu0 0.0
    %3710 = vmatpush1.msra.mxu0 0.0
    %3711 = vmatprep.subr.mxu0 0.0
    %3712 = vmatpush1.msra.mxu0 0.0
    %3713 = vmatprep.subr.mxu0 0.0
    %3714 = vmatpush1.msra.mxu0 0.0
    %3715 = vmatprep.subr.mxu0 0.0
    %3716 = vmatpush1.msra.mxu0 0.0
    %3717 = vmatprep.subr.mxu0 0.0
    %3718 = vmatpush1.msra.mxu0 0.0
    %3719 = vmatprep.subr.mxu0 0.0
    %3720 = vmatpush1.msra.mxu0 0.0
    %3721 = vmatprep.subr.mxu0 0.0
    %3722 = vmatpush1.msra.mxu0 0.0
    %3723 = vmatprep.subr.mxu0 0.0
    %3724 = vmatpush1.msra.mxu0 0.0
    %3725 = vmatprep.subr.mxu0 0.0
    %3726 = vmatpush1.msra.mxu0 0.0
    %3727 = vmatprep.mubr.f32.mxu0 0.0
    %3728 = vmatmul.mubr.f32.gmra.mrb[0].mxu0 %v3658
    %v3729 = vpop.f32.mrb[0].mxu0
    %v3730 = vadd.f32 0.0, %v3729
    %v3731 = vpop.f32.mrb[0].mxu0
    %3732 = vmatprep.mubr.f32.mxu0 0.0
    %3733 = vmatmul.mubr.f32.gmra.mrb[0].mxu0 %v3661
    %v3734 = vpop.f32.mrb[0].mxu0
    %v3735 = vadd.f32 0.0, %v3734
    %v3736 = vpop.f32.mrb[0].mxu0
    %3737 = vdwg.mxu0
    %v3739 = vsel %vm743, %v3037, 0
    %v3742 = vsel %vm743, %v3039, 0
    %3744 = vmatprep.subr.mxu0 0.0
    %3745 = vmatpush1.msra.mxu0 %v640
    %3746 = vmatprep.subr.mxu0 0.0
    %3747 = vmatpush1.msra.mxu0 %v642
    %3748 = vmatprep.subr.mxu0 0.0
    %3749 = vmatpush1.msra.mxu0 0.0
    %3750 = vmatprep.subr.mxu0 0.0
    %3751 = vmatpush1.msra.mxu0 0.0
    %3752 = vmatprep.subr.mxu0 0.0
    %3753 = vmatpush1.msra.mxu0 0.0
    %3754 = vmatprep.subr.mxu0 0.0
    %3755 = vmatpush1.msra.mxu0 0.0
    %3756 = vmatprep.subr.mxu0 0.0
    %3757 = vmatpush1.msra.mxu0 0.0
    %3758 = vmatprep.subr.mxu0 0.0
    %3759 = vmatpush1.msra.mxu0 0.0
    %3760 = vmatprep.subr.mxu0 0.0
    %3761 = vmatpush1.msra.mxu0 0.0
    %3762 = vmatprep.subr.mxu0 0.0
    %3763 = vmatpush1.msra.mxu0 0.0
    %3764 = vmatprep.subr.mxu0 0.0
    %3765 = vmatpush1.msra.mxu0 0.0
    %3766 = vmatprep.subr.mxu0 0.0
    %3767 = vmatpush1.msra.mxu0 0.0
    %3768 = vmatprep.subr.mxu0 0.0
    %3769 = vmatpush1.msra.mxu0 0.0
    %3770 = vmatprep.subr.mxu0 0.0
    %3771 = vmatpush1.msra.mxu0 0.0
    %3772 = vmatprep.subr.mxu0 0.0
    %3773 = vmatpush1.msra.mxu0 0.0
    %3774 = vmatprep.subr.mxu0 0.0
    %3775 = vmatpush1.msra.mxu0 0.0
    %3776 = vmatprep.subr.mxu0 0.0
    %3777 = vmatpush1.msra.mxu0 0.0
    %3778 = vmatprep.subr.mxu0 0.0
    %3779 = vmatpush1.msra.mxu0 0.0
    %3780 = vmatprep.subr.mxu0 0.0
    %3781 = vmatpush1.msra.mxu0 0.0
    %3782 = vmatprep.subr.mxu0 0.0
    %3783 = vmatpush1.msra.mxu0 0.0
    %3784 = vmatprep.subr.mxu0 0.0
    %3785 = vmatpush1.msra.mxu0 0.0
    %3786 = vmatprep.subr.mxu0 0.0
    %3787 = vmatpush1.msra.mxu0 0.0
    %3788 = vmatprep.subr.mxu0 0.0
    %3789 = vmatpush1.msra.mxu0 0.0
    %3790 = vmatprep.subr.mxu0 0.0
    %3791 = vmatpush1.msra.mxu0 0.0
    %3792 = vmatprep.subr.mxu0 0.0
    %3793 = vmatpush1.msra.mxu0 0.0
    %3794 = vmatprep.subr.mxu0 0.0
    %3795 = vmatpush1.msra.mxu0 0.0
    %3796 = vmatprep.subr.mxu0 0.0
    %3797 = vmatpush1.msra.mxu0 0.0
    %3798 = vmatprep.subr.mxu0 0.0
    %3799 = vmatpush1.msra.mxu0 0.0
    %3800 = vmatprep.subr.mxu0 0.0
    %3801 = vmatpush1.msra.mxu0 0.0
    %3802 = vmatprep.subr.mxu0 0.0
    %3803 = vmatpush1.msra.mxu0 0.0
    %3804 = vmatprep.subr.mxu0 0.0
    %3805 = vmatpush1.msra.mxu0 0.0
    %3806 = vmatprep.subr.mxu0 0.0
    %3807 = vmatpush1.msra.mxu0 0.0
    %3808 = vmatprep.mubr.f32.mxu0 0.0
    %3809 = vmatmul.mubr.f32.gmra.mrb[0].mxu0 %v3739
    %v3810 = vpop.f32.mrb[0].mxu0
    %v3811 = vadd.f32 0.0, %v3810
    %v3812 = vpop.f32.mrb[0].mxu0
    %3813 = vmatprep.mubr.f32.mxu0 0.0
    %3814 = vmatmul.mubr.f32.gmra.mrb[0].mxu0 %v3742
    %v3815 = vpop.f32.mrb[0].mxu0
    %v3816 = vadd.f32 0.0, %v3815
    %v3817 = vpop.f32.mrb[0].mxu0
    %3818 = vdwg.mxu0
    %v3820 = vsel %vm743, %v3041, 0
    %v3823 = vsel %vm743, %v3043, 0
    %3825 = vmatprep.subr.mxu0 0.0
    %3826 = vmatpush1.msra.mxu0 %v644
    %3827 = vmatprep.subr.mxu0 0.0
    %3828 = vmatpush1.msra.mxu0 %v646
    %3829 = vmatprep.subr.mxu0 0.0
    %3830 = vmatpush1.msra.mxu0 0.0
    %3831 = vmatprep.subr.mxu0 0.0
    %3832 = vmatpush1.msra.mxu0 0.0
    %3833 = vmatprep.subr.mxu0 0.0
    %3834 = vmatpush1.msra.mxu0 0.0
    %3835 = vmatprep.subr.mxu0 0.0
    %3836 = vmatpush1.msra.mxu0 0.0
    %3837 = vmatprep.subr.mxu0 0.0
    %3838 = vmatpush1.msra.mxu0 0.0
    %3839 = vmatprep.subr.mxu0 0.0
    %3840 = vmatpush1.msra.mxu0 0.0
    %3841 = vmatprep.subr.mxu0 0.0
    %3842 = vmatpush1.msra.mxu0 0.0
    %3843 = vmatprep.subr.mxu0 0.0
    %3844 = vmatpush1.msra.mxu0 0.0
    %3845 = vmatprep.subr.mxu0 0.0
    %3846 = vmatpush1.msra.mxu0 0.0
    %3847 = vmatprep.subr.mxu0 0.0
    %3848 = vmatpush1.msra.mxu0 0.0
    %3849 = vmatprep.subr.mxu0 0.0
    %3850 = vmatpush1.msra.mxu0 0.0
    %3851 = vmatprep.subr.mxu0 0.0
    %3852 = vmatpush1.msra.mxu0 0.0
    %3853 = vmatprep.subr.mxu0 0.0
    %3854 = vmatpush1.msra.mxu0 0.0
    %3855 = vmatprep.subr.mxu0 0.0
    %3856 = vmatpush1.msra.mxu0 0.0
    %3857 = vmatprep.subr.mxu0 0.0
    %3858 = vmatpush1.msra.mxu0 0.0
    %3859 = vmatprep.subr.mxu0 0.0
    %3860 = vmatpush1.msra.mxu0 0.0
    %3861 = vmatprep.subr.mxu0 0.0
    %3862 = vmatpush1.msra.mxu0 0.0
    %3863 = vmatprep.subr.mxu0 0.0
    %3864 = vmatpush1.msra.mxu0 0.0
    %3865 = vmatprep.subr.mxu0 0.0
    %3866 = vmatpush1.msra.mxu0 0.0
    %3867 = vmatprep.subr.mxu0 0.0
    %3868 = vmatpush1.msra.mxu0 0.0
    %3869 = vmatprep.subr.mxu0 0.0
    %3870 = vmatpush1.msra.mxu0 0.0
    %3871 = vmatprep.subr.mxu0 0.0
    %3872 = vmatpush1.msra.mxu0 0.0
    %3873 = vmatprep.subr.mxu0 0.0
    %3874 = vmatpush1.msra.mxu0 0.0
    %3875 = vmatprep.subr.mxu0 0.0
    %3876 = vmatpush1.msra.mxu0 0.0
    %3877 = vmatprep.subr.mxu0 0.0
    %3878 = vmatpush1.msra.mxu0 0.0
    %3879 = vmatprep.subr.mxu0 0.0
    %3880 = vmatpush1.msra.mxu0 0.0
    %3881 = vmatprep.subr.mxu0 0.0
    %3882 = vmatpush1.msra.mxu0 0.0
    %3883 = vmatprep.subr.mxu0 0.0
    %3884 = vmatpush1.msra.mxu0 0.0
    %3885 = vmatprep.subr.mxu0 0.0
    %3886 = vmatpush1.msra.mxu0 0.0
    %3887 = vmatprep.subr.mxu0 0.0
    %3888 = vmatpush1.msra.mxu0 0.0
    %3889 = vmatprep.mubr.f32.mxu0 0.0
    %3890 = vmatmul.mubr.f32.gmra.mrb[0].mxu0 %v3820
    %v3891 = vpop.f32.mrb[0].mxu0
    %v3892 = vadd.f32 0.0, %v3891
    %v3893 = vpop.f32.mrb[0].mxu0
    %3894 = vmatprep.mubr.f32.mxu0 0.0
    %3895 = vmatmul.mubr.f32.gmra.mrb[0].mxu0 %v3823
    %v3896 = vpop.f32.mrb[0].mxu0
    %v3897 = vadd.f32 0.0, %v3896
    %v3898 = vpop.f32.mrb[0].mxu0
    %3899 = vdwg.mxu0
    %v3901 = vsel %vm743, %v3045, 0
    %v3904 = vsel %vm743, %v3047, 0
    %3906 = vmatprep.subr.mxu0 0.0
    %3907 = vmatpush1.msra.mxu0 %v652
    %3908 = vmatprep.subr.mxu0 0.0
    %3909 = vmatpush1.msra.mxu0 %v654
    %3910 = vmatprep.subr.mxu0 0.0
    %3911 = vmatpush1.msra.mxu0 0.0
    %3912 = vmatprep.subr.mxu0 0.0
    %3913 = vmatpush1.msra.mxu0 0.0
    %3914 = vmatprep.subr.mxu0 0.0
    %3915 = vmatpush1.msra.mxu0 0.0
    %3916 = vmatprep.subr.mxu0 0.0
    %3917 = vmatpush1.msra.mxu0 0.0
    %3918 = vmatprep.subr.mxu0 0.0
    %3919 = vmatpush1.msra.mxu0 0.0
    %3920 = vmatprep.subr.mxu0 0.0
    %3921 = vmatpush1.msra.mxu0 0.0
    %3922 = vmatprep.subr.mxu0 0.0
    %3923 = vmatpush1.msra.mxu0 0.0
    %3924 = vmatprep.subr.mxu0 0.0
    %3925 = vmatpush1.msra.mxu0 0.0
    %3926 = vmatprep.subr.mxu0 0.0
    %3927 = vmatpush1.msra.mxu0 0.0
    %3928 = vmatprep.subr.mxu0 0.0
    %3929 = vmatpush1.msra.mxu0 0.0
    %3930 = vmatprep.subr.mxu0 0.0
    %3931 = vmatpush1.msra.mxu0 0.0
    %3932 = vmatprep.subr.mxu0 0.0
    %3933 = vmatpush1.msra.mxu0 0.0
    %3934 = vmatprep.subr.mxu0 0.0
    %3935 = vmatpush1.msra.mxu0 0.0
    %3936 = vmatprep.subr.mxu0 0.0
    %3937 = vmatpush1.msra.mxu0 0.0
    %3938 = vmatprep.subr.mxu0 0.0
    %3939 = vmatpush1.msra.mxu0 0.0
    %3940 = vmatprep.subr.mxu0 0.0
    %3941 = vmatpush1.msra.mxu0 0.0
    %3942 = vmatprep.subr.mxu0 0.0
    %3943 = vmatpush1.msra.mxu0 0.0
    %3944 = vmatprep.subr.mxu0 0.0
    %3945 = vmatpush1.msra.mxu0 0.0
    %3946 = vmatprep.subr.mxu0 0.0
    %3947 = vmatpush1.msra.mxu0 0.0
    %3948 = vmatprep.subr.mxu0 0.0
    %3949 = vmatpush1.msra.mxu0 0.0
    %3950 = vmatprep.subr.mxu0 0.0
    %3951 = vmatpush1.msra.mxu0 0.0
    %3952 = vmatprep.subr.mxu0 0.0
    %3953 = vmatpush1.msra.mxu0 0.0
    %3954 = vmatprep.subr.mxu0 0.0
    %3955 = vmatpush1.msra.mxu0 0.0
    %3956 = vmatprep.subr.mxu0 0.0
    %3957 = vmatpush1.msra.mxu0 0.0
    %3958 = vmatprep.subr.mxu0 0.0
    %3959 = vmatpush1.msra.mxu0 0.0
    %3960 = vmatprep.subr.mxu0 0.0
    %3961 = vmatpush1.msra.mxu0 0.0
    %3962 = vmatprep.subr.mxu0 0.0
    %3963 = vmatpush1.msra.mxu0 0.0
    %3964 = vmatprep.subr.mxu0 0.0
    %3965 = vmatpush1.msra.mxu0 0.0
    %3966 = vmatprep.subr.mxu0 0.0
    %3967 = vmatpush1.msra.mxu0 0.0
    %3968 = vmatprep.subr.mxu0 0.0
    %3969 = vmatpush1.msra.mxu0 0.0
    %3970 = vmatprep.mubr.f32.mxu0 0.0
    %3971 = vmatmul.mubr.f32.gmra.mrb[0].mxu0 %v3901
    %v3972 = vpop.f32.mrb[0].mxu0
    %v3973 = vadd.f32 0.0, %v3972
    %v3974 = vpop.f32.mrb[0].mxu0
    %3975 = vmatprep.mubr.f32.mxu0 0.0
    %3976 = vmatmul.mubr.f32.gmra.mrb[0].mxu0 %v3904
    %v3977 = vpop.f32.mrb[0].mxu0
    %v3978 = vadd.f32 0.0, %v3977
    %v3979 = vpop.f32.mrb[0].mxu0
    %3980 = vdwg.mxu0
    %v3982 = vsel %vm743, %v3049, 0
    %v3985 = vsel %vm743, %v3051, 0
    %3987 = vmatprep.subr.mxu0 0.0
    %3988 = vmatpush1.msra.mxu0 %v656
    %3989 = vmatprep.subr.mxu0 0.0
    %3990 = vmatpush1.msra.mxu0 %v658
    %3991 = vmatprep.subr.mxu0 0.0
    %3992 = vmatpush1.msra.mxu0 0.0
    %3993 = vmatprep.subr.mxu0 0.0
    %3994 = vmatpush1.msra.mxu0 0.0
    %3995 = vmatprep.subr.mxu0 0.0
    %3996 = vmatpush1.msra.mxu0 0.0
    %3997 = vmatprep.subr.mxu0 0.0
    %3998 = vmatpush1.msra.mxu0 0.0
    %3999 = vmatprep.subr.mxu0 0.0
    %4000 = vmatpush1.msra.mxu0 0.0
    %4001 = vmatprep.subr.mxu0 0.0
    %4002 = vmatpush1.msra.mxu0 0.0
    %4003 = vmatprep.subr.mxu0 0.0
    %4004 = vmatpush1.msra.mxu0 0.0
    %4005 = vmatprep.subr.mxu0 0.0
    %4006 = vmatpush1.msra.mxu0 0.0
    %4007 = vmatprep.subr.mxu0 0.0
    %4008 = vmatpush1.msra.mxu0 0.0
    %4009 = vmatprep.subr.mxu0 0.0
    %4010 = vmatpush1.msra.mxu0 0.0
    %4011 = vmatprep.subr.mxu0 0.0
    %4012 = vmatpush1.msra.mxu0 0.0
    %4013 = vmatprep.subr.mxu0 0.0
    %4014 = vmatpush1.msra.mxu0 0.0
    %4015 = vmatprep.subr.mxu0 0.0
    %4016 = vmatpush1.msra.mxu0 0.0
    %4017 = vmatprep.subr.mxu0 0.0
    %4018 = vmatpush1.msra.mxu0 0.0
    %4019 = vmatprep.subr.mxu0 0.0
    %4020 = vmatpush1.msra.mxu0 0.0
    %4021 = vmatprep.subr.mxu0 0.0
    %4022 = vmatpush1.msra.mxu0 0.0
    %4023 = vmatprep.subr.mxu0 0.0
    %4024 = vmatpush1.msra.mxu0 0.0
    %4025 = vmatprep.subr.mxu0 0.0
    %4026 = vmatpush1.msra.mxu0 0.0
    %4027 = vmatprep.subr.mxu0 0.0
    %4028 = vmatpush1.msra.mxu0 0.0
    %4029 = vmatprep.subr.mxu0 0.0
    %4030 = vmatpush1.msra.mxu0 0.0
    %4031 = vmatprep.subr.mxu0 0.0
    %4032 = vmatpush1.msra.mxu0 0.0
    %4033 = vmatprep.subr.mxu0 0.0
    %4034 = vmatpush1.msra.mxu0 0.0
    %4035 = vmatprep.subr.mxu0 0.0
    %4036 = vmatpush1.msra.mxu0 0.0
    %4037 = vmatprep.subr.mxu0 0.0
    %4038 = vmatpush1.msra.mxu0 0.0
    %4039 = vmatprep.subr.mxu0 0.0
    %4040 = vmatpush1.msra.mxu0 0.0
    %4041 = vmatprep.subr.mxu0 0.0
    %4042 = vmatpush1.msra.mxu0 0.0
    %4043 = vmatprep.subr.mxu0 0.0
    %4044 = vmatpush1.msra.mxu0 0.0
    %4045 = vmatprep.subr.mxu0 0.0
    %4046 = vmatpush1.msra.mxu0 0.0
    %4047 = vmatprep.subr.mxu0 0.0
    %4048 = vmatpush1.msra.mxu0 0.0
    %4049 = vmatprep.subr.mxu0 0.0
    %4050 = vmatpush1.msra.mxu0 0.0
    %4051 = vmatprep.mubr.f32.mxu0 0.0
    %4052 = vmatmul.mubr.f32.gmra.mrb[0].mxu0 %v3982
    %v4053 = vpop.f32.mrb[0].mxu0
    %v4054 = vadd.f32 0.0, %v4053
    %v4055 = vpop.f32.mrb[0].mxu0
    %4056 = vmatprep.mubr.f32.mxu0 0.0
    %4057 = vmatmul.mubr.f32.gmra.mrb[0].mxu0 %v3985
    %v4058 = vpop.f32.mrb[0].mxu0
    %v4059 = vadd.f32 0.0, %v4058
    %v4060 = vpop.f32.mrb[0].mxu0
    %4061 = vdwg.mxu0
    %v4063 = vsel %vm743, %v3053, 0
    %v4066 = vsel %vm743, %v3055, 0
    %4068 = vmatprep.subr.mxu0 0.0
    %4069 = vmatpush1.msra.mxu0 %v664
    %4070 = vmatprep.subr.mxu0 0.0
    %4071 = vmatpush1.msra.mxu0 %v666
    %4072 = vmatprep.subr.mxu0 0.0
    %4073 = vmatpush1.msra.mxu0 0.0
    %4074 = vmatprep.subr.mxu0 0.0
    %4075 = vmatpush1.msra.mxu0 0.0
    %4076 = vmatprep.subr.mxu0 0.0
    %4077 = vmatpush1.msra.mxu0 0.0
    %4078 = vmatprep.subr.mxu0 0.0
    %4079 = vmatpush1.msra.mxu0 0.0
    %4080 = vmatprep.subr.mxu0 0.0
    %4081 = vmatpush1.msra.mxu0 0.0
    %4082 = vmatprep.subr.mxu0 0.0
    %4083 = vmatpush1.msra.mxu0 0.0
    %4084 = vmatprep.subr.mxu0 0.0
    %4085 = vmatpush1.msra.mxu0 0.0
    %4086 = vmatprep.subr.mxu0 0.0
    %4087 = vmatpush1.msra.mxu0 0.0
    %4088 = vmatprep.subr.mxu0 0.0
    %4089 = vmatpush1.msra.mxu0 0.0
    %4090 = vmatprep.subr.mxu0 0.0
    %4091 = vmatpush1.msra.mxu0 0.0
    %4092 = vmatprep.subr.mxu0 0.0
    %4093 = vmatpush1.msra.mxu0 0.0
    %4094 = vmatprep.subr.mxu0 0.0
    %4095 = vmatpush1.msra.mxu0 0.0
    %4096 = vmatprep.subr.mxu0 0.0
    %4097 = vmatpush1.msra.mxu0 0.0
    %4098 = vmatprep.subr.mxu0 0.0
    %4099 = vmatpush1.msra.mxu0 0.0
    %4100 = vmatprep.subr.mxu0 0.0
    %4101 = vmatpush1.msra.mxu0 0.0
    %4102 = vmatprep.subr.mxu0 0.0
    %4103 = vmatpush1.msra.mxu0 0.0
    %4104 = vmatprep.subr.mxu0 0.0
    %4105 = vmatpush1.msra.mxu0 0.0
    %4106 = vmatprep.subr.mxu0 0.0
    %4107 = vmatpush1.msra.mxu0 0.0
    %4108 = vmatprep.subr.mxu0 0.0
    %4109 = vmatpush1.msra.mxu0 0.0
    %4110 = vmatprep.subr.mxu0 0.0
    %4111 = vmatpush1.msra.mxu0 0.0
    %4112 = vmatprep.subr.mxu0 0.0
    %4113 = vmatpush1.msra.mxu0 0.0
    %4114 = vmatprep.subr.mxu0 0.0
    %4115 = vmatpush1.msra.mxu0 0.0
    %4116 = vmatprep.subr.mxu0 0.0
    %4117 = vmatpush1.msra.mxu0 0.0
    %4118 = vmatprep.subr.mxu0 0.0
    %4119 = vmatpush1.msra.mxu0 0.0
    %4120 = vmatprep.subr.mxu0 0.0
    %4121 = vmatpush1.msra.mxu0 0.0
    %4122 = vmatprep.subr.mxu0 0.0
    %4123 = vmatpush1.msra.mxu0 0.0
    %4124 = vmatprep.subr.mxu0 0.0
    %4125 = vmatpush1.msra.mxu0 0.0
    %4126 = vmatprep.subr.mxu0 0.0
    %4127 = vmatpush1.msra.mxu0 0.0
    %4128 = vmatprep.subr.mxu0 0.0
    %4129 = vmatpush1.msra.mxu0 0.0
    %4130 = vmatprep.subr.mxu0 0.0
    %4131 = vmatpush1.msra.mxu0 0.0
    %4132 = vmatprep.mubr.f32.mxu0 0.0
    %4133 = vmatmul.mubr.f32.gmra.mrb[0].mxu0 %v4063
    %v4134 = vpop.f32.mrb[0].mxu0
    %v4135 = vadd.f32 0.0, %v4134
    %v4136 = vpop.f32.mrb[0].mxu0
    %4137 = vmatprep.mubr.f32.mxu0 0.0
    %4138 = vmatmul.mubr.f32.gmra.mrb[0].mxu0 %v4066
    %v4139 = vpop.f32.mrb[0].mxu0
    %v4140 = vadd.f32 0.0, %v4139
    %v4141 = vpop.f32.mrb[0].mxu0
    %4142 = vdwg.mxu0
    %v4144 = vsel %vm743, %v3057, 0
    %v4147 = vsel %vm743, %v3059, 0
    %4149 = vmatprep.subr.mxu0 0.0
    %4150 = vmatpush1.msra.mxu0 %v668
    %4151 = vmatprep.subr.mxu0 0.0
    %4152 = vmatpush1.msra.mxu0 %v670
    %4153 = vmatprep.subr.mxu0 0.0
    %4154 = vmatpush1.msra.mxu0 0.0
    %4155 = vmatprep.subr.mxu0 0.0
    %4156 = vmatpush1.msra.mxu0 0.0
    %4157 = vmatprep.subr.mxu0 0.0
    %4158 = vmatpush1.msra.mxu0 0.0
    %4159 = vmatprep.subr.mxu0 0.0
    %4160 = vmatpush1.msra.mxu0 0.0
    %4161 = vmatprep.subr.mxu0 0.0
    %4162 = vmatpush1.msra.mxu0 0.0
    %4163 = vmatprep.subr.mxu0 0.0
    %4164 = vmatpush1.msra.mxu0 0.0
    %4165 = vmatprep.subr.mxu0 0.0
    %4166 = vmatpush1.msra.mxu0 0.0
    %4167 = vmatprep.subr.mxu0 0.0
    %4168 = vmatpush1.msra.mxu0 0.0
    %4169 = vmatprep.subr.mxu0 0.0
    %4170 = vmatpush1.msra.mxu0 0.0
    %4171 = vmatprep.subr.mxu0 0.0
    %4172 = vmatpush1.msra.mxu0 0.0
    %4173 = vmatprep.subr.mxu0 0.0
    %4174 = vmatpush1.msra.mxu0 0.0
    %4175 = vmatprep.subr.mxu0 0.0
    %4176 = vmatpush1.msra.mxu0 0.0
    %4177 = vmatprep.subr.mxu0 0.0
    %4178 = vmatpush1.msra.mxu0 0.0
    %4179 = vmatprep.subr.mxu0 0.0
    %4180 = vmatpush1.msra.mxu0 0.0
    %4181 = vmatprep.subr.mxu0 0.0
    %4182 = vmatpush1.msra.mxu0 0.0
    %4183 = vmatprep.subr.mxu0 0.0
    %4184 = vmatpush1.msra.mxu0 0.0
    %4185 = vmatprep.subr.mxu0 0.0
    %4186 = vmatpush1.msra.mxu0 0.0
    %4187 = vmatprep.subr.mxu0 0.0
    %4188 = vmatpush1.msra.mxu0 0.0
    %4189 = vmatprep.subr.mxu0 0.0
    %4190 = vmatpush1.msra.mxu0 0.0
    %4191 = vmatprep.subr.mxu0 0.0
    %4192 = vmatpush1.msra.mxu0 0.0
    %4193 = vmatprep.subr.mxu0 0.0
    %4194 = vmatpush1.msra.mxu0 0.0
    %4195 = vmatprep.subr.mxu0 0.0
    %4196 = vmatpush1.msra.mxu0 0.0
    %4197 = vmatprep.subr.mxu0 0.0
    %4198 = vmatpush1.msra.mxu0 0.0
    %4199 = vmatprep.subr.mxu0 0.0
    %4200 = vmatpush1.msra.mxu0 0.0
    %4201 = vmatprep.subr.mxu0 0.0
    %4202 = vmatpush1.msra.mxu0 0.0
    %4203 = vmatprep.subr.mxu0 0.0
    %4204 = vmatpush1.msra.mxu0 0.0
    %4205 = vmatprep.subr.mxu0 0.0
    %4206 = vmatpush1.msra.mxu0 0.0
    %4207 = vmatprep.subr.mxu0 0.0
    %4208 = vmatpush1.msra.mxu0 0.0
    %4209 = vmatprep.subr.mxu0 0.0
    %4210 = vmatpush1.msra.mxu0 0.0
    %4211 = vmatprep.subr.mxu0 0.0
    %4212 = vmatpush1.msra.mxu0 0.0
    %4213 = vmatprep.mubr.f32.mxu0 0.0
    %4214 = vmatmul.mubr.f32.gmra.mrb[0].mxu0 %v4144
    %v4215 = vpop.f32.mrb[0].mxu0
    %v4216 = vadd.f32 0.0, %v4215
    %v4217 = vpop.f32.mrb[0].mxu0
    %4218 = vmatprep.mubr.f32.mxu0 0.0
    %4219 = vmatmul.mubr.f32.gmra.mrb[0].mxu0 %v4147
    %v4220 = vpop.f32.mrb[0].mxu0
    %v4221 = vadd.f32 0.0, %v4220
    %v4222 = vpop.f32.mrb[0].mxu0
    %4223 = vdwg.mxu0
    %v4225 = vsel %vm743, %v3061, 0
    %v4228 = vsel %vm743, %v3063, 0
    %4230 = vmatprep.subr.mxu0 0.0
    %4231 = vmatpush1.msra.mxu0 %v676
    %4232 = vmatprep.subr.mxu0 0.0
    %4233 = vmatpush1.msra.mxu0 %v678
    %4234 = vmatprep.subr.mxu0 0.0
    %4235 = vmatpush1.msra.mxu0 0.0
    %4236 = vmatprep.subr.mxu0 0.0
    %4237 = vmatpush1.msra.mxu0 0.0
    %4238 = vmatprep.subr.mxu0 0.0
    %4239 = vmatpush1.msra.mxu0 0.0
    %4240 = vmatprep.subr.mxu0 0.0
    %4241 = vmatpush1.msra.mxu0 0.0
    %4242 = vmatprep.subr.mxu0 0.0
    %4243 = vmatpush1.msra.mxu0 0.0
    %4244 = vmatprep.subr.mxu0 0.0
    %4245 = vmatpush1.msra.mxu0 0.0
    %4246 = vmatprep.subr.mxu0 0.0
    %4247 = vmatpush1.msra.mxu0 0.0
    %4248 = vmatprep.subr.mxu0 0.0
    %4249 = vmatpush1.msra.mxu0 0.0
    %4250 = vmatprep.subr.mxu0 0.0
    %4251 = vmatpush1.msra.mxu0 0.0
    %4252 = vmatprep.subr.mxu0 0.0
    %4253 = vmatpush1.msra.mxu0 0.0
    %4254 = vmatprep.subr.mxu0 0.0
    %4255 = vmatpush1.msra.mxu0 0.0
    %4256 = vmatprep.subr.mxu0 0.0
    %4257 = vmatpush1.msra.mxu0 0.0
    %4258 = vmatprep.subr.mxu0 0.0
    %4259 = vmatpush1.msra.mxu0 0.0
    %4260 = vmatprep.subr.mxu0 0.0
    %4261 = vmatpush1.msra.mxu0 0.0
    %4262 = vmatprep.subr.mxu0 0.0
    %4263 = vmatpush1.msra.mxu0 0.0
    %4264 = vmatprep.subr.mxu0 0.0
    %4265 = vmatpush1.msra.mxu0 0.0
    %4266 = vmatprep.subr.mxu0 0.0
    %4267 = vmatpush1.msra.mxu0 0.0
    %4268 = vmatprep.subr.mxu0 0.0
    %4269 = vmatpush1.msra.mxu0 0.0
    %4270 = vmatprep.subr.mxu0 0.0
    %4271 = vmatpush1.msra.mxu0 0.0
    %4272 = vmatprep.subr.mxu0 0.0
    %4273 = vmatpush1.msra.mxu0 0.0
    %4274 = vmatprep.subr.mxu0 0.0
    %4275 = vmatpush1.msra.mxu0 0.0
    %4276 = vmatprep.subr.mxu0 0.0
    %4277 = vmatpush1.msra.mxu0 0.0
    %4278 = vmatprep.subr.mxu0 0.0
    %4279 = vmatpush1.msra.mxu0 0.0
    %4280 = vmatprep.subr.mxu0 0.0
    %4281 = vmatpush1.msra.mxu0 0.0
    %4282 = vmatprep.subr.mxu0 0.0
    %4283 = vmatpush1.msra.mxu0 0.0
    %4284 = vmatprep.subr.mxu0 0.0
    %4285 = vmatpush1.msra.mxu0 0.0
    %4286 = vmatprep.subr.mxu0 0.0
    %4287 = vmatpush1.msra.mxu0 0.0
    %4288 = vmatprep.subr.mxu0 0.0
    %4289 = vmatpush1.msra.mxu0 0.0
    %4290 = vmatprep.subr.mxu0 0.0
    %4291 = vmatpush1.msra.mxu0 0.0
    %4292 = vmatprep.subr.mxu0 0.0
    %4293 = vmatpush1.msra.mxu0 0.0
    %4294 = vmatprep.mubr.f32.mxu0 0.0
    %4295 = vmatmul.mubr.f32.gmra.mrb[0].mxu0 %v4225
    %v4296 = vpop.f32.mrb[0].mxu0
    %v4297 = vadd.f32 0.0, %v4296
    %v4298 = vpop.f32.mrb[0].mxu0
    %4299 = vmatprep.mubr.f32.mxu0 0.0
    %4300 = vmatmul.mubr.f32.gmra.mrb[0].mxu0 %v4228
    %v4301 = vpop.f32.mrb[0].mxu0
    %v4302 = vadd.f32 0.0, %v4301
    %v4303 = vpop.f32.mrb[0].mxu0
    %4304 = vdwg.mxu0
    %v4306 = vsel %vm743, %v3065, 0
    %v4309 = vsel %vm743, %v3067, 0
    %4311 = vmatprep.subr.mxu0 0.0
    %4312 = vmatpush1.msra.mxu0 %v680
    %4313 = vmatprep.subr.mxu0 0.0
    %4314 = vmatpush1.msra.mxu0 %v682
    %4315 = vmatprep.subr.mxu0 0.0
    %4316 = vmatpush1.msra.mxu0 0.0
    %4317 = vmatprep.subr.mxu0 0.0
    %4318 = vmatpush1.msra.mxu0 0.0
    %4319 = vmatprep.subr.mxu0 0.0
    %4320 = vmatpush1.msra.mxu0 0.0
    %4321 = vmatprep.subr.mxu0 0.0
    %4322 = vmatpush1.msra.mxu0 0.0
    %4323 = vmatprep.subr.mxu0 0.0
    %4324 = vmatpush1.msra.mxu0 0.0
    %4325 = vmatprep.subr.mxu0 0.0
    %4326 = vmatpush1.msra.mxu0 0.0
    %4327 = vmatprep.subr.mxu0 0.0
    %4328 = vmatpush1.msra.mxu0 0.0
    %4329 = vmatprep.subr.mxu0 0.0
    %4330 = vmatpush1.msra.mxu0 0.0
    %4331 = vmatprep.subr.mxu0 0.0
    %4332 = vmatpush1.msra.mxu0 0.0
    %4333 = vmatprep.subr.mxu0 0.0
    %4334 = vmatpush1.msra.mxu0 0.0
    %4335 = vmatprep.subr.mxu0 0.0
    %4336 = vmatpush1.msra.mxu0 0.0
    %4337 = vmatprep.subr.mxu0 0.0
    %4338 = vmatpush1.msra.mxu0 0.0
    %4339 = vmatprep.subr.mxu0 0.0
    %4340 = vmatpush1.msra.mxu0 0.0
    %4341 = vmatprep.subr.mxu0 0.0
    %4342 = vmatpush1.msra.mxu0 0.0
    %4343 = vmatprep.subr.mxu0 0.0
    %4344 = vmatpush1.msra.mxu0 0.0
    %4345 = vmatprep.subr.mxu0 0.0
    %4346 = vmatpush1.msra.mxu0 0.0
    %4347 = vmatprep.subr.mxu0 0.0
    %4348 = vmatpush1.msra.mxu0 0.0
    %4349 = vmatprep.subr.mxu0 0.0
    %4350 = vmatpush1.msra.mxu0 0.0
    %4351 = vmatprep.subr.mxu0 0.0
    %4352 = vmatpush1.msra.mxu0 0.0
    %4353 = vmatprep.subr.mxu0 0.0
    %4354 = vmatpush1.msra.mxu0 0.0
    %4355 = vmatprep.subr.mxu0 0.0
    %4356 = vmatpush1.msra.mxu0 0.0
    %4357 = vmatprep.subr.mxu0 0.0
    %4358 = vmatpush1.msra.mxu0 0.0
    %4359 = vmatprep.subr.mxu0 0.0
    %4360 = vmatpush1.msra.mxu0 0.0
    %4361 = vmatprep.subr.mxu0 0.0
    %4362 = vmatpush1.msra.mxu0 0.0
    %4363 = vmatprep.subr.mxu0 0.0
    %4364 = vmatpush1.msra.mxu0 0.0
    %4365 = vmatprep.subr.mxu0 0.0
    %4366 = vmatpush1.msra.mxu0 0.0
    %4367 = vmatprep.subr.mxu0 0.0
    %4368 = vmatpush1.msra.mxu0 0.0
    %4369 = vmatprep.subr.mxu0 0.0
    %4370 = vmatpush1.msra.mxu0 0.0
    %4371 = vmatprep.subr.mxu0 0.0
    %4372 = vmatpush1.msra.mxu0 0.0
    %4373 = vmatprep.subr.mxu0 0.0
    %4374 = vmatpush1.msra.mxu0 0.0
    %4375 = vmatprep.mubr.f32.mxu0 0.0
    %4376 = vmatmul.mubr.f32.gmra.mrb[0].mxu0 %v4306
    %v4377 = vpop.f32.mrb[0].mxu0
    %v4378 = vadd.f32 0.0, %v4377
    %v4379 = vpop.f32.mrb[0].mxu0
    %4380 = vmatprep.mubr.f32.mxu0 0.0
    %4381 = vmatmul.mubr.f32.gmra.mrb[0].mxu0 %v4309
    %v4382 = vpop.f32.mrb[0].mxu0
    %v4383 = vadd.f32 0.0, %v4382
    %v4384 = vpop.f32.mrb[0].mxu0
    %4385 = vdwg.mxu0
    %v4387 = vsel %vm743, %v3069, 0
    %v4390 = vsel %vm743, %v3071, 0
    %4392 = vmatprep.subr.mxu0 0.0
    %4393 = vmatpush1.msra.mxu0 %v688
    %4394 = vmatprep.subr.mxu0 0.0
    %4395 = vmatpush1.msra.mxu0 %v690
    %4396 = vmatprep.subr.mxu0 0.0
    %4397 = vmatpush1.msra.mxu0 0.0
    %4398 = vmatprep.subr.mxu0 0.0
    %4399 = vmatpush1.msra.mxu0 0.0
    %4400 = vmatprep.subr.mxu0 0.0
    %4401 = vmatpush1.msra.mxu0 0.0
    %4402 = vmatprep.subr.mxu0 0.0
    %4403 = vmatpush1.msra.mxu0 0.0
    %4404 = vmatprep.subr.mxu0 0.0
    %4405 = vmatpush1.msra.mxu0 0.0
    %4406 = vmatprep.subr.mxu0 0.0
    %4407 = vmatpush1.msra.mxu0 0.0
    %4408 = vmatprep.subr.mxu0 0.0
    %4409 = vmatpush1.msra.mxu0 0.0
    %4410 = vmatprep.subr.mxu0 0.0
    %4411 = vmatpush1.msra.mxu0 0.0
    %4412 = vmatprep.subr.mxu0 0.0
    %4413 = vmatpush1.msra.mxu0 0.0
    %4414 = vmatprep.subr.mxu0 0.0
    %4415 = vmatpush1.msra.mxu0 0.0
    %4416 = vmatprep.subr.mxu0 0.0
    %4417 = vmatpush1.msra.mxu0 0.0
    %4418 = vmatprep.subr.mxu0 0.0
    %4419 = vmatpush1.msra.mxu0 0.0
    %4420 = vmatprep.subr.mxu0 0.0
    %4421 = vmatpush1.msra.mxu0 0.0
    %4422 = vmatprep.subr.mxu0 0.0
    %4423 = vmatpush1.msra.mxu0 0.0
    %4424 = vmatprep.subr.mxu0 0.0
    %4425 = vmatpush1.msra.mxu0 0.0
    %4426 = vmatprep.subr.mxu0 0.0
    %4427 = vmatpush1.msra.mxu0 0.0
    %4428 = vmatprep.subr.mxu0 0.0
    %4429 = vmatpush1.msra.mxu0 0.0
    %4430 = vmatprep.subr.mxu0 0.0
    %4431 = vmatpush1.msra.mxu0 0.0
    %4432 = vmatprep.subr.mxu0 0.0
    %4433 = vmatpush1.msra.mxu0 0.0
    %4434 = vmatprep.subr.mxu0 0.0
    %4435 = vmatpush1.msra.mxu0 0.0
    %4436 = vmatprep.subr.mxu0 0.0
    %4437 = vmatpush1.msra.mxu0 0.0
    %4438 = vmatprep.subr.mxu0 0.0
    %4439 = vmatpush1.msra.mxu0 0.0
    %4440 = vmatprep.subr.mxu0 0.0
    %4441 = vmatpush1.msra.mxu0 0.0
    %4442 = vmatprep.subr.mxu0 0.0
    %4443 = vmatpush1.msra.mxu0 0.0
    %4444 = vmatprep.subr.mxu0 0.0
    %4445 = vmatpush1.msra.mxu0 0.0
    %4446 = vmatprep.subr.mxu0 0.0
    %4447 = vmatpush1.msra.mxu0 0.0
    %4448 = vmatprep.subr.mxu0 0.0
    %4449 = vmatpush1.msra.mxu0 0.0
    %4450 = vmatprep.subr.mxu0 0.0
    %4451 = vmatpush1.msra.mxu0 0.0
    %4452 = vmatprep.subr.mxu0 0.0
    %4453 = vmatpush1.msra.mxu0 0.0
    %4454 = vmatprep.subr.mxu0 0.0
    %4455 = vmatpush1.msra.mxu0 0.0
    %4456 = vmatprep.mubr.f32.mxu0 0.0
    %4457 = vmatmul.mubr.f32.gmra.mrb[0].mxu0 %v4387
    %v4458 = vpop.f32.mrb[0].mxu0
    %v4459 = vadd.f32 0.0, %v4458
    %v4460 = vpop.f32.mrb[0].mxu0
    %4461 = vmatprep.mubr.f32.mxu0 0.0
    %4462 = vmatmul.mubr.f32.gmra.mrb[0].mxu0 %v4390
    %v4463 = vpop.f32.mrb[0].mxu0
    %v4464 = vadd.f32 0.0, %v4463
    %v4465 = vpop.f32.mrb[0].mxu0
    %4466 = vdwg.mxu0
    %v4468 = vsel %vm743, %v3073, 0
    %v4471 = vsel %vm743, %v3075, 0
    %4473 = vmatprep.subr.mxu0 0.0
    %4474 = vmatpush1.msra.mxu0 %v692
    %4475 = vmatprep.subr.mxu0 0.0
    %4476 = vmatpush1.msra.mxu0 %v694
    %4477 = vmatprep.subr.mxu0 0.0
    %4478 = vmatpush1.msra.mxu0 0.0
    %4479 = vmatprep.subr.mxu0 0.0
    %4480 = vmatpush1.msra.mxu0 0.0
    %4481 = vmatprep.subr.mxu0 0.0
    %4482 = vmatpush1.msra.mxu0 0.0
    %4483 = vmatprep.subr.mxu0 0.0
    %4484 = vmatpush1.msra.mxu0 0.0
    %4485 = vmatprep.subr.mxu0 0.0
    %4486 = vmatpush1.msra.mxu0 0.0
    %4487 = vmatprep.subr.mxu0 0.0
    %4488 = vmatpush1.msra.mxu0 0.0
    %4489 = vmatprep.subr.mxu0 0.0
    %4490 = vmatpush1.msra.mxu0 0.0
    %4491 = vmatprep.subr.mxu0 0.0
    %4492 = vmatpush1.msra.mxu0 0.0
    %4493 = vmatprep.subr.mxu0 0.0
    %4494 = vmatpush1.msra.mxu0 0.0
    %4495 = vmatprep.subr.mxu0 0.0
    %4496 = vmatpush1.msra.mxu0 0.0
    %4497 = vmatprep.subr.mxu0 0.0
    %4498 = vmatpush1.msra.mxu0 0.0
    %4499 = vmatprep.subr.mxu0 0.0
    %4500 = vmatpush1.msra.mxu0 0.0
    %4501 = vmatprep.subr.mxu0 0.0
    %4502 = vmatpush1.msra.mxu0 0.0
    %4503 = vmatprep.subr.mxu0 0.0
    %4504 = vmatpush1.msra.mxu0 0.0
    %4505 = vmatprep.subr.mxu0 0.0
    %4506 = vmatpush1.msra.mxu0 0.0
    %4507 = vmatprep.subr.mxu0 0.0
    %4508 = vmatpush1.msra.mxu0 0.0
    %4509 = vmatprep.subr.mxu0 0.0
    %4510 = vmatpush1.msra.mxu0 0.0
    %4511 = vmatprep.subr.mxu0 0.0
    %4512 = vmatpush1.msra.mxu0 0.0
    %4513 = vmatprep.subr.mxu0 0.0
    %4514 = vmatpush1.msra.mxu0 0.0
    %4515 = vmatprep.subr.mxu0 0.0
    %4516 = vmatpush1.msra.mxu0 0.0
    %4517 = vmatprep.subr.mxu0 0.0
    %4518 = vmatpush1.msra.mxu0 0.0
    %4519 = vmatprep.subr.mxu0 0.0
    %4520 = vmatpush1.msra.mxu0 0.0
    %4521 = vmatprep.subr.mxu0 0.0
    %4522 = vmatpush1.msra.mxu0 0.0
    %4523 = vmatprep.subr.mxu0 0.0
    %4524 = vmatpush1.msra.mxu0 0.0
    %4525 = vmatprep.subr.mxu0 0.0
    %4526 = vmatpush1.msra.mxu0 0.0
    %4527 = vmatprep.subr.mxu0 0.0
    %4528 = vmatpush1.msra.mxu0 0.0
    %4529 = vmatprep.subr.mxu0 0.0
    %4530 = vmatpush1.msra.mxu0 0.0
    %4531 = vmatprep.subr.mxu0 0.0
    %4532 = vmatpush1.msra.mxu0 0.0
    %4533 = vmatprep.subr.mxu0 0.0
    %4534 = vmatpush1.msra.mxu0 0.0
    %4535 = vmatprep.subr.mxu0 0.0
    %4536 = vmatpush1.msra.mxu0 0.0
    %4537 = vmatprep.mubr.f32.mxu0 0.0
    %4538 = vmatmul.mubr.f32.gmra.mrb[0].mxu0 %v4468
    %v4539 = vpop.f32.mrb[0].mxu0
    %v4540 = vadd.f32 0.0, %v4539
    %v4541 = vpop.f32.mrb[0].mxu0
    %4542 = vmatprep.mubr.f32.mxu0 0.0
    %4543 = vmatmul.mubr.f32.gmra.mrb[0].mxu0 %v4471
    %v4544 = vpop.f32.mrb[0].mxu0
    %v4545 = vadd.f32 0.0, %v4544
    %v4546 = vpop.f32.mrb[0].mxu0
    %4547 = vdwg.mxu0
    %v4549 = vsel %vm743, %v3077, 0
    %v4552 = vsel %vm743, %v3079, 0
    %4554 = vmatprep.subr.mxu0 0.0
    %4555 = vmatpush1.msra.mxu0 %v445
    %4556 = vmatprep.subr.mxu0 0.0
    %4557 = vmatpush1.msra.mxu0 %v450
    %4558 = vmatprep.subr.mxu0 0.0
    %4559 = vmatpush1.msra.mxu0 0.0
    %4560 = vmatprep.subr.mxu0 0.0
    %4561 = vmatpush1.msra.mxu0 0.0
    %4562 = vmatprep.subr.mxu0 0.0
    %4563 = vmatpush1.msra.mxu0 0.0
    %4564 = vmatprep.subr.mxu0 0.0
    %4565 = vmatpush1.msra.mxu0 0.0
    %4566 = vmatprep.subr.mxu0 0.0
    %4567 = vmatpush1.msra.mxu0 0.0
    %4568 = vmatprep.subr.mxu0 0.0
    %4569 = vmatpush1.msra.mxu0 0.0
    %4570 = vmatprep.subr.mxu0 0.0
    %4571 = vmatpush1.msra.mxu0 0.0
    %4572 = vmatprep.subr.mxu0 0.0
    %4573 = vmatpush1.msra.mxu0 0.0
    %4574 = vmatprep.subr.mxu0 0.0
    %4575 = vmatpush1.msra.mxu0 0.0
    %4576 = vmatprep.subr.mxu0 0.0
    %4577 = vmatpush1.msra.mxu0 0.0
    %4578 = vmatprep.subr.mxu0 0.0
    %4579 = vmatpush1.msra.mxu0 0.0
    %4580 = vmatprep.subr.mxu0 0.0
    %4581 = vmatpush1.msra.mxu0 0.0
    %4582 = vmatprep.subr.mxu0 0.0
    %4583 = vmatpush1.msra.mxu0 0.0
    %4584 = vmatprep.subr.mxu0 0.0
    %4585 = vmatpush1.msra.mxu0 0.0
    %4586 = vmatprep.subr.mxu0 0.0
    %4587 = vmatpush1.msra.mxu0 0.0
    %4588 = vmatprep.subr.mxu0 0.0
    %4589 = vmatpush1.msra.mxu0 0.0
    %4590 = vmatprep.subr.mxu0 0.0
    %4591 = vmatpush1.msra.mxu0 0.0
    %4592 = vmatprep.subr.mxu0 0.0
    %4593 = vmatpush1.msra.mxu0 0.0
    %4594 = vmatprep.subr.mxu0 0.0
    %4595 = vmatpush1.msra.mxu0 0.0
    %4596 = vmatprep.subr.mxu0 0.0
    %4597 = vmatpush1.msra.mxu0 0.0
    %4598 = vmatprep.subr.mxu0 0.0
    %4599 = vmatpush1.msra.mxu0 0.0
    %4600 = vmatprep.subr.mxu0 0.0
    %4601 = vmatpush1.msra.mxu0 0.0
    %4602 = vmatprep.subr.mxu0 0.0
    %4603 = vmatpush1.msra.mxu0 0.0
    %4604 = vmatprep.subr.mxu0 0.0
    %4605 = vmatpush1.msra.mxu0 0.0
    %4606 = vmatprep.subr.mxu0 0.0
    %4607 = vmatpush1.msra.mxu0 0.0
    %4608 = vmatprep.subr.mxu0 0.0
    %4609 = vmatpush1.msra.mxu0 0.0
    %4610 = vmatprep.subr.mxu0 0.0
    %4611 = vmatpush1.msra.mxu0 0.0
    %4612 = vmatprep.subr.mxu0 0.0
    %4613 = vmatpush1.msra.mxu0 0.0
    %4614 = vmatprep.subr.mxu0 0.0
    %4615 = vmatpush1.msra.mxu0 0.0
    %4616 = vmatprep.subr.mxu0 0.0
    %4617 = vmatpush1.msra.mxu0 0.0
    %4618 = vmatprep.mubr.f32.mxu0 0.0
    %4619 = vmatmul.mubr.f32.gmra.mrb[0].mxu0 %v4549
    %v4620 = vpop.f32.mrb[0].mxu0
    %v4621 = vadd.f32 0.0, %v4620
    %v4622 = vpop.f32.mrb[0].mxu0
    %4623 = vmatprep.mubr.f32.mxu0 0.0
    %4624 = vmatmul.mubr.f32.gmra.mrb[0].mxu0 %v4552
    %v4625 = vpop.f32.mrb[0].mxu0
    %v4626 = vadd.f32 0.0, %v4625
    %v4627 = vpop.f32.mrb[0].mxu0
    %4628 = vdwg.mxu0
    %v4630 = vsel %vm743, %v3081, 0
    %v4633 = vsel %vm743, %v3083, 0
    %4635 = vmatprep.subr.mxu0 0.0
    %4636 = vmatpush1.msra.mxu0 %v455
    %4637 = vmatprep.subr.mxu0 0.0
    %4638 = vmatpush1.msra.mxu0 %v460
    %4639 = vmatprep.subr.mxu0 0.0
    %4640 = vmatpush1.msra.mxu0 0.0
    %4641 = vmatprep.subr.mxu0 0.0
    %4642 = vmatpush1.msra.mxu0 0.0
    %4643 = vmatprep.subr.mxu0 0.0
    %4644 = vmatpush1.msra.mxu0 0.0
    %4645 = vmatprep.subr.mxu0 0.0
    %4646 = vmatpush1.msra.mxu0 0.0
    %4647 = vmatprep.subr.mxu0 0.0
    %4648 = vmatpush1.msra.mxu0 0.0
    %4649 = vmatprep.subr.mxu0 0.0
    %4650 = vmatpush1.msra.mxu0 0.0
    %4651 = vmatprep.subr.mxu0 0.0
    %4652 = vmatpush1.msra.mxu0 0.0
    %4653 = vmatprep.subr.mxu0 0.0
    %4654 = vmatpush1.msra.mxu0 0.0
    %4655 = vmatprep.subr.mxu0 0.0
    %4656 = vmatpush1.msra.mxu0 0.0
    %4657 = vmatprep.subr.mxu0 0.0
    %4658 = vmatpush1.msra.mxu0 0.0
    %4659 = vmatprep.subr.mxu0 0.0
    %4660 = vmatpush1.msra.mxu0 0.0
    %4661 = vmatprep.subr.mxu0 0.0
    %4662 = vmatpush1.msra.mxu0 0.0
    %4663 = vmatprep.subr.mxu0 0.0
    %4664 = vmatpush1.msra.mxu0 0.0
    %4665 = vmatprep.subr.mxu0 0.0
    %4666 = vmatpush1.msra.mxu0 0.0
    %4667 = vmatprep.subr.mxu0 0.0
    %4668 = vmatpush1.msra.mxu0 0.0
    %4669 = vmatprep.subr.mxu0 0.0
    %4670 = vmatpush1.msra.mxu0 0.0
    %4671 = vmatprep.subr.mxu0 0.0
    %4672 = vmatpush1.msra.mxu0 0.0
    %4673 = vmatprep.subr.mxu0 0.0
    %4674 = vmatpush1.msra.mxu0 0.0
    %4675 = vmatprep.subr.mxu0 0.0
    %4676 = vmatpush1.msra.mxu0 0.0
    %4677 = vmatprep.subr.mxu0 0.0
    %4678 = vmatpush1.msra.mxu0 0.0
    %4679 = vmatprep.subr.mxu0 0.0
    %4680 = vmatpush1.msra.mxu0 0.0
    %4681 = vmatprep.subr.mxu0 0.0
    %4682 = vmatpush1.msra.mxu0 0.0
    %4683 = vmatprep.subr.mxu0 0.0
    %4684 = vmatpush1.msra.mxu0 0.0
    %4685 = vmatprep.subr.mxu0 0.0
    %4686 = vmatpush1.msra.mxu0 0.0
    %4687 = vmatprep.subr.mxu0 0.0
    %4688 = vmatpush1.msra.mxu0 0.0
    %4689 = vmatprep.subr.mxu0 0.0
    %4690 = vmatpush1.msra.mxu0 0.0
    %4691 = vmatprep.subr.mxu0 0.0
    %4692 = vmatpush1.msra.mxu0 0.0
    %4693 = vmatprep.subr.mxu0 0.0
    %4694 = vmatpush1.msra.mxu0 0.0
    %4695 = vmatprep.subr.mxu0 0.0
    %4696 = vmatpush1.msra.mxu0 0.0
    %4697 = vmatprep.subr.mxu0 0.0
    %4698 = vmatpush1.msra.mxu0 0.0
    %4699 = vmatprep.mubr.f32.mxu0 0.0
    %4700 = vmatmul.mubr.f32.gmra.mrb[0].mxu0 %v4630
    %v4701 = vpop.f32.mrb[0].mxu0
    %v4702 = vadd.f32 0.0, %v4701
    %v4703 = vpop.f32.mrb[0].mxu0
    %4704 = vmatprep.mubr.f32.mxu0 0.0
    %4705 = vmatmul.mubr.f32.gmra.mrb[0].mxu0 %v4633
    %v4706 = vpop.f32.mrb[0].mxu0
    %v4707 = vadd.f32 0.0, %v4706
    %v4708 = vpop.f32.mrb[0].mxu0
    %4709 = vdwg.mxu0
    %v4711 = vsel %vm743, %v3085, 0
    %v4714 = vsel %vm743, %v3087, 0
    %4716 = vmatprep.subr.mxu0 0.0
    %4717 = vmatpush1.msra.mxu0 %v704
    %4718 = vmatprep.subr.mxu0 0.0
    %4719 = vmatpush1.msra.mxu0 %v706
    %4720 = vmatprep.subr.mxu0 0.0
    %4721 = vmatpush1.msra.mxu0 0.0
    %4722 = vmatprep.subr.mxu0 0.0
    %4723 = vmatpush1.msra.mxu0 0.0
    %4724 = vmatprep.subr.mxu0 0.0
    %4725 = vmatpush1.msra.mxu0 0.0
    %4726 = vmatprep.subr.mxu0 0.0
    %4727 = vmatpush1.msra.mxu0 0.0
    %4728 = vmatprep.subr.mxu0 0.0
    %4729 = vmatpush1.msra.mxu0 0.0
    %4730 = vmatprep.subr.mxu0 0.0
    %4731 = vmatpush1.msra.mxu0 0.0
    %4732 = vmatprep.subr.mxu0 0.0
    %4733 = vmatpush1.msra.mxu0 0.0
    %4734 = vmatprep.subr.mxu0 0.0
    %4735 = vmatpush1.msra.mxu0 0.0
    %4736 = vmatprep.subr.mxu0 0.0
    %4737 = vmatpush1.msra.mxu0 0.0
    %4738 = vmatprep.subr.mxu0 0.0
    %4739 = vmatpush1.msra.mxu0 0.0
    %4740 = vmatprep.subr.mxu0 0.0
    %4741 = vmatpush1.msra.mxu0 0.0
    %4742 = vmatprep.subr.mxu0 0.0
    %4743 = vmatpush1.msra.mxu0 0.0
    %4744 = vmatprep.subr.mxu0 0.0
    %4745 = vmatpush1.msra.mxu0 0.0
    %4746 = vmatprep.subr.mxu0 0.0
    %4747 = vmatpush1.msra.mxu0 0.0
    %4748 = vmatprep.subr.mxu0 0.0
    %4749 = vmatpush1.msra.mxu0 0.0
    %4750 = vmatprep.subr.mxu0 0.0
    %4751 = vmatpush1.msra.mxu0 0.0
    %4752 = vmatprep.subr.mxu0 0.0
    %4753 = vmatpush1.msra.mxu0 0.0
    %4754 = vmatprep.subr.mxu0 0.0
    %4755 = vmatpush1.msra.mxu0 0.0
    %4756 = vmatprep.subr.mxu0 0.0
    %4757 = vmatpush1.msra.mxu0 0.0
    %4758 = vmatprep.subr.mxu0 0.0
    %4759 = vmatpush1.msra.mxu0 0.0
    %4760 = vmatprep.subr.mxu0 0.0
    %4761 = vmatpush1.msra.mxu0 0.0
    %4762 = vmatprep.subr.mxu0 0.0
    %4763 = vmatpush1.msra.mxu0 0.0
    %4764 = vmatprep.subr.mxu0 0.0
    %4765 = vmatpush1.msra.mxu0 0.0
    %4766 = vmatprep.subr.mxu0 0.0
    %4767 = vmatpush1.msra.mxu0 0.0
    %4768 = vmatprep.subr.mxu0 0.0
    %4769 = vmatpush1.msra.mxu0 0.0
    %4770 = vmatprep.subr.mxu0 0.0
    %4771 = vmatpush1.msra.mxu0 0.0
    %4772 = vmatprep.subr.mxu0 0.0
    %4773 = vmatpush1.msra.mxu0 0.0
    %4774 = vmatprep.subr.mxu0 0.0
    %4775 = vmatpush1.msra.mxu0 0.0
    %4776 = vmatprep.subr.mxu0 0.0
    %4777 = vmatpush1.msra.mxu0 0.0
    %4778 = vmatprep.subr.mxu0 0.0
    %4779 = vmatpush1.msra.mxu0 0.0
    %4780 = vmatprep.mubr.f32.mxu0 0.0
    %4781 = vmatmul.mubr.f32.gmra.mrb[0].mxu0 %v4711
    %v4782 = vpop.f32.mrb[0].mxu0
    %v4783 = vadd.f32 0.0, %v4782
    %v4784 = vpop.f32.mrb[0].mxu0
    %4785 = vmatprep.mubr.f32.mxu0 0.0
    %4786 = vmatmul.mubr.f32.gmra.mrb[0].mxu0 %v4714
    %v4787 = vpop.f32.mrb[0].mxu0
    %v4788 = vadd.f32 0.0, %v4787
    %v4789 = vpop.f32.mrb[0].mxu0
    %4790 = vdwg.mxu0
    %v4792 = vsel %vm743, %v3089, 0
    %v4795 = vsel %vm743, %v3091, 0
    %4797 = vmatprep.subr.mxu0 0.0
    %4798 = vmatpush1.msra.mxu0 %v708
    %4799 = vmatprep.subr.mxu0 0.0
    %4800 = vmatpush1.msra.mxu0 %v710
    %4801 = vmatprep.subr.mxu0 0.0
    %4802 = vmatpush1.msra.mxu0 0.0
    %4803 = vmatprep.subr.mxu0 0.0
    %4804 = vmatpush1.msra.mxu0 0.0
    %4805 = vmatprep.subr.mxu0 0.0
    %4806 = vmatpush1.msra.mxu0 0.0
    %4807 = vmatprep.subr.mxu0 0.0
    %4808 = vmatpush1.msra.mxu0 0.0
    %4809 = vmatprep.subr.mxu0 0.0
    %4810 = vmatpush1.msra.mxu0 0.0
    %4811 = vmatprep.subr.mxu0 0.0
    %4812 = vmatpush1.msra.mxu0 0.0
    %4813 = vmatprep.subr.mxu0 0.0
    %4814 = vmatpush1.msra.mxu0 0.0
    %4815 = vmatprep.subr.mxu0 0.0
    %4816 = vmatpush1.msra.mxu0 0.0
    %4817 = vmatprep.subr.mxu0 0.0
    %4818 = vmatpush1.msra.mxu0 0.0
    %4819 = vmatprep.subr.mxu0 0.0
    %4820 = vmatpush1.msra.mxu0 0.0
    %4821 = vmatprep.subr.mxu0 0.0
    %4822 = vmatpush1.msra.mxu0 0.0
    %4823 = vmatprep.subr.mxu0 0.0
    %4824 = vmatpush1.msra.mxu0 0.0
    %4825 = vmatprep.subr.mxu0 0.0
    %4826 = vmatpush1.msra.mxu0 0.0
    %4827 = vmatprep.subr.mxu0 0.0
    %4828 = vmatpush1.msra.mxu0 0.0
    %4829 = vmatprep.subr.mxu0 0.0
    %4830 = vmatpush1.msra.mxu0 0.0
    %4831 = vmatprep.subr.mxu0 0.0
    %4832 = vmatpush1.msra.mxu0 0.0
    %4833 = vmatprep.subr.mxu0 0.0
    %4834 = vmatpush1.msra.mxu0 0.0
    %4835 = vmatprep.subr.mxu0 0.0
    %4836 = vmatpush1.msra.mxu0 0.0
    %4837 = vmatprep.subr.mxu0 0.0
    %4838 = vmatpush1.msra.mxu0 0.0
    %4839 = vmatprep.subr.mxu0 0.0
    %4840 = vmatpush1.msra.mxu0 0.0
    %4841 = vmatprep.subr.mxu0 0.0
    %4842 = vmatpush1.msra.mxu0 0.0
    %4843 = vmatprep.subr.mxu0 0.0
    %4844 = vmatpush1.msra.mxu0 0.0
    %4845 = vmatprep.subr.mxu0 0.0
    %4846 = vmatpush1.msra.mxu0 0.0
    %4847 = vmatprep.subr.mxu0 0.0
    %4848 = vmatpush1.msra.mxu0 0.0
    %4849 = vmatprep.subr.mxu0 0.0
    %4850 = vmatpush1.msra.mxu0 0.0
    %4851 = vmatprep.subr.mxu0 0.0
    %4852 = vmatpush1.msra.mxu0 0.0
    %4853 = vmatprep.subr.mxu0 0.0
    %4854 = vmatpush1.msra.mxu0 0.0
    %4855 = vmatprep.subr.mxu0 0.0
    %4856 = vmatpush1.msra.mxu0 0.0
    %4857 = vmatprep.subr.mxu0 0.0
    %4858 = vmatpush1.msra.mxu0 0.0
    %4859 = vmatprep.subr.mxu0 0.0
    %4860 = vmatpush1.msra.mxu0 0.0
    %4861 = vmatprep.mubr.f32.mxu0 0.0
    %4862 = vmatmul.mubr.f32.gmra.mrb[0].mxu0 %v4792
    %v4863 = vpop.f32.mrb[0].mxu0
    %v4864 = vadd.f32 0.0, %v4863
    %v4865 = vpop.f32.mrb[0].mxu0
    %4866 = vmatprep.mubr.f32.mxu0 0.0
    %4867 = vmatmul.mubr.f32.gmra.mrb[0].mxu0 %v4795
    %v4868 = vpop.f32.mrb[0].mxu0
    %v4869 = vadd.f32 0.0, %v4868
    %v4870 = vpop.f32.mrb[0].mxu0
    %4871 = vdwg.mxu0
    %v4873 = vsel %vm743, %v3093, 0
    %v4876 = vsel %vm743, %v3095, 0
    %4878 = vmatprep.subr.mxu0 0.0
    %4879 = vmatpush1.msra.mxu0 %v716
    %4880 = vmatprep.subr.mxu0 0.0
    %4881 = vmatpush1.msra.mxu0 %v718
    %4882 = vmatprep.subr.mxu0 0.0
    %4883 = vmatpush1.msra.mxu0 0.0
    %4884 = vmatprep.subr.mxu0 0.0
    %4885 = vmatpush1.msra.mxu0 0.0
    %4886 = vmatprep.subr.mxu0 0.0
    %4887 = vmatpush1.msra.mxu0 0.0
    %4888 = vmatprep.subr.mxu0 0.0
    %4889 = vmatpush1.msra.mxu0 0.0
    %4890 = vmatprep.subr.mxu0 0.0
    %4891 = vmatpush1.msra.mxu0 0.0
    %4892 = vmatprep.subr.mxu0 0.0
    %4893 = vmatpush1.msra.mxu0 0.0
    %4894 = vmatprep.subr.mxu0 0.0
    %4895 = vmatpush1.msra.mxu0 0.0
    %4896 = vmatprep.subr.mxu0 0.0
    %4897 = vmatpush1.msra.mxu0 0.0
    %4898 = vmatprep.subr.mxu0 0.0
    %4899 = vmatpush1.msra.mxu0 0.0
    %4900 = vmatprep.subr.mxu0 0.0
    %4901 = vmatpush1.msra.mxu0 0.0
    %4902 = vmatprep.subr.mxu0 0.0
    %4903 = vmatpush1.msra.mxu0 0.0
    %4904 = vmatprep.subr.mxu0 0.0
    %4905 = vmatpush1.msra.mxu0 0.0
    %4906 = vmatprep.subr.mxu0 0.0
    %4907 = vmatpush1.msra.mxu0 0.0
    %4908 = vmatprep.subr.mxu0 0.0
    %4909 = vmatpush1.msra.mxu0 0.0
    %4910 = vmatprep.subr.mxu0 0.0
    %4911 = vmatpush1.msra.mxu0 0.0
    %4912 = vmatprep.subr.mxu0 0.0
    %4913 = vmatpush1.msra.mxu0 0.0
    %4914 = vmatprep.subr.mxu0 0.0
    %4915 = vmatpush1.msra.mxu0 0.0
    %4916 = vmatprep.subr.mxu0 0.0
    %4917 = vmatpush1.msra.mxu0 0.0
    %4918 = vmatprep.subr.mxu0 0.0
    %4919 = vmatpush1.msra.mxu0 0.0
    %4920 = vmatprep.subr.mxu0 0.0
    %4921 = vmatpush1.msra.mxu0 0.0
    %4922 = vmatprep.subr.mxu0 0.0
    %4923 = vmatpush1.msra.mxu0 0.0
    %4924 = vmatprep.subr.mxu0 0.0
    %4925 = vmatpush1.msra.mxu0 0.0
    %4926 = vmatprep.subr.mxu0 0.0
    %4927 = vmatpush1.msra.mxu0 0.0
    %4928 = vmatprep.subr.mxu0 0.0
    %4929 = vmatpush1.msra.mxu0 0.0
    %4930 = vmatprep.subr.mxu0 0.0
    %4931 = vmatpush1.msra.mxu0 0.0
    %4932 = vmatprep.subr.mxu0 0.0
    %4933 = vmatpush1.msra.mxu0 0.0
    %4934 = vmatprep.subr.mxu0 0.0
    %4935 = vmatpush1.msra.mxu0 0.0
    %4936 = vmatprep.subr.mxu0 0.0
    %4937 = vmatpush1.msra.mxu0 0.0
    %4938 = vmatprep.subr.mxu0 0.0
    %4939 = vmatpush1.msra.mxu0 0.0
    %4940 = vmatprep.subr.mxu0 0.0
    %4941 = vmatpush1.msra.mxu0 0.0
    %4942 = vmatprep.mubr.f32.mxu0 0.0
    %4943 = vmatmul.mubr.f32.gmra.mrb[0].mxu0 %v4873
    %v4944 = vpop.f32.mrb[0].mxu0
    %v4945 = vadd.f32 0.0, %v4944
    %v4946 = vpop.f32.mrb[0].mxu0
    %4947 = vmatprep.mubr.f32.mxu0 0.0
    %4948 = vmatmul.mubr.f32.gmra.mrb[0].mxu0 %v4876
    %v4949 = vpop.f32.mrb[0].mxu0
    %v4950 = vadd.f32 0.0, %v4949
    %v4951 = vpop.f32.mrb[0].mxu0
    %4952 = vdwg.mxu0
    %v4954 = vsel %vm743, %v3097, 0
    %v4957 = vsel %vm743, %v3099, 0
    %4959 = vmatprep.subr.mxu0 0.0
    %4960 = vmatpush1.msra.mxu0 %v720
    %4961 = vmatprep.subr.mxu0 0.0
    %4962 = vmatpush1.msra.mxu0 %v722
    %4963 = vmatprep.subr.mxu0 0.0
    %4964 = vmatpush1.msra.mxu0 0.0
    %4965 = vmatprep.subr.mxu0 0.0
    %4966 = vmatpush1.msra.mxu0 0.0
    %4967 = vmatprep.subr.mxu0 0.0
    %4968 = vmatpush1.msra.mxu0 0.0
    %4969 = vmatprep.subr.mxu0 0.0
    %4970 = vmatpush1.msra.mxu0 0.0
    %4971 = vmatprep.subr.mxu0 0.0
    %4972 = vmatpush1.msra.mxu0 0.0
    %4973 = vmatprep.subr.mxu0 0.0
    %4974 = vmatpush1.msra.mxu0 0.0
    %4975 = vmatprep.subr.mxu0 0.0
    %4976 = vmatpush1.msra.mxu0 0.0
    %4977 = vmatprep.subr.mxu0 0.0
    %4978 = vmatpush1.msra.mxu0 0.0
    %4979 = vmatprep.subr.mxu0 0.0
    %4980 = vmatpush1.msra.mxu0 0.0
    %4981 = vmatprep.subr.mxu0 0.0
    %4982 = vmatpush1.msra.mxu0 0.0
    %4983 = vmatprep.subr.mxu0 0.0
    %4984 = vmatpush1.msra.mxu0 0.0
    %4985 = vmatprep.subr.mxu0 0.0
    %4986 = vmatpush1.msra.mxu0 0.0
    %4987 = vmatprep.subr.mxu0 0.0
    %4988 = vmatpush1.msra.mxu0 0.0
    %4989 = vmatprep.subr.mxu0 0.0
    %4990 = vmatpush1.msra.mxu0 0.0
    %4991 = vmatprep.subr.mxu0 0.0
    %4992 = vmatpush1.msra.mxu0 0.0
    %4993 = vmatprep.subr.mxu0 0.0
    %4994 = vmatpush1.msra.mxu0 0.0
    %4995 = vmatprep.subr.mxu0 0.0
    %4996 = vmatpush1.msra.mxu0 0.0
    %4997 = vmatprep.subr.mxu0 0.0
    %4998 = vmatpush1.msra.mxu0 0.0
    %4999 = vmatprep.subr.mxu0 0.0
    %5000 = vmatpush1.msra.mxu0 0.0
    %5001 = vmatprep.subr.mxu0 0.0
    %5002 = vmatpush1.msra.mxu0 0.0
    %5003 = vmatprep.subr.mxu0 0.0
    %5004 = vmatpush1.msra.mxu0 0.0
    %5005 = vmatprep.subr.mxu0 0.0
    %5006 = vmatpush1.msra.mxu0 0.0
    %5007 = vmatprep.subr.mxu0 0.0
    %5008 = vmatpush1.msra.mxu0 0.0
    %5009 = vmatprep.subr.mxu0 0.0
    %5010 = vmatpush1.msra.mxu0 0.0
    %5011 = vmatprep.subr.mxu0 0.0
    %5012 = vmatpush1.msra.mxu0 0.0
    %5013 = vmatprep.subr.mxu0 0.0
    %5014 = vmatpush1.msra.mxu0 0.0
    %5015 = vmatprep.subr.mxu0 0.0
    %5016 = vmatpush1.msra.mxu0 0.0
    %5017 = vmatprep.subr.mxu0 0.0
    %5018 = vmatpush1.msra.mxu0 0.0
    %5019 = vmatprep.subr.mxu0 0.0
    %5020 = vmatpush1.msra.mxu0 0.0
    %5021 = vmatprep.subr.mxu0 0.0
    %5022 = vmatpush1.msra.mxu0 0.0
    %5023 = vmatprep.mubr.f32.mxu0 0.0
    %5024 = vmatmul.mubr.f32.gmra.mrb[0].mxu0 %v4954
    %v5025 = vpop.f32.mrb[0].mxu0
    %v5026 = vadd.f32 0.0, %v5025
    %v5027 = vpop.f32.mrb[0].mxu0
    %5028 = vmatprep.mubr.f32.mxu0 0.0
    %5029 = vmatmul.mubr.f32.gmra.mrb[0].mxu0 %v4957
    %v5030 = vpop.f32.mrb[0].mxu0
    %v5031 = vadd.f32 0.0, %v5030
    %v5032 = vpop.f32.mrb[0].mxu0
    %5033 = vdwg.mxu0
    %v5035 = vsel %vm743, %v3101, 0
    %v5038 = vsel %vm743, %v3103, 0
    %5040 = vmatprep.subr.mxu0 0.0
    %5041 = vmatpush1.msra.mxu0 %v728
    %5042 = vmatprep.subr.mxu0 0.0
    %5043 = vmatpush1.msra.mxu0 %v730
    %5044 = vmatprep.subr.mxu0 0.0
    %5045 = vmatpush1.msra.mxu0 0.0
    %5046 = vmatprep.subr.mxu0 0.0
    %5047 = vmatpush1.msra.mxu0 0.0
    %5048 = vmatprep.subr.mxu0 0.0
    %5049 = vmatpush1.msra.mxu0 0.0
    %5050 = vmatprep.subr.mxu0 0.0
    %5051 = vmatpush1.msra.mxu0 0.0
    %5052 = vmatprep.subr.mxu0 0.0
    %5053 = vmatpush1.msra.mxu0 0.0
    %5054 = vmatprep.subr.mxu0 0.0
    %5055 = vmatpush1.msra.mxu0 0.0
    %5056 = vmatprep.subr.mxu0 0.0
    %5057 = vmatpush1.msra.mxu0 0.0
    %5058 = vmatprep.subr.mxu0 0.0
    %5059 = vmatpush1.msra.mxu0 0.0
    %5060 = vmatprep.subr.mxu0 0.0
    %5061 = vmatpush1.msra.mxu0 0.0
    %5062 = vmatprep.subr.mxu0 0.0
    %5063 = vmatpush1.msra.mxu0 0.0
    %5064 = vmatprep.subr.mxu0 0.0
    %5065 = vmatpush1.msra.mxu0 0.0
    %5066 = vmatprep.subr.mxu0 0.0
    %5067 = vmatpush1.msra.mxu0 0.0
    %5068 = vmatprep.subr.mxu0 0.0
    %5069 = vmatpush1.msra.mxu0 0.0
    %5070 = vmatprep.subr.mxu0 0.0
    %5071 = vmatpush1.msra.mxu0 0.0
    %5072 = vmatprep.subr.mxu0 0.0
    %5073 = vmatpush1.msra.mxu0 0.0
    %5074 = vmatprep.subr.mxu0 0.0
    %5075 = vmatpush1.msra.mxu0 0.0
    %5076 = vmatprep.subr.mxu0 0.0
    %5077 = vmatpush1.msra.mxu0 0.0
    %5078 = vmatprep.subr.mxu0 0.0
    %5079 = vmatpush1.msra.mxu0 0.0
    %5080 = vmatprep.subr.mxu0 0.0
    %5081 = vmatpush1.msra.mxu0 0.0
    %5082 = vmatprep.subr.mxu0 0.0
    %5083 = vmatpush1.msra.mxu0 0.0
    %5084 = vmatprep.subr.mxu0 0.0
    %5085 = vmatpush1.msra.mxu0 0.0
    %5086 = vmatprep.subr.mxu0 0.0
    %5087 = vmatpush1.msra.mxu0 0.0
    %5088 = vmatprep.subr.mxu0 0.0
    %5089 = vmatpush1.msra.mxu0 0.0
    %5090 = vmatprep.subr.mxu0 0.0
    %5091 = vmatpush1.msra.mxu0 0.0
    %5092 = vmatprep.subr.mxu0 0.0
    %5093 = vmatpush1.msra.mxu0 0.0
    %5094 = vmatprep.subr.mxu0 0.0
    %5095 = vmatpush1.msra.mxu0 0.0
    %5096 = vmatprep.subr.mxu0 0.0
    %5097 = vmatpush1.msra.mxu0 0.0
    %5098 = vmatprep.subr.mxu0 0.0
    %5099 = vmatpush1.msra.mxu0 0.0
    %5100 = vmatprep.subr.mxu0 0.0
    %5101 = vmatpush1.msra.mxu0 0.0
    %5102 = vmatprep.subr.mxu0 0.0
    %5103 = vmatpush1.msra.mxu0 0.0
    %5104 = vmatprep.mubr.f32.mxu0 0.0
    %5105 = vmatmul.mubr.f32.gmra.mrb[0].mxu0 %v5035
    %v5106 = vpop.f32.mrb[0].mxu0
    %v5107 = vadd.f32 0.0, %v5106
    %v5108 = vpop.f32.mrb[0].mxu0
    %5109 = vmatprep.mubr.f32.mxu0 0.0
    %5110 = vmatmul.mubr.f32.gmra.mrb[0].mxu0 %v5038
    %v5111 = vpop.f32.mrb[0].mxu0
    %v5112 = vadd.f32 0.0, %v5111
    %v5113 = vpop.f32.mrb[0].mxu0
    %5114 = vdwg.mxu0
    %v5116 = vsel %vm743, %v3105, 0
    %v5119 = vsel %vm743, %v3107, 0
    %5121 = vmatprep.subr.mxu0 0.0
    %5122 = vmatpush1.msra.mxu0 %v732
    %5123 = vmatprep.subr.mxu0 0.0
    %5124 = vmatpush1.msra.mxu0 %v734
    %5125 = vmatprep.subr.mxu0 0.0
    %5126 = vmatpush1.msra.mxu0 0.0
    %5127 = vmatprep.subr.mxu0 0.0
    %5128 = vmatpush1.msra.mxu0 0.0
    %5129 = vmatprep.subr.mxu0 0.0
    %5130 = vmatpush1.msra.mxu0 0.0
    %5131 = vmatprep.subr.mxu0 0.0
    %5132 = vmatpush1.msra.mxu0 0.0
    %5133 = vmatprep.subr.mxu0 0.0
    %5134 = vmatpush1.msra.mxu0 0.0
    %5135 = vmatprep.subr.mxu0 0.0
    %5136 = vmatpush1.msra.mxu0 0.0
    %5137 = vmatprep.subr.mxu0 0.0
    %5138 = vmatpush1.msra.mxu0 0.0
    %5139 = vmatprep.subr.mxu0 0.0
    %5140 = vmatpush1.msra.mxu0 0.0
    %5141 = vmatprep.subr.mxu0 0.0
    %5142 = vmatpush1.msra.mxu0 0.0
    %5143 = vmatprep.subr.mxu0 0.0
    %5144 = vmatpush1.msra.mxu0 0.0
    %5145 = vmatprep.subr.mxu0 0.0
    %5146 = vmatpush1.msra.mxu0 0.0
    %5147 = vmatprep.subr.mxu0 0.0
    %5148 = vmatpush1.msra.mxu0 0.0
    %5149 = vmatprep.subr.mxu0 0.0
    %5150 = vmatpush1.msra.mxu0 0.0
    %5151 = vmatprep.subr.mxu0 0.0
    %5152 = vmatpush1.msra.mxu0 0.0
    %5153 = vmatprep.subr.mxu0 0.0
    %5154 = vmatpush1.msra.mxu0 0.0
    %5155 = vmatprep.subr.mxu0 0.0
    %5156 = vmatpush1.msra.mxu0 0.0
    %5157 = vmatprep.subr.mxu0 0.0
    %5158 = vmatpush1.msra.mxu0 0.0
    %5159 = vmatprep.subr.mxu0 0.0
    %5160 = vmatpush1.msra.mxu0 0.0
    %5161 = vmatprep.subr.mxu0 0.0
    %5162 = vmatpush1.msra.mxu0 0.0
    %5163 = vmatprep.subr.mxu0 0.0
    %5164 = vmatpush1.msra.mxu0 0.0
    %5165 = vmatprep.subr.mxu0 0.0
    %5166 = vmatpush1.msra.mxu0 0.0
    %5167 = vmatprep.subr.mxu0 0.0
    %5168 = vmatpush1.msra.mxu0 0.0
    %5169 = vmatprep.subr.mxu0 0.0
    %5170 = vmatpush1.msra.mxu0 0.0
    %5171 = vmatprep.subr.mxu0 0.0
    %5172 = vmatpush1.msra.mxu0 0.0
    %5173 = vmatprep.subr.mxu0 0.0
    %5174 = vmatpush1.msra.mxu0 0.0
    %5175 = vmatprep.subr.mxu0 0.0
    %5176 = vmatpush1.msra.mxu0 0.0
    %5177 = vmatprep.subr.mxu0 0.0
    %5178 = vmatpush1.msra.mxu0 0.0
    %5179 = vmatprep.subr.mxu0 0.0
    %5180 = vmatpush1.msra.mxu0 0.0
    %5181 = vmatprep.subr.mxu0 0.0
    %5182 = vmatpush1.msra.mxu0 0.0
    %5183 = vmatprep.subr.mxu0 0.0
    %5184 = vmatpush1.msra.mxu0 0.0
    %5185 = vmatprep.mubr.f32.mxu0 0.0
    %5186 = vmatmul.mubr.f32.gmra.mrb[0].mxu0 %v5116
    %v5187 = vpop.f32.mrb[0].mxu0
    %v5188 = vadd.f32 0.0, %v5187
    %v5189 = vpop.f32.mrb[0].mxu0
    %5190 = vmatprep.mubr.f32.mxu0 0.0
    %5191 = vmatmul.mubr.f32.gmra.mrb[0].mxu0 %v5119
    %v5192 = vpop.f32.mrb[0].mxu0
    %v5193 = vadd.f32 0.0, %v5192
    %v5194 = vpop.f32.mrb[0].mxu0
    %5195 = vdwg.mxu0
    %v5196 = vrcp.pop %v3110
    %v5197 = vrcp.pop %v3113
    %v5198 = vrcp.pop %v3116
    %v5199 = vrcp.pop %v3119
    %v5200 = vrcp.pop %v3122
    %v5201 = vrcp.pop %v3125
    %v5202 = vrcp.pop %v3128
    %v5203 = vrcp.pop %v3131
    %v5204 = vrcp.pop %v3134
    %v5205 = vrcp.pop %v3137
    %v5206 = vrcp.pop %v3140
    %v5207 = vrcp.pop %v3143
    %v5208 = vrcp.pop %v3146
    %v5209 = vrcp.pop %v3149
    %v5210 = vrcp.pop %v3152
    %v5211 = vrcp.pop %v3155
    %v5212 = vrcp.pop %v3158
    %v5213 = vrcp.pop %v3161
    %v5214 = vrcp.pop %v3164
    %v5215 = vrcp.pop %v3167
    %v5216 = vrcp.pop %v3170
    %v5217 = vrcp.pop %v3173
    %v5218 = vrcp.pop %v3176
    %v5219 = vrcp.pop %v3179
    %v5220 = vrcp.pop %v3182
    %v5221 = vrcp.pop %v3185
    %v5222 = vrcp.pop %v3188
    %v5223 = vrcp.pop %v3191
    %v5224 = vrcp.pop %v3194
    %v5225 = vrcp.pop %v3197
    %v5226 = vrcp.pop %v3200
    %v5227 = vrcp.pop %v3203
    %v5228 = vrcp.pop %v3206
    %v5229 = vrcp.pop %v3209
    %v5230 = vrcp.pop %v3212
    %v5231 = vrcp.pop %v3215
    %v5232 = vrcp.pop %v3218
    %v5233 = vrcp.pop %v3221
    %v5234 = vrcp.pop %v3224
    %v5235 = vrcp.pop %v3227
    %v5236 = vrcp.pop %v3230
    %v5237 = vrcp.pop %v3233
    %v5238 = vrcp.pop %v3236
    %v5239 = vrcp.pop %v3239
    %v5240 = vrcp.pop %v3242
    %v5241 = vrcp.pop %v3245
    %v5242 = vrcp.pop %v3248
    %v5243 = vrcp.pop %v3251
    %v5244 = vmul.f32 %v3325, %v5196
    %v5245 = vmul.f32 %v3330, %v5197
    %v5246 = vmul.f32 %v3406, %v5198
    %v5247 = vmul.f32 %v3411, %v5199
    %v5248 = vmul.f32 %v3487, %v5200
    %v5249 = vmul.f32 %v3492, %v5201
    %v5250 = vmul.f32 %v3568, %v5202
    %v5251 = vmul.f32 %v3573, %v5203
    %v5252 = vmul.f32 %v3649, %v5204
    %v5253 = vmul.f32 %v3654, %v5205
    %v5254 = vmul.f32 %v3730, %v5206
    %v5255 = vmul.f32 %v3735, %v5207
    %v5256 = vmul.f32 %v3811, %v5208
    %v5257 = vmul.f32 %v3816, %v5209
    %v5258 = vmul.f32 %v3892, %v5210
    %v5259 = vmul.f32 %v3897, %v5211
    %v5260 = vmul.f32 %v3973, %v5212
    %v5261 = vmul.f32 %v3978, %v5213
    %v5262 = vmul.f32 %v4054, %v5214
    %v5263 = vmul.f32 %v4059, %v5215
    %v5264 = vmul.f32 %v4135, %v5216
    %v5265 = vmul.f32 %v4140, %v5217
    %v5266 = vmul.f32 %v4216, %v5218
    %v5267 = vmul.f32 %v4221, %v5219
    %v5268 = vmul.f32 %v4297, %v5220
    %v5269 = vmul.f32 %v4302, %v5221
    %v5270 = vmul.f32 %v4378, %v5222
    %v5271 = vmul.f32 %v4383, %v5223
    %v5272 = vmul.f32 %v4459, %v5224
    %v5273 = vmul.f32 %v4464, %v5225
    %v5274 = vmul.f32 %v4540, %v5226
    %v5275 = vmul.f32 %v4545, %v5227
    %v5276 = vmul.f32 %v4621, %v5228
    %v5277 = vmul.f32 %v4626, %v5229
    %v5278 = vmul.f32 %v4702, %v5230
    %v5279 = vmul.f32 %v4707, %v5231
    %v5280 = vmul.f32 %v4783, %v5232
    %v5281 = vmul.f32 %v4788, %v5233
    %v5282 = vmul.f32 %v4864, %v5234
    %v5283 = vmul.f32 %v4869, %v5235
    %v5284 = vmul.f32 %v4945, %v5236
    %v5285 = vmul.f32 %v4950, %v5237
    %v5286 = vmul.f32 %v5026, %v5238
    %v5287 = vmul.f32 %v5031, %v5239
    %v5288 = vmul.f32 %v5107, %v5240
    %v5289 = vmul.f32 %v5112, %v5241
    %v5290 = vmul.f32 %v5188, %v5242
    %v5291 = vmul.f32 %v5193, %v5243
    %5296 = vrot.lane.b32.xlu0 %v5248, 16
    %v5297 = vpop.permute.xlu0 %5296
    %5298 = vrot.lane.b32.xlu0 %v5249, 16
    %v5299 = vpop.permute.xlu0 %5298
    %5300 = vrot.lane.b32.xlu0 %v5250, 16
    %v5301 = vpop.permute.xlu0 %5300
    %5302 = vrot.lane.b32.xlu0 %v5251, 16
    %v5303 = vpop.permute.xlu0 %5302
    %5312 = vrot.lane.b32.xlu0 %v5252, 32
    %v5313 = vpop.permute.xlu0 %5312
    %5314 = vrot.lane.b32.xlu0 %v5253, 32
    %v5315 = vpop.permute.xlu0 %5314
    %5316 = vrot.lane.b32.xlu0 %v5254, 32
    %v5317 = vpop.permute.xlu0 %5316
    %5318 = vrot.lane.b32.xlu0 %v5255, 32
    %v5319 = vpop.permute.xlu0 %5318
    %5328 = vrot.lane.b32.xlu0 %v5256, 48
    %v5329 = vpop.permute.xlu0 %5328
    %5330 = vrot.lane.b32.xlu0 %v5257, 48
    %v5331 = vpop.permute.xlu0 %5330
    %5332 = vrot.lane.b32.xlu0 %v5258, 48
    %v5333 = vpop.permute.xlu0 %5332
    %5334 = vrot.lane.b32.xlu0 %v5259, 48
    %v5335 = vpop.permute.xlu0 %5334
    %5344 = vrot.lane.b32.xlu0 %v5260, 64
    %v5345 = vpop.permute.xlu0 %5344
    %5346 = vrot.lane.b32.xlu0 %v5261, 64
    %v5347 = vpop.permute.xlu0 %5346
    %5348 = vrot.lane.b32.xlu0 %v5262, 64
    %v5349 = vpop.permute.xlu0 %5348
    %5350 = vrot.lane.b32.xlu0 %v5263, 64
    %v5351 = vpop.permute.xlu0 %5350
    %5360 = vrot.lane.b32.xlu0 %v5264, 80
    %v5361 = vpop.permute.xlu0 %5360
    %5362 = vrot.lane.b32.xlu0 %v5265, 80
    %v5363 = vpop.permute.xlu0 %5362
    %5364 = vrot.lane.b32.xlu0 %v5266, 80
    %v5365 = vpop.permute.xlu0 %5364
    %5366 = vrot.lane.b32.xlu0 %v5267, 80
    %v5367 = vpop.permute.xlu0 %5366
    %5376 = vrot.lane.b32.xlu0 %v5268, 96
    %v5377 = vpop.permute.xlu0 %5376
    %5378 = vrot.lane.b32.xlu0 %v5269, 96
    %v5379 = vpop.permute.xlu0 %5378
    %5380 = vrot.lane.b32.xlu0 %v5270, 96
    %v5381 = vpop.permute.xlu0 %5380
    %5382 = vrot.lane.b32.xlu0 %v5271, 96
    %v5383 = vpop.permute.xlu0 %5382
    %5392 = vrot.lane.b32.xlu0 %v5272, 112
    %v5393 = vpop.permute.xlu0 %5392
    %5394 = vrot.lane.b32.xlu0 %v5273, 112
    %v5395 = vpop.permute.xlu0 %5394
    %5396 = vrot.lane.b32.xlu0 %v5274, 112
    %v5397 = vpop.permute.xlu0 %5396
    %5398 = vrot.lane.b32.xlu0 %v5275, 112
    %v5399 = vpop.permute.xlu0 %5398
    %5408 = vrot.lane.b32.xlu0 %v5280, 16
    %v5409 = vpop.permute.xlu0 %5408
    %5410 = vrot.lane.b32.xlu0 %v5281, 16
    %v5411 = vpop.permute.xlu0 %5410
    %5412 = vrot.lane.b32.xlu0 %v5282, 16
    %v5413 = vpop.permute.xlu0 %5412
    %5414 = vrot.lane.b32.xlu0 %v5283, 16
    %v5415 = vpop.permute.xlu0 %5414
    %5424 = vrot.lane.b32.xlu0 %v5284, 32
    %v5425 = vpop.permute.xlu0 %5424
    %5426 = vrot.lane.b32.xlu0 %v5285, 32
    %v5427 = vpop.permute.xlu0 %5426
    %5428 = vrot.lane.b32.xlu0 %v5286, 32
    %v5429 = vpop.permute.xlu0 %5428
    %5430 = vrot.lane.b32.xlu0 %v5287, 32
    %v5431 = vpop.permute.xlu0 %5430
    %5440 = vrot.lane.b32.xlu0 %v5288, 48
    %v5441 = vpop.permute.xlu0 %5440
    %5442 = vrot.lane.b32.xlu0 %v5289, 48
    %v5443 = vpop.permute.xlu0 %5442
    %5444 = vrot.lane.b32.xlu0 %v5290, 48
    %v5445 = vpop.permute.xlu0 %5444
    %5446 = vrot.lane.b32.xlu0 %v5291, 48
    %v5447 = vpop.permute.xlu0 %5446
    %v5452 = vsel %vm743, %v5244, %v5297
    %v5453 = vsel %vm743, %v5245, %v5299
    %v5454 = vsel %vm743, %v5246, %v5301
    %v5455 = vsel %vm743, %v5247, %v5303
    %vm5456 = vcmask 261120
    %v5457 = vsel %vm5456, %v5452, %v5313
    %v5458 = vsel %vm5456, %v5453, %v5315
    %v5459 = vsel %vm5456, %v5454, %v5317
    %v5460 = vsel %vm5456, %v5455, %v5319
    %vm5461 = vcmask 392192
    %v5462 = vsel %vm5461, %v5457, %v5329
    %v5463 = vsel %vm5461, %v5458, %v5331
    %v5464 = vsel %vm5461, %v5459, %v5333
    %v5465 = vsel %vm5461, %v5460, %v5335
    %v5466 = vsel %vm187, %v5462, %v5345
    %v5467 = vsel %vm187, %v5463, %v5347
    %v5468 = vsel %vm187, %v5464, %v5349
    %v5469 = vsel %vm187, %v5465, %v5351
    %vm5470 = vcmask 654336
    %v5471 = vsel %vm5470, %v5466, %v5361
    %v5472 = vsel %vm5470, %v5467, %v5363
    %v5473 = vsel %vm5470, %v5468, %v5365
    %v5474 = vsel %vm5470, %v5469, %v5367
    %vm5475 = vcmask 785408
    %v5476 = vsel %vm5475, %v5471, %v5377
    %v5477 = vsel %vm5475, %v5472, %v5379
    %v5478 = vsel %vm5475, %v5473, %v5381
    %v5479 = vsel %vm5475, %v5474, %v5383
    %vm5480 = vcmask 916480
    %v5481 = vsel %vm5480, %v5476, %v5393
    %v5482 = vsel %vm5480, %v5477, %v5395
    %v5483 = vsel %vm5480, %v5478, %v5397
    %v5484 = vsel %vm5480, %v5479, %v5399
    %v5485 = vsel %vm743, %v5276, %v5409
    %v5486 = vsel %vm743, %v5277, %v5411
    %v5487 = vsel %vm743, %v5278, %v5413
    %v5488 = vsel %vm743, %v5279, %v5415
    %v5489 = vsel %vm5456, %v5485, %v5425
    %v5490 = vsel %vm5456, %v5486, %v5427
    %v5491 = vsel %vm5456, %v5487, %v5429
    %v5492 = vsel %vm5456, %v5488, %v5431
    %v5493 = vsel %vm5461, %v5489, %v5441
    %v5494 = vsel %vm5461, %v5490, %v5443
    %v5495 = vsel %vm5461, %v5491, %v5445
    %v5496 = vsel %vm5461, %v5492, %v5447
    %v5497 = vld [vmem:[#allocation7] sm:$0xff]
    %v5498 = vld [vmem:[#allocation7 + $0x8] sm:$0xff]
    %v5499 = vld [vmem:[#allocation7 + $0x10] sm:$0xff]
    %v5500 = vld [vmem:[#allocation7 + $0x18] sm:$0xff]
    %v5501 = vld [vmem:[#allocation7 + $0x20] sm:$0xff]
    %v5502 = vld [vmem:[#allocation7 + $0x28] sm:$0xff]
    %v5503 = vld [vmem:[#allocation7 + $0x30] sm:$0xff]
    %v5504 = vld [vmem:[#allocation7 + $0x38] sm:$0xff]
    %v5505 = vld [vmem:[#allocation7 + $0x40] sm:$0xff]
    %v5506 = vld [vmem:[#allocation7 + $0x48] sm:$0xff]
    %v5507 = vld [vmem:[#allocation7 + $0x50] sm:$0xff]
    %v5508 = vld [vmem:[#allocation7 + $0x58] sm:$0xff]
    %v5509 = vld [vmem:[#allocation7 + $0x60] sm:$0xff]
    %v5510 = vld [vmem:[#allocation7 + $0x68] sm:$0xff]
    %v5511 = vld [vmem:[#allocation7 + $0x70] sm:$0xff]
    %v5512 = vld [vmem:[#allocation7 + $0x78] sm:$0xff]
    %v5513 = vld [vmem:[#allocation7 + $0x80] sm:$0xff]
    %v5514 = vld [vmem:[#allocation7 + $0x88] sm:$0xff]
    %v5515 = vld [vmem:[#allocation7 + $0x90] sm:$0xff]
    %v5516 = vld [vmem:[#allocation7 + $0x98] sm:$0xff]
    %v5517 = vld [vmem:[#allocation7 + $0xa0] sm:$0xff]
    %v5518 = vld [vmem:[#allocation7 + $0xa8] sm:$0xff]
    %v5519 = vld [vmem:[#allocation7 + $0xb0] sm:$0xff]
    %v5520 = vld [vmem:[#allocation7 + $0xb8] sm:$0xff]
    %v5521 = vld [vmem:[#allocation7 + $0xc0] sm:$0xff]
    %v5522 = vld [vmem:[#allocation7 + $0xc8] sm:$0xff]
    %v5523 = vld [vmem:[#allocation7 + $0xd0] sm:$0xff]
    %v5524 = vld [vmem:[#allocation7 + $0xd8] sm:$0xff]
    %v5525 = vld [vmem:[#allocation7 + $0xe0] sm:$0xff]
    %v5526 = vld [vmem:[#allocation7 + $0xe8] sm:$0xff]
    %v5527 = vld [vmem:[#allocation7 + $0xf0] sm:$0xff]
    %v5528 = vld [vmem:[#allocation7 + $0xf8] sm:$0xff]
    %v5529 = vld [vmem:[#allocation7 + $0x100] sm:$0xff]
    %v5530 = vld [vmem:[#allocation7 + $0x108] sm:$0xff]
    %v5531 = vld [vmem:[#allocation7 + $0x110] sm:$0xff]
    %v5532 = vld [vmem:[#allocation7 + $0x118] sm:$0xff]
    %v5533 = vld [vmem:[#allocation7 + $0x120] sm:$0xff]
    %v5534 = vld [vmem:[#allocation7 + $0x128] sm:$0xff]
    %v5535 = vld [vmem:[#allocation7 + $0x130] sm:$0xff]
    %v5536 = vld [vmem:[#allocation7 + $0x138] sm:$0xff]
    %v5537 = vld [vmem:[#allocation7 + $0x140] sm:$0xff]
    %v5538 = vld [vmem:[#allocation7 + $0x148] sm:$0xff]
    %v5539 = vld [vmem:[#allocation7 + $0x150] sm:$0xff]
    %v5540 = vld [vmem:[#allocation7 + $0x158] sm:$0xff]
    %v5541 = vld [vmem:[#allocation7 + $0x160] sm:$0xff]
    %v5542 = vld [vmem:[#allocation7 + $0x168] sm:$0xff]
    %v5543 = vld [vmem:[#allocation7 + $0x170] sm:$0xff]
    %v5544 = vld [vmem:[#allocation7 + $0x178] sm:$0xff]
    %v5545 = vld [vmem:[%s3] sm:$0x3]
    %v5547 = vlaneseq
    %v5548 = vshrl.u32 %v5547, 7
    %v5549 = vsub.s32 0, %v5548
    %v5550 = vrot.slane %v5545, %v5549
    %v5551 = vlaneseq
    %v5552 = vshrl.u32 %v5551, 7
    %v5553 = vsub.s32 1, %v5552
    %v5554 = vrot.slane %v5545, %v5553
    %v5558 = vsel %vm187, %v5493, 0
    %v5561 = vsel %vm187, %v5494, 0
    %v5564 = vsel %vm187, %v5495, 0
    %v5567 = vsel %vm187, %v5496, 0
    %5569 = vmatprep.subr.mxu0 %v5498
    %5570 = vmatpush1.msra.mxu0 %v5497
    %5571 = vmatprep.subr.mxu0 %v5500
    %5572 = vmatpush1.msra.mxu0 %v5499
    %5573 = vmatprep.subr.mxu0 %v5502
    %5574 = vmatpush1.msra.mxu0 %v5501
    %5575 = vmatprep.subr.mxu0 %v5504
    %5576 = vmatpush1.msra.mxu0 %v5503
    %5577 = vmatprep.subr.mxu0 %v5506
    %5578 = vmatpush1.msra.mxu0 %v5505
    %5579 = vmatprep.subr.mxu0 %v5508
    %5580 = vmatpush1.msra.mxu0 %v5507
    %5581 = vmatprep.subr.mxu0 %v5510
    %5582 = vmatpush1.msra.mxu0 %v5509
    %5583 = vmatprep.subr.mxu0 %v5512
    %5584 = vmatpush1.msra.mxu0 %v5511
    %5585 = vmatprep.subr.mxu0 %v5514
    %5586 = vmatpush1.msra.mxu0 %v5513
    %5587 = vmatprep.subr.mxu0 %v5516
    %5588 = vmatpush1.msra.mxu0 %v5515
    %5589 = vmatprep.subr.mxu0 %v5518
    %5590 = vmatpush1.msra.mxu0 %v5517
    %5591 = vmatprep.subr.mxu0 %v5520
    %5592 = vmatpush1.msra.mxu0 %v5519
    %5593 = vmatprep.subr.mxu0 %v5522
    %5594 = vmatpush1.msra.mxu0 %v5521
    %5595 = vmatprep.subr.mxu0 %v5524
    %5596 = vmatpush1.msra.mxu0 %v5523
    %5597 = vmatprep.subr.mxu0 %v5526
    %5598 = vmatpush1.msra.mxu0 %v5525
    %5599 = vmatprep.subr.mxu0 %v5528
    %5600 = vmatpush1.msra.mxu0 %v5527
    %5601 = vmatprep.subr.mxu0 %v5530
    %5602 = vmatpush1.msra.mxu0 %v5529
    %5603 = vmatprep.subr.mxu0 %v5532
    %5604 = vmatpush1.msra.mxu0 %v5531
    %5605 = vmatprep.subr.mxu0 %v5534
    %5606 = vmatpush1.msra.mxu0 %v5533
    %5607 = vmatprep.subr.mxu0 %v5536
    %5608 = vmatpush1.msra.mxu0 %v5535
    %5609 = vmatprep.subr.mxu0 %v5538
    %5610 = vmatpush1.msra.mxu0 %v5537
    %5611 = vmatprep.subr.mxu0 %v5540
    %5612 = vmatpush1.msra.mxu0 %v5539
    %5613 = vmatprep.subr.mxu0 %v5542
    %5614 = vmatpush1.msra.mxu0 %v5541
    %5615 = vmatprep.subr.mxu0 %v5544
    %5616 = vmatpush1.msra.mxu0 %v5543
    %5617 = vmatprep.subr.mxu0 0.0
    %5618 = vmatpush1.msra.mxu0 0.0
    %5619 = vmatprep.subr.mxu0 0.0
    %5620 = vmatpush1.msra.mxu0 0.0
    %5621 = vmatprep.subr.mxu0 0.0
    %5622 = vmatpush1.msra.mxu0 0.0
    %5623 = vmatprep.subr.mxu0 0.0
    %5624 = vmatpush1.msra.mxu0 0.0
    %5625 = vmatprep.subr.mxu0 0.0
    %5626 = vmatpush1.msra.mxu0 0.0
    %5627 = vmatprep.subr.mxu0 0.0
    %5628 = vmatpush1.msra.mxu0 0.0
    %5629 = vmatprep.subr.mxu0 0.0
    %5630 = vmatpush1.msra.mxu0 0.0
    %5631 = vmatprep.subr.mxu0 0.0
    %5632 = vmatpush1.msra.mxu0 0.0
    %5633 = vmatprep.mubr.f32.mxu0 %v5558
    %5634 = vmatmul.mubr.f32.gmra.mrb[0].mxu0 %v5481
    %v5635 = vpop.f32.mrb[0].mxu0
    %v5636 = vadd.f32 %v5550, %v5635
    %v5637 = vpop.f32.mrb[0].mxu0
    %v5638 = vadd.f32 %v5554, %v5637
    %5639 = vmatprep.mubr.f32.mxu0 %v5561
    %5640 = vmatmul.mubr.f32.gmra.mrb[0].mxu0 %v5482
    %v5641 = vpop.f32.mrb[0].mxu0
    %v5642 = vadd.f32 %v5550, %v5641
    %v5643 = vpop.f32.mrb[0].mxu0
    %v5644 = vadd.f32 %v5554, %v5643
    %5645 = vmatprep.mubr.f32.mxu0 %v5564
    %5646 = vmatmul.mubr.f32.gmra.mrb[0].mxu0 %v5483
    %v5647 = vpop.f32.mrb[0].mxu0
    %v5648 = vadd.f32 %v5550, %v5647
    %v5649 = vpop.f32.mrb[0].mxu0
    %v5650 = vadd.f32 %v5554, %v5649
    %5651 = vmatprep.mubr.f32.mxu0 %v5567
    %5652 = vmatmul.mubr.f32.gmra.mrb[0].mxu0 %v5484
    %v5653 = vpop.f32.mrb[0].mxu0
    %v5654 = vadd.f32 %v5550, %v5653
    %v5655 = vpop.f32.mrb[0].mxu0
    %v5656 = vadd.f32 %v5554, %v5655
    %5657 = vdwg.mxu0
    %5658 = vst [vmem:[#allocation8] sm:$0xff] %v5636
    %5659 = vst.msk [vmem:[#allocation8 + $0x8] sm:$0xff] %vm187, %v5638
    %5660 = vst [vmem:[#allocation8 + $0x10] sm:$0xff] %v5642
    %5661 = vst.msk [vmem:[#allocation8 + $0x18] sm:$0xff] %vm187, %v5644
    %5662 = vst [vmem:[#allocation8 + $0x20] sm:$0xff] %v5648
    %5663 = vst.msk [vmem:[#allocation8 + $0x28] sm:$0xff] %vm187, %v5650
    %5664 = vst [vmem:[#allocation8 + $0x30] sm:$0xff] %v5654
    %5665 = vst.msk [vmem:[#allocation8 + $0x38] sm:$0xff] %vm187, %v5656
    // Predicated region
    $region30: #{msa_forward.1} parent=1 // pred_check
      _
    $region31: #{msa_forward.1} parent=1 // pred_check_branch
      %5667 = sbr.rel (0) target = $region33
    $region32: #{msa_forward.1} parent=1 // pred_region
      %s5669 = ssub.s32 1024, 1024
      %5670 = vsyncadd [#allocation4], %s5669
      %s5671 = sshll.u32 [#allocation8], 4
      %s5672 = int_to_ptr.vmem [resolvable:$true] %s5671
      %5677 = dma.vmem_to_hbm [thread:$0]  %s5672, 1024, %s4, [#allocation4], 256, 256, 16
    $region33: #{msa_forward.1} parent=1 // pred_fallthru
      _
    // Predicated region
    $region34: #{msa_forward.1} parent=1 // pred_check
      _
    $region35: #{msa_forward.1} parent=1 // pred_check_branch
      %5679 = sbr.rel (0) target = $region37
    $region36: #{msa_forward.1} parent=1 // pred_region
      %5680 = dma.done [#allocation4], 1024
    $region37: #{msa_forward.1} parent=1 // pred_fallthru
      _
    %5681 = vsyncpa [#allocation3], 1
    %5682 = vsyncpa [#allocation6], 1
    %5683 = vsyncpa [#allocation4], 1

// kernel: msa_forward.1
$region0: #{msa_forward.1}
  #allocation0 [shape = 'u32[]', space=smem, size = 0x4, offset = 0x4, fixed_abs, tag = 'smem constant byte address 0x4 - core index']
  #allocation1 [shape = 'u32[144,128]{1,0:T(1,128)}', space=vmem, size = 0x12000, scoped, tag = 'internal scratch']
  %s0 = inlined_call_operand.hbm [shape: f32[2,16,192], index: 0, kind: input, shape index: {}]
  %s1 = inlined_call_operand.hbm [shape: f32[192,576], index: 1, kind: input, shape index: {}]
  %s2 = inlined_call_operand.hbm [shape: f32[192,192], index: 2, kind: input, shape index: {}]
  %s3 = inlined_call_operand.vmem [shape: f32[1,192], index: 3, kind: input, shape index: {}]
  %s4 = inlined_call_operand.hbm [shape: f32[2,16,192], index: 4, kind: output, shape index: {}]
  %s5 = sld [smem:[#allocation0]]
  $region38: #{msa_forward.1} parent=0
    _
  %s7 = ssub.s32 1, %s5
  %s8 = scalar_select 0, %s7, %s5
  $region1: #{msa_forward.1} parent=0
    #allocation2 [shape = 'u8[32768]{0}', space=vmem, size = 0x8000, scoped, tag = 'input window, operand 0, single buffered']
    #allocation3 [shape = 's32[1]{0}', space=sflag, size = 0x4, scoped, tag = 'scoped memory for msa_forward.1']
    #allocation4 [shape = 's32[1]{0}', space=sflag, size = 0x4, scoped, tag = 'scoped memory for msa_forward.1']
    #allocation5 [shape = 'u8[491520]{0}', space=vmem, size = 0x78000, scoped, tag = 'input window, operand 1, single buffered']
    #allocation6 [shape = 's32[1]{0}', space=sflag, size = 0x4, scoped, tag = 'scoped memory for msa_forward.1']
    #allocation7 [shape = 'u8[196608]{0}', space=vmem, size = 0x30000, scoped, tag = 'input window, operand 2, single buffered']
    #allocation8 [shape = 'u8[32768]{0}', space=vmem, size = 0x8000, scoped, tag = 'output window, operand 0, single buffered']
    %9 = vsyncpa [#allocation3], 0
    %10 = vsyncpa [#allocation6], 0
    %11 = vsyncpa [#allocation4], 0
    // Predicated region
    $region2: #{msa_forward.1} parent=1 // pred_check
      _
    $region3: #{msa_forward.1} parent=1 // pred_check_branch
      %13 = sbr.rel (0) target = $region5
    $region4: #{msa_forward.1} parent=1 // pred_region
      %s15 = ssub.s32 1024, 1024
      %16 = vsyncadd [#allocation3], %s15
      %s17 = sshll.u32 [#allocation2], 4
      %s18 = int_to_ptr.vmem [resolvable:$true] %s17
      %23 = dma.hbm_to_vmem [thread:$0]  %s0, 1024, %s18, [#allocation3], 256, 256, 16
    $region5: #{msa_forward.1} parent=1 // pred_fallthru
      _
    // Predicated region
    $region6: #{msa_forward.1} parent=1 // pred_check
      _
    $region7: #{msa_forward.1} parent=1 // pred_check_branch
      %25 = sbr.rel (0) target = $region9
    $region8: #{msa_forward.1} parent=1 // pred_region
      %s27 = ssub.s32 15360, 15360
      %28 = vsyncadd [#allocation6], %s27
      %s29 = sshll.u32 [#allocation5], 4
      %s30 = int_to_ptr.vmem [resolvable:$true] %s29
      %35 = dma.hbm_to_vmem [thread:$0]  %s1, 15360, %s30, [#allocation6], 640, 640, 40
    $region9: #{msa_forward.1} parent=1 // pred_fallthru
      _
    // Predicated region
    $region10: #{msa_forward.1} parent=1 // pred_check
      _
    $region11: #{msa_forward.1} parent=1 // pred_check_branch
      %37 = sbr.rel (0) target = $region13
    $region12: #{msa_forward.1} parent=1 // pred_region
      %s39 = ssub.s32 6144, 6144
      %40 = vsyncadd [#allocation6], %s39
      %s41 = sshll.u32 [#allocation7], 4
      %s42 = int_to_ptr.vmem [resolvable:$true] %s41
      %47 = dma.hbm_to_vmem [thread:$0]  %s2, 6144, %s42, [#allocation6], 256, 256, 16
    $region13: #{msa_forward.1} parent=1 // pred_fallthru
      _
    // Predicated region
    $region14: #{msa_forward.1} parent=1 // pred_check
      _
    $region15: #{msa_forward.1} parent=1 // pred_check_branch
      %49 = sbr.rel (0) target = $region17
    $region16: #{msa_forward.1} parent=1 // pred_region
      _
    $region17: #{msa_forward.1} parent=1 // pred_fallthru
      _
    // Predicated region
    $region18: #{msa_forward.1} parent=1 // pred_check
      _
    $region19: #{msa_forward.1} parent=1 // pred_check_branch
      %51 = sbr.rel (0) target = $region21
    $region20: #{msa_forward.1} parent=1 // pred_region
      %52 = dma.done [#allocation3], 1024
    $region21: #{msa_forward.1} parent=1 // pred_fallthru
      _
    // Predicated region
    $region22: #{msa_forward.1} parent=1 // pred_check
      _
    $region23: #{msa_forward.1} parent=1 // pred_check_branch
      %54 = sbr.rel (0) target = $region25
    $region24: #{msa_forward.1} parent=1 // pred_region
      %55 = dma.done [#allocation6], 15360
    $region25: #{msa_forward.1} parent=1 // pred_fallthru
      _
    // Predicated region
    $region26: #{msa_forward.1} parent=1 // pred_check
      _
    $region27: #{msa_forward.1} parent=1 // pred_check_branch
      %57 = sbr.rel (0) target = $region29
    $region28: #{msa_forward.1} parent=1 // pred_region
      %58 = dma.done [#allocation6], 6144
    $region29: #{msa_forward.1} parent=1 // pred_fallthru
      _
    %v59 = vld [vmem:[#allocation2] sm:$0xff]
    %v60 = vld [vmem:[#allocation2 + $0x8] sm:$0xff]
    %v61 = vld [vmem:[#allocation2 + $0x10] sm:$0xff]
    %v62 = vld [vmem:[#allocation2 + $0x18] sm:$0xff]
    %v63 = vld [vmem:[#allocation2 + $0x20] sm:$0xff]
    %v64 = vld [vmem:[#allocation2 + $0x28] sm:$0xff]
    %v65 = vld [vmem:[#allocation2 + $0x30] sm:$0xff]
    %v66 = vld [vmem:[#allocation2 + $0x38] sm:$0xff]
    %v67 = vld [vmem:[#allocation5] sm:$0xff]
    %v68 = vld [vmem:[#allocation5 + $0x8] sm:$0xff]
    %v69 = vld [vmem:[#allocation5 + $0x10] sm:$0xff]
    %v70 = vld [vmem:[#allocation5 + $0x18] sm:$0xff]
    %v71 = vld [vmem:[#allocation5 + $0x20] sm:$0xff]
    %v72 = vld [vmem:[#allocation5 + $0x28] sm:$0xff]
    %v73 = vld [vmem:[#allocation5 + $0x30] sm:$0xff]
    %v74 = vld [vmem:[#allocation5 + $0x38] sm:$0xff]
    %v75 = vld [vmem:[#allocation5 + $0x40] sm:$0xff]
    %v76 = vld [vmem:[#allocation5 + $0x48] sm:$0xff]
    %v77 = vld [vmem:[#allocation5 + $0x50] sm:$0xff]
    %v78 = vld [vmem:[#allocation5 + $0x58] sm:$0xff]
    %v79 = vld [vmem:[#allocation5 + $0x60] sm:$0xff]
    %v80 = vld [vmem:[#allocation5 + $0x68] sm:$0xff]
    %v81 = vld [vmem:[#allocation5 + $0x70] sm:$0xff]
    %v82 = vld [vmem:[#allocation5 + $0x78] sm:$0xff]
    %v83 = vld [vmem:[#allocation5 + $0x80] sm:$0xff]
    %v84 = vld [vmem:[#allocation5 + $0x88] sm:$0xff]
    %v85 = vld [vmem:[#allocation5 + $0x90] sm:$0xff]
    %v86 = vld [vmem:[#allocation5 + $0x98] sm:$0xff]
    %v87 = vld [vmem:[#allocation5 + $0xa0] sm:$0xff]
    %v88 = vld [vmem:[#allocation5 + $0xa8] sm:$0xff]
    %v89 = vld [vmem:[#allocation5 + $0xb0] sm:$0xff]
    %v90 = vld [vmem:[#allocation5 + $0xb8] sm:$0xff]
    %v91 = vld [vmem:[#allocation5 + $0xc0] sm:$0xff]
    %v92 = vld [vmem:[#allocation5 + $0xc8] sm:$0xff]
    %v93 = vld [vmem:[#allocation5 + $0xd0] sm:$0xff]
    %v94 = vld [vmem:[#allocation5 + $0xd8] sm:$0xff]
    %v95 = vld [vmem:[#allocation5 + $0xe0] sm:$0xff]
    %v96 = vld [vmem:[#allocation5 + $0xe8] sm:$0xff]
    %v97 = vld [vmem:[#allocation5 + $0xf0] sm:$0xff]
    %v98 = vld [vmem:[#allocation5 + $0xf8] sm:$0xff]
    %v99 = vld [vmem:[#allocation5 + $0x100] sm:$0xff]
    %v100 = vld [vmem:[#allocation5 + $0x108] sm:$0xff]
    %v101 = vld [vmem:[#allocation5 + $0x110] sm:$0xff]
    %v102 = vld [vmem:[#allocation5 + $0x118] sm:$0xff]
    %v103 = vld [vmem:[#allocation5 + $0x120] sm:$0xff]
    %v104 = vld [vmem:[#allocation5 + $0x128] sm:$0xff]
    %v105 = vld [vmem:[#allocation5 + $0x130] sm:$0xff]
    %v106 = vld [vmem:[#allocation5 + $0x138] sm:$0xff]
    %v107 = vld [vmem:[#allocation5 + $0x140] sm:$0xff]
    %v108 = vld [vmem:[#allocation5 + $0x148] sm:$0xff]
    %v109 = vld [vmem:[#allocation5 + $0x150] sm:$0xff]
    %v110 = vld [vmem:[#allocation5 + $0x158] sm:$0xff]
    %v111 = vld [vmem:[#allocation5 + $0x160] sm:$0xff]
    %v112 = vld [vmem:[#allocation5 + $0x168] sm:$0xff]
    %v113 = vld [vmem:[#allocation5 + $0x170] sm:$0xff]
    %v114 = vld [vmem:[#allocation5 + $0x178] sm:$0xff]
    %v115 = vld [vmem:[#allocation5 + $0x180] sm:$0xff]
    %v116 = vld [vmem:[#allocation5 + $0x188] sm:$0xff]
    %v117 = vld [vmem:[#allocation5 + $0x190] sm:$0xff]
    %v118 = vld [vmem:[#allocation5 + $0x198] sm:$0xff]
    %v119 = vld [vmem:[#allocation5 + $0x1a0] sm:$0xff]
    %v120 = vld [vmem:[#allocation5 + $0x1a8] sm:$0xff]
    %v121 = vld [vmem:[#allocation5 + $0x1b0] sm:$0xff]
    %v122 = vld [vmem:[#allocation5 + $0x1b8] sm:$0xff]
    %v123 = vld [vmem:[#allocation5 + $0x1c0] sm:$0xff]
    %v124 = vld [vmem:[#allocation5 + $0x1c8] sm:$0xff]
    %v125 = vld [vmem:[#allocation5 + $0x1d0] sm:$0xff]
    %v126 = vld [vmem:[#allocation5 + $0x1d8] sm:$0xff]
    %v127 = vld [vmem:[#allocation5 + $0x1e0] sm:$0xff]
    %v128 = vld [vmem:[#allocation5 + $0x1e8] sm:$0xff]
    %v129 = vld [vmem:[#allocation5 + $0x1f0] sm:$0xff]
    %v130 = vld [vmem:[#allocation5 + $0x1f8] sm:$0xff]
    %v131 = vld [vmem:[#allocation5 + $0x200] sm:$0xff]
    %v132 = vld [vmem:[#allocation5 + $0x208] sm:$0xff]
    %v133 = vld [vmem:[#allocation5 + $0x210] sm:$0xff]
    %v134 = vld [vmem:[#allocation5 + $0x218] sm:$0xff]
    %v135 = vld [vmem:[#allocation5 + $0x220] sm:$0xff]
    %v136 = vld [vmem:[#allocation5 + $0x228] sm:$0xff]
    %v137 = vld [vmem:[#allocation5 + $0x230] sm:$0xff]
    %v138 = vld [vmem:[#allocation5 + $0x238] sm:$0xff]
    %v139 = vld [vmem:[#allocation5 + $0x240] sm:$0xff]
    %v140 = vld [vmem:[#allocation5 + $0x248] sm:$0xff]
    %v141 = vld [vmem:[#allocation5 + $0x250] sm:$0xff]
    %v142 = vld [vmem:[#allocation5 + $0x258] sm:$0xff]
    %v143 = vld [vmem:[#allocation5 + $0x260] sm:$0xff]
    %v144 = vld [vmem:[#allocation5 + $0x268] sm:$0xff]
    %v145 = vld [vmem:[#allocation5 + $0x270] sm:$0xff]
    %v146 = vld [vmem:[#allocation5 + $0x278] sm:$0xff]
    %v147 = vld [vmem:[#allocation5 + $0x280] sm:$0xff]
    %v148 = vld [vmem:[#allocation5 + $0x288] sm:$0xff]
    %v149 = vld [vmem:[#allocation5 + $0x290] sm:$0xff]
    %v150 = vld [vmem:[#allocation5 + $0x298] sm:$0xff]
    %v151 = vld [vmem:[#allocation5 + $0x2a0] sm:$0xff]
    %v152 = vld [vmem:[#allocation5 + $0x2a8] sm:$0xff]
    %v153 = vld [vmem:[#allocation5 + $0x2b0] sm:$0xff]
    %v154 = vld [vmem:[#allocation5 + $0x2b8] sm:$0xff]
    %v155 = vld [vmem:[#allocation5 + $0x2c0] sm:$0xff]
    %v156 = vld [vmem:[#allocation5 + $0x2c8] sm:$0xff]
    %v157 = vld [vmem:[#allocation5 + $0x2d0] sm:$0xff]
    %v158 = vld [vmem:[#allocation5 + $0x2d8] sm:$0xff]
    %v159 = vld [vmem:[#allocation5 + $0x2e0] sm:$0xff]
    %v160 = vld [vmem:[#allocation5 + $0x2e8] sm:$0xff]
    %v161 = vld [vmem:[#allocation5 + $0x2f0] sm:$0xff]
    %v162 = vld [vmem:[#allocation5 + $0x2f8] sm:$0xff]
    %v163 = vld [vmem:[#allocation5 + $0x300] sm:$0xff]
    %v164 = vld [vmem:[#allocation5 + $0x308] sm:$0xff]
    %v165 = vld [vmem:[#allocation5 + $0x310] sm:$0xff]
    %v166 = vld [vmem:[#allocation5 + $0x318] sm:$0xff]
    %v167 = vld [vmem:[#allocation5 + $0x320] sm:$0xff]
    %v168 = vld [vmem:[#allocation5 + $0x328] sm:$0xff]
    %v169 = vld [vmem:[#allocation5 + $0x330] sm:$0xff]
    %v170 = vld [vmem:[#allocation5 + $0x338] sm:$0xff]
    %v171 = vld [vmem:[#allocation5 + $0x340] sm:$0xff]
    %v172 = vld [vmem:[#allocation5 + $0x348] sm:$0xff]
    %v173 = vld [vmem:[#allocation5 + $0x350] sm:$0xff]
    %v174 = vld [vmem:[#allocation5 + $0x358] sm:$0xff]
    %v175 = vld [vmem:[#allocation5 + $0x360] sm:$0xff]
    %v176 = vld [vmem:[#allocation5 + $0x368] sm:$0xff]
    %v177 = vld [vmem:[#allocation5 + $0x370] sm:$0xff]
    %v178 = vld [vmem:[#allocation5 + $0x378] sm:$0xff]
    %v179 = vld [vmem:[#allocation5 + $0x380] sm:$0xff]
    %v180 = vld [vmem:[#allocation5 + $0x388] sm:$0xff]
    %v181 = vld [vmem:[#allocation5 + $0x390] sm:$0xff]
    %v182 = vld [vmem:[#allocation5 + $0x398] sm:$0xff]
    %v183 = vld [vmem:[#allocation5 + $0x3a0] sm:$0xff]
    %v184 = vld [vmem:[#allocation5 + $0x3a8] sm:$0xff]
    %v185 = vld [vmem:[#allocation5 + $0x3b0] sm:$0xff]
    %v186 = vld [vmem:[#allocation5 + $0x3b8] sm:$0xff]
    %vm187 = vcmask 523264
    %v189 = vsel %vm187, %v60, 0
    %v192 = vsel %vm187, %v62, 0
    %v195 = vsel %vm187, %v64, 0
    %v198 = vsel %vm187, %v66, 0
    %200 = vmatprep.subr.mxu0 %v68
    %201 = vmatpush1.msra.mxu0 %v67
    %202 = vmatprep.subr.mxu0 %v73
    %203 = vmatpush1.msra.mxu0 %v72
    %204 = vmatprep.subr.mxu0 %v78
    %205 = vmatpush1.msra.mxu0 %v77
    %206 = vmatprep.subr.mxu0 %v83
    %207 = vmatpush1.msra.mxu0 %v82
    %208 = vmatprep.subr.mxu0 %v88
    %209 = vmatpush1.msra.mxu0 %v87
    %210 = vmatprep.subr.mxu0 %v93
    %211 = vmatpush1.msra.mxu0 %v92
    %212 = vmatprep.subr.mxu0 %v98
    %213 = vmatpush1.msra.mxu0 %v97
    %214 = vmatprep.subr.mxu0 %v103
    %215 = vmatpush1.msra.mxu0 %v102
    %216 = vmatprep.subr.mxu0 %v108
    %217 = vmatpush1.msra.mxu0 %v107
    %218 = vmatprep.subr.mxu0 %v113
    %219 = vmatpush1.msra.mxu0 %v112
    %220 = vmatprep.subr.mxu0 %v118
    %221 = vmatpush1.msra.mxu0 %v117
    %222 = vmatprep.subr.mxu0 %v123
    %223 = vmatpush1.msra.mxu0 %v122
    %224 = vmatprep.subr.mxu0 %v128
    %225 = vmatpush1.msra.mxu0 %v127
    %226 = vmatprep.subr.mxu0 %v133
    %227 = vmatpush1.msra.mxu0 %v132
    %228 = vmatprep.subr.mxu0 %v138
    %229 = vmatpush1.msra.mxu0 %v137
    %230 = vmatprep.subr.mxu0 %v143
    %231 = vmatpush1.msra.mxu0 %v142
    %232 = vmatprep.subr.mxu0 %v148
    %233 = vmatpush1.msra.mxu0 %v147
    %234 = vmatprep.subr.mxu0 %v153
    %235 = vmatpush1.msra.mxu0 %v152
    %236 = vmatprep.subr.mxu0 %v158
    %237 = vmatpush1.msra.mxu0 %v157
    %238 = vmatprep.subr.mxu0 %v163
    %239 = vmatpush1.msra.mxu0 %v162
    %240 = vmatprep.subr.mxu0 %v168
    %241 = vmatpush1.msra.mxu0 %v167
    %242 = vmatprep.subr.mxu0 %v173
    %243 = vmatpush1.msra.mxu0 %v172
    %244 = vmatprep.subr.mxu0 %v178
    %245 = vmatpush1.msra.mxu0 %v177
    %246 = vmatprep.subr.mxu0 %v183
    %247 = vmatpush1.msra.mxu0 %v182
    %248 = vmatprep.subr.mxu0 0.0
    %249 = vmatpush1.msra.mxu0 0.0
    %250 = vmatprep.subr.mxu0 0.0
    %251 = vmatpush1.msra.mxu0 0.0
    %252 = vmatprep.subr.mxu0 0.0
    %253 = vmatpush1.msra.mxu0 0.0
    %254 = vmatprep.subr.mxu0 0.0
    %255 = vmatpush1.msra.mxu0 0.0
    %256 = vmatprep.subr.mxu0 0.0
    %257 = vmatpush1.msra.mxu0 0.0
    %258 = vmatprep.subr.mxu0 0.0
    %259 = vmatpush1.msra.mxu0 0.0
    %260 = vmatprep.subr.mxu0 0.0
    %261 = vmatpush1.msra.mxu0 0.0
    %262 = vmatprep.subr.mxu0 0.0
    %263 = vmatpush1.msra.mxu0 0.0
    %264 = vmatprep.mubr.f32.mxu0 %v189
    %265 = vmatmul.mubr.f32.gmra.mrb[0].mxu0 %v59
    %v266 = vpop.f32.mrb[0].mxu0
    %v267 = vadd.f32 0.0, %v266
    %v268 = vpop.f32.mrb[0].mxu0
    %v269 = vadd.f32 0.0, %v268
    %270 = vmatprep.mubr.f32.mxu0 %v192
    %271 = vmatmul.mubr.f32.gmra.mrb[0].mxu0 %v61
    %v272 = vpop.f32.mrb[0].mxu0
    %v273 = vadd.f32 0.0, %v272
    %v274 = vpop.f32.mrb[0].mxu0
    %v275 = vadd.f32 0.0, %v274
    %276 = vmatprep.mubr.f32.mxu0 %v195
    %277 = vmatmul.mubr.f32.gmra.mrb[0].mxu0 %v63
    %v278 = vpop.f32.mrb[0].mxu0
    %v279 = vadd.f32 0.0, %v278
    %v280 = vpop.f32.mrb[0].mxu0
    %v281 = vadd.f32 0.0, %v280
    %282 = vmatprep.mubr.f32.mxu0 %v198
    %283 = vmatmul.mubr.f32.gmra.mrb[0].mxu0 %v65
    %v284 = vpop.f32.mrb[0].mxu0
    %v285 = vadd.f32 0.0, %v284
    %v286 = vpop.f32.mrb[0].mxu0
    %v287 = vadd.f32 0.0, %v286
    %288 = vdwg.mxu0
    %289 = vmatprep.subr.mxu0 %v70
    %290 = vmatpush1.msra.mxu0 %v69
    %291 = vmatprep.subr.mxu0 %v75
    %292 = vmatpush1.msra.mxu0 %v74
    %293 = vmatprep.subr.mxu0 %v80
    %294 = vmatpush1.msra.mxu0 %v79
    %295 = vmatprep.subr.mxu0 %v85
    %296 = vmatpush1.msra.mxu0 %v84
    %297 = vmatprep.subr.mxu0 %v90
    %298 = vmatpush1.msra.mxu0 %v89
    %299 = vmatprep.subr.mxu0 %v95
    %300 = vmatpush1.msra.mxu0 %v94
    %301 = vmatprep.subr.mxu0 %v100
    %302 = vmatpush1.msra.mxu0 %v99
    %303 = vmatprep.subr.mxu0 %v105
    %304 = vmatpush1.msra.mxu0 %v104
    %305 = vmatprep.subr.mxu0 %v110
    %306 = vmatpush1.msra.mxu0 %v109
    %307 = vmatprep.subr.mxu0 %v115
    %308 = vmatpush1.msra.mxu0 %v114
    %309 = vmatprep.subr.mxu0 %v120
    %310 = vmatpush1.msra.mxu0 %v119
    %311 = vmatprep.subr.mxu0 %v125
    %312 = vmatpush1.msra.mxu0 %v124
    %313 = vmatprep.subr.mxu0 %v130
    %314 = vmatpush1.msra.mxu0 %v129
    %315 = vmatprep.subr.mxu0 %v135
    %316 = vmatpush1.msra.mxu0 %v134
    %317 = vmatprep.subr.mxu0 %v140
    %318 = vmatpush1.msra.mxu0 %v139
    %319 = vmatprep.subr.mxu0 %v145
    %320 = vmatpush1.msra.mxu0 %v144
    %321 = vmatprep.subr.mxu0 %v150
    %322 = vmatpush1.msra.mxu0 %v149
    %323 = vmatprep.subr.mxu0 %v155
    %324 = vmatpush1.msra.mxu0 %v154
    %325 = vmatprep.subr.mxu0 %v160
    %326 = vmatpush1.msra.mxu0 %v159
    %327 = vmatprep.subr.mxu0 %v165
    %328 = vmatpush1.msra.mxu0 %v164
    %329 = vmatprep.subr.mxu0 %v170
    %330 = vmatpush1.msra.mxu0 %v169
    %331 = vmatprep.subr.mxu0 %v175
    %332 = vmatpush1.msra.mxu0 %v174
    %333 = vmatprep.subr.mxu0 %v180
    %334 = vmatpush1.msra.mxu0 %v179
    %335 = vmatprep.subr.mxu0 %v185
    %336 = vmatpush1.msra.mxu0 %v184
    %337 = vmatprep.subr.mxu0 0.0
    %338 = vmatpush1.msra.mxu0 0.0
    %339 = vmatprep.subr.mxu0 0.0
    %340 = vmatpush1.msra.mxu0 0.0
    %341 = vmatprep.subr.mxu0 0.0
    %342 = vmatpush1.msra.mxu0 0.0
    %343 = vmatprep.subr.mxu0 0.0
    %344 = vmatpush1.msra.mxu0 0.0
    %345 = vmatprep.subr.mxu0 0.0
    %346 = vmatpush1.msra.mxu0 0.0
    %347 = vmatprep.subr.mxu0 0.0
    %348 = vmatpush1.msra.mxu0 0.0
    %349 = vmatprep.subr.mxu0 0.0
    %350 = vmatpush1.msra.mxu0 0.0
    %351 = vmatprep.subr.mxu0 0.0
    %352 = vmatpush1.msra.mxu0 0.0
    %353 = vmatprep.mubr.f32.mxu0 %v189
    %354 = vmatmul.mubr.f32.gmra.mrb[0].mxu0 %v59
    %v355 = vpop.f32.mrb[0].mxu0
    %v356 = vadd.f32 0.0, %v355
    %v357 = vpop.f32.mrb[0].mxu0
    %v358 = vadd.f32 0.0, %v357
    %359 = vmatprep.mubr.f32.mxu0 %v192
    %360 = vmatmul.mubr.f32.gmra.mrb[0].mxu0 %v61
    %v361 = vpop.f32.mrb[0].mxu0
    %v362 = vadd.f32 0.0, %v361
    %v363 = vpop.f32.mrb[0].mxu0
    %v364 = vadd.f32 0.0, %v363
    %365 = vmatprep.mubr.f32.mxu0 %v195
    %366 = vmatmul.mubr.f32.gmra.mrb[0].mxu0 %v63
    %v367 = vpop.f32.mrb[0].mxu0
    %v368 = vadd.f32 0.0, %v367
    %v369 = vpop.f32.mrb[0].mxu0
    %v370 = vadd.f32 0.0, %v369
    %371 = vmatprep.mubr.f32.mxu0 %v198
    %372 = vmatmul.mubr.f32.gmra.mrb[0].mxu0 %v65
    %v373 = vpop.f32.mrb[0].mxu0
    %v374 = vadd.f32 0.0, %v373
    %v375 = vpop.f32.mrb[0].mxu0
    %v376 = vadd.f32 0.0, %v375
    %377 = vdwg.mxu0
    %378 = vmatprep.subr.mxu0 0.0
    %379 = vmatpush1.msra.mxu0 %v71
    %380 = vmatprep.subr.mxu0 0.0
    %381 = vmatpush1.msra.mxu0 %v76
    %382 = vmatprep.subr.mxu0 0.0
    %383 = vmatpush1.msra.mxu0 %v81
    %384 = vmatprep.subr.mxu0 0.0
    %385 = vmatpush1.msra.mxu0 %v86
    %386 = vmatprep.subr.mxu0 0.0
    %387 = vmatpush1.msra.mxu0 %v91
    %388 = vmatprep.subr.mxu0 0.0
    %389 = vmatpush1.msra.mxu0 %v96
    %390 = vmatprep.subr.mxu0 0.0
    %391 = vmatpush1.msra.mxu0 %v101
    %392 = vmatprep.subr.mxu0 0.0
    %393 = vmatpush1.msra.mxu0 %v106
    %394 = vmatprep.subr.mxu0 0.0
    %395 = vmatpush1.msra.mxu0 %v111
    %396 = vmatprep.subr.mxu0 0.0
    %397 = vmatpush1.msra.mxu0 %v116
    %398 = vmatprep.subr.mxu0 0.0
    %399 = vmatpush1.msra.mxu0 %v121
    %400 = vmatprep.subr.mxu0 0.0
    %401 = vmatpush1.msra.mxu0 %v126
    %402 = vmatprep.subr.mxu0 0.0
    %403 = vmatpush1.msra.mxu0 %v131
    %404 = vmatprep.subr.mxu0 0.0
    %405 = vmatpush1.msra.mxu0 %v136
    %406 = vmatprep.subr.mxu0 0.0
    %407 = vmatpush1.msra.mxu0 %v141
    %408 = vmatprep.subr.mxu0 0.0
    %409 = vmatpush1.msra.mxu0 %v146
    %410 = vmatprep.subr.mxu0 0.0
    %411 = vmatpush1.msra.mxu0 %v151
    %412 = vmatprep.subr.mxu0 0.0
    %413 = vmatpush1.msra.mxu0 %v156
    %414 = vmatprep.subr.mxu0 0.0
    %415 = vmatpush1.msra.mxu0 %v161
    %416 = vmatprep.subr.mxu0 0.0
    %417 = vmatpush1.msra.mxu0 %v166
    %418 = vmatprep.subr.mxu0 0.0
    %419 = vmatpush1.msra.mxu0 %v171
    %420 = vmatprep.subr.mxu0 0.0
    %421 = vmatpush1.msra.mxu0 %v176
    %422 = vmatprep.subr.mxu0 0.0
    %423 = vmatpush1.msra.mxu0 %v181
    %424 = vmatprep.subr.mxu0 0.0
    %425 = vmatpush1.msra.mxu0 %v186
    %426 = vmatprep.subr.mxu0 0.0
    %427 = vmatpush1.msra.mxu0 0.0
    %428 = vmatprep.subr.mxu0 0.0
    %429 = vmatpush1.msra.mxu0 0.0
    %430 = vmatprep.subr.mxu0 0.0
    %431 = vmatpush1.msra.mxu0 0.0
    %432 = vmatprep.subr.mxu0 0.0
    %433 = vmatpush1.msra.mxu0 0.0
    %434 = vmatprep.subr.mxu0 0.0
    %435 = vmatpush1.msra.mxu0 0.0
    %436 = vmatprep.subr.mxu0 0.0
    %437 = vmatpush1.msra.mxu0 0.0
    %438 = vmatprep.subr.mxu0 0.0
    %439 = vmatpush1.msra.mxu0 0.0
    %440 = vmatprep.subr.mxu0 0.0
    %441 = vmatpush1.msra.mxu0 0.0
    %442 = vmatprep.mubr.f32.mxu0 %v189
    %443 = vmatmul.mubr.f32.gmra.mrb[0].mxu0 %v59
    %v444 = vpop.f32.mrb[0].mxu0
    %v445 = vadd.f32 0.0, %v444
    %v446 = vpop.f32.mrb[0].mxu0
    %447 = vmatprep.mubr.f32.mxu0 %v192
    %448 = vmatmul.mubr.f32.gmra.mrb[0].mxu0 %v61
    %v449 = vpop.f32.mrb[0].mxu0
    %v450 = vadd.f32 0.0, %v449
    %v451 = vpop.f32.mrb[0].mxu0
    %452 = vmatprep.mubr.f32.mxu0 %v195
    %453 = vmatmul.mubr.f32.gmra.mrb[0].mxu0 %v63
    %v454 = vpop.f32.mrb[0].mxu0
    %v455 = vadd.f32 0.0, %v454
    %v456 = vpop.f32.mrb[0].mxu0
    %457 = vmatprep.mubr.f32.mxu0 %v198
    %458 = vmatmul.mubr.f32.gmra.mrb[0].mxu0 %v65
    %v459 = vpop.f32.mrb[0].mxu0
    %v460 = vadd.f32 0.0, %v459
    %v461 = vpop.f32.mrb[0].mxu0
    %462 = vdwg.mxu0
    %467 = vrot.lane.b32.xlu0 %v267, 112
    %v468 = vpop.permute.xlu0 %467
    %469 = vrot.lane.b32.xlu0 %v273, 112
    %v470 = vpop.permute.xlu0 %469
    %471 = vrot.lane.b32.xlu0 %v279, 112
    %v472 = vpop.permute.xlu0 %471
    %473 = vrot.lane.b32.xlu0 %v285, 112
    %v474 = vpop.permute.xlu0 %473
    %475 = vrot.lane.b32.xlu0 %v267, 96
    %v476 = vpop.permute.xlu0 %475
    %477 = vrot.lane.b32.xlu0 %v273, 96
    %v478 = vpop.permute.xlu0 %477
    %479 = vrot.lane.b32.xlu0 %v279, 96
    %v480 = vpop.permute.xlu0 %479
    %481 = vrot.lane.b32.xlu0 %v285, 96
    %v482 = vpop.permute.xlu0 %481
    %483 = vrot.lane.b32.xlu0 %v267, 80
    %v484 = vpop.permute.xlu0 %483
    %485 = vrot.lane.b32.xlu0 %v273, 80
    %v486 = vpop.permute.xlu0 %485
    %487 = vrot.lane.b32.xlu0 %v279, 80
    %v488 = vpop.permute.xlu0 %487
    %489 = vrot.lane.b32.xlu0 %v285, 80
    %v490 = vpop.permute.xlu0 %489
    %491 = vrot.lane.b32.xlu0 %v267, 64
    %v492 = vpop.permute.xlu0 %491
    %493 = vrot.lane.b32.xlu0 %v273, 64
    %v494 = vpop.permute.xlu0 %493
    %495 = vrot.lane.b32.xlu0 %v279, 64
    %v496 = vpop.permute.xlu0 %495
    %497 = vrot.lane.b32.xlu0 %v285, 64
    %v498 = vpop.permute.xlu0 %497
    %499 = vrot.lane.b32.xlu0 %v267, 48
    %v500 = vpop.permute.xlu0 %499
    %501 = vrot.lane.b32.xlu0 %v273, 48
    %v502 = vpop.permute.xlu0 %501
    %503 = vrot.lane.b32.xlu0 %v279, 48
    %v504 = vpop.permute.xlu0 %503
    %505 = vrot.lane.b32.xlu0 %v285, 48
    %v506 = vpop.permute.xlu0 %505
    %507 = vrot.lane.b32.xlu0 %v267, 32
    %v508 = vpop.permute.xlu0 %507
    %509 = vrot.lane.b32.xlu0 %v273, 32
    %v510 = vpop.permute.xlu0 %509
    %511 = vrot.lane.b32.xlu0 %v279, 32
    %v512 = vpop.permute.xlu0 %511
    %513 = vrot.lane.b32.xlu0 %v285, 32
    %v514 = vpop.permute.xlu0 %513
    %515 = vrot.lane.b32.xlu0 %v267, 16
    %v516 = vpop.permute.xlu0 %515
    %517 = vrot.lane.b32.xlu0 %v273, 16
    %v518 = vpop.permute.xlu0 %517
    %519 = vrot.lane.b32.xlu0 %v279, 16
    %v520 = vpop.permute.xlu0 %519
    %521 = vrot.lane.b32.xlu0 %v285, 16
    %v522 = vpop.permute.xlu0 %521
    %527 = vrot.lane.b32.xlu0 %v269, 112
    %v528 = vpop.permute.xlu0 %527
    %529 = vrot.lane.b32.xlu0 %v275, 112
    %v530 = vpop.permute.xlu0 %529
    %531 = vrot.lane.b32.xlu0 %v281, 112
    %v532 = vpop.permute.xlu0 %531
    %533 = vrot.lane.b32.xlu0 %v287, 112
    %v534 = vpop.permute.xlu0 %533
    %535 = vrot.lane.b32.xlu0 %v269, 96
    %v536 = vpop.permute.xlu0 %535
    %537 = vrot.lane.b32.xlu0 %v275, 96
    %v538 = vpop.permute.xlu0 %537
    %539 = vrot.lane.b32.xlu0 %v281, 96
    %v540 = vpop.permute.xlu0 %539
    %541 = vrot.lane.b32.xlu0 %v287, 96
    %v542 = vpop.permute.xlu0 %541
    %543 = vrot.lane.b32.xlu0 %v269, 80
    %v544 = vpop.permute.xlu0 %543
    %545 = vrot.lane.b32.xlu0 %v275, 80
    %v546 = vpop.permute.xlu0 %545
    %547 = vrot.lane.b32.xlu0 %v281, 80
    %v548 = vpop.permute.xlu0 %547
    %549 = vrot.lane.b32.xlu0 %v287, 80
    %v550 = vpop.permute.xlu0 %549
    %555 = vrot.lane.b32.xlu0 %v356, 64
    %v556 = vpop.permute.xlu0 %555
    %557 = vrot.lane.b32.xlu0 %v362, 64
    %v558 = vpop.permute.xlu0 %557
    %559 = vrot.lane.b32.xlu0 %v368, 64
    %v560 = vpop.permute.xlu0 %559
    %561 = vrot.lane.b32.xlu0 %v374, 64
    %v562 = vpop.permute.xlu0 %561
    %563 = vrot.lane.b32.xlu0 %v356, 48
    %v564 = vpop.permute.xlu0 %563
    %565 = vrot.lane.b32.xlu0 %v362, 48
    %v566 = vpop.permute.xlu0 %565
    %567 = vrot.lane.b32.xlu0 %v368, 48
    %v568 = vpop.permute.xlu0 %567
    %569 = vrot.lane.b32.xlu0 %v374, 48
    %v570 = vpop.permute.xlu0 %569
    %571 = vrot.lane.b32.xlu0 %v356, 32
    %v572 = vpop.permute.xlu0 %571
    %573 = vrot.lane.b32.xlu0 %v362, 32
    %v574 = vpop.permute.xlu0 %573
    %575 = vrot.lane.b32.xlu0 %v368, 32
    %v576 = vpop.permute.xlu0 %575
    %577 = vrot.lane.b32.xlu0 %v374, 32
    %v578 = vpop.permute.xlu0 %577
    %579 = vrot.lane.b32.xlu0 %v356, 16
    %v580 = vpop.permute.xlu0 %579
    %581 = vrot.lane.b32.xlu0 %v362, 16
    %v582 = vpop.permute.xlu0 %581
    %583 = vrot.lane.b32.xlu0 %v368, 16
    %v584 = vpop.permute.xlu0 %583
    %585 = vrot.lane.b32.xlu0 %v374, 16
    %v586 = vpop.permute.xlu0 %585
    %587 = vrot.lane.b32.xlu0 %v356, 112
    %v588 = vpop.permute.xlu0 %587
    %589 = vrot.lane.b32.xlu0 %v362, 112
    %v590 = vpop.permute.xlu0 %589
    %591 = vrot.lane.b32.xlu0 %v368, 112
    %v592 = vpop.permute.xlu0 %591
    %593 = vrot.lane.b32.xlu0 %v374, 112
    %v594 = vpop.permute.xlu0 %593
    %595 = vrot.lane.b32.xlu0 %v356, 96
    %v596 = vpop.permute.xlu0 %595
    %597 = vrot.lane.b32.xlu0 %v362, 96
    %v598 = vpop.permute.xlu0 %597
    %599 = vrot.lane.b32.xlu0 %v368, 96
    %v600 = vpop.permute.xlu0 %599
    %601 = vrot.lane.b32.xlu0 %v374, 96
    %v602 = vpop.permute.xlu0 %601
    %603 = vrot.lane.b32.xlu0 %v356, 80
    %v604 = vpop.permute.xlu0 %603
    %605 = vrot.lane.b32.xlu0 %v362, 80
    %v606 = vpop.permute.xlu0 %605
    %607 = vrot.lane.b32.xlu0 %v368, 80
    %v608 = vpop.permute.xlu0 %607
    %609 = vrot.lane.b32.xlu0 %v374, 80
    %v610 = vpop.permute.xlu0 %609
    %615 = vrot.lane.b32.xlu0 %v358, 112
    %v616 = vpop.permute.xlu0 %615
    %617 = vrot.lane.b32.xlu0 %v364, 112
    %v618 = vpop.permute.xlu0 %617
    %619 = vrot.lane.b32.xlu0 %v370, 112
    %v620 = vpop.permute.xlu0 %619
    %621 = vrot.lane.b32.xlu0 %v376, 112
    %v622 = vpop.permute.xlu0 %621
    %627 = vrot.lane.b32.xlu0 %v358, 96
    %v628 = vpop.permute.xlu0 %627
    %629 = vrot.lane.b32.xlu0 %v364, 96
    %v630 = vpop.permute.xlu0 %629
    %631 = vrot.lane.b32.xlu0 %v370, 96
    %v632 = vpop.permute.xlu0 %631
    %633 = vrot.lane.b32.xlu0 %v376, 96
    %v634 = vpop.permute.xlu0 %633
    %639 = vrot.lane.b32.xlu0 %v358, 80
    %v640 = vpop.permute.xlu0 %639
    %641 = vrot.lane.b32.xlu0 %v364, 80
    %v642 = vpop.permute.xlu0 %641
    %643 = vrot.lane.b32.xlu0 %v370, 80
    %v644 = vpop.permute.xlu0 %643
    %645 = vrot.lane.b32.xlu0 %v376, 80
    %v646 = vpop.permute.xlu0 %645
    %651 = vrot.lane.b32.xlu0 %v358, 64
    %v652 = vpop.permute.xlu0 %651
    %653 = vrot.lane.b32.xlu0 %v364, 64
    %v654 = vpop.permute.xlu0 %653
    %655 = vrot.lane.b32.xlu0 %v370, 64
    %v656 = vpop.permute.xlu0 %655
    %657 = vrot.lane.b32.xlu0 %v376, 64
    %v658 = vpop.permute.xlu0 %657
    %663 = vrot.lane.b32.xlu0 %v358, 48
    %v664 = vpop.permute.xlu0 %663
    %665 = vrot.lane.b32.xlu0 %v364, 48
    %v666 = vpop.permute.xlu0 %665
    %667 = vrot.lane.b32.xlu0 %v370, 48
    %v668 = vpop.permute.xlu0 %667
    %669 = vrot.lane.b32.xlu0 %v376, 48
    %v670 = vpop.permute.xlu0 %669
    %675 = vrot.lane.b32.xlu0 %v358, 32
    %v676 = vpop.permute.xlu0 %675
    %677 = vrot.lane.b32.xlu0 %v364, 32
    %v678 = vpop.permute.xlu0 %677
    %679 = vrot.lane.b32.xlu0 %v370, 32
    %v680 = vpop.permute.xlu0 %679
    %681 = vrot.lane.b32.xlu0 %v376, 32
    %v682 = vpop.permute.xlu0 %681
    %687 = vrot.lane.b32.xlu0 %v358, 16
    %v688 = vpop.permute.xlu0 %687
    %689 = vrot.lane.b32.xlu0 %v364, 16
    %v690 = vpop.permute.xlu0 %689
    %691 = vrot.lane.b32.xlu0 %v370, 16
    %v692 = vpop.permute.xlu0 %691
    %693 = vrot.lane.b32.xlu0 %v376, 16
    %v694 = vpop.permute.xlu0 %693
    %703 = vrot.lane.b32.xlu0 %v445, 112
    %v704 = vpop.permute.xlu0 %703
    %705 = vrot.lane.b32.xlu0 %v450, 112
    %v706 = vpop.permute.xlu0 %705
    %707 = vrot.lane.b32.xlu0 %v455, 112
    %v708 = vpop.permute.xlu0 %707
    %709 = vrot.lane.b32.xlu0 %v460, 112
    %v710 = vpop.permute.xlu0 %709
    %715 = vrot.lane.b32.xlu0 %v445, 96
    %v716 = vpop.permute.xlu0 %715
    %717 = vrot.lane.b32.xlu0 %v450, 96
    %v718 = vpop.permute.xlu0 %717
    %719 = vrot.lane.b32.xlu0 %v455, 96
    %v720 = vpop.permute.xlu0 %719
    %721 = vrot.lane.b32.xlu0 %v460, 96
    %v722 = vpop.permute.xlu0 %721
    %727 = vrot.lane.b32.xlu0 %v445, 80
    %v728 = vpop.permute.xlu0 %727
    %729 = vrot.lane.b32.xlu0 %v450, 80
    %v730 = vpop.permute.xlu0 %729
    %731 = vrot.lane.b32.xlu0 %v455, 80
    %v732 = vpop.permute.xlu0 %731
    %733 = vrot.lane.b32.xlu0 %v460, 80
    %v734 = vpop.permute.xlu0 %733
    %739 = vrot.lane.b32.xlu0 %v269, 64
    %v740 = vpop.permute.xlu0 %739
    %741 = vrot.lane.b32.xlu0 %v275, 64
    %v742 = vpop.permute.xlu0 %741
    %vm743 = vcmask 130048
    %v744 = vsel %vm743, %v267, 0
    %v746 = vsel %vm743, %v273, 0
    %v748 = vsel %vm743, %v740, 0
    %v750 = vsel %vm743, %v742, 0
    %752 = vmatprep.subr.mxu0 0.0
    %753 = vmatpush1.xpose.msra.mxu0 %v748
    %754 = vmatprep.subr.mxu0 0.0
    %755 = vmatpush1.xpose.msra.mxu0 %v750
    %756 = vmatprep.subr.mxu0 0.0
    %757 = vmatpush1.xpose.msra.mxu0 0.0
    %758 = vmatprep.subr.mxu0 0.0
    %759 = vmatpush1.xpose.msra.mxu0 0.0
    %760 = vmatprep.subr.mxu0 0.0
    %761 = vmatpush1.xpose.msra.mxu0 0.0
    %762 = vmatprep.subr.mxu0 0.0
    %763 = vmatpush1.xpose.msra.mxu0 0.0
    %764 = vmatprep.subr.mxu0 0.0
    %765 = vmatpush1.xpose.msra.mxu0 0.0
    %766 = vmatprep.subr.mxu0 0.0
    %767 = vmatpush1.xpose.msra.mxu0 0.0
    %768 = vmatprep.subr.mxu0 0.0
    %769 = vmatpush1.xpose.msra.mxu0 0.0
    %770 = vmatprep.subr.mxu0 0.0
    %771 = vmatpush1.xpose.msra.mxu0 0.0
    %772 = vmatprep.subr.mxu0 0.0
    %773 = vmatpush1.xpose.msra.mxu0 0.0
    %774 = vmatprep.subr.mxu0 0.0
    %775 = vmatpush1.xpose.msra.mxu0 0.0
    %776 = vmatprep.subr.mxu0 0.0
    %777 = vmatpush1.xpose.msra.mxu0 0.0
    %778 = vmatprep.subr.mxu0 0.0
    %779 = vmatpush1.xpose.msra.mxu0 0.0
    %780 = vmatprep.subr.mxu0 0.0
    %781 = vmatpush1.xpose.msra.mxu0 0.0
    %782 = vmatprep.subr.mxu0 0.0
    %783 = vmatpush1.xpose.msra.mxu0 0.0
    %784 = vmatprep.subr.mxu0 0.0
    %785 = vmatpush1.xpose.msra.mxu0 0.0
    %786 = vmatprep.subr.mxu0 0.0
    %787 = vmatpush1.xpose.msra.mxu0 0.0
    %788 = vmatprep.subr.mxu0 0.0
    %789 = vmatpush1.xpose.msra.mxu0 0.0
    %790 = vmatprep.subr.mxu0 0.0
    %791 = vmatpush1.xpose.msra.mxu0 0.0
    %792 = vmatprep.subr.mxu0 0.0
    %793 = vmatpush1.xpose.msra.mxu0 0.0
    %794 = vmatprep.subr.mxu0 0.0
    %795 = vmatpush1.xpose.msra.mxu0 0.0
    %796 = vmatprep.subr.mxu0 0.0
    %797 = vmatpush1.xpose.msra.mxu0 0.0
    %798 = vmatprep.subr.mxu0 0.0
    %799 = vmatpush1.xpose.msra.mxu0 0.0
    %800 = vmatprep.subr.mxu0 0.0
    %801 = vmatpush1.xpose.msra.mxu0 0.0
    %802 = vmatprep.subr.mxu0 0.0
    %803 = vmatpush1.xpose.msra.mxu0 0.0
    %804 = vmatprep.subr.mxu0 0.0
    %805 = vmatpush1.xpose.msra.mxu0 0.0
    %806 = vmatprep.subr.mxu0 0.0
    %807 = vmatpush1.xpose.msra.mxu0 0.0
    %808 = vmatprep.subr.mxu0 0.0
    %809 = vmatpush1.xpose.msra.mxu0 0.0
    %810 = vmatprep.subr.mxu0 0.0
    %811 = vmatpush1.xpose.msra.mxu0 0.0
    %812 = vmatprep.subr.mxu0 0.0
    %813 = vmatpush1.xpose.msra.mxu0 0.0
    %814 = vmatprep.subr.mxu0 0.0
    %815 = vmatpush1.xpose.msra.mxu0 0.0
    %816 = vmatprep.mubr.f32.mxu0 0.0
    %817 = vmatmul.mubr.f32.gmra.mrb[0].mxu0 %v744
    %v818 = vpop.f32.mrb[0].mxu0
    %v819 = vadd.f32 0.0, %v818
    %v820 = vpop.f32.mrb[0].mxu0
    %821 = vmatprep.mubr.f32.mxu0 0.0
    %822 = vmatmul.mubr.f32.gmra.mrb[0].mxu0 %v746
    %v823 = vpop.f32.mrb[0].mxu0
    %v824 = vadd.f32 0.0, %v823
    %v825 = vpop.f32.mrb[0].mxu0
    %826 = vdwg.mxu0
    %827 = vrot.lane.b32.xlu0 %v281, 64
    %v828 = vpop.permute.xlu0 %827
    %829 = vrot.lane.b32.xlu0 %v287, 64
    %v830 = vpop.permute.xlu0 %829
    %v831 = vsel %vm743, %v279, 0
    %v833 = vsel %vm743, %v285, 0
    %v835 = vsel %vm743, %v828, 0
    %v837 = vsel %vm743, %v830, 0
    %839 = vmatprep.subr.mxu0 0.0
    %840 = vmatpush1.xpose.msra.mxu0 %v835
    %841 = vmatprep.subr.mxu0 0.0
    %842 = vmatpush1.xpose.msra.mxu0 %v837
    %843 = vmatprep.subr.mxu0 0.0
    %844 = vmatpush1.xpose.msra.mxu0 0.0
    %845 = vmatprep.subr.mxu0 0.0
    %846 = vmatpush1.xpose.msra.mxu0 0.0
    %847 = vmatprep.subr.mxu0 0.0
    %848 = vmatpush1.xpose.msra.mxu0 0.0
    %849 = vmatprep.subr.mxu0 0.0
    %850 = vmatpush1.xpose.msra.mxu0 0.0
    %851 = vmatprep.subr.mxu0 0.0
    %852 = vmatpush1.xpose.msra.mxu0 0.0
    %853 = vmatprep.subr.mxu0 0.0
    %854 = vmatpush1.xpose.msra.mxu0 0.0
    %855 = vmatprep.subr.mxu0 0.0
    %856 = vmatpush1.xpose.msra.mxu0 0.0
    %857 = vmatprep.subr.mxu0 0.0
    %858 = vmatpush1.xpose.msra.mxu0 0.0
    %859 = vmatprep.subr.mxu0 0.0
    %860 = vmatpush1.xpose.msra.mxu0 0.0
    %861 = vmatprep.subr.mxu0 0.0
    %862 = vmatpush1.xpose.msra.mxu0 0.0
    %863 = vmatprep.subr.mxu0 0.0
    %864 = vmatpush1.xpose.msra.mxu0 0.0
    %865 = vmatprep.subr.mxu0 0.0
    %866 = vmatpush1.xpose.msra.mxu0 0.0
    %867 = vmatprep.subr.mxu0 0.0
    %868 = vmatpush1.xpose.msra.mxu0 0.0
    %869 = vmatprep.subr.mxu0 0.0
    %870 = vmatpush1.xpose.msra.mxu0 0.0
    %871 = vmatprep.subr.mxu0 0.0
    %872 = vmatpush1.xpose.msra.mxu0 0.0
    %873 = vmatprep.subr.mxu0 0.0
    %874 = vmatpush1.xpose.msra.mxu0 0.0
    %875 = vmatprep.subr.mxu0 0.0
    %876 = vmatpush1.xpose.msra.mxu0 0.0
    %877 = vmatprep.subr.mxu0 0.0
    %878 = vmatpush1.xpose.msra.mxu0 0.0
    %879 = vmatprep.subr.mxu0 0.0
    %880 = vmatpush1.xpose.msra.mxu0 0.0
    %881 = vmatprep.subr.mxu0 0.0
    %882 = vmatpush1.xpose.msra.mxu0 0.0
    %883 = vmatprep.subr.mxu0 0.0
    %884 = vmatpush1.xpose.msra.mxu0 0.0
    %885 = vmatprep.subr.mxu0 0.0
    %886 = vmatpush1.xpose.msra.mxu0 0.0
    %887 = vmatprep.subr.mxu0 0.0
    %888 = vmatpush1.xpose.msra.mxu0 0.0
    %889 = vmatprep.subr.mxu0 0.0
    %890 = vmatpush1.xpose.msra.mxu0 0.0
    %891 = vmatprep.subr.mxu0 0.0
    %892 = vmatpush1.xpose.msra.mxu0 0.0
    %893 = vmatprep.subr.mxu0 0.0
    %894 = vmatpush1.xpose.msra.mxu0 0.0
    %895 = vmatprep.subr.mxu0 0.0
    %896 = vmatpush1.xpose.msra.mxu0 0.0
    %897 = vmatprep.subr.mxu0 0.0
    %898 = vmatpush1.xpose.msra.mxu0 0.0
    %899 = vmatprep.subr.mxu0 0.0
    %900 = vmatpush1.xpose.msra.mxu0 0.0
    %901 = vmatprep.subr.mxu0 0.0
    %902 = vmatpush1.xpose.msra.mxu0 0.0
    %903 = vmatprep.mubr.f32.mxu0 0.0
    %904 = vmatmul.mubr.f32.gmra.mrb[0].mxu0 %v831
    %v905 = vpop.f32.mrb[0].mxu0
    %v906 = vadd.f32 0.0, %v905
    %v907 = vpop.f32.mrb[0].mxu0
    %908 = vmatprep.mubr.f32.mxu0 0.0
    %909 = vmatmul.mubr.f32.gmra.mrb[0].mxu0 %v833
    %v910 = vpop.f32.mrb[0].mxu0
    %v911 = vadd.f32 0.0, %v910
    %v912 = vpop.f32.mrb[0].mxu0
    %913 = vdwg.mxu0
    %914 = vrot.lane.b32.xlu0 %v528, 64
    %v915 = vpop.permute.xlu0 %914
    %916 = vrot.lane.b32.xlu0 %v530, 64
    %v917 = vpop.permute.xlu0 %916
    %v918 = vsel %vm743, %v468, 0
    %v920 = vsel %vm743, %v470, 0
    %v922 = vsel %vm743, %v915, 0
    %v924 = vsel %vm743, %v917, 0
    %926 = vmatprep.subr.mxu0 0.0
    %927 = vmatpush1.xpose.msra.mxu0 %v922
    %928 = vmatprep.subr.mxu0 0.0
    %929 = vmatpush1.xpose.msra.mxu0 %v924
    %930 = vmatprep.subr.mxu0 0.0
    %931 = vmatpush1.xpose.msra.mxu0 0.0
    %932 = vmatprep.subr.mxu0 0.0
    %933 = vmatpush1.xpose.msra.mxu0 0.0
    %934 = vmatprep.subr.mxu0 0.0
    %935 = vmatpush1.xpose.msra.mxu0 0.0
    %936 = vmatprep.subr.mxu0 0.0
    %937 = vmatpush1.xpose.msra.mxu0 0.0
    %938 = vmatprep.subr.mxu0 0.0
    %939 = vmatpush1.xpose.msra.mxu0 0.0
    %940 = vmatprep.subr.mxu0 0.0
    %941 = vmatpush1.xpose.msra.mxu0 0.0
    %942 = vmatprep.subr.mxu0 0.0
    %943 = vmatpush1.xpose.msra.mxu0 0.0
    %944 = vmatprep.subr.mxu0 0.0
    %945 = vmatpush1.xpose.msra.mxu0 0.0
    %946 = vmatprep.subr.mxu0 0.0
    %947 = vmatpush1.xpose.msra.mxu0 0.0
    %948 = vmatprep.subr.mxu0 0.0
    %949 = vmatpush1.xpose.msra.mxu0 0.0
    %950 = vmatprep.subr.mxu0 0.0
    %951 = vmatpush1.xpose.msra.mxu0 0.0
    %952 = vmatprep.subr.mxu0 0.0
    %953 = vmatpush1.xpose.msra.mxu0 0.0
    %954 = vmatprep.subr.mxu0 0.0
    %955 = vmatpush1.xpose.msra.mxu0 0.0
    %956 = vmatprep.subr.mxu0 0.0
    %957 = vmatpush1.xpose.msra.mxu0 0.0
    %958 = vmatprep.subr.mxu0 0.0
    %959 = vmatpush1.xpose.msra.mxu0 0.0
    %960 = vmatprep.subr.mxu0 0.0
    %961 = vmatpush1.xpose.msra.mxu0 0.0
    %962 = vmatprep.subr.mxu0 0.0
    %963 = vmatpush1.xpose.msra.mxu0 0.0
    %964 = vmatprep.subr.mxu0 0.0
    %965 = vmatpush1.xpose.msra.mxu0 0.0
    %966 = vmatprep.subr.mxu0 0.0
    %967 = vmatpush1.xpose.msra.mxu0 0.0
    %968 = vmatprep.subr.mxu0 0.0
    %969 = vmatpush1.xpose.msra.mxu0 0.0
    %970 = vmatprep.subr.mxu0 0.0
    %971 = vmatpush1.xpose.msra.mxu0 0.0
    %972 = vmatprep.subr.mxu0 0.0
    %973 = vmatpush1.xpose.msra.mxu0 0.0
    %974 = vmatprep.subr.mxu0 0.0
    %975 = vmatpush1.xpose.msra.mxu0 0.0
    %976 = vmatprep.subr.mxu0 0.0
    %977 = vmatpush1.xpose.msra.mxu0 0.0
    %978 = vmatprep.subr.mxu0 0.0
    %979 = vmatpush1.xpose.msra.mxu0 0.0
    %980 = vmatprep.subr.mxu0 0.0
    %981 = vmatpush1.xpose.msra.mxu0 0.0
    %982 = vmatprep.subr.mxu0 0.0
    %983 = vmatpush1.xpose.msra.mxu0 0.0
    %984 = vmatprep.subr.mxu0 0.0
    %985 = vmatpush1.xpose.msra.mxu0 0.0
    %986 = vmatprep.subr.mxu0 0.0
    %987 = vmatpush1.xpose.msra.mxu0 0.0
    %988 = vmatprep.subr.mxu0 0.0
    %989 = vmatpush1.xpose.msra.mxu0 0.0
    %990 = vmatprep.mubr.f32.mxu0 0.0
    %991 = vmatmul.mubr.f32.gmra.mrb[0].mxu0 %v918
    %v992 = vpop.f32.mrb[0].mxu0
    %v993 = vadd.f32 0.0, %v992
    %v994 = vpop.f32.mrb[0].mxu0
    %995 = vmatprep.mubr.f32.mxu0 0.0
    %996 = vmatmul.mubr.f32.gmra.mrb[0].mxu0 %v920
    %v997 = vpop.f32.mrb[0].mxu0
    %v998 = vadd.f32 0.0, %v997
    %v999 = vpop.f32.mrb[0].mxu0
    %1000 = vdwg.mxu0
    %1001 = vrot.lane.b32.xlu0 %v532, 64
    %v1002 = vpop.permute.xlu0 %1001
    %1003 = vrot.lane.b32.xlu0 %v534, 64
    %v1004 = vpop.permute.xlu0 %1003
    %v1005 = vsel %vm743, %v472, 0
    %v1007 = vsel %vm743, %v474, 0
    %v1009 = vsel %vm743, %v1002, 0
    %v1011 = vsel %vm743, %v1004, 0
    %1013 = vmatprep.subr.mxu0 0.0
    %1014 = vmatpush1.xpose.msra.mxu0 %v1009
    %1015 = vmatprep.subr.mxu0 0.0
    %1016 = vmatpush1.xpose.msra.mxu0 %v1011
    %1017 = vmatprep.subr.mxu0 0.0
    %1018 = vmatpush1.xpose.msra.mxu0 0.0
    %1019 = vmatprep.subr.mxu0 0.0
    %1020 = vmatpush1.xpose.msra.mxu0 0.0
    %1021 = vmatprep.subr.mxu0 0.0
    %1022 = vmatpush1.xpose.msra.mxu0 0.0
    %1023 = vmatprep.subr.mxu0 0.0
    %1024 = vmatpush1.xpose.msra.mxu0 0.0
    %1025 = vmatprep.subr.mxu0 0.0
    %1026 = vmatpush1.xpose.msra.mxu0 0.0
    %1027 = vmatprep.subr.mxu0 0.0
    %1028 = vmatpush1.xpose.msra.mxu0 0.0
    %1029 = vmatprep.subr.mxu0 0.0
    %1030 = vmatpush1.xpose.msra.mxu0 0.0
    %1031 = vmatprep.subr.mxu0 0.0
    %1032 = vmatpush1.xpose.msra.mxu0 0.0
    %1033 = vmatprep.subr.mxu0 0.0
    %1034 = vmatpush1.xpose.msra.mxu0 0.0
    %1035 = vmatprep.subr.mxu0 0.0
    %1036 = vmatpush1.xpose.msra.mxu0 0.0
    %1037 = vmatprep.subr.mxu0 0.0
    %1038 = vmatpush1.xpose.msra.mxu0 0.0
    %1039 = vmatprep.subr.mxu0 0.0
    %1040 = vmatpush1.xpose.msra.mxu0 0.0
    %1041 = vmatprep.subr.mxu0 0.0
    %1042 = vmatpush1.xpose.msra.mxu0 0.0
    %1043 = vmatprep.subr.mxu0 0.0
    %1044 = vmatpush1.xpose.msra.mxu0 0.0
    %1045 = vmatprep.subr.mxu0 0.0
    %1046 = vmatpush1.xpose.msra.mxu0 0.0
    %1047 = vmatprep.subr.mxu0 0.0
    %1048 = vmatpush1.xpose.msra.mxu0 0.0
    %1049 = vmatprep.subr.mxu0 0.0
    %1050 = vmatpush1.xpose.msra.mxu0 0.0
    %1051 = vmatprep.subr.mxu0 0.0
    %1052 = vmatpush1.xpose.msra.mxu0 0.0
    %1053 = vmatprep.subr.mxu0 0.0
    %1054 = vmatpush1.xpose.msra.mxu0 0.0
    %1055 = vmatprep.subr.mxu0 0.0
    %1056 = vmatpush1.xpose.msra.mxu0 0.0
    %1057 = vmatprep.subr.mxu0 0.0
    %1058 = vmatpush1.xpose.msra.mxu0 0.0
    %1059 = vmatprep.subr.mxu0 0.0
    %1060 = vmatpush1.xpose.msra.mxu0 0.0
    %1061 = vmatprep.subr.mxu0 0.0
    %1062 = vmatpush1.xpose.msra.mxu0 0.0
    %1063 = vmatprep.subr.mxu0 0.0
    %1064 = vmatpush1.xpose.msra.mxu0 0.0
    %1065 = vmatprep.subr.mxu0 0.0
    %1066 = vmatpush1.xpose.msra.mxu0 0.0
    %1067 = vmatprep.subr.mxu0 0.0
    %1068 = vmatpush1.xpose.msra.mxu0 0.0
    %1069 = vmatprep.subr.mxu0 0.0
    %1070 = vmatpush1.xpose.msra.mxu0 0.0
    %1071 = vmatprep.subr.mxu0 0.0
    %1072 = vmatpush1.xpose.msra.mxu0 0.0
    %1073 = vmatprep.subr.mxu0 0.0
    %1074 = vmatpush1.xpose.msra.mxu0 0.0
    %1075 = vmatprep.subr.mxu0 0.0
    %1076 = vmatpush1.xpose.msra.mxu0 0.0
    %1077 = vmatprep.mubr.f32.mxu0 0.0
    %1078 = vmatmul.mubr.f32.gmra.mrb[0].mxu0 %v1005
    %v1079 = vpop.f32.mrb[0].mxu0
    %v1080 = vadd.f32 0.0, %v1079
    %v1081 = vpop.f32.mrb[0].mxu0
    %1082 = vmatprep.mubr.f32.mxu0 0.0
    %1083 = vmatmul.mubr.f32.gmra.mrb[0].mxu0 %v1007
    %v1084 = vpop.f32.mrb[0].mxu0
    %v1085 = vadd.f32 0.0, %v1084
    %v1086 = vpop.f32.mrb[0].mxu0
    %1087 = vdwg.mxu0
    %1088 = vrot.lane.b32.xlu0 %v536, 64
    %v1089 = vpop.permute.xlu0 %1088
    %1090 = vrot.lane.b32.xlu0 %v538, 64
    %v1091 = vpop.permute.xlu0 %1090
    %v1092 = vsel %vm743, %v476, 0
    %v1094 = vsel %vm743, %v478, 0
    %v1096 = vsel %vm743, %v1089, 0
    %v1098 = vsel %vm743, %v1091, 0
    %1100 = vmatprep.subr.mxu0 0.0
    %1101 = vmatpush1.xpose.msra.mxu0 %v1096
    %1102 = vmatprep.subr.mxu0 0.0
    %1103 = vmatpush1.xpose.msra.mxu0 %v1098
    %1104 = vmatprep.subr.mxu0 0.0
    %1105 = vmatpush1.xpose.msra.mxu0 0.0
    %1106 = vmatprep.subr.mxu0 0.0
    %1107 = vmatpush1.xpose.msra.mxu0 0.0
    %1108 = vmatprep.subr.mxu0 0.0
    %1109 = vmatpush1.xpose.msra.mxu0 0.0
    %1110 = vmatprep.subr.mxu0 0.0
    %1111 = vmatpush1.xpose.msra.mxu0 0.0
    %1112 = vmatprep.subr.mxu0 0.0
    %1113 = vmatpush1.xpose.msra.mxu0 0.0
    %1114 = vmatprep.subr.mxu0 0.0
    %1115 = vmatpush1.xpose.msra.mxu0 0.0
    %1116 = vmatprep.subr.mxu0 0.0
    %1117 = vmatpush1.xpose.msra.mxu0 0.0
    %1118 = vmatprep.subr.mxu0 0.0
    %1119 = vmatpush1.xpose.msra.mxu0 0.0
    %1120 = vmatprep.subr.mxu0 0.0
    %1121 = vmatpush1.xpose.msra.mxu0 0.0
    %1122 = vmatprep.subr.mxu0 0.0
    %1123 = vmatpush1.xpose.msra.mxu0 0.0
    %1124 = vmatprep.subr.mxu0 0.0
    %1125 = vmatpush1.xpose.msra.mxu0 0.0
    %1126 = vmatprep.subr.mxu0 0.0
    %1127 = vmatpush1.xpose.msra.mxu0 0.0
    %1128 = vmatprep.subr.mxu0 0.0
    %1129 = vmatpush1.xpose.msra.mxu0 0.0
    %1130 = vmatprep.subr.mxu0 0.0
    %1131 = vmatpush1.xpose.msra.mxu0 0.0
    %1132 = vmatprep.subr.mxu0 0.0
    %1133 = vmatpush1.xpose.msra.mxu0 0.0
    %1134 = vmatprep.subr.mxu0 0.0
    %1135 = vmatpush1.xpose.msra.mxu0 0.0
    %1136 = vmatprep.subr.mxu0 0.0
    %1137 = vmatpush1.xpose.msra.mxu0 0.0
    %1138 = vmatprep.subr.mxu0 0.0
    %1139 = vmatpush1.xpose.msra.mxu0 0.0
    %1140 = vmatprep.subr.mxu0 0.0
    %1141 = vmatpush1.xpose.msra.mxu0 0.0
    %1142 = vmatprep.subr.mxu0 0.0
    %1143 = vmatpush1.xpose.msra.mxu0 0.0
    %1144 = vmatprep.subr.mxu0 0.0
    %1145 = vmatpush1.xpose.msra.mxu0 0.0
    %1146 = vmatprep.subr.mxu0 0.0
    %1147 = vmatpush1.xpose.msra.mxu0 0.0
    %1148 = vmatprep.subr.mxu0 0.0
    %1149 = vmatpush1.xpose.msra.mxu0 0.0
    %1150 = vmatprep.subr.mxu0 0.0
    %1151 = vmatpush1.xpose.msra.mxu0 0.0
    %1152 = vmatprep.subr.mxu0 0.0
    %1153 = vmatpush1.xpose.msra.mxu0 0.0
    %1154 = vmatprep.subr.mxu0 0.0
    %1155 = vmatpush1.xpose.msra.mxu0 0.0
    %1156 = vmatprep.subr.mxu0 0.0
    %1157 = vmatpush1.xpose.msra.mxu0 0.0
    %1158 = vmatprep.subr.mxu0 0.0
    %1159 = vmatpush1.xpose.msra.mxu0 0.0
    %1160 = vmatprep.subr.mxu0 0.0
    %1161 = vmatpush1.xpose.msra.mxu0 0.0
    %1162 = vmatprep.subr.mxu0 0.0
    %1163 = vmatpush1.xpose.msra.mxu0 0.0
    %1164 = vmatprep.mubr.f32.mxu0 0.0
    %1165 = vmatmul.mubr.f32.gmra.mrb[0].mxu0 %v1092
    %v1166 = vpop.f32.mrb[0].mxu0
    %v1167 = vadd.f32 0.0, %v1166
    %v1168 = vpop.f32.mrb[0].mxu0
    %1169 = vmatprep.mubr.f32.mxu0 0.0
    %1170 = vmatmul.mubr.f32.gmra.mrb[0].mxu0 %v1094
    %v1171 = vpop.f32.mrb[0].mxu0
    %v1172 = vadd.f32 0.0, %v1171
    %v1173 = vpop.f32.mrb[0].mxu0
    %1174 = vdwg.mxu0
    %1175 = vrot.lane.b32.xlu0 %v540, 64
    %v1176 = vpop.permute.xlu0 %1175
    %1177 = vrot.lane.b32.xlu0 %v542, 64
    %v1178 = vpop.permute.xlu0 %1177
    %v1179 = vsel %vm743, %v480, 0
    %v1181 = vsel %vm743, %v482, 0
    %v1183 = vsel %vm743, %v1176, 0
    %v1185 = vsel %vm743, %v1178, 0
    %1187 = vmatprep.subr.mxu0 0.0
    %1188 = vmatpush1.xpose.msra.mxu0 %v1183
    %1189 = vmatprep.subr.mxu0 0.0
    %1190 = vmatpush1.xpose.msra.mxu0 %v1185
    %1191 = vmatprep.subr.mxu0 0.0
    %1192 = vmatpush1.xpose.msra.mxu0 0.0
    %1193 = vmatprep.subr.mxu0 0.0
    %1194 = vmatpush1.xpose.msra.mxu0 0.0
    %1195 = vmatprep.subr.mxu0 0.0
    %1196 = vmatpush1.xpose.msra.mxu0 0.0
    %1197 = vmatprep.subr.mxu0 0.0
    %1198 = vmatpush1.xpose.msra.mxu0 0.0
    %1199 = vmatprep.subr.mxu0 0.0
    %1200 = vmatpush1.xpose.msra.mxu0 0.0
    %1201 = vmatprep.subr.mxu0 0.0
    %1202 = vmatpush1.xpose.msra.mxu0 0.0
    %1203 = vmatprep.subr.mxu0 0.0
    %1204 = vmatpush1.xpose.msra.mxu0 0.0
    %1205 = vmatprep.subr.mxu0 0.0
    %1206 = vmatpush1.xpose.msra.mxu0 0.0
    %1207 = vmatprep.subr.mxu0 0.0
    %1208 = vmatpush1.xpose.msra.mxu0 0.0
    %1209 = vmatprep.subr.mxu0 0.0
    %1210 = vmatpush1.xpose.msra.mxu0 0.0
    %1211 = vmatprep.subr.mxu0 0.0
    %1212 = vmatpush1.xpose.msra.mxu0 0.0
    %1213 = vmatprep.subr.mxu0 0.0
    %1214 = vmatpush1.xpose.msra.mxu0 0.0
    %1215 = vmatprep.subr.mxu0 0.0
    %1216 = vmatpush1.xpose.msra.mxu0 0.0
    %1217 = vmatprep.subr.mxu0 0.0
    %1218 = vmatpush1.xpose.msra.mxu0 0.0
    %1219 = vmatprep.subr.mxu0 0.0
    %1220 = vmatpush1.xpose.msra.mxu0 0.0
    %1221 = vmatprep.subr.mxu0 0.0
    %1222 = vmatpush1.xpose.msra.mxu0 0.0
    %1223 = vmatprep.subr.mxu0 0.0
    %1224 = vmatpush1.xpose.msra.mxu0 0.0
    %1225 = vmatprep.subr.mxu0 0.0
    %1226 = vmatpush1.xpose.msra.mxu0 0.0
    %1227 = vmatprep.subr.mxu0 0.0
    %1228 = vmatpush1.xpose.msra.mxu0 0.0
    %1229 = vmatprep.subr.mxu0 0.0
    %1230 = vmatpush1.xpose.msra.mxu0 0.0
    %1231 = vmatprep.subr.mxu0 0.0
    %1232 = vmatpush1.xpose.msra.mxu0 0.0
    %1233 = vmatprep.subr.mxu0 0.0
    %1234 = vmatpush1.xpose.msra.mxu0 0.0
    %1235 = vmatprep.subr.mxu0 0.0
    %1236 = vmatpush1.xpose.msra.mxu0 0.0
    %1237 = vmatprep.subr.mxu0 0.0
    %1238 = vmatpush1.xpose.msra.mxu0 0.0
    %1239 = vmatprep.subr.mxu0 0.0
    %1240 = vmatpush1.xpose.msra.mxu0 0.0
    %1241 = vmatprep.subr.mxu0 0.0
    %1242 = vmatpush1.xpose.msra.mxu0 0.0
    %1243 = vmatprep.subr.mxu0 0.0
    %1244 = vmatpush1.xpose.msra.mxu0 0.0
    %1245 = vmatprep.subr.mxu0 0.0
    %1246 = vmatpush1.xpose.msra.mxu0 0.0
    %1247 = vmatprep.subr.mxu0 0.0
    %1248 = vmatpush1.xpose.msra.mxu0 0.0
    %1249 = vmatprep.subr.mxu0 0.0
    %1250 = vmatpush1.xpose.msra.mxu0 0.0
    %1251 = vmatprep.mubr.f32.mxu0 0.0
    %1252 = vmatmul.mubr.f32.gmra.mrb[0].mxu0 %v1179
    %v1253 = vpop.f32.mrb[0].mxu0
    %v1254 = vadd.f32 0.0, %v1253
    %v1255 = vpop.f32.mrb[0].mxu0
    %1256 = vmatprep.mubr.f32.mxu0 0.0
    %1257 = vmatmul.mubr.f32.gmra.mrb[0].mxu0 %v1181
    %v1258 = vpop.f32.mrb[0].mxu0
    %v1259 = vadd.f32 0.0, %v1258
    %v1260 = vpop.f32.mrb[0].mxu0
    %1261 = vdwg.mxu0
    %1262 = vrot.lane.b32.xlu0 %v544, 64
    %v1263 = vpop.permute.xlu0 %1262
    %1264 = vrot.lane.b32.xlu0 %v546, 64
    %v1265 = vpop.permute.xlu0 %1264
    %v1266 = vsel %vm743, %v484, 0
    %v1268 = vsel %vm743, %v486, 0
    %v1270 = vsel %vm743, %v1263, 0
    %v1272 = vsel %vm743, %v1265, 0
    %1274 = vmatprep.subr.mxu0 0.0
    %1275 = vmatpush1.xpose.msra.mxu0 %v1270
    %1276 = vmatprep.subr.mxu0 0.0
    %1277 = vmatpush1.xpose.msra.mxu0 %v1272
    %1278 = vmatprep.subr.mxu0 0.0
    %1279 = vmatpush1.xpose.msra.mxu0 0.0
    %1280 = vmatprep.subr.mxu0 0.0
    %1281 = vmatpush1.xpose.msra.mxu0 0.0
    %1282 = vmatprep.subr.mxu0 0.0
    %1283 = vmatpush1.xpose.msra.mxu0 0.0
    %1284 = vmatprep.subr.mxu0 0.0
    %1285 = vmatpush1.xpose.msra.mxu0 0.0
    %1286 = vmatprep.subr.mxu0 0.0
    %1287 = vmatpush1.xpose.msra.mxu0 0.0
    %1288 = vmatprep.subr.mxu0 0.0
    %1289 = vmatpush1.xpose.msra.mxu0 0.0
    %1290 = vmatprep.subr.mxu0 0.0
    %1291 = vmatpush1.xpose.msra.mxu0 0.0
    %1292 = vmatprep.subr.mxu0 0.0
    %1293 = vmatpush1.xpose.msra.mxu0 0.0
    %1294 = vmatprep.subr.mxu0 0.0
    %1295 = vmatpush1.xpose.msra.mxu0 0.0
    %1296 = vmatprep.subr.mxu0 0.0
    %1297 = vmatpush1.xpose.msra.mxu0 0.0
    %1298 = vmatprep.subr.mxu0 0.0
    %1299 = vmatpush1.xpose.msra.mxu0 0.0
    %1300 = vmatprep.subr.mxu0 0.0
    %1301 = vmatpush1.xpose.msra.mxu0 0.0
    %1302 = vmatprep.subr.mxu0 0.0
    %1303 = vmatpush1.xpose.msra.mxu0 0.0
    %1304 = vmatprep.subr.mxu0 0.0
    %1305 = vmatpush1.xpose.msra.mxu0 0.0
    %1306 = vmatprep.subr.mxu0 0.0
    %1307 = vmatpush1.xpose.msra.mxu0 0.0
    %1308 = vmatprep.subr.mxu0 0.0
    %1309 = vmatpush1.xpose.msra.mxu0 0.0
    %1310 = vmatprep.subr.mxu0 0.0
    %1311 = vmatpush1.xpose.msra.mxu0 0.0
    %1312 = vmatprep.subr.mxu0 0.0
    %1313 = vmatpush1.xpose.msra.mxu0 0.0
    %1314 = vmatprep.subr.mxu0 0.0
    %1315 = vmatpush1.xpose.msra.mxu0 0.0
    %1316 = vmatprep.subr.mxu0 0.0
    %1317 = vmatpush1.xpose.msra.mxu0 0.0
    %1318 = vmatprep.subr.mxu0 0.0
    %1319 = vmatpush1.xpose.msra.mxu0 0.0
    %1320 = vmatprep.subr.mxu0 0.0
    %1321 = vmatpush1.xpose.msra.mxu0 0.0
    %1322 = vmatprep.subr.mxu0 0.0
    %1323 = vmatpush1.xpose.msra.mxu0 0.0
    %1324 = vmatprep.subr.mxu0 0.0
    %1325 = vmatpush1.xpose.msra.mxu0 0.0
    %1326 = vmatprep.subr.mxu0 0.0
    %1327 = vmatpush1.xpose.msra.mxu0 0.0
    %1328 = vmatprep.subr.mxu0 0.0
    %1329 = vmatpush1.xpose.msra.mxu0 0.0
    %1330 = vmatprep.subr.mxu0 0.0
    %1331 = vmatpush1.xpose.msra.mxu0 0.0
    %1332 = vmatprep.subr.mxu0 0.0
    %1333 = vmatpush1.xpose.msra.mxu0 0.0
    %1334 = vmatprep.subr.mxu0 0.0
    %1335 = vmatpush1.xpose.msra.mxu0 0.0
    %1336 = vmatprep.subr.mxu0 0.0
    %1337 = vmatpush1.xpose.msra.mxu0 0.0
    %1338 = vmatprep.mubr.f32.mxu0 0.0
    %1339 = vmatmul.mubr.f32.gmra.mrb[0].mxu0 %v1266
    %v1340 = vpop.f32.mrb[0].mxu0
    %v1341 = vadd.f32 0.0, %v1340
    %v1342 = vpop.f32.mrb[0].mxu0
    %1343 = vmatprep.mubr.f32.mxu0 0.0
    %1344 = vmatmul.mubr.f32.gmra.mrb[0].mxu0 %v1268
    %v1345 = vpop.f32.mrb[0].mxu0
    %v1346 = vadd.f32 0.0, %v1345
    %v1347 = vpop.f32.mrb[0].mxu0
    %1348 = vdwg.mxu0
    %1349 = vrot.lane.b32.xlu0 %v548, 64
    %v1350 = vpop.permute.xlu0 %1349
    %1351 = vrot.lane.b32.xlu0 %v550, 64
    %v1352 = vpop.permute.xlu0 %1351
    %v1353 = vsel %vm743, %v488, 0
    %v1355 = vsel %vm743, %v490, 0
    %v1357 = vsel %vm743, %v1350, 0
    %v1359 = vsel %vm743, %v1352, 0
    %1361 = vmatprep.subr.mxu0 0.0
    %1362 = vmatpush1.xpose.msra.mxu0 %v1357
    %1363 = vmatprep.subr.mxu0 0.0
    %1364 = vmatpush1.xpose.msra.mxu0 %v1359
    %1365 = vmatprep.subr.mxu0 0.0
    %1366 = vmatpush1.xpose.msra.mxu0 0.0
    %1367 = vmatprep.subr.mxu0 0.0
    %1368 = vmatpush1.xpose.msra.mxu0 0.0
    %1369 = vmatprep.subr.mxu0 0.0
    %1370 = vmatpush1.xpose.msra.mxu0 0.0
    %1371 = vmatprep.subr.mxu0 0.0
    %1372 = vmatpush1.xpose.msra.mxu0 0.0
    %1373 = vmatprep.subr.mxu0 0.0
    %1374 = vmatpush1.xpose.msra.mxu0 0.0
    %1375 = vmatprep.subr.mxu0 0.0
    %1376 = vmatpush1.xpose.msra.mxu0 0.0
    %1377 = vmatprep.subr.mxu0 0.0
    %1378 = vmatpush1.xpose.msra.mxu0 0.0
    %1379 = vmatprep.subr.mxu0 0.0
    %1380 = vmatpush1.xpose.msra.mxu0 0.0
    %1381 = vmatprep.subr.mxu0 0.0
    %1382 = vmatpush1.xpose.msra.mxu0 0.0
    %1383 = vmatprep.subr.mxu0 0.0
    %1384 = vmatpush1.xpose.msra.mxu0 0.0
    %1385 = vmatprep.subr.mxu0 0.0
    %1386 = vmatpush1.xpose.msra.mxu0 0.0
    %1387 = vmatprep.subr.mxu0 0.0
    %1388 = vmatpush1.xpose.msra.mxu0 0.0
    %1389 = vmatprep.subr.mxu0 0.0
    %1390 = vmatpush1.xpose.msra.mxu0 0.0
    %1391 = vmatprep.subr.mxu0 0.0
    %1392 = vmatpush1.xpose.msra.mxu0 0.0
    %1393 = vmatprep.subr.mxu0 0.0
    %1394 = vmatpush1.xpose.msra.mxu0 0.0
    %1395 = vmatprep.subr.mxu0 0.0
    %1396 = vmatpush1.xpose.msra.mxu0 0.0
    %1397 = vmatprep.subr.mxu0 0.0
    %1398 = vmatpush1.xpose.msra.mxu0 0.0
    %1399 = vmatprep.subr.mxu0 0.0
    %1400 = vmatpush1.xpose.msra.mxu0 0.0
    %1401 = vmatprep.subr.mxu0 0.0
    %1402 = vmatpush1.xpose.msra.mxu0 0.0
    %1403 = vmatprep.subr.mxu0 0.0
    %1404 = vmatpush1.xpose.msra.mxu0 0.0
    %1405 = vmatprep.subr.mxu0 0.0
    %1406 = vmatpush1.xpose.msra.mxu0 0.0
    %1407 = vmatprep.subr.mxu0 0.0
    %1408 = vmatpush1.xpose.msra.mxu0 0.0
    %1409 = vmatprep.subr.mxu0 0.0
    %1410 = vmatpush1.xpose.msra.mxu0 0.0
    %1411 = vmatprep.subr.mxu0 0.0
    %1412 = vmatpush1.xpose.msra.mxu0 0.0
    %1413 = vmatprep.subr.mxu0 0.0
    %1414 = vmatpush1.xpose.msra.mxu0 0.0
    %1415 = vmatprep.subr.mxu0 0.0
    %1416 = vmatpush1.xpose.msra.mxu0 0.0
    %1417 = vmatprep.subr.mxu0 0.0
    %1418 = vmatpush1.xpose.msra.mxu0 0.0
    %1419 = vmatprep.subr.mxu0 0.0
    %1420 = vmatpush1.xpose.msra.mxu0 0.0
    %1421 = vmatprep.subr.mxu0 0.0
    %1422 = vmatpush1.xpose.msra.mxu0 0.0
    %1423 = vmatprep.subr.mxu0 0.0
    %1424 = vmatpush1.xpose.msra.mxu0 0.0
    %1425 = vmatprep.mubr.f32.mxu0 0.0
    %1426 = vmatmul.mubr.f32.gmra.mrb[0].mxu0 %v1353
    %v1427 = vpop.f32.mrb[0].mxu0
    %v1428 = vadd.f32 0.0, %v1427
    %v1429 = vpop.f32.mrb[0].mxu0
    %1430 = vmatprep.mubr.f32.mxu0 0.0
    %1431 = vmatmul.mubr.f32.gmra.mrb[0].mxu0 %v1355
    %v1432 = vpop.f32.mrb[0].mxu0
    %v1433 = vadd.f32 0.0, %v1432
    %v1434 = vpop.f32.mrb[0].mxu0
    %1435 = vdwg.mxu0
    %1436 = vrot.lane.b32.xlu0 %v556, 64
    %v1437 = vpop.permute.xlu0 %1436
    %1438 = vrot.lane.b32.xlu0 %v558, 64
    %v1439 = vpop.permute.xlu0 %1438
    %v1440 = vsel %vm743, %v492, 0
    %v1442 = vsel %vm743, %v494, 0
    %v1444 = vsel %vm743, %v1437, 0
    %v1446 = vsel %vm743, %v1439, 0
    %1448 = vmatprep.subr.mxu0 0.0
    %1449 = vmatpush1.xpose.msra.mxu0 %v1444
    %1450 = vmatprep.subr.mxu0 0.0
    %1451 = vmatpush1.xpose.msra.mxu0 %v1446
    %1452 = vmatprep.subr.mxu0 0.0
    %1453 = vmatpush1.xpose.msra.mxu0 0.0
    %1454 = vmatprep.subr.mxu0 0.0
    %1455 = vmatpush1.xpose.msra.mxu0 0.0
    %1456 = vmatprep.subr.mxu0 0.0
    %1457 = vmatpush1.xpose.msra.mxu0 0.0
    %1458 = vmatprep.subr.mxu0 0.0
    %1459 = vmatpush1.xpose.msra.mxu0 0.0
    %1460 = vmatprep.subr.mxu0 0.0
    %1461 = vmatpush1.xpose.msra.mxu0 0.0
    %1462 = vmatprep.subr.mxu0 0.0
    %1463 = vmatpush1.xpose.msra.mxu0 0.0
    %1464 = vmatprep.subr.mxu0 0.0
    %1465 = vmatpush1.xpose.msra.mxu0 0.0
    %1466 = vmatprep.subr.mxu0 0.0
    %1467 = vmatpush1.xpose.msra.mxu0 0.0
    %1468 = vmatprep.subr.mxu0 0.0
    %1469 = vmatpush1.xpose.msra.mxu0 0.0
    %1470 = vmatprep.subr.mxu0 0.0
    %1471 = vmatpush1.xpose.msra.mxu0 0.0
    %1472 = vmatprep.subr.mxu0 0.0
    %1473 = vmatpush1.xpose.msra.mxu0 0.0
    %1474 = vmatprep.subr.mxu0 0.0
    %1475 = vmatpush1.xpose.msra.mxu0 0.0
    %1476 = vmatprep.subr.mxu0 0.0
    %1477 = vmatpush1.xpose.msra.mxu0 0.0
    %1478 = vmatprep.subr.mxu0 0.0
    %1479 = vmatpush1.xpose.msra.mxu0 0.0
    %1480 = vmatprep.subr.mxu0 0.0
    %1481 = vmatpush1.xpose.msra.mxu0 0.0
    %1482 = vmatprep.subr.mxu0 0.0
    %1483 = vmatpush1.xpose.msra.mxu0 0.0
    %1484 = vmatprep.subr.mxu0 0.0
    %1485 = vmatpush1.xpose.msra.mxu0 0.0
    %1486 = vmatprep.subr.mxu0 0.0
    %1487 = vmatpush1.xpose.msra.mxu0 0.0
    %1488 = vmatprep.subr.mxu0 0.0
    %1489 = vmatpush1.xpose.msra.mxu0 0.0
    %1490 = vmatprep.subr.mxu0 0.0
    %1491 = vmatpush1.xpose.msra.mxu0 0.0
    %1492 = vmatprep.subr.mxu0 0.0
    %1493 = vmatpush1.xpose.msra.mxu0 0.0
    %1494 = vmatprep.subr.mxu0 0.0
    %1495 = vmatpush1.xpose.msra.mxu0 0.0
    %1496 = vmatprep.subr.mxu0 0.0
    %1497 = vmatpush1.xpose.msra.mxu0 0.0
    %1498 = vmatprep.subr.mxu0 0.0
    %1499 = vmatpush1.xpose.msra.mxu0 0.0
    %1500 = vmatprep.subr.mxu0 0.0
    %1501 = vmatpush1.xpose.msra.mxu0 0.0
    %1502 = vmatprep.subr.mxu0 0.0
    %1503 = vmatpush1.xpose.msra.mxu0 0.0
    %1504 = vmatprep.subr.mxu0 0.0
    %1505 = vmatpush1.xpose.msra.mxu0 0.0
    %1506 = vmatprep.subr.mxu0 0.0
    %1507 = vmatpush1.xpose.msra.mxu0 0.0
    %1508 = vmatprep.subr.mxu0 0.0
    %1509 = vmatpush1.xpose.msra.mxu0 0.0
    %1510 = vmatprep.subr.mxu0 0.0
    %1511 = vmatpush1.xpose.msra.mxu0 0.0
    %1512 = vmatprep.mubr.f32.mxu0 0.0
    %1513 = vmatmul.mubr.f32.gmra.mrb[0].mxu0 %v1440
    %v1514 = vpop.f32.mrb[0].mxu0
    %v1515 = vadd.f32 0.0, %v1514
    %v1516 = vpop.f32.mrb[0].mxu0
    %1517 = vmatprep.mubr.f32.mxu0 0.0
    %1518 = vmatmul.mubr.f32.gmra.mrb[0].mxu0 %v1442
    %v1519 = vpop.f32.mrb[0].mxu0
    %v1520 = vadd.f32 0.0, %v1519
    %v1521 = vpop.f32.mrb[0].mxu0
    %1522 = vdwg.mxu0
    %1523 = vrot.lane.b32.xlu0 %v560, 64
    %v1524 = vpop.permute.xlu0 %1523
    %1525 = vrot.lane.b32.xlu0 %v562, 64
    %v1526 = vpop.permute.xlu0 %1525
    %v1527 = vsel %vm743, %v496, 0
    %v1529 = vsel %vm743, %v498, 0
    %v1531 = vsel %vm743, %v1524, 0
    %v1533 = vsel %vm743, %v1526, 0
    %1535 = vmatprep.subr.mxu0 0.0
    %1536 = vmatpush1.xpose.msra.mxu0 %v1531
    %1537 = vmatprep.subr.mxu0 0.0
    %1538 = vmatpush1.xpose.msra.mxu0 %v1533
    %1539 = vmatprep.subr.mxu0 0.0
    %1540 = vmatpush1.xpose.msra.mxu0 0.0
    %1541 = vmatprep.subr.mxu0 0.0
    %1542 = vmatpush1.xpose.msra.mxu0 0.0
    %1543 = vmatprep.subr.mxu0 0.0
    %1544 = vmatpush1.xpose.msra.mxu0 0.0
    %1545 = vmatprep.subr.mxu0 0.0
    %1546 = vmatpush1.xpose.msra.mxu0 0.0
    %1547 = vmatprep.subr.mxu0 0.0
    %1548 = vmatpush1.xpose.msra.mxu0 0.0
    %1549 = vmatprep.subr.mxu0 0.0
    %1550 = vmatpush1.xpose.msra.mxu0 0.0
    %1551 = vmatprep.subr.mxu0 0.0
    %1552 = vmatpush1.xpose.msra.mxu0 0.0
    %1553 = vmatprep.subr.mxu0 0.0
    %1554 = vmatpush1.xpose.msra.mxu0 0.0
    %1555 = vmatprep.subr.mxu0 0.0
    %1556 = vmatpush1.xpose.msra.mxu0 0.0
    %1557 = vmatprep.subr.mxu0 0.0
    %1558 = vmatpush1.xpose.msra.mxu0 0.0
    %1559 = vmatprep.subr.mxu0 0.0
    %1560 = vmatpush1.xpose.msra.mxu0 0.0
    %1561 = vmatprep.subr.mxu0 0.0
    %1562 = vmatpush1.xpose.msra.mxu0 0.0
    %1563 = vmatprep.subr.mxu0 0.0
    %1564 = vmatpush1.xpose.msra.mxu0 0.0
    %1565 = vmatprep.subr.mxu0 0.0
    %1566 = vmatpush1.xpose.msra.mxu0 0.0
    %1567 = vmatprep.subr.mxu0 0.0
    %1568 = vmatpush1.xpose.msra.mxu0 0.0
    %1569 = vmatprep.subr.mxu0 0.0
    %1570 = vmatpush1.xpose.msra.mxu0 0.0
    %1571 = vmatprep.subr.mxu0 0.0
    %1572 = vmatpush1.xpose.msra.mxu0 0.0
    %1573 = vmatprep.subr.mxu0 0.0
    %1574 = vmatpush1.xpose.msra.mxu0 0.0
    %1575 = vmatprep.subr.mxu0 0.0
    %1576 = vmatpush1.xpose.msra.mxu0 0.0
    %1577 = vmatprep.subr.mxu0 0.0
    %1578 = vmatpush1.xpose.msra.mxu0 0.0
    %1579 = vmatprep.subr.mxu0 0.0
    %1580 = vmatpush1.xpose.msra.mxu0 0.0
    %1581 = vmatprep.subr.mxu0 0.0
    %1582 = vmatpush1.xpose.msra.mxu0 0.0
    %1583 = vmatprep.subr.mxu0 0.0
    %1584 = vmatpush1.xpose.msra.mxu0 0.0
    %1585 = vmatprep.subr.mxu0 0.0
    %1586 = vmatpush1.xpose.msra.mxu0 0.0
    %1587 = vmatprep.subr.mxu0 0.0
    %1588 = vmatpush1.xpose.msra.mxu0 0.0
    %1589 = vmatprep.subr.mxu0 0.0
    %1590 = vmatpush1.xpose.msra.mxu0 0.0
    %1591 = vmatprep.subr.mxu0 0.0
    %1592 = vmatpush1.xpose.msra.mxu0 0.0
    %1593 = vmatprep.subr.mxu0 0.0
    %1594 = vmatpush1.xpose.msra.mxu0 0.0
    %1595 = vmatprep.subr.mxu0 0.0
    %1596 = vmatpush1.xpose.msra.mxu0 0.0
    %1597 = vmatprep.subr.mxu0 0.0
    %1598 = vmatpush1.xpose.msra.mxu0 0.0
    %1599 = vmatprep.mubr.f32.mxu0 0.0
    %1600 = vmatmul.mubr.f32.gmra.mrb[0].mxu0 %v1527
    %v1601 = vpop.f32.mrb[0].mxu0
    %v1602 = vadd.f32 0.0, %v1601
    %v1603 = vpop.f32.mrb[0].mxu0
    %1604 = vmatprep.mubr.f32.mxu0 0.0
    %1605 = vmatmul.mubr.f32.gmra.mrb[0].mxu0 %v1529
    %v1606 = vpop.f32.mrb[0].mxu0
    %v1607 = vadd.f32 0.0, %v1606
    %v1608 = vpop.f32.mrb[0].mxu0
    %1609 = vdwg.mxu0
    %1610 = vrot.lane.b32.xlu0 %v564, 64
    %v1611 = vpop.permute.xlu0 %1610
    %1612 = vrot.lane.b32.xlu0 %v566, 64
    %v1613 = vpop.permute.xlu0 %1612
    %v1614 = vsel %vm743, %v500, 0
    %v1616 = vsel %vm743, %v502, 0
    %v1618 = vsel %vm743, %v1611, 0
    %v1620 = vsel %vm743, %v1613, 0
    %1622 = vmatprep.subr.mxu0 0.0
    %1623 = vmatpush1.xpose.msra.mxu0 %v1618
    %1624 = vmatprep.subr.mxu0 0.0
    %1625 = vmatpush1.xpose.msra.mxu0 %v1620
    %1626 = vmatprep.subr.mxu0 0.0
    %1627 = vmatpush1.xpose.msra.mxu0 0.0
    %1628 = vmatprep.subr.mxu0 0.0
    %1629 = vmatpush1.xpose.msra.mxu0 0.0
    %1630 = vmatprep.subr.mxu0 0.0
    %1631 = vmatpush1.xpose.msra.mxu0 0.0
    %1632 = vmatprep.subr.mxu0 0.0
    %1633 = vmatpush1.xpose.msra.mxu0 0.0
    %1634 = vmatprep.subr.mxu0 0.0
    %1635 = vmatpush1.xpose.msra.mxu0 0.0
    %1636 = vmatprep.subr.mxu0 0.0
    %1637 = vmatpush1.xpose.msra.mxu0 0.0
    %1638 = vmatprep.subr.mxu0 0.0
    %1639 = vmatpush1.xpose.msra.mxu0 0.0
    %1640 = vmatprep.subr.mxu0 0.0
    %1641 = vmatpush1.xpose.msra.mxu0 0.0
    %1642 = vmatprep.subr.mxu0 0.0
    %1643 = vmatpush1.xpose.msra.mxu0 0.0
    %1644 = vmatprep.subr.mxu0 0.0
    %1645 = vmatpush1.xpose.msra.mxu0 0.0
    %1646 = vmatprep.subr.mxu0 0.0
    %1647 = vmatpush1.xpose.msra.mxu0 0.0
    %1648 = vmatprep.subr.mxu0 0.0
    %1649 = vmatpush1.xpose.msra.mxu0 0.0
    %1650 = vmatprep.subr.mxu0 0.0
    %1651 = vmatpush1.xpose.msra.mxu0 0.0
    %1652 = vmatprep.subr.mxu0 0.0
    %1653 = vmatpush1.xpose.msra.mxu0 0.0
    %1654 = vmatprep.subr.mxu0 0.0
    %1655 = vmatpush1.xpose.msra.mxu0 0.0
    %1656 = vmatprep.subr.mxu0 0.0
    %1657 = vmatpush1.xpose.msra.mxu0 0.0
    %1658 = vmatprep.subr.mxu0 0.0
    %1659 = vmatpush1.xpose.msra.mxu0 0.0
    %1660 = vmatprep.subr.mxu0 0.0
    %1661 = vmatpush1.xpose.msra.mxu0 0.0
    %1662 = vmatprep.subr.mxu0 0.0
    %1663 = vmatpush1.xpose.msra.mxu0 0.0
    %1664 = vmatprep.subr.mxu0 0.0
    %1665 = vmatpush1.xpose.msra.mxu0 0.0
    %1666 = vmatprep.subr.mxu0 0.0
    %1667 = vmatpush1.xpose.msra.mxu0 0.0
    %1668 = vmatprep.subr.mxu0 0.0
    %1669 = vmatpush1.xpose.msra.mxu0 0.0
    %1670 = vmatprep.subr.mxu0 0.0
    %1671 = vmatpush1.xpose.msra.mxu0 0.0
    %1672 = vmatprep.subr.mxu0 0.0
    %1673 = vmatpush1.xpose.msra.mxu0 0.0
    %1674 = vmatprep.subr.mxu0 0.0
    %1675 = vmatpush1.xpose.msra.mxu0 0.0
    %1676 = vmatprep.subr.mxu0 0.0
    %1677 = vmatpush1.xpose.msra.mxu0 0.0
    %1678 = vmatprep.subr.mxu0 0.0
    %1679 = vmatpush1.xpose.msra.mxu0 0.0
    %1680 = vmatprep.subr.mxu0 0.0
    %1681 = vmatpush1.xpose.msra.mxu0 0.0
    %1682 = vmatprep.subr.mxu0 0.0
    %1683 = vmatpush1.xpose.msra.mxu0 0.0
    %1684 = vmatprep.subr.mxu0 0.0
    %1685 = vmatpush1.xpose.msra.mxu0 0.0
    %1686 = vmatprep.mubr.f32.mxu0 0.0
    %1687 = vmatmul.mubr.f32.gmra.mrb[0].mxu0 %v1614
    %v1688 = vpop.f32.mrb[0].mxu0
    %v1689 = vadd.f32 0.0, %v1688
    %v1690 = vpop.f32.mrb[0].mxu0
    %1691 = vmatprep.mubr.f32.mxu0 0.0
    %1692 = vmatmul.mubr.f32.gmra.mrb[0].mxu0 %v1616
    %v1693 = vpop.f32.mrb[0].mxu0
    %v1694 = vadd.f32 0.0, %v1693
    %v1695 = vpop.f32.mrb[0].mxu0
    %1696 = vdwg.mxu0
    %1697 = vrot.lane.b32.xlu0 %v568, 64
    %v1698 = vpop.permute.xlu0 %1697
    %1699 = vrot.lane.b32.xlu0 %v570, 64
    %v1700 = vpop.permute.xlu0 %1699
    %v1701 = vsel %vm743, %v504, 0
    %v1703 = vsel %vm743, %v506, 0
    %v1705 = vsel %vm743, %v1698, 0
    %v1707 = vsel %vm743, %v1700, 0
    %1709 = vmatprep.subr.mxu0 0.0
    %1710 = vmatpush1.xpose.msra.mxu0 %v1705
    %1711 = vmatprep.subr.mxu0 0.0
    %1712 = vmatpush1.xpose.msra.mxu0 %v1707
    %1713 = vmatprep.subr.mxu0 0.0
    %1714 = vmatpush1.xpose.msra.mxu0 0.0
    %1715 = vmatprep.subr.mxu0 0.0
    %1716 = vmatpush1.xpose.msra.mxu0 0.0
    %1717 = vmatprep.subr.mxu0 0.0
    %1718 = vmatpush1.xpose.msra.mxu0 0.0
    %1719 = vmatprep.subr.mxu0 0.0
    %1720 = vmatpush1.xpose.msra.mxu0 0.0
    %1721 = vmatprep.subr.mxu0 0.0
    %1722 = vmatpush1.xpose.msra.mxu0 0.0
    %1723 = vmatprep.subr.mxu0 0.0
    %1724 = vmatpush1.xpose.msra.mxu0 0.0
    %1725 = vmatprep.subr.mxu0 0.0
    %1726 = vmatpush1.xpose.msra.mxu0 0.0
    %1727 = vmatprep.subr.mxu0 0.0
    %1728 = vmatpush1.xpose.msra.mxu0 0.0
    %1729 = vmatprep.subr.mxu0 0.0
    %1730 = vmatpush1.xpose.msra.mxu0 0.0
    %1731 = vmatprep.subr.mxu0 0.0
    %1732 = vmatpush1.xpose.msra.mxu0 0.0
    %1733 = vmatprep.subr.mxu0 0.0
    %1734 = vmatpush1.xpose.msra.mxu0 0.0
    %1735 = vmatprep.subr.mxu0 0.0
    %1736 = vmatpush1.xpose.msra.mxu0 0.0
    %1737 = vmatprep.subr.mxu0 0.0
    %1738 = vmatpush1.xpose.msra.mxu0 0.0
    %1739 = vmatprep.subr.mxu0 0.0
    %1740 = vmatpush1.xpose.msra.mxu0 0.0
    %1741 = vmatprep.subr.mxu0 0.0
    %1742 = vmatpush1.xpose.msra.mxu0 0.0
    %1743 = vmatprep.subr.mxu0 0.0
    %1744 = vmatpush1.xpose.msra.mxu0 0.0
    %1745 = vmatprep.subr.mxu0 0.0
    %1746 = vmatpush1.xpose.msra.mxu0 0.0
    %1747 = vmatprep.subr.mxu0 0.0
    %1748 = vmatpush1.xpose.msra.mxu0 0.0
    %1749 = vmatprep.subr.mxu0 0.0
    %1750 = vmatpush1.xpose.msra.mxu0 0.0
    %1751 = vmatprep.subr.mxu0 0.0
    %1752 = vmatpush1.xpose.msra.mxu0 0.0
    %1753 = vmatprep.subr.mxu0 0.0
    %1754 = vmatpush1.xpose.msra.mxu0 0.0
    %1755 = vmatprep.subr.mxu0 0.0
    %1756 = vmatpush1.xpose.msra.mxu0 0.0
    %1757 = vmatprep.subr.mxu0 0.0
    %1758 = vmatpush1.xpose.msra.mxu0 0.0
    %1759 = vmatprep.subr.mxu0 0.0
    %1760 = vmatpush1.xpose.msra.mxu0 0.0
    %1761 = vmatprep.subr.mxu0 0.0
    %1762 = vmatpush1.xpose.msra.mxu0 0.0
    %1763 = vmatprep.subr.mxu0 0.0
    %1764 = vmatpush1.xpose.msra.mxu0 0.0
    %1765 = vmatprep.subr.mxu0 0.0
    %1766 = vmatpush1.xpose.msra.mxu0 0.0
    %1767 = vmatprep.subr.mxu0 0.0
    %1768 = vmatpush1.xpose.msra.mxu0 0.0
    %1769 = vmatprep.subr.mxu0 0.0
    %1770 = vmatpush1.xpose.msra.mxu0 0.0
    %1771 = vmatprep.subr.mxu0 0.0
    %1772 = vmatpush1.xpose.msra.mxu0 0.0
    %1773 = vmatprep.mubr.f32.mxu0 0.0
    %1774 = vmatmul.mubr.f32.gmra.mrb[0].mxu0 %v1701
    %v1775 = vpop.f32.mrb[0].mxu0
    %v1776 = vadd.f32 0.0, %v1775
    %v1777 = vpop.f32.mrb[0].mxu0
    %1778 = vmatprep.mubr.f32.mxu0 0.0
    %1779 = vmatmul.mubr.f32.gmra.mrb[0].mxu0 %v1703
    %v1780 = vpop.f32.mrb[0].mxu0
    %v1781 = vadd.f32 0.0, %v1780
    %v1782 = vpop.f32.mrb[0].mxu0
    %1783 = vdwg.mxu0
    %1784 = vrot.lane.b32.xlu0 %v572, 64
    %v1785 = vpop.permute.xlu0 %1784
    %1786 = vrot.lane.b32.xlu0 %v574, 64
    %v1787 = vpop.permute.xlu0 %1786
    %v1788 = vsel %vm743, %v508, 0
    %v1790 = vsel %vm743, %v510, 0
    %v1792 = vsel %vm743, %v1785, 0
    %v1794 = vsel %vm743, %v1787, 0
    %1796 = vmatprep.subr.mxu0 0.0
    %1797 = vmatpush1.xpose.msra.mxu0 %v1792
    %1798 = vmatprep.subr.mxu0 0.0
    %1799 = vmatpush1.xpose.msra.mxu0 %v1794
    %1800 = vmatprep.subr.mxu0 0.0
    %1801 = vmatpush1.xpose.msra.mxu0 0.0
    %1802 = vmatprep.subr.mxu0 0.0
    %1803 = vmatpush1.xpose.msra.mxu0 0.0
    %1804 = vmatprep.subr.mxu0 0.0
    %1805 = vmatpush1.xpose.msra.mxu0 0.0
    %1806 = vmatprep.subr.mxu0 0.0
    %1807 = vmatpush1.xpose.msra.mxu0 0.0
    %1808 = vmatprep.subr.mxu0 0.0
    %1809 = vmatpush1.xpose.msra.mxu0 0.0
    %1810 = vmatprep.subr.mxu0 0.0
    %1811 = vmatpush1.xpose.msra.mxu0 0.0
    %1812 = vmatprep.subr.mxu0 0.0
    %1813 = vmatpush1.xpose.msra.mxu0 0.0
    %1814 = vmatprep.subr.mxu0 0.0
    %1815 = vmatpush1.xpose.msra.mxu0 0.0
    %1816 = vmatprep.subr.mxu0 0.0
    %1817 = vmatpush1.xpose.msra.mxu0 0.0
    %1818 = vmatprep.subr.mxu0 0.0
    %1819 = vmatpush1.xpose.msra.mxu0 0.0
    %1820 = vmatprep.subr.mxu0 0.0
    %1821 = vmatpush1.xpose.msra.mxu0 0.0
    %1822 = vmatprep.subr.mxu0 0.0
    %1823 = vmatpush1.xpose.msra.mxu0 0.0
    %1824 = vmatprep.subr.mxu0 0.0
    %1825 = vmatpush1.xpose.msra.mxu0 0.0
    %1826 = vmatprep.subr.mxu0 0.0
    %1827 = vmatpush1.xpose.msra.mxu0 0.0
    %1828 = vmatprep.subr.mxu0 0.0
    %1829 = vmatpush1.xpose.msra.mxu0 0.0
    %1830 = vmatprep.subr.mxu0 0.0
    %1831 = vmatpush1.xpose.msra.mxu0 0.0
    %1832 = vmatprep.subr.mxu0 0.0
    %1833 = vmatpush1.xpose.msra.mxu0 0.0
    %1834 = vmatprep.subr.mxu0 0.0
    %1835 = vmatpush1.xpose.msra.mxu0 0.0
    %1836 = vmatprep.subr.mxu0 0.0
    %1837 = vmatpush1.xpose.msra.mxu0 0.0
    %1838 = vmatprep.subr.mxu0 0.0
    %1839 = vmatpush1.xpose.msra.mxu0 0.0
    %1840 = vmatprep.subr.mxu0 0.0
    %1841 = vmatpush1.xpose.msra.mxu0 0.0
    %1842 = vmatprep.subr.mxu0 0.0
    %1843 = vmatpush1.xpose.msra.mxu0 0.0
    %1844 = vmatprep.subr.mxu0 0.0
    %1845 = vmatpush1.xpose.msra.mxu0 0.0
    %1846 = vmatprep.subr.mxu0 0.0
    %1847 = vmatpush1.xpose.msra.mxu0 0.0
    %1848 = vmatprep.subr.mxu0 0.0
    %1849 = vmatpush1.xpose.msra.mxu0 0.0
    %1850 = vmatprep.subr.mxu0 0.0
    %1851 = vmatpush1.xpose.msra.mxu0 0.0
    %1852 = vmatprep.subr.mxu0 0.0
    %1853 = vmatpush1.xpose.msra.mxu0 0.0
    %1854 = vmatprep.subr.mxu0 0.0
    %1855 = vmatpush1.xpose.msra.mxu0 0.0
    %1856 = vmatprep.subr.mxu0 0.0
    %1857 = vmatpush1.xpose.msra.mxu0 0.0
    %1858 = vmatprep.subr.mxu0 0.0
    %1859 = vmatpush1.xpose.msra.mxu0 0.0
    %1860 = vmatprep.mubr.f32.mxu0 0.0
    %1861 = vmatmul.mubr.f32.gmra.mrb[0].mxu0 %v1788
    %v1862 = vpop.f32.mrb[0].mxu0
    %v1863 = vadd.f32 0.0, %v1862
    %v1864 = vpop.f32.mrb[0].mxu0
    %1865 = vmatprep.mubr.f32.mxu0 0.0
    %1866 = vmatmul.mubr.f32.gmra.mrb[0].mxu0 %v1790
    %v1867 = vpop.f32.mrb[0].mxu0
    %v1868 = vadd.f32 0.0, %v1867
    %v1869 = vpop.f32.mrb[0].mxu0
    %1870 = vdwg.mxu0
    %1871 = vrot.lane.b32.xlu0 %v576, 64
    %v1872 = vpop.permute.xlu0 %1871
    %1873 = vrot.lane.b32.xlu0 %v578, 64
    %v1874 = vpop.permute.xlu0 %1873
    %v1875 = vsel %vm743, %v512, 0
    %v1877 = vsel %vm743, %v514, 0
    %v1879 = vsel %vm743, %v1872, 0
    %v1881 = vsel %vm743, %v1874, 0
    %1883 = vmatprep.subr.mxu0 0.0
    %1884 = vmatpush1.xpose.msra.mxu0 %v1879
    %1885 = vmatprep.subr.mxu0 0.0
    %1886 = vmatpush1.xpose.msra.mxu0 %v1881
    %1887 = vmatprep.subr.mxu0 0.0
    %1888 = vmatpush1.xpose.msra.mxu0 0.0
    %1889 = vmatprep.subr.mxu0 0.0
    %1890 = vmatpush1.xpose.msra.mxu0 0.0
    %1891 = vmatprep.subr.mxu0 0.0
    %1892 = vmatpush1.xpose.msra.mxu0 0.0
    %1893 = vmatprep.subr.mxu0 0.0
    %1894 = vmatpush1.xpose.msra.mxu0 0.0
    %1895 = vmatprep.subr.mxu0 0.0
    %1896 = vmatpush1.xpose.msra.mxu0 0.0
    %1897 = vmatprep.subr.mxu0 0.0
    %1898 = vmatpush1.xpose.msra.mxu0 0.0
    %1899 = vmatprep.subr.mxu0 0.0
    %1900 = vmatpush1.xpose.msra.mxu0 0.0
    %1901 = vmatprep.subr.mxu0 0.0
    %1902 = vmatpush1.xpose.msra.mxu0 0.0
    %1903 = vmatprep.subr.mxu0 0.0
    %1904 = vmatpush1.xpose.msra.mxu0 0.0
    %1905 = vmatprep.subr.mxu0 0.0
    %1906 = vmatpush1.xpose.msra.mxu0 0.0
    %1907 = vmatprep.subr.mxu0 0.0
    %1908 = vmatpush1.xpose.msra.mxu0 0.0
    %1909 = vmatprep.subr.mxu0 0.0
    %1910 = vmatpush1.xpose.msra.mxu0 0.0
    %1911 = vmatprep.subr.mxu0 0.0
    %1912 = vmatpush1.xpose.msra.mxu0 0.0
    %1913 = vmatprep.subr.mxu0 0.0
    %1914 = vmatpush1.xpose.msra.mxu0 0.0
    %1915 = vmatprep.subr.mxu0 0.0
    %1916 = vmatpush1.xpose.msra.mxu0 0.0
    %1917 = vmatprep.subr.mxu0 0.0
    %1918 = vmatpush1.xpose.msra.mxu0 0.0
    %1919 = vmatprep.subr.mxu0 0.0
    %1920 = vmatpush1.xpose.msra.mxu0 0.0
    %1921 = vmatprep.subr.mxu0 0.0
    %1922 = vmatpush1.xpose.msra.mxu0 0.0
    %1923 = vmatprep.subr.mxu0 0.0
    %1924 = vmatpush1.xpose.msra.mxu0 0.0
    %1925 = vmatprep.subr.mxu0 0.0
    %1926 = vmatpush1.xpose.msra.mxu0 0.0
    %1927 = vmatprep.subr.mxu0 0.0
    %1928 = vmatpush1.xpose.msra.mxu0 0.0
    %1929 = vmatprep.subr.mxu0 0.0
    %1930 = vmatpush1.xpose.msra.mxu0 0.0
    %1931 = vmatprep.subr.mxu0 0.0
    %1932 = vmatpush1.xpose.msra.mxu0 0.0
    %1933 = vmatprep.subr.mxu0 0.0
    %1934 = vmatpush1.xpose.msra.mxu0 0.0
    %1935 = vmatprep.subr.mxu0 0.0
    %1936 = vmatpush1.xpose.msra.mxu0 0.0
    %1937 = vmatprep.subr.mxu0 0.0
    %1938 = vmatpush1.xpose.msra.mxu0 0.0
    %1939 = vmatprep.subr.mxu0 0.0
    %1940 = vmatpush1.xpose.msra.mxu0 0.0
    %1941 = vmatprep.subr.mxu0 0.0
    %1942 = vmatpush1.xpose.msra.mxu0 0.0
    %1943 = vmatprep.subr.mxu0 0.0
    %1944 = vmatpush1.xpose.msra.mxu0 0.0
    %1945 = vmatprep.subr.mxu0 0.0
    %1946 = vmatpush1.xpose.msra.mxu0 0.0
    %1947 = vmatprep.mubr.f32.mxu0 0.0
    %1948 = vmatmul.mubr.f32.gmra.mrb[0].mxu0 %v1875
    %v1949 = vpop.f32.mrb[0].mxu0
    %v1950 = vadd.f32 0.0, %v1949
    %v1951 = vpop.f32.mrb[0].mxu0
    %1952 = vmatprep.mubr.f32.mxu0 0.0
    %1953 = vmatmul.mubr.f32.gmra.mrb[0].mxu0 %v1877
    %v1954 = vpop.f32.mrb[0].mxu0
    %v1955 = vadd.f32 0.0, %v1954
    %v1956 = vpop.f32.mrb[0].mxu0
    %1957 = vdwg.mxu0
    %1958 = vrot.lane.b32.xlu0 %v580, 64
    %v1959 = vpop.permute.xlu0 %1958
    %1960 = vrot.lane.b32.xlu0 %v582, 64
    %v1961 = vpop.permute.xlu0 %1960
    %v1962 = vsel %vm743, %v516, 0
    %v1964 = vsel %vm743, %v518, 0
    %v1966 = vsel %vm743, %v1959, 0
    %v1968 = vsel %vm743, %v1961, 0
    %1970 = vmatprep.subr.mxu0 0.0
    %1971 = vmatpush1.xpose.msra.mxu0 %v1966
    %1972 = vmatprep.subr.mxu0 0.0
    %1973 = vmatpush1.xpose.msra.mxu0 %v1968
    %1974 = vmatprep.subr.mxu0 0.0
    %1975 = vmatpush1.xpose.msra.mxu0 0.0
    %1976 = vmatprep.subr.mxu0 0.0
    %1977 = vmatpush1.xpose.msra.mxu0 0.0
    %1978 = vmatprep.subr.mxu0 0.0
    %1979 = vmatpush1.xpose.msra.mxu0 0.0
    %1980 = vmatprep.subr.mxu0 0.0
    %1981 = vmatpush1.xpose.msra.mxu0 0.0
    %1982 = vmatprep.subr.mxu0 0.0
    %1983 = vmatpush1.xpose.msra.mxu0 0.0
    %1984 = vmatprep.subr.mxu0 0.0
    %1985 = vmatpush1.xpose.msra.mxu0 0.0
    %1986 = vmatprep.subr.mxu0 0.0
    %1987 = vmatpush1.xpose.msra.mxu0 0.0
    %1988 = vmatprep.subr.mxu0 0.0
    %1989 = vmatpush1.xpose.msra.mxu0 0.0
    %1990 = vmatprep.subr.mxu0 0.0
    %1991 = vmatpush1.xpose.msra.mxu0 0.0
    %1992 = vmatprep.subr.mxu0 0.0
    %1993 = vmatpush1.xpose.msra.mxu0 0.0
    %1994 = vmatprep.subr.mxu0 0.0
    %1995 = vmatpush1.xpose.msra.mxu0 0.0
    %1996 = vmatprep.subr.mxu0 0.0
    %1997 = vmatpush1.xpose.msra.mxu0 0.0
    %1998 = vmatprep.subr.mxu0 0.0
    %1999 = vmatpush1.xpose.msra.mxu0 0.0
    %2000 = vmatprep.subr.mxu0 0.0
    %2001 = vmatpush1.xpose.msra.mxu0 0.0
    %2002 = vmatprep.subr.mxu0 0.0
    %2003 = vmatpush1.xpose.msra.mxu0 0.0
    %2004 = vmatprep.subr.mxu0 0.0
    %2005 = vmatpush1.xpose.msra.mxu0 0.0
    %2006 = vmatprep.subr.mxu0 0.0
    %2007 = vmatpush1.xpose.msra.mxu0 0.0
    %2008 = vmatprep.subr.mxu0 0.0
    %2009 = vmatpush1.xpose.msra.mxu0 0.0
    %2010 = vmatprep.subr.mxu0 0.0
    %2011 = vmatpush1.xpose.msra.mxu0 0.0
    %2012 = vmatprep.subr.mxu0 0.0
    %2013 = vmatpush1.xpose.msra.mxu0 0.0
    %2014 = vmatprep.subr.mxu0 0.0
    %2015 = vmatpush1.xpose.msra.mxu0 0.0
    %2016 = vmatprep.subr.mxu0 0.0
    %2017 = vmatpush1.xpose.msra.mxu0 0.0
    %2018 = vmatprep.subr.mxu0 0.0
    %2019 = vmatpush1.xpose.msra.mxu0 0.0
    %2020 = vmatprep.subr.mxu0 0.0
    %2021 = vmatpush1.xpose.msra.mxu0 0.0
    %2022 = vmatprep.subr.mxu0 0.0
    %2023 = vmatpush1.xpose.msra.mxu0 0.0
    %2024 = vmatprep.subr.mxu0 0.0
    %2025 = vmatpush1.xpose.msra.mxu0 0.0
    %2026 = vmatprep.subr.mxu0 0.0
    %2027 = vmatpush1.xpose.msra.mxu0 0.0
    %2028 = vmatprep.subr.mxu0 0.0
    %2029 = vmatpush1.xpose.msra.mxu0 0.0
    %2030 = vmatprep.subr.mxu0 0.0
    %2031 = vmatpush1.xpose.msra.mxu0 0.0
    %2032 = vmatprep.subr.mxu0 0.0
    %2033 = vmatpush1.xpose.msra.mxu0 0.0
    %2034 = vmatprep.mubr.f32.mxu0 0.0
    %2035 = vmatmul.mubr.f32.gmra.mrb[0].mxu0 %v1962
    %v2036 = vpop.f32.mrb[0].mxu0
    %v2037 = vadd.f32 0.0, %v2036
    %v2038 = vpop.f32.mrb[0].mxu0
    %2039 = vmatprep.mubr.f32.mxu0 0.0
    %2040 = vmatmul.mubr.f32.gmra.mrb[0].mxu0 %v1964
    %v2041 = vpop.f32.mrb[0].mxu0
    %v2042 = vadd.f32 0.0, %v2041
    %v2043 = vpop.f32.mrb[0].mxu0
    %2044 = vdwg.mxu0
    %2045 = vrot.lane.b32.xlu0 %v584, 64
    %v2046 = vpop.permute.xlu0 %2045
    %2047 = vrot.lane.b32.xlu0 %v586, 64
    %v2048 = vpop.permute.xlu0 %2047
    %v2049 = vsel %vm743, %v520, 0
    %v2051 = vsel %vm743, %v522, 0
    %v2053 = vsel %vm743, %v2046, 0
    %v2055 = vsel %vm743, %v2048, 0
    %2057 = vmatprep.subr.mxu0 0.0
    %2058 = vmatpush1.xpose.msra.mxu0 %v2053
    %2059 = vmatprep.subr.mxu0 0.0
    %2060 = vmatpush1.xpose.msra.mxu0 %v2055
    %2061 = vmatprep.subr.mxu0 0.0
    %2062 = vmatpush1.xpose.msra.mxu0 0.0
    %2063 = vmatprep.subr.mxu0 0.0
    %2064 = vmatpush1.xpose.msra.mxu0 0.0
    %2065 = vmatprep.subr.mxu0 0.0
    %2066 = vmatpush1.xpose.msra.mxu0 0.0
    %2067 = vmatprep.subr.mxu0 0.0
    %2068 = vmatpush1.xpose.msra.mxu0 0.0
    %2069 = vmatprep.subr.mxu0 0.0
    %2070 = vmatpush1.xpose.msra.mxu0 0.0
    %2071 = vmatprep.subr.mxu0 0.0
    %2072 = vmatpush1.xpose.msra.mxu0 0.0
    %2073 = vmatprep.subr.mxu0 0.0
    %2074 = vmatpush1.xpose.msra.mxu0 0.0
    %2075 = vmatprep.subr.mxu0 0.0
    %2076 = vmatpush1.xpose.msra.mxu0 0.0
    %2077 = vmatprep.subr.mxu0 0.0
    %2078 = vmatpush1.xpose.msra.mxu0 0.0
    %2079 = vmatprep.subr.mxu0 0.0
    %2080 = vmatpush1.xpose.msra.mxu0 0.0
    %2081 = vmatprep.subr.mxu0 0.0
    %2082 = vmatpush1.xpose.msra.mxu0 0.0
    %2083 = vmatprep.subr.mxu0 0.0
    %2084 = vmatpush1.xpose.msra.mxu0 0.0
    %2085 = vmatprep.subr.mxu0 0.0
    %2086 = vmatpush1.xpose.msra.mxu0 0.0
    %2087 = vmatprep.subr.mxu0 0.0
    %2088 = vmatpush1.xpose.msra.mxu0 0.0
    %2089 = vmatprep.subr.mxu0 0.0
    %2090 = vmatpush1.xpose.msra.mxu0 0.0
    %2091 = vmatprep.subr.mxu0 0.0
    %2092 = vmatpush1.xpose.msra.mxu0 0.0
    %2093 = vmatprep.subr.mxu0 0.0
    %2094 = vmatpush1.xpose.msra.mxu0 0.0
    %2095 = vmatprep.subr.mxu0 0.0
    %2096 = vmatpush1.xpose.msra.mxu0 0.0
    %2097 = vmatprep.subr.mxu0 0.0
    %2098 = vmatpush1.xpose.msra.mxu0 0.0
    %2099 = vmatprep.subr.mxu0 0.0
    %2100 = vmatpush1.xpose.msra.mxu0 0.0
    %2101 = vmatprep.subr.mxu0 0.0
    %2102 = vmatpush1.xpose.msra.mxu0 0.0
    %2103 = vmatprep.subr.mxu0 0.0
    %2104 = vmatpush1.xpose.msra.mxu0 0.0
    %2105 = vmatprep.subr.mxu0 0.0
    %2106 = vmatpush1.xpose.msra.mxu0 0.0
    %2107 = vmatprep.subr.mxu0 0.0
    %2108 = vmatpush1.xpose.msra.mxu0 0.0
    %2109 = vmatprep.subr.mxu0 0.0
    %2110 = vmatpush1.xpose.msra.mxu0 0.0
    %2111 = vmatprep.subr.mxu0 0.0
    %2112 = vmatpush1.xpose.msra.mxu0 0.0
    %2113 = vmatprep.subr.mxu0 0.0
    %2114 = vmatpush1.xpose.msra.mxu0 0.0
    %2115 = vmatprep.subr.mxu0 0.0
    %2116 = vmatpush1.xpose.msra.mxu0 0.0
    %2117 = vmatprep.subr.mxu0 0.0
    %2118 = vmatpush1.xpose.msra.mxu0 0.0
    %2119 = vmatprep.subr.mxu0 0.0
    %2120 = vmatpush1.xpose.msra.mxu0 0.0
    %2121 = vmatprep.mubr.f32.mxu0 0.0
    %2122 = vmatmul.mubr.f32.gmra.mrb[0].mxu0 %v2049
    %v2123 = vpop.f32.mrb[0].mxu0
    %v2124 = vadd.f32 0.0, %v2123
    %v2125 = vpop.f32.mrb[0].mxu0
    %2126 = vmatprep.mubr.f32.mxu0 0.0
    %2127 = vmatmul.mubr.f32.gmra.mrb[0].mxu0 %v2051
    %v2128 = vpop.f32.mrb[0].mxu0
    %v2129 = vadd.f32 0.0, %v2128
    %v2130 = vpop.f32.mrb[0].mxu0
    %2131 = vdwg.mxu0
    %v2132 = vsel %vm743, %v269, 0
    %v2134 = vsel %vm743, %v275, 0
    %v2136 = vsel %vm743, %v556, 0
    %v2138 = vsel %vm743, %v558, 0
    %2140 = vmatprep.subr.mxu0 0.0
    %2141 = vmatpush1.xpose.msra.mxu0 %v2136
    %2142 = vmatprep.subr.mxu0 0.0
    %2143 = vmatpush1.xpose.msra.mxu0 %v2138
    %2144 = vmatprep.subr.mxu0 0.0
    %2145 = vmatpush1.xpose.msra.mxu0 0.0
    %2146 = vmatprep.subr.mxu0 0.0
    %2147 = vmatpush1.xpose.msra.mxu0 0.0
    %2148 = vmatprep.subr.mxu0 0.0
    %2149 = vmatpush1.xpose.msra.mxu0 0.0
    %2150 = vmatprep.subr.mxu0 0.0
    %2151 = vmatpush1.xpose.msra.mxu0 0.0
    %2152 = vmatprep.subr.mxu0 0.0
    %2153 = vmatpush1.xpose.msra.mxu0 0.0
    %2154 = vmatprep.subr.mxu0 0.0
    %2155 = vmatpush1.xpose.msra.mxu0 0.0
    %2156 = vmatprep.subr.mxu0 0.0
    %2157 = vmatpush1.xpose.msra.mxu0 0.0
    %2158 = vmatprep.subr.mxu0 0.0
    %2159 = vmatpush1.xpose.msra.mxu0 0.0
    %2160 = vmatprep.subr.mxu0 0.0
    %2161 = vmatpush1.xpose.msra.mxu0 0.0
    %2162 = vmatprep.subr.mxu0 0.0
    %2163 = vmatpush1.xpose.msra.mxu0 0.0
    %2164 = vmatprep.subr.mxu0 0.0
    %2165 = vmatpush1.xpose.msra.mxu0 0.0
    %2166 = vmatprep.subr.mxu0 0.0
    %2167 = vmatpush1.xpose.msra.mxu0 0.0
    %2168 = vmatprep.subr.mxu0 0.0
    %2169 = vmatpush1.xpose.msra.mxu0 0.0
    %2170 = vmatprep.subr.mxu0 0.0
    %2171 = vmatpush1.xpose.msra.mxu0 0.0
    %2172 = vmatprep.subr.mxu0 0.0
    %2173 = vmatpush1.xpose.msra.mxu0 0.0
    %2174 = vmatprep.subr.mxu0 0.0
    %2175 = vmatpush1.xpose.msra.mxu0 0.0
    %2176 = vmatprep.subr.mxu0 0.0
    %2177 = vmatpush1.xpose.msra.mxu0 0.0
    %2178 = vmatprep.subr.mxu0 0.0
    %2179 = vmatpush1.xpose.msra.mxu0 0.0
    %2180 = vmatprep.subr.mxu0 0.0
    %2181 = vmatpush1.xpose.msra.mxu0 0.0
    %2182 = vmatprep.subr.mxu0 0.0
    %2183 = vmatpush1.xpose.msra.mxu0 0.0
    %2184 = vmatprep.subr.mxu0 0.0
    %2185 = vmatpush1.xpose.msra.mxu0 0.0
    %2186 = vmatprep.subr.mxu0 0.0
    %2187 = vmatpush1.xpose.msra.mxu0 0.0
    %2188 = vmatprep.subr.mxu0 0.0
    %2189 = vmatpush1.xpose.msra.mxu0 0.0
    %2190 = vmatprep.subr.mxu0 0.0
    %2191 = vmatpush1.xpose.msra.mxu0 0.0
    %2192 = vmatprep.subr.mxu0 0.0
    %2193 = vmatpush1.xpose.msra.mxu0 0.0
    %2194 = vmatprep.subr.mxu0 0.0
    %2195 = vmatpush1.xpose.msra.mxu0 0.0
    %2196 = vmatprep.subr.mxu0 0.0
    %2197 = vmatpush1.xpose.msra.mxu0 0.0
    %2198 = vmatprep.subr.mxu0 0.0
    %2199 = vmatpush1.xpose.msra.mxu0 0.0
    %2200 = vmatprep.subr.mxu0 0.0
    %2201 = vmatpush1.xpose.msra.mxu0 0.0
    %2202 = vmatprep.subr.mxu0 0.0
    %2203 = vmatpush1.xpose.msra.mxu0 0.0
    %2204 = vmatprep.mubr.f32.mxu0 0.0
    %2205 = vmatmul.mubr.f32.gmra.mrb[0].mxu0 %v2132
    %v2206 = vpop.f32.mrb[0].mxu0
    %v2207 = vadd.f32 0.0, %v2206
    %v2208 = vpop.f32.mrb[0].mxu0
    %2209 = vmatprep.mubr.f32.mxu0 0.0
    %2210 = vmatmul.mubr.f32.gmra.mrb[0].mxu0 %v2134
    %v2211 = vpop.f32.mrb[0].mxu0
    %v2212 = vadd.f32 0.0, %v2211
    %v2213 = vpop.f32.mrb[0].mxu0
    %2214 = vdwg.mxu0
    %v2215 = vsel %vm743, %v281, 0
    %v2217 = vsel %vm743, %v287, 0
    %v2219 = vsel %vm743, %v560, 0
    %v2221 = vsel %vm743, %v562, 0
    %2223 = vmatprep.subr.mxu0 0.0
    %2224 = vmatpush1.xpose.msra.mxu0 %v2219
    %2225 = vmatprep.subr.mxu0 0.0
    %2226 = vmatpush1.xpose.msra.mxu0 %v2221
    %2227 = vmatprep.subr.mxu0 0.0
    %2228 = vmatpush1.xpose.msra.mxu0 0.0
    %2229 = vmatprep.subr.mxu0 0.0
    %2230 = vmatpush1.xpose.msra.mxu0 0.0
    %2231 = vmatprep.subr.mxu0 0.0
    %2232 = vmatpush1.xpose.msra.mxu0 0.0
    %2233 = vmatprep.subr.mxu0 0.0
    %2234 = vmatpush1.xpose.msra.mxu0 0.0
    %2235 = vmatprep.subr.mxu0 0.0
    %2236 = vmatpush1.xpose.msra.mxu0 0.0
    %2237 = vmatprep.subr.mxu0 0.0
    %2238 = vmatpush1.xpose.msra.mxu0 0.0
    %2239 = vmatprep.subr.mxu0 0.0
    %2240 = vmatpush1.xpose.msra.mxu0 0.0
    %2241 = vmatprep.subr.mxu0 0.0
    %2242 = vmatpush1.xpose.msra.mxu0 0.0
    %2243 = vmatprep.subr.mxu0 0.0
    %2244 = vmatpush1.xpose.msra.mxu0 0.0
    %2245 = vmatprep.subr.mxu0 0.0
    %2246 = vmatpush1.xpose.msra.mxu0 0.0
    %2247 = vmatprep.subr.mxu0 0.0
    %2248 = vmatpush1.xpose.msra.mxu0 0.0
    %2249 = vmatprep.subr.mxu0 0.0
    %2250 = vmatpush1.xpose.msra.mxu0 0.0
    %2251 = vmatprep.subr.mxu0 0.0
    %2252 = vmatpush1.xpose.msra.mxu0 0.0
    %2253 = vmatprep.subr.mxu0 0.0
    %2254 = vmatpush1.xpose.msra.mxu0 0.0
    %2255 = vmatprep.subr.mxu0 0.0
    %2256 = vmatpush1.xpose.msra.mxu0 0.0
    %2257 = vmatprep.subr.mxu0 0.0
    %2258 = vmatpush1.xpose.msra.mxu0 0.0
    %2259 = vmatprep.subr.mxu0 0.0
    %2260 = vmatpush1.xpose.msra.mxu0 0.0
    %2261 = vmatprep.subr.mxu0 0.0
    %2262 = vmatpush1.xpose.msra.mxu0 0.0
    %2263 = vmatprep.subr.mxu0 0.0
    %2264 = vmatpush1.xpose.msra.mxu0 0.0
    %2265 = vmatprep.subr.mxu0 0.0
    %2266 = vmatpush1.xpose.msra.mxu0 0.0
    %2267 = vmatprep.subr.mxu0 0.0
    %2268 = vmatpush1.xpose.msra.mxu0 0.0
    %2269 = vmatprep.subr.mxu0 0.0
    %2270 = vmatpush1.xpose.msra.mxu0 0.0
    %2271 = vmatprep.subr.mxu0 0.0
    %2272 = vmatpush1.xpose.msra.mxu0 0.0
    %2273 = vmatprep.subr.mxu0 0.0
    %2274 = vmatpush1.xpose.msra.mxu0 0.0
    %2275 = vmatprep.subr.mxu0 0.0
    %2276 = vmatpush1.xpose.msra.mxu0 0.0
    %2277 = vmatprep.subr.mxu0 0.0
    %2278 = vmatpush1.xpose.msra.mxu0 0.0
    %2279 = vmatprep.subr.mxu0 0.0
    %2280 = vmatpush1.xpose.msra.mxu0 0.0
    %2281 = vmatprep.subr.mxu0 0.0
    %2282 = vmatpush1.xpose.msra.mxu0 0.0
    %2283 = vmatprep.subr.mxu0 0.0
    %2284 = vmatpush1.xpose.msra.mxu0 0.0
    %2285 = vmatprep.subr.mxu0 0.0
    %2286 = vmatpush1.xpose.msra.mxu0 0.0
    %2287 = vmatprep.mubr.f32.mxu0 0.0
    %2288 = vmatmul.mubr.f32.gmra.mrb[0].mxu0 %v2215
    %v2289 = vpop.f32.mrb[0].mxu0
    %v2290 = vadd.f32 0.0, %v2289
    %v2291 = vpop.f32.mrb[0].mxu0
    %2292 = vmatprep.mubr.f32.mxu0 0.0
    %2293 = vmatmul.mubr.f32.gmra.mrb[0].mxu0 %v2217
    %v2294 = vpop.f32.mrb[0].mxu0
    %v2295 = vadd.f32 0.0, %v2294
    %v2296 = vpop.f32.mrb[0].mxu0
    %2297 = vdwg.mxu0
    %2298 = vrot.lane.b32.xlu0 %v588, 64
    %v2299 = vpop.permute.xlu0 %2298
    %2300 = vrot.lane.b32.xlu0 %v590, 64
    %v2301 = vpop.permute.xlu0 %2300
    %v2302 = vsel %vm743, %v528, 0
    %v2304 = vsel %vm743, %v530, 0
    %v2306 = vsel %vm743, %v2299, 0
    %v2308 = vsel %vm743, %v2301, 0
    %2310 = vmatprep.subr.mxu0 0.0
    %2311 = vmatpush1.xpose.msra.mxu0 %v2306
    %2312 = vmatprep.subr.mxu0 0.0
    %2313 = vmatpush1.xpose.msra.mxu0 %v2308
    %2314 = vmatprep.subr.mxu0 0.0
    %2315 = vmatpush1.xpose.msra.mxu0 0.0
    %2316 = vmatprep.subr.mxu0 0.0
    %2317 = vmatpush1.xpose.msra.mxu0 0.0
    %2318 = vmatprep.subr.mxu0 0.0
    %2319 = vmatpush1.xpose.msra.mxu0 0.0
    %2320 = vmatprep.subr.mxu0 0.0
    %2321 = vmatpush1.xpose.msra.mxu0 0.0
    %2322 = vmatprep.subr.mxu0 0.0
    %2323 = vmatpush1.xpose.msra.mxu0 0.0
    %2324 = vmatprep.subr.mxu0 0.0
    %2325 = vmatpush1.xpose.msra.mxu0 0.0
    %2326 = vmatprep.subr.mxu0 0.0
    %2327 = vmatpush1.xpose.msra.mxu0 0.0
    %2328 = vmatprep.subr.mxu0 0.0
    %2329 = vmatpush1.xpose.msra.mxu0 0.0
    %2330 = vmatprep.subr.mxu0 0.0
    %2331 = vmatpush1.xpose.msra.mxu0 0.0
    %2332 = vmatprep.subr.mxu0 0.0
    %2333 = vmatpush1.xpose.msra.mxu0 0.0
    %2334 = vmatprep.subr.mxu0 0.0
    %2335 = vmatpush1.xpose.msra.mxu0 0.0
    %2336 = vmatprep.subr.mxu0 0.0
    %2337 = vmatpush1.xpose.msra.mxu0 0.0
    %2338 = vmatprep.subr.mxu0 0.0
    %2339 = vmatpush1.xpose.msra.mxu0 0.0
    %2340 = vmatprep.subr.mxu0 0.0
    %2341 = vmatpush1.xpose.msra.mxu0 0.0
    %2342 = vmatprep.subr.mxu0 0.0
    %2343 = vmatpush1.xpose.msra.mxu0 0.0
    %2344 = vmatprep.subr.mxu0 0.0
    %2345 = vmatpush1.xpose.msra.mxu0 0.0
    %2346 = vmatprep.subr.mxu0 0.0
    %2347 = vmatpush1.xpose.msra.mxu0 0.0
    %2348 = vmatprep.subr.mxu0 0.0
    %2349 = vmatpush1.xpose.msra.mxu0 0.0
    %2350 = vmatprep.subr.mxu0 0.0
    %2351 = vmatpush1.xpose.msra.mxu0 0.0
    %2352 = vmatprep.subr.mxu0 0.0
    %2353 = vmatpush1.xpose.msra.mxu0 0.0
    %2354 = vmatprep.subr.mxu0 0.0
    %2355 = vmatpush1.xpose.msra.mxu0 0.0
    %2356 = vmatprep.subr.mxu0 0.0
    %2357 = vmatpush1.xpose.msra.mxu0 0.0
    %2358 = vmatprep.subr.mxu0 0.0
    %2359 = vmatpush1.xpose.msra.mxu0 0.0
    %2360 = vmatprep.subr.mxu0 0.0
    %2361 = vmatpush1.xpose.msra.mxu0 0.0
    %2362 = vmatprep.subr.mxu0 0.0
    %2363 = vmatpush1.xpose.msra.mxu0 0.0
    %2364 = vmatprep.subr.mxu0 0.0
    %2365 = vmatpush1.xpose.msra.mxu0 0.0
    %2366 = vmatprep.subr.mxu0 0.0
    %2367 = vmatpush1.xpose.msra.mxu0 0.0
    %2368 = vmatprep.subr.mxu0 0.0
    %2369 = vmatpush1.xpose.msra.mxu0 0.0
    %2370 = vmatprep.subr.mxu0 0.0
    %2371 = vmatpush1.xpose.msra.mxu0 0.0
    %2372 = vmatprep.subr.mxu0 0.0
    %2373 = vmatpush1.xpose.msra.mxu0 0.0
    %2374 = vmatprep.mubr.f32.mxu0 0.0
    %2375 = vmatmul.mubr.f32.gmra.mrb[0].mxu0 %v2302
    %v2376 = vpop.f32.mrb[0].mxu0
    %v2377 = vadd.f32 0.0, %v2376
    %v2378 = vpop.f32.mrb[0].mxu0
    %2379 = vmatprep.mubr.f32.mxu0 0.0
    %2380 = vmatmul.mubr.f32.gmra.mrb[0].mxu0 %v2304
    %v2381 = vpop.f32.mrb[0].mxu0
    %v2382 = vadd.f32 0.0, %v2381
    %v2383 = vpop.f32.mrb[0].mxu0
    %2384 = vdwg.mxu0
    %2385 = vrot.lane.b32.xlu0 %v592, 64
    %v2386 = vpop.permute.xlu0 %2385
    %2387 = vrot.lane.b32.xlu0 %v594, 64
    %v2388 = vpop.permute.xlu0 %2387
    %v2389 = vsel %vm743, %v532, 0
    %v2391 = vsel %vm743, %v534, 0
    %v2393 = vsel %vm743, %v2386, 0
    %v2395 = vsel %vm743, %v2388, 0
    %2397 = vmatprep.subr.mxu0 0.0
    %2398 = vmatpush1.xpose.msra.mxu0 %v2393
    %2399 = vmatprep.subr.mxu0 0.0
    %2400 = vmatpush1.xpose.msra.mxu0 %v2395
    %2401 = vmatprep.subr.mxu0 0.0
    %2402 = vmatpush1.xpose.msra.mxu0 0.0
    %2403 = vmatprep.subr.mxu0 0.0
    %2404 = vmatpush1.xpose.msra.mxu0 0.0
    %2405 = vmatprep.subr.mxu0 0.0
    %2406 = vmatpush1.xpose.msra.mxu0 0.0
    %2407 = vmatprep.subr.mxu0 0.0
    %2408 = vmatpush1.xpose.msra.mxu0 0.0
    %2409 = vmatprep.subr.mxu0 0.0
    %2410 = vmatpush1.xpose.msra.mxu0 0.0
    %2411 = vmatprep.subr.mxu0 0.0
    %2412 = vmatpush1.xpose.msra.mxu0 0.0
    %2413 = vmatprep.subr.mxu0 0.0
    %2414 = vmatpush1.xpose.msra.mxu0 0.0
    %2415 = vmatprep.subr.mxu0 0.0
    %2416 = vmatpush1.xpose.msra.mxu0 0.0
    %2417 = vmatprep.subr.mxu0 0.0
    %2418 = vmatpush1.xpose.msra.mxu0 0.0
    %2419 = vmatprep.subr.mxu0 0.0
    %2420 = vmatpush1.xpose.msra.mxu0 0.0
    %2421 = vmatprep.subr.mxu0 0.0
    %2422 = vmatpush1.xpose.msra.mxu0 0.0
    %2423 = vmatprep.subr.mxu0 0.0
    %2424 = vmatpush1.xpose.msra.mxu0 0.0
    %2425 = vmatprep.subr.mxu0 0.0
    %2426 = vmatpush1.xpose.msra.mxu0 0.0
    %2427 = vmatprep.subr.mxu0 0.0
    %2428 = vmatpush1.xpose.msra.mxu0 0.0
    %2429 = vmatprep.subr.mxu0 0.0
    %2430 = vmatpush1.xpose.msra.mxu0 0.0
    %2431 = vmatprep.subr.mxu0 0.0
    %2432 = vmatpush1.xpose.msra.mxu0 0.0
    %2433 = vmatprep.subr.mxu0 0.0
    %2434 = vmatpush1.xpose.msra.mxu0 0.0
    %2435 = vmatprep.subr.mxu0 0.0
    %2436 = vmatpush1.xpose.msra.mxu0 0.0
    %2437 = vmatprep.subr.mxu0 0.0
    %2438 = vmatpush1.xpose.msra.mxu0 0.0
    %2439 = vmatprep.subr.mxu0 0.0
    %2440 = vmatpush1.xpose.msra.mxu0 0.0
    %2441 = vmatprep.subr.mxu0 0.0
    %2442 = vmatpush1.xpose.msra.mxu0 0.0
    %2443 = vmatprep.subr.mxu0 0.0
    %2444 = vmatpush1.xpose.msra.mxu0 0.0
    %2445 = vmatprep.subr.mxu0 0.0
    %2446 = vmatpush1.xpose.msra.mxu0 0.0
    %2447 = vmatprep.subr.mxu0 0.0
    %2448 = vmatpush1.xpose.msra.mxu0 0.0
    %2449 = vmatprep.subr.mxu0 0.0
    %2450 = vmatpush1.xpose.msra.mxu0 0.0
    %2451 = vmatprep.subr.mxu0 0.0
    %2452 = vmatpush1.xpose.msra.mxu0 0.0
    %2453 = vmatprep.subr.mxu0 0.0
    %2454 = vmatpush1.xpose.msra.mxu0 0.0
    %2455 = vmatprep.subr.mxu0 0.0
    %2456 = vmatpush1.xpose.msra.mxu0 0.0
    %2457 = vmatprep.subr.mxu0 0.0
    %2458 = vmatpush1.xpose.msra.mxu0 0.0
    %2459 = vmatprep.subr.mxu0 0.0
    %2460 = vmatpush1.xpose.msra.mxu0 0.0
    %2461 = vmatprep.mubr.f32.mxu0 0.0
    %2462 = vmatmul.mubr.f32.gmra.mrb[0].mxu0 %v2389
    %v2463 = vpop.f32.mrb[0].mxu0
    %v2464 = vadd.f32 0.0, %v2463
    %v2465 = vpop.f32.mrb[0].mxu0
    %2466 = vmatprep.mubr.f32.mxu0 0.0
    %2467 = vmatmul.mubr.f32.gmra.mrb[0].mxu0 %v2391
    %v2468 = vpop.f32.mrb[0].mxu0
    %v2469 = vadd.f32 0.0, %v2468
    %v2470 = vpop.f32.mrb[0].mxu0
    %2471 = vdwg.mxu0
    %2472 = vrot.lane.b32.xlu0 %v596, 64
    %v2473 = vpop.permute.xlu0 %2472
    %2474 = vrot.lane.b32.xlu0 %v598, 64
    %v2475 = vpop.permute.xlu0 %2474
    %v2476 = vsel %vm743, %v536, 0
    %v2478 = vsel %vm743, %v538, 0
    %v2480 = vsel %vm743, %v2473, 0
    %v2482 = vsel %vm743, %v2475, 0
    %2484 = vmatprep.subr.mxu0 0.0
    %2485 = vmatpush1.xpose.msra.mxu0 %v2480
    %2486 = vmatprep.subr.mxu0 0.0
    %2487 = vmatpush1.xpose.msra.mxu0 %v2482
    %2488 = vmatprep.subr.mxu0 0.0
    %2489 = vmatpush1.xpose.msra.mxu0 0.0
    %2490 = vmatprep.subr.mxu0 0.0
    %2491 = vmatpush1.xpose.msra.mxu0 0.0
    %2492 = vmatprep.subr.mxu0 0.0
    %2493 = vmatpush1.xpose.msra.mxu0 0.0
    %2494 = vmatprep.subr.mxu0 0.0
    %2495 = vmatpush1.xpose.msra.mxu0 0.0
    %2496 = vmatprep.subr.mxu0 0.0
    %2497 = vmatpush1.xpose.msra.mxu0 0.0
    %2498 = vmatprep.subr.mxu0 0.0
    %2499 = vmatpush1.xpose.msra.mxu0 0.0
    %2500 = vmatprep.subr.mxu0 0.0
    %2501 = vmatpush1.xpose.msra.mxu0 0.0
    %2502 = vmatprep.subr.mxu0 0.0
    %2503 = vmatpush1.xpose.msra.mxu0 0.0
    %2504 = vmatprep.subr.mxu0 0.0
    %2505 = vmatpush1.xpose.msra.mxu0 0.0
    %2506 = vmatprep.subr.mxu0 0.0
    %2507 = vmatpush1.xpose.msra.mxu0 0.0
    %2508 = vmatprep.subr.mxu0 0.0
    %2509 = vmatpush1.xpose.msra.mxu0 0.0
    %2510 = vmatprep.subr.mxu0 0.0
    %2511 = vmatpush1.xpose.msra.mxu0 0.0
    %2512 = vmatprep.subr.mxu0 0.0
    %2513 = vmatpush1.xpose.msra.mxu0 0.0
    %2514 = vmatprep.subr.mxu0 0.0
    %2515 = vmatpush1.xpose.msra.mxu0 0.0
    %2516 = vmatprep.subr.mxu0 0.0
    %2517 = vmatpush1.xpose.msra.mxu0 0.0
    %2518 = vmatprep.subr.mxu0 0.0
    %2519 = vmatpush1.xpose.msra.mxu0 0.0
    %2520 = vmatprep.subr.mxu0 0.0
    %2521 = vmatpush1.xpose.msra.mxu0 0.0
    %2522 = vmatprep.subr.mxu0 0.0
    %2523 = vmatpush1.xpose.msra.mxu0 0.0
    %2524 = vmatprep.subr.mxu0 0.0
    %2525 = vmatpush1.xpose.msra.mxu0 0.0
    %2526 = vmatprep.subr.mxu0 0.0
    %2527 = vmatpush1.xpose.msra.mxu0 0.0
    %2528 = vmatprep.subr.mxu0 0.0
    %2529 = vmatpush1.xpose.msra.mxu0 0.0
    %2530 = vmatprep.subr.mxu0 0.0
    %2531 = vmatpush1.xpose.msra.mxu0 0.0
    %2532 = vmatprep.subr.mxu0 0.0
    %2533 = vmatpush1.xpose.msra.mxu0 0.0
    %2534 = vmatprep.subr.mxu0 0.0
    %2535 = vmatpush1.xpose.msra.mxu0 0.0
    %2536 = vmatprep.subr.mxu0 0.0
    %2537 = vmatpush1.xpose.msra.mxu0 0.0
    %2538 = vmatprep.subr.mxu0 0.0
    %2539 = vmatpush1.xpose.msra.mxu0 0.0
    %2540 = vmatprep.subr.mxu0 0.0
    %2541 = vmatpush1.xpose.msra.mxu0 0.0
    %2542 = vmatprep.subr.mxu0 0.0
    %2543 = vmatpush1.xpose.msra.mxu0 0.0
    %2544 = vmatprep.subr.mxu0 0.0
    %2545 = vmatpush1.xpose.msra.mxu0 0.0
    %2546 = vmatprep.subr.mxu0 0.0
    %2547 = vmatpush1.xpose.msra.mxu0 0.0
    %2548 = vmatprep.mubr.f32.mxu0 0.0
    %2549 = vmatmul.mubr.f32.gmra.mrb[0].mxu0 %v2476
    %v2550 = vpop.f32.mrb[0].mxu0
    %v2551 = vadd.f32 0.0, %v2550
    %v2552 = vpop.f32.mrb[0].mxu0
    %2553 = vmatprep.mubr.f32.mxu0 0.0
    %2554 = vmatmul.mubr.f32.gmra.mrb[0].mxu0 %v2478
    %v2555 = vpop.f32.mrb[0].mxu0
    %v2556 = vadd.f32 0.0, %v2555
    %v2557 = vpop.f32.mrb[0].mxu0
    %2558 = vdwg.mxu0
    %2559 = vrot.lane.b32.xlu0 %v600, 64
    %v2560 = vpop.permute.xlu0 %2559
    %2561 = vrot.lane.b32.xlu0 %v602, 64
    %v2562 = vpop.permute.xlu0 %2561
    %v2563 = vsel %vm743, %v540, 0
    %v2565 = vsel %vm743, %v542, 0
    %v2567 = vsel %vm743, %v2560, 0
    %v2569 = vsel %vm743, %v2562, 0
    %2571 = vmatprep.subr.mxu0 0.0
    %2572 = vmatpush1.xpose.msra.mxu0 %v2567
    %2573 = vmatprep.subr.mxu0 0.0
    %2574 = vmatpush1.xpose.msra.mxu0 %v2569
    %2575 = vmatprep.subr.mxu0 0.0
    %2576 = vmatpush1.xpose.msra.mxu0 0.0
    %2577 = vmatprep.subr.mxu0 0.0
    %2578 = vmatpush1.xpose.msra.mxu0 0.0
    %2579 = vmatprep.subr.mxu0 0.0
    %2580 = vmatpush1.xpose.msra.mxu0 0.0
    %2581 = vmatprep.subr.mxu0 0.0
    %2582 = vmatpush1.xpose.msra.mxu0 0.0
    %2583 = vmatprep.subr.mxu0 0.0
    %2584 = vmatpush1.xpose.msra.mxu0 0.0
    %2585 = vmatprep.subr.mxu0 0.0
    %2586 = vmatpush1.xpose.msra.mxu0 0.0
    %2587 = vmatprep.subr.mxu0 0.0
    %2588 = vmatpush1.xpose.msra.mxu0 0.0
    %2589 = vmatprep.subr.mxu0 0.0
    %2590 = vmatpush1.xpose.msra.mxu0 0.0
    %2591 = vmatprep.subr.mxu0 0.0
    %2592 = vmatpush1.xpose.msra.mxu0 0.0
    %2593 = vmatprep.subr.mxu0 0.0
    %2594 = vmatpush1.xpose.msra.mxu0 0.0
    %2595 = vmatprep.subr.mxu0 0.0
    %2596 = vmatpush1.xpose.msra.mxu0 0.0
    %2597 = vmatprep.subr.mxu0 0.0
    %2598 = vmatpush1.xpose.msra.mxu0 0.0
    %2599 = vmatprep.subr.mxu0 0.0
    %2600 = vmatpush1.xpose.msra.mxu0 0.0
    %2601 = vmatprep.subr.mxu0 0.0
    %2602 = vmatpush1.xpose.msra.mxu0 0.0
    %2603 = vmatprep.subr.mxu0 0.0
    %2604 = vmatpush1.xpose.msra.mxu0 0.0
    %2605 = vmatprep.subr.mxu0 0.0
    %2606 = vmatpush1.xpose.msra.mxu0 0.0
    %2607 = vmatprep.subr.mxu0 0.0
    %2608 = vmatpush1.xpose.msra.mxu0 0.0
    %2609 = vmatprep.subr.mxu0 0.0
    %2610 = vmatpush1.xpose.msra.mxu0 0.0
    %2611 = vmatprep.subr.mxu0 0.0
    %2612 = vmatpush1.xpose.msra.mxu0 0.0
    %2613 = vmatprep.subr.mxu0 0.0
    %2614 = vmatpush1.xpose.msra.mxu0 0.0
    %2615 = vmatprep.subr.mxu0 0.0
    %2616 = vmatpush1.xpose.msra.mxu0 0.0
    %2617 = vmatprep.subr.mxu0 0.0
    %2618 = vmatpush1.xpose.msra.mxu0 0.0
    %2619 = vmatprep.subr.mxu0 0.0
    %2620 = vmatpush1.xpose.msra.mxu0 0.0
    %2621 = vmatprep.subr.mxu0 0.0
    %2622 = vmatpush1.xpose.msra.mxu0 0.0
    %2623 = vmatprep.subr.mxu0 0.0
    %2624 = vmatpush1.xpose.msra.mxu0 0.0
    %2625 = vmatprep.subr.mxu0 0.0
    %2626 = vmatpush1.xpose.msra.mxu0 0.0
    %2627 = vmatprep.subr.mxu0 0.0
    %2628 = vmatpush1.xpose.msra.mxu0 0.0
    %2629 = vmatprep.subr.mxu0 0.0
    %2630 = vmatpush1.xpose.msra.mxu0 0.0
    %2631 = vmatprep.subr.mxu0 0.0
    %2632 = vmatpush1.xpose.msra.mxu0 0.0
    %2633 = vmatprep.subr.mxu0 0.0
    %2634 = vmatpush1.xpose.msra.mxu0 0.0
    %2635 = vmatprep.mubr.f32.mxu0 0.0
    %2636 = vmatmul.mubr.f32.gmra.mrb[0].mxu0 %v2563
    %v2637 = vpop.f32.mrb[0].mxu0
    %v2638 = vadd.f32 0.0, %v2637
    %v2639 = vpop.f32.mrb[0].mxu0
    %2640 = vmatprep.mubr.f32.mxu0 0.0
    %2641 = vmatmul.mubr.f32.gmra.mrb[0].mxu0 %v2565
    %v2642 = vpop.f32.mrb[0].mxu0
    %v2643 = vadd.f32 0.0, %v2642
    %v2644 = vpop.f32.mrb[0].mxu0
    %2645 = vdwg.mxu0
    %2646 = vrot.lane.b32.xlu0 %v604, 64
    %v2647 = vpop.permute.xlu0 %2646
    %2648 = vrot.lane.b32.xlu0 %v606, 64
    %v2649 = vpop.permute.xlu0 %2648
    %v2650 = vsel %vm743, %v544, 0
    %v2652 = vsel %vm743, %v546, 0
    %v2654 = vsel %vm743, %v2647, 0
    %v2656 = vsel %vm743, %v2649, 0
    %2658 = vmatprep.subr.mxu0 0.0
    %2659 = vmatpush1.xpose.msra.mxu0 %v2654
    %2660 = vmatprep.subr.mxu0 0.0
    %2661 = vmatpush1.xpose.msra.mxu0 %v2656
    %2662 = vmatprep.subr.mxu0 0.0
    %2663 = vmatpush1.xpose.msra.mxu0 0.0
    %2664 = vmatprep.subr.mxu0 0.0
    %2665 = vmatpush1.xpose.msra.mxu0 0.0
    %2666 = vmatprep.subr.mxu0 0.0
    %2667 = vmatpush1.xpose.msra.mxu0 0.0
    %2668 = vmatprep.subr.mxu0 0.0
    %2669 = vmatpush1.xpose.msra.mxu0 0.0
    %2670 = vmatprep.subr.mxu0 0.0
    %2671 = vmatpush1.xpose.msra.mxu0 0.0
    %2672 = vmatprep.subr.mxu0 0.0
    %2673 = vmatpush1.xpose.msra.mxu0 0.0
    %2674 = vmatprep.subr.mxu0 0.0
    %2675 = vmatpush1.xpose.msra.mxu0 0.0
    %2676 = vmatprep.subr.mxu0 0.0
    %2677 = vmatpush1.xpose.msra.mxu0 0.0
    %2678 = vmatprep.subr.mxu0 0.0
    %2679 = vmatpush1.xpose.msra.mxu0 0.0
    %2680 = vmatprep.subr.mxu0 0.0
    %2681 = vmatpush1.xpose.msra.mxu0 0.0
    %2682 = vmatprep.subr.mxu0 0.0
    %2683 = vmatpush1.xpose.msra.mxu0 0.0
    %2684 = vmatprep.subr.mxu0 0.0
    %2685 = vmatpush1.xpose.msra.mxu0 0.0
    %2686 = vmatprep.subr.mxu0 0.0
    %2687 = vmatpush1.xpose.msra.mxu0 0.0
    %2688 = vmatprep.subr.mxu0 0.0
    %2689 = vmatpush1.xpose.msra.mxu0 0.0
    %2690 = vmatprep.subr.mxu0 0.0
    %2691 = vmatpush1.xpose.msra.mxu0 0.0
    %2692 = vmatprep.subr.mxu0 0.0
    %2693 = vmatpush1.xpose.msra.mxu0 0.0
    %2694 = vmatprep.subr.mxu0 0.0
    %2695 = vmatpush1.xpose.msra.mxu0 0.0
    %2696 = vmatprep.subr.mxu0 0.0
    %2697 = vmatpush1.xpose.msra.mxu0 0.0
    %2698 = vmatprep.subr.mxu0 0.0
    %2699 = vmatpush1.xpose.msra.mxu0 0.0
    %2700 = vmatprep.subr.mxu0 0.0
    %2701 = vmatpush1.xpose.msra.mxu0 0.0
    %2702 = vmatprep.subr.mxu0 0.0
    %2703 = vmatpush1.xpose.msra.mxu0 0.0
    %2704 = vmatprep.subr.mxu0 0.0
    %2705 = vmatpush1.xpose.msra.mxu0 0.0
    %2706 = vmatprep.subr.mxu0 0.0
    %2707 = vmatpush1.xpose.msra.mxu0 0.0
    %2708 = vmatprep.subr.mxu0 0.0
    %2709 = vmatpush1.xpose.msra.mxu0 0.0
    %2710 = vmatprep.subr.mxu0 0.0
    %2711 = vmatpush1.xpose.msra.mxu0 0.0
    %2712 = vmatprep.subr.mxu0 0.0
    %2713 = vmatpush1.xpose.msra.mxu0 0.0
    %2714 = vmatprep.subr.mxu0 0.0
    %2715 = vmatpush1.xpose.msra.mxu0 0.0
    %2716 = vmatprep.subr.mxu0 0.0
    %2717 = vmatpush1.xpose.msra.mxu0 0.0
    %2718 = vmatprep.subr.mxu0 0.0
    %2719 = vmatpush1.xpose.msra.mxu0 0.0
    %2720 = vmatprep.subr.mxu0 0.0
    %2721 = vmatpush1.xpose.msra.mxu0 0.0
    %2722 = vmatprep.mubr.f32.mxu0 0.0
    %2723 = vmatmul.mubr.f32.gmra.mrb[0].mxu0 %v2650
    %v2724 = vpop.f32.mrb[0].mxu0
    %v2725 = vadd.f32 0.0, %v2724
    %v2726 = vpop.f32.mrb[0].mxu0
    %2727 = vmatprep.mubr.f32.mxu0 0.0
    %2728 = vmatmul.mubr.f32.gmra.mrb[0].mxu0 %v2652
    %v2729 = vpop.f32.mrb[0].mxu0
    %v2730 = vadd.f32 0.0, %v2729
    %v2731 = vpop.f32.mrb[0].mxu0
    %2732 = vdwg.mxu0
    %2733 = vrot.lane.b32.xlu0 %v608, 64
    %v2734 = vpop.permute.xlu0 %2733
    %2735 = vrot.lane.b32.xlu0 %v610, 64
    %v2736 = vpop.permute.xlu0 %2735
    %v2737 = vsel %vm743, %v548, 0
    %v2739 = vsel %vm743, %v550, 0
    %v2741 = vsel %vm743, %v2734, 0
    %v2743 = vsel %vm743, %v2736, 0
    %2745 = vmatprep.subr.mxu0 0.0
    %2746 = vmatpush1.xpose.msra.mxu0 %v2741
    %2747 = vmatprep.subr.mxu0 0.0
    %2748 = vmatpush1.xpose.msra.mxu0 %v2743
    %2749 = vmatprep.subr.mxu0 0.0
    %2750 = vmatpush1.xpose.msra.mxu0 0.0
    %2751 = vmatprep.subr.mxu0 0.0
    %2752 = vmatpush1.xpose.msra.mxu0 0.0
    %2753 = vmatprep.subr.mxu0 0.0
    %2754 = vmatpush1.xpose.msra.mxu0 0.0
    %2755 = vmatprep.subr.mxu0 0.0
    %2756 = vmatpush1.xpose.msra.mxu0 0.0
    %2757 = vmatprep.subr.mxu0 0.0
    %2758 = vmatpush1.xpose.msra.mxu0 0.0
    %2759 = vmatprep.subr.mxu0 0.0
    %2760 = vmatpush1.xpose.msra.mxu0 0.0
    %2761 = vmatprep.subr.mxu0 0.0
    %2762 = vmatpush1.xpose.msra.mxu0 0.0
    %2763 = vmatprep.subr.mxu0 0.0
    %2764 = vmatpush1.xpose.msra.mxu0 0.0
    %2765 = vmatprep.subr.mxu0 0.0
    %2766 = vmatpush1.xpose.msra.mxu0 0.0
    %2767 = vmatprep.subr.mxu0 0.0
    %2768 = vmatpush1.xpose.msra.mxu0 0.0
    %2769 = vmatprep.subr.mxu0 0.0
    %2770 = vmatpush1.xpose.msra.mxu0 0.0
    %2771 = vmatprep.subr.mxu0 0.0
    %2772 = vmatpush1.xpose.msra.mxu0 0.0
    %2773 = vmatprep.subr.mxu0 0.0
    %2774 = vmatpush1.xpose.msra.mxu0 0.0
    %2775 = vmatprep.subr.mxu0 0.0
    %2776 = vmatpush1.xpose.msra.mxu0 0.0
    %2777 = vmatprep.subr.mxu0 0.0
    %2778 = vmatpush1.xpose.msra.mxu0 0.0
    %2779 = vmatprep.subr.mxu0 0.0
    %2780 = vmatpush1.xpose.msra.mxu0 0.0
    %2781 = vmatprep.subr.mxu0 0.0
    %2782 = vmatpush1.xpose.msra.mxu0 0.0
    %2783 = vmatprep.subr.mxu0 0.0
    %2784 = vmatpush1.xpose.msra.mxu0 0.0
    %2785 = vmatprep.subr.mxu0 0.0
    %2786 = vmatpush1.xpose.msra.mxu0 0.0
    %2787 = vmatprep.subr.mxu0 0.0
    %2788 = vmatpush1.xpose.msra.mxu0 0.0
    %2789 = vmatprep.subr.mxu0 0.0
    %2790 = vmatpush1.xpose.msra.mxu0 0.0
    %2791 = vmatprep.subr.mxu0 0.0
    %2792 = vmatpush1.xpose.msra.mxu0 0.0
    %2793 = vmatprep.subr.mxu0 0.0
    %2794 = vmatpush1.xpose.msra.mxu0 0.0
    %2795 = vmatprep.subr.mxu0 0.0
    %2796 = vmatpush1.xpose.msra.mxu0 0.0
    %2797 = vmatprep.subr.mxu0 0.0
    %2798 = vmatpush1.xpose.msra.mxu0 0.0
    %2799 = vmatprep.subr.mxu0 0.0
    %2800 = vmatpush1.xpose.msra.mxu0 0.0
    %2801 = vmatprep.subr.mxu0 0.0
    %2802 = vmatpush1.xpose.msra.mxu0 0.0
    %2803 = vmatprep.subr.mxu0 0.0
    %2804 = vmatpush1.xpose.msra.mxu0 0.0
    %2805 = vmatprep.subr.mxu0 0.0
    %2806 = vmatpush1.xpose.msra.mxu0 0.0
    %2807 = vmatprep.subr.mxu0 0.0
    %2808 = vmatpush1.xpose.msra.mxu0 0.0
    %2809 = vmatprep.mubr.f32.mxu0 0.0
    %2810 = vmatmul.mubr.f32.gmra.mrb[0].mxu0 %v2737
    %v2811 = vpop.f32.mrb[0].mxu0
    %v2812 = vadd.f32 0.0, %v2811
    %v2813 = vpop.f32.mrb[0].mxu0
    %2814 = vmatprep.mubr.f32.mxu0 0.0
    %2815 = vmatmul.mubr.f32.gmra.mrb[0].mxu0 %v2739
    %v2816 = vpop.f32.mrb[0].mxu0
    %v2817 = vadd.f32 0.0, %v2816
    %v2818 = vpop.f32.mrb[0].mxu0
    %2819 = vdwg.mxu0
    %v2820 = vsel %vm743, %v819, -inf
    %2821 = vmax.xlane.f32.xlu0 %v2820
    %v2822 = vpop.xlane.xlu0 %2821
    %v2823 = vsel %vm743, %v824, -inf
    %2824 = vmax.xlane.f32.xlu0 %v2823
    %v2825 = vpop.xlane.xlu0 %2824
    %v2826 = vsel %vm743, %v906, -inf
    %2827 = vmax.xlane.f32.xlu0 %v2826
    %v2828 = vpop.xlane.xlu0 %2827
    %v2829 = vsel %vm743, %v911, -inf
    %2830 = vmax.xlane.f32.xlu0 %v2829
    %v2831 = vpop.xlane.xlu0 %2830
    %v2832 = vsel %vm743, %v993, -inf
    %2833 = vmax.xlane.f32.xlu0 %v2832
    %v2834 = vpop.xlane.xlu0 %2833
    %v2835 = vsel %vm743, %v998, -inf
    %2836 = vmax.xlane.f32.xlu0 %v2835
    %v2837 = vpop.xlane.xlu0 %2836
    %v2838 = vsel %vm743, %v1080, -inf
    %2839 = vmax.xlane.f32.xlu0 %v2838
    %v2840 = vpop.xlane.xlu0 %2839
    %v2841 = vsel %vm743, %v1085, -inf
    %2842 = vmax.xlane.f32.xlu0 %v2841
    %v2843 = vpop.xlane.xlu0 %2842
    %v2844 = vsel %vm743, %v1167, -inf
    %2845 = vmax.xlane.f32.xlu0 %v2844
    %v2846 = vpop.xlane.xlu0 %2845
    %v2847 = vsel %vm743, %v1172, -inf
    %2848 = vmax.xlane.f32.xlu0 %v2847
    %v2849 = vpop.xlane.xlu0 %2848
    %v2850 = vsel %vm743, %v1254, -inf
    %2851 = vmax.xlane.f32.xlu0 %v2850
    %v2852 = vpop.xlane.xlu0 %2851
    %v2853 = vsel %vm743, %v1259, -inf
    %2854 = vmax.xlane.f32.xlu0 %v2853
    %v2855 = vpop.xlane.xlu0 %2854
    %v2856 = vsel %vm743, %v1341, -inf
    %2857 = vmax.xlane.f32.xlu0 %v2856
    %v2858 = vpop.xlane.xlu0 %2857
    %v2859 = vsel %vm743, %v1346, -inf
    %2860 = vmax.xlane.f32.xlu0 %v2859
    %v2861 = vpop.xlane.xlu0 %2860
    %v2862 = vsel %vm743, %v1428, -inf
    %2863 = vmax.xlane.f32.xlu0 %v2862
    %v2864 = vpop.xlane.xlu0 %2863
    %v2865 = vsel %vm743, %v1433, -inf
    %2866 = vmax.xlane.f32.xlu0 %v2865
    %v2867 = vpop.xlane.xlu0 %2866
    %v2868 = vsel %vm743, %v1515, -inf
    %2869 = vmax.xlane.f32.xlu0 %v2868
    %v2870 = vpop.xlane.xlu0 %2869
    %v2871 = vsel %vm743, %v1520, -inf
    %2872 = vmax.xlane.f32.xlu0 %v2871
    %v2873 = vpop.xlane.xlu0 %2872
    %v2874 = vsel %vm743, %v1602, -inf
    %2875 = vmax.xlane.f32.xlu0 %v2874
    %v2876 = vpop.xlane.xlu0 %2875
    %v2877 = vsel %vm743, %v1607, -inf
    %2878 = vmax.xlane.f32.xlu0 %v2877
    %v2879 = vpop.xlane.xlu0 %2878
    %v2880 = vsel %vm743, %v1689, -inf
    %2881 = vmax.xlane.f32.xlu0 %v2880
    %v2882 = vpop.xlane.xlu0 %2881
    %v2883 = vsel %vm743, %v1694, -inf
    %2884 = vmax.xlane.f32.xlu0 %v2883
    %v2885 = vpop.xlane.xlu0 %2884
    %v2886 = vsel %vm743, %v1776, -inf
    %2887 = vmax.xlane.f32.xlu0 %v2886
    %v2888 = vpop.xlane.xlu0 %2887
    %v2889 = vsel %vm743, %v1781, -inf
    %2890 = vmax.xlane.f32.xlu0 %v2889
    %v2891 = vpop.xlane.xlu0 %2890
    %v2892 = vsel %vm743, %v1863, -inf
    %2893 = vmax.xlane.f32.xlu0 %v2892
    %v2894 = vpop.xlane.xlu0 %2893
    %v2895 = vsel %vm743, %v1868, -inf
    %2896 = vmax.xlane.f32.xlu0 %v2895
    %v2897 = vpop.xlane.xlu0 %2896
    %v2898 = vsel %vm743, %v1950, -inf
    %2899 = vmax.xlane.f32.xlu0 %v2898
    %v2900 = vpop.xlane.xlu0 %2899
    %v2901 = vsel %vm743, %v1955, -inf
    %2902 = vmax.xlane.f32.xlu0 %v2901
    %v2903 = vpop.xlane.xlu0 %2902
    %v2904 = vsel %vm743, %v2037, -inf
    %2905 = vmax.xlane.f32.xlu0 %v2904
    %v2906 = vpop.xlane.xlu0 %2905
    %v2907 = vsel %vm743, %v2042, -inf
    %2908 = vmax.xlane.f32.xlu0 %v2907
    %v2909 = vpop.xlane.xlu0 %2908
    %v2910 = vsel %vm743, %v2124, -inf
    %2911 = vmax.xlane.f32.xlu0 %v2910
    %v2912 = vpop.xlane.xlu0 %2911
    %v2913 = vsel %vm743, %v2129, -inf
    %2914 = vmax.xlane.f32.xlu0 %v2913
    %v2915 = vpop.xlane.xlu0 %2914
    %v2916 = vsel %vm743, %v2207, -inf
    %2917 = vmax.xlane.f32.xlu0 %v2916
    %v2918 = vpop.xlane.xlu0 %2917
    %v2919 = vsel %vm743, %v2212, -inf
    %2920 = vmax.xlane.f32.xlu0 %v2919
    %v2921 = vpop.xlane.xlu0 %2920
    %v2922 = vsel %vm743, %v2290, -inf
    %2923 = vmax.xlane.f32.xlu0 %v2922
    %v2924 = vpop.xlane.xlu0 %2923
    %v2925 = vsel %vm743, %v2295, -inf
    %2926 = vmax.xlane.f32.xlu0 %v2925
    %v2927 = vpop.xlane.xlu0 %2926
    %v2928 = vsel %vm743, %v2377, -inf
    %2929 = vmax.xlane.f32.xlu0 %v2928
    %v2930 = vpop.xlane.xlu0 %2929
    %v2931 = vsel %vm743, %v2382, -inf
    %2932 = vmax.xlane.f32.xlu0 %v2931
    %v2933 = vpop.xlane.xlu0 %2932
    %v2934 = vsel %vm743, %v2464, -inf
    %2935 = vmax.xlane.f32.xlu0 %v2934
    %v2936 = vpop.xlane.xlu0 %2935
    %v2937 = vsel %vm743, %v2469, -inf
    %2938 = vmax.xlane.f32.xlu0 %v2937
    %v2939 = vpop.xlane.xlu0 %2938
    %v2940 = vsel %vm743, %v2551, -inf
    %2941 = vmax.xlane.f32.xlu0 %v2940
    %v2942 = vpop.xlane.xlu0 %2941
    %v2943 = vsel %vm743, %v2556, -inf
    %2944 = vmax.xlane.f32.xlu0 %v2943
    %v2945 = vpop.xlane.xlu0 %2944
    %v2946 = vsel %vm743, %v2638, -inf
    %2947 = vmax.xlane.f32.xlu0 %v2946
    %v2948 = vpop.xlane.xlu0 %2947
    %v2949 = vsel %vm743, %v2643, -inf
    %2950 = vmax.xlane.f32.xlu0 %v2949
    %v2951 = vpop.xlane.xlu0 %2950
    %v2952 = vsel %vm743, %v2725, -inf
    %2953 = vmax.xlane.f32.xlu0 %v2952
    %v2954 = vpop.xlane.xlu0 %2953
    %v2955 = vsel %vm743, %v2730, -inf
    %2956 = vmax.xlane.f32.xlu0 %v2955
    %v2957 = vpop.xlane.xlu0 %2956
    %v2958 = vsel %vm743, %v2812, -inf
    %2959 = vmax.xlane.f32.xlu0 %v2958
    %v2960 = vpop.xlane.xlu0 %2959
    %v2961 = vsel %vm743, %v2817, -inf
    %2962 = vmax.xlane.f32.xlu0 %v2961
    %v2963 = vpop.xlane.xlu0 %2962
    %v2964 = vsub.f32 %v819, %v2822
    %v2965 = vsub.f32 %v824, %v2825
    %v2966 = vsub.f32 %v906, %v2828
    %v2967 = vsub.f32 %v911, %v2831
    %v2968 = vsub.f32 %v993, %v2834
    %v2969 = vsub.f32 %v998, %v2837
    %v2970 = vsub.f32 %v1080, %v2840
    %v2971 = vsub.f32 %v1085, %v2843
    %v2972 = vsub.f32 %v1167, %v2846
    %v2973 = vsub.f32 %v1172, %v2849
    %v2974 = vsub.f32 %v1254, %v2852
    %v2975 = vsub.f32 %v1259, %v2855
    %v2976 = vsub.f32 %v1341, %v2858
    %v2977 = vsub.f32 %v1346, %v2861
    %v2978 = vsub.f32 %v1428, %v2864
    %v2979 = vsub.f32 %v1433, %v2867
    %v2980 = vsub.f32 %v1515, %v2870
    %v2981 = vsub.f32 %v1520, %v2873
    %v2982 = vsub.f32 %v1602, %v2876
    %v2983 = vsub.f32 %v1607, %v2879
    %v2984 = vsub.f32 %v1689, %v2882
    %v2985 = vsub.f32 %v1694, %v2885
    %v2986 = vsub.f32 %v1776, %v2888
    %v2987 = vsub.f32 %v1781, %v2891
    %v2988 = vsub.f32 %v1863, %v2894
    %v2989 = vsub.f32 %v1868, %v2897
    %v2990 = vsub.f32 %v1950, %v2900
    %v2991 = vsub.f32 %v1955, %v2903
    %v2992 = vsub.f32 %v2037, %v2906
    %v2993 = vsub.f32 %v2042, %v2909
    %v2994 = vsub.f32 %v2124, %v2912
    %v2995 = vsub.f32 %v2129, %v2915
    %v2996 = vsub.f32 %v2207, %v2918
    %v2997 = vsub.f32 %v2212, %v2921
    %v2998 = vsub.f32 %v2290, %v2924
    %v2999 = vsub.f32 %v2295, %v2927
    %v3000 = vsub.f32 %v2377, %v2930
    %v3001 = vsub.f32 %v2382, %v2933
    %v3002 = vsub.f32 %v2464, %v2936
    %v3003 = vsub.f32 %v2469, %v2939
    %v3004 = vsub.f32 %v2551, %v2942
    %v3005 = vsub.f32 %v2556, %v2945
    %v3006 = vsub.f32 %v2638, %v2948
    %v3007 = vsub.f32 %v2643, %v2951
    %v3008 = vsub.f32 %v2725, %v2954
    %v3009 = vsub.f32 %v2730, %v2957
    %v3010 = vsub.f32 %v2812, %v2960
    %v3011 = vsub.f32 %v2817, %v2963
    %v3012 = vmul.f32 %v2964, 1.442695
    %v3013 = vpow.pop %v3012
    %v3014 = vmul.f32 %v2965, 1.442695
    %v3015 = vpow.pop %v3014
    %v3016 = vmul.f32 %v2966, 1.442695
    %v3017 = vpow.pop %v3016
    %v3018 = vmul.f32 %v2967, 1.442695
    %v3019 = vpow.pop %v3018
    %v3020 = vmul.f32 %v2968, 1.442695
    %v3021 = vpow.pop %v3020
    %v3022 = vmul.f32 %v2969, 1.442695
    %v3023 = vpow.pop %v3022
    %v3024 = vmul.f32 %v2970, 1.442695
    %v3025 = vpow.pop %v3024
    %v3026 = vmul.f32 %v2971, 1.442695
    %v3027 = vpow.pop %v3026
    %v3028 = vmul.f32 %v2972, 1.442695
    %v3029 = vpow.pop %v3028
    %v3030 = vmul.f32 %v2973, 1.442695
    %v3031 = vpow.pop %v3030
    %v3032 = vmul.f32 %v2974, 1.442695
    %v3033 = vpow.pop %v3032
    %v3034 = vmul.f32 %v2975, 1.442695
    %v3035 = vpow.pop %v3034
    %v3036 = vmul.f32 %v2976, 1.442695
    %v3037 = vpow.pop %v3036
    %v3038 = vmul.f32 %v2977, 1.442695
    %v3039 = vpow.pop %v3038
    %v3040 = vmul.f32 %v2978, 1.442695
    %v3041 = vpow.pop %v3040
    %v3042 = vmul.f32 %v2979, 1.442695
    %v3043 = vpow.pop %v3042
    %v3044 = vmul.f32 %v2980, 1.442695
    %v3045 = vpow.pop %v3044
    %v3046 = vmul.f32 %v2981, 1.442695
    %v3047 = vpow.pop %v3046
    %v3048 = vmul.f32 %v2982, 1.442695
    %v3049 = vpow.pop %v3048
    %v3050 = vmul.f32 %v2983, 1.442695
    %v3051 = vpow.pop %v3050
    %v3052 = vmul.f32 %v2984, 1.442695
    %v3053 = vpow.pop %v3052
    %v3054 = vmul.f32 %v2985, 1.442695
    %v3055 = vpow.pop %v3054
    %v3056 = vmul.f32 %v2986, 1.442695
    %v3057 = vpow.pop %v3056
    %v3058 = vmul.f32 %v2987, 1.442695
    %v3059 = vpow.pop %v3058
    %v3060 = vmul.f32 %v2988, 1.442695
    %v3061 = vpow.pop %v3060
    %v3062 = vmul.f32 %v2989, 1.442695
    %v3063 = vpow.pop %v3062
    %v3064 = vmul.f32 %v2990, 1.442695
    %v3065 = vpow.pop %v3064
    %v3066 = vmul.f32 %v2991, 1.442695
    %v3067 = vpow.pop %v3066
    %v3068 = vmul.f32 %v2992, 1.442695
    %v3069 = vpow.pop %v3068
    %v3070 = vmul.f32 %v2993, 1.442695
    %v3071 = vpow.pop %v3070
    %v3072 = vmul.f32 %v2994, 1.442695
    %v3073 = vpow.pop %v3072
    %v3074 = vmul.f32 %v2995, 1.442695
    %v3075 = vpow.pop %v3074
    %v3076 = vmul.f32 %v2996, 1.442695
    %v3077 = vpow.pop %v3076
    %v3078 = vmul.f32 %v2997, 1.442695
    %v3079 = vpow.pop %v3078
    %v3080 = vmul.f32 %v2998, 1.442695
    %v3081 = vpow.pop %v3080
    %v3082 = vmul.f32 %v2999, 1.442695
    %v3083 = vpow.pop %v3082
    %v3084 = vmul.f32 %v3000, 1.442695
    %v3085 = vpow.pop %v3084
    %v3086 = vmul.f32 %v3001, 1.442695
    %v3087 = vpow.pop %v3086
    %v3088 = vmul.f32 %v3002, 1.442695
    %v3089 = vpow.pop %v3088
    %v3090 = vmul.f32 %v3003, 1.442695
    %v3091 = vpow.pop %v3090
    %v3092 = vmul.f32 %v3004, 1.442695
    %v3093 = vpow.pop %v3092
    %v3094 = vmul.f32 %v3005, 1.442695
    %v3095 = vpow.pop %v3094
    %v3096 = vmul.f32 %v3006, 1.442695
    %v3097 = vpow.pop %v3096
    %v3098 = vmul.f32 %v3007, 1.442695
    %v3099 = vpow.pop %v3098
    %v3100 = vmul.f32 %v3008, 1.442695
    %v3101 = vpow.pop %v3100
    %v3102 = vmul.f32 %v3009, 1.442695
    %v3103 = vpow.pop %v3102
    %v3104 = vmul.f32 %v3010, 1.442695
    %v3105 = vpow.pop %v3104
    %v3106 = vmul.f32 %v3011, 1.442695
    %v3107 = vpow.pop %v3106
    %v3108 = vsel %vm743, %v3013, 0.0
    %3109 = vadd.xlane.f32.xlu0 %v3108
    %v3110 = vpop.xlane.xlu0 %3109
    %v3111 = vsel %vm743, %v3015, 0.0
    %3112 = vadd.xlane.f32.xlu0 %v3111
    %v3113 = vpop.xlane.xlu0 %3112
    %v3114 = vsel %vm743, %v3017, 0.0
    %3115 = vadd.xlane.f32.xlu0 %v3114
    %v3116 = vpop.xlane.xlu0 %3115
    %v3117 = vsel %vm743, %v3019, 0.0
    %3118 = vadd.xlane.f32.xlu0 %v3117
    %v3119 = vpop.xlane.xlu0 %3118
    %v3120 = vsel %vm743, %v3021, 0.0
    %3121 = vadd.xlane.f32.xlu0 %v3120
    %v3122 = vpop.xlane.xlu0 %3121
    %v3123 = vsel %vm743, %v3023, 0.0
    %3124 = vadd.xlane.f32.xlu0 %v3123
    %v3125 = vpop.xlane.xlu0 %3124
    %v3126 = vsel %vm743, %v3025, 0.0
    %3127 = vadd.xlane.f32.xlu0 %v3126
    %v3128 = vpop.xlane.xlu0 %3127
    %v3129 = vsel %vm743, %v3027, 0.0
    %3130 = vadd.xlane.f32.xlu0 %v3129
    %v3131 = vpop.xlane.xlu0 %3130
    %v3132 = vsel %vm743, %v3029, 0.0
    %3133 = vadd.xlane.f32.xlu0 %v3132
    %v3134 = vpop.xlane.xlu0 %3133
    %v3135 = vsel %vm743, %v3031, 0.0
    %3136 = vadd.xlane.f32.xlu0 %v3135
    %v3137 = vpop.xlane.xlu0 %3136
    %v3138 = vsel %vm743, %v3033, 0.0
    %3139 = vadd.xlane.f32.xlu0 %v3138
    %v3140 = vpop.xlane.xlu0 %3139
    %v3141 = vsel %vm743, %v3035, 0.0
    %3142 = vadd.xlane.f32.xlu0 %v3141
    %v3143 = vpop.xlane.xlu0 %3142
    %v3144 = vsel %vm743, %v3037, 0.0
    %3145 = vadd.xlane.f32.xlu0 %v3144
    %v3146 = vpop.xlane.xlu0 %3145
    %v3147 = vsel %vm743, %v3039, 0.0
    %3148 = vadd.xlane.f32.xlu0 %v3147
    %v3149 = vpop.xlane.xlu0 %3148
    %v3150 = vsel %vm743, %v3041, 0.0
    %3151 = vadd.xlane.f32.xlu0 %v3150
    %v3152 = vpop.xlane.xlu0 %3151
    %v3153 = vsel %vm743, %v3043, 0.0
    %3154 = vadd.xlane.f32.xlu0 %v3153
    %v3155 = vpop.xlane.xlu0 %3154
    %v3156 = vsel %vm743, %v3045, 0.0
    %3157 = vadd.xlane.f32.xlu0 %v3156
    %v3158 = vpop.xlane.xlu0 %3157
    %v3159 = vsel %vm743, %v3047, 0.0
    %3160 = vadd.xlane.f32.xlu0 %v3159
    %v3161 = vpop.xlane.xlu0 %3160
    %v3162 = vsel %vm743, %v3049, 0.0
    %3163 = vadd.xlane.f32.xlu0 %v3162
    %v3164 = vpop.xlane.xlu0 %3163
    %v3165 = vsel %vm743, %v3051, 0.0
    %3166 = vadd.xlane.f32.xlu0 %v3165
    %v3167 = vpop.xlane.xlu0 %3166
    %v3168 = vsel %vm743, %v3053, 0.0
    %3169 = vadd.xlane.f32.xlu0 %v3168
    %v3170 = vpop.xlane.xlu0 %3169
    %v3171 = vsel %vm743, %v3055, 0.0
    %3172 = vadd.xlane.f32.xlu0 %v3171
    %v3173 = vpop.xlane.xlu0 %3172
    %v3174 = vsel %vm743, %v3057, 0.0
    %3175 = vadd.xlane.f32.xlu0 %v3174
    %v3176 = vpop.xlane.xlu0 %3175
    %v3177 = vsel %vm743, %v3059, 0.0
    %3178 = vadd.xlane.f32.xlu0 %v3177
    %v3179 = vpop.xlane.xlu0 %3178
    %v3180 = vsel %vm743, %v3061, 0.0
    %3181 = vadd.xlane.f32.xlu0 %v3180
    %v3182 = vpop.xlane.xlu0 %3181
    %v3183 = vsel %vm743, %v3063, 0.0
    %3184 = vadd.xlane.f32.xlu0 %v3183
    %v3185 = vpop.xlane.xlu0 %3184
    %v3186 = vsel %vm743, %v3065, 0.0
    %3187 = vadd.xlane.f32.xlu0 %v3186
    %v3188 = vpop.xlane.xlu0 %3187
    %v3189 = vsel %vm743, %v3067, 0.0
    %3190 = vadd.xlane.f32.xlu0 %v3189
    %v3191 = vpop.xlane.xlu0 %3190
    %v3192 = vsel %vm743, %v3069, 0.0
    %3193 = vadd.xlane.f32.xlu0 %v3192
    %v3194 = vpop.xlane.xlu0 %3193
    %v3195 = vsel %vm743, %v3071, 0.0
    %3196 = vadd.xlane.f32.xlu0 %v3195
    %v3197 = vpop.xlane.xlu0 %3196
    %v3198 = vsel %vm743, %v3073, 0.0
    %3199 = vadd.xlane.f32.xlu0 %v3198
    %v3200 = vpop.xlane.xlu0 %3199
    %v3201 = vsel %vm743, %v3075, 0.0
    %3202 = vadd.xlane.f32.xlu0 %v3201
    %v3203 = vpop.xlane.xlu0 %3202
    %v3204 = vsel %vm743, %v3077, 0.0
    %3205 = vadd.xlane.f32.xlu0 %v3204
    %v3206 = vpop.xlane.xlu0 %3205
    %v3207 = vsel %vm743, %v3079, 0.0
    %3208 = vadd.xlane.f32.xlu0 %v3207
    %v3209 = vpop.xlane.xlu0 %3208
    %v3210 = vsel %vm743, %v3081, 0.0
    %3211 = vadd.xlane.f32.xlu0 %v3210
    %v3212 = vpop.xlane.xlu0 %3211
    %v3213 = vsel %vm743, %v3083, 0.0
    %3214 = vadd.xlane.f32.xlu0 %v3213
    %v3215 = vpop.xlane.xlu0 %3214
    %v3216 = vsel %vm743, %v3085, 0.0
    %3217 = vadd.xlane.f32.xlu0 %v3216
    %v3218 = vpop.xlane.xlu0 %3217
    %v3219 = vsel %vm743, %v3087, 0.0
    %3220 = vadd.xlane.f32.xlu0 %v3219
    %v3221 = vpop.xlane.xlu0 %3220
    %v3222 = vsel %vm743, %v3089, 0.0
    %3223 = vadd.xlane.f32.xlu0 %v3222
    %v3224 = vpop.xlane.xlu0 %3223
    %v3225 = vsel %vm743, %v3091, 0.0
    %3226 = vadd.xlane.f32.xlu0 %v3225
    %v3227 = vpop.xlane.xlu0 %3226
    %v3228 = vsel %vm743, %v3093, 0.0
    %3229 = vadd.xlane.f32.xlu0 %v3228
    %v3230 = vpop.xlane.xlu0 %3229
    %v3231 = vsel %vm743, %v3095, 0.0
    %3232 = vadd.xlane.f32.xlu0 %v3231
    %v3233 = vpop.xlane.xlu0 %3232
    %v3234 = vsel %vm743, %v3097, 0.0
    %3235 = vadd.xlane.f32.xlu0 %v3234
    %v3236 = vpop.xlane.xlu0 %3235
    %v3237 = vsel %vm743, %v3099, 0.0
    %3238 = vadd.xlane.f32.xlu0 %v3237
    %v3239 = vpop.xlane.xlu0 %3238
    %v3240 = vsel %vm743, %v3101, 0.0
    %3241 = vadd.xlane.f32.xlu0 %v3240
    %v3242 = vpop.xlane.xlu0 %3241
    %v3243 = vsel %vm743, %v3103, 0.0
    %3244 = vadd.xlane.f32.xlu0 %v3243
    %v3245 = vpop.xlane.xlu0 %3244
    %v3246 = vsel %vm743, %v3105, 0.0
    %3247 = vadd.xlane.f32.xlu0 %v3246
    %v3248 = vpop.xlane.xlu0 %3247
    %v3249 = vsel %vm743, %v3107, 0.0
    %3250 = vadd.xlane.f32.xlu0 %v3249
    %v3251 = vpop.xlane.xlu0 %3250
    %v3253 = vsel %vm743, %v3013, 0
    %v3256 = vsel %vm743, %v3015, 0
    %3258 = vmatprep.subr.mxu0 0.0
    %3259 = vmatpush1.msra.mxu0 %v358
    %3260 = vmatprep.subr.mxu0 0.0
    %3261 = vmatpush1.msra.mxu0 %v364
    %3262 = vmatprep.subr.mxu0 0.0
    %3263 = vmatpush1.msra.mxu0 0.0
    %3264 = vmatprep.subr.mxu0 0.0
    %3265 = vmatpush1.msra.mxu0 0.0
    %3266 = vmatprep.subr.mxu0 0.0
    %3267 = vmatpush1.msra.mxu0 0.0
    %3268 = vmatprep.subr.mxu0 0.0
    %3269 = vmatpush1.msra.mxu0 0.0
    %3270 = vmatprep.subr.mxu0 0.0
    %3271 = vmatpush1.msra.mxu0 0.0
    %3272 = vmatprep.subr.mxu0 0.0
    %3273 = vmatpush1.msra.mxu0 0.0
    %3274 = vmatprep.subr.mxu0 0.0
    %3275 = vmatpush1.msra.mxu0 0.0
    %3276 = vmatprep.subr.mxu0 0.0
    %3277 = vmatpush1.msra.mxu0 0.0
    %3278 = vmatprep.subr.mxu0 0.0
    %3279 = vmatpush1.msra.mxu0 0.0
    %3280 = vmatprep.subr.mxu0 0.0
    %3281 = vmatpush1.msra.mxu0 0.0
    %3282 = vmatprep.subr.mxu0 0.0
    %3283 = vmatpush1.msra.mxu0 0.0
    %3284 = vmatprep.subr.mxu0 0.0
    %3285 = vmatpush1.msra.mxu0 0.0
    %3286 = vmatprep.subr.mxu0 0.0
    %3287 = vmatpush1.msra.mxu0 0.0
    %3288 = vmatprep.subr.mxu0 0.0
    %3289 = vmatpush1.msra.mxu0 0.0
    %3290 = vmatprep.subr.mxu0 0.0
    %3291 = vmatpush1.msra.mxu0 0.0
    %3292 = vmatprep.subr.mxu0 0.0
    %3293 = vmatpush1.msra.mxu0 0.0
    %3294 = vmatprep.subr.mxu0 0.0
    %3295 = vmatpush1.msra.mxu0 0.0
    %3296 = vmatprep.subr.mxu0 0.0
    %3297 = vmatpush1.msra.mxu0 0.0
    %3298 = vmatprep.subr.mxu0 0.0
    %3299 = vmatpush1.msra.mxu0 0.0
    %3300 = vmatprep.subr.mxu0 0.0
    %3301 = vmatpush1.msra.mxu0 0.0
    %3302 = vmatprep.subr.mxu0 0.0
    %3303 = vmatpush1.msra.mxu0 0.0
    %3304 = vmatprep.subr.mxu0 0.0
    %3305 = vmatpush1.msra.mxu0 0.0
    %3306 = vmatprep.subr.mxu0 0.0
    %3307 = vmatpush1.msra.mxu0 0.0
    %3308 = vmatprep.subr.mxu0 0.0
    %3309 = vmatpush1.msra.mxu0 0.0
    %3310 = vmatprep.subr.mxu0 0.0
    %3311 = vmatpush1.msra.mxu0 0.0
    %3312 = vmatprep.subr.mxu0 0.0
    %3313 = vmatpush1.msra.mxu0 0.0
    %3314 = vmatprep.subr.mxu0 0.0
    %3315 = vmatpush1.msra.mxu0 0.0
    %3316 = vmatprep.subr.mxu0 0.0
    %3317 = vmatpush1.msra.mxu0 0.0
    %3318 = vmatprep.subr.mxu0 0.0
    %3319 = vmatpush1.msra.mxu0 0.0
    %3320 = vmatprep.subr.mxu0 0.0
    %3321 = vmatpush1.msra.mxu0 0.0
    %3322 = vmatprep.mubr.f32.mxu0 0.0
    %3323 = vmatmul.mubr.f32.gmra.mrb[0].mxu0 %v3253
    %v3324 = vpop.f32.mrb[0].mxu0
    %v3325 = vadd.f32 0.0, %v3324
    %v3326 = vpop.f32.mrb[0].mxu0
    %3327 = vmatprep.mubr.f32.mxu0 0.0
    %3328 = vmatmul.mubr.f32.gmra.mrb[0].mxu0 %v3256
    %v3329 = vpop.f32.mrb[0].mxu0
    %v3330 = vadd.f32 0.0, %v3329
    %v3331 = vpop.f32.mrb[0].mxu0
    %3332 = vdwg.mxu0
    %v3334 = vsel %vm743, %v3017, 0
    %v3337 = vsel %vm743, %v3019, 0
    %3339 = vmatprep.subr.mxu0 0.0
    %3340 = vmatpush1.msra.mxu0 %v370
    %3341 = vmatprep.subr.mxu0 0.0
    %3342 = vmatpush1.msra.mxu0 %v376
    %3343 = vmatprep.subr.mxu0 0.0
    %3344 = vmatpush1.msra.mxu0 0.0
    %3345 = vmatprep.subr.mxu0 0.0
    %3346 = vmatpush1.msra.mxu0 0.0
    %3347 = vmatprep.subr.mxu0 0.0
    %3348 = vmatpush1.msra.mxu0 0.0
    %3349 = vmatprep.subr.mxu0 0.0
    %3350 = vmatpush1.msra.mxu0 0.0
    %3351 = vmatprep.subr.mxu0 0.0
    %3352 = vmatpush1.msra.mxu0 0.0
    %3353 = vmatprep.subr.mxu0 0.0
    %3354 = vmatpush1.msra.mxu0 0.0
    %3355 = vmatprep.subr.mxu0 0.0
    %3356 = vmatpush1.msra.mxu0 0.0
    %3357 = vmatprep.subr.mxu0 0.0
    %3358 = vmatpush1.msra.mxu0 0.0
    %3359 = vmatprep.subr.mxu0 0.0
    %3360 = vmatpush1.msra.mxu0 0.0
    %3361 = vmatprep.subr.mxu0 0.0
    %3362 = vmatpush1.msra.mxu0 0.0
    %3363 = vmatprep.subr.mxu0 0.0
    %3364 = vmatpush1.msra.mxu0 0.0
    %3365 = vmatprep.subr.mxu0 0.0
    %3366 = vmatpush1.msra.mxu0 0.0
    %3367 = vmatprep.subr.mxu0 0.0
    %3368 = vmatpush1.msra.mxu0 0.0
    %3369 = vmatprep.subr.mxu0 0.0
    %3370 = vmatpush1.msra.mxu0 0.0
    %3371 = vmatprep.subr.mxu0 0.0
    %3372 = vmatpush1.msra.mxu0 0.0
    %3373 = vmatprep.subr.mxu0 0.0
    %3374 = vmatpush1.msra.mxu0 0.0
    %3375 = vmatprep.subr.mxu0 0.0
    %3376 = vmatpush1.msra.mxu0 0.0
    %3377 = vmatprep.subr.mxu0 0.0
    %3378 = vmatpush1.msra.mxu0 0.0
    %3379 = vmatprep.subr.mxu0 0.0
    %3380 = vmatpush1.msra.mxu0 0.0
    %3381 = vmatprep.subr.mxu0 0.0
    %3382 = vmatpush1.msra.mxu0 0.0
    %3383 = vmatprep.subr.mxu0 0.0
    %3384 = vmatpush1.msra.mxu0 0.0
    %3385 = vmatprep.subr.mxu0 0.0
    %3386 = vmatpush1.msra.mxu0 0.0
    %3387 = vmatprep.subr.mxu0 0.0
    %3388 = vmatpush1.msra.mxu0 0.0
    %3389 = vmatprep.subr.mxu0 0.0
    %3390 = vmatpush1.msra.mxu0 0.0
    %3391 = vmatprep.subr.mxu0 0.0
    %3392 = vmatpush1.msra.mxu0 0.0
    %3393 = vmatprep.subr.mxu0 0.0
    %3394 = vmatpush1.msra.mxu0 0.0
    %3395 = vmatprep.subr.mxu0 0.0
    %3396 = vmatpush1.msra.mxu0 0.0
    %3397 = vmatprep.subr.mxu0 0.0
    %3398 = vmatpush1.msra.mxu0 0.0
    %3399 = vmatprep.subr.mxu0 0.0
    %3400 = vmatpush1.msra.mxu0 0.0
    %3401 = vmatprep.subr.mxu0 0.0
    %3402 = vmatpush1.msra.mxu0 0.0
    %3403 = vmatprep.mubr.f32.mxu0 0.0
    %3404 = vmatmul.mubr.f32.gmra.mrb[0].mxu0 %v3334
    %v3405 = vpop.f32.mrb[0].mxu0
    %v3406 = vadd.f32 0.0, %v3405
    %v3407 = vpop.f32.mrb[0].mxu0
    %3408 = vmatprep.mubr.f32.mxu0 0.0
    %3409 = vmatmul.mubr.f32.gmra.mrb[0].mxu0 %v3337
    %v3410 = vpop.f32.mrb[0].mxu0
    %v3411 = vadd.f32 0.0, %v3410
    %v3412 = vpop.f32.mrb[0].mxu0
    %3413 = vdwg.mxu0
    %v3415 = vsel %vm743, %v3021, 0
    %v3418 = vsel %vm743, %v3023, 0
    %3420 = vmatprep.subr.mxu0 0.0
    %3421 = vmatpush1.msra.mxu0 %v616
    %3422 = vmatprep.subr.mxu0 0.0
    %3423 = vmatpush1.msra.mxu0 %v618
    %3424 = vmatprep.subr.mxu0 0.0
    %3425 = vmatpush1.msra.mxu0 0.0
    %3426 = vmatprep.subr.mxu0 0.0
    %3427 = vmatpush1.msra.mxu0 0.0
    %3428 = vmatprep.subr.mxu0 0.0
    %3429 = vmatpush1.msra.mxu0 0.0
    %3430 = vmatprep.subr.mxu0 0.0
    %3431 = vmatpush1.msra.mxu0 0.0
    %3432 = vmatprep.subr.mxu0 0.0
    %3433 = vmatpush1.msra.mxu0 0.0
    %3434 = vmatprep.subr.mxu0 0.0
    %3435 = vmatpush1.msra.mxu0 0.0
    %3436 = vmatprep.subr.mxu0 0.0
    %3437 = vmatpush1.msra.mxu0 0.0
    %3438 = vmatprep.subr.mxu0 0.0
    %3439 = vmatpush1.msra.mxu0 0.0
    %3440 = vmatprep.subr.mxu0 0.0
    %3441 = vmatpush1.msra.mxu0 0.0
    %3442 = vmatprep.subr.mxu0 0.0
    %3443 = vmatpush1.msra.mxu0 0.0
    %3444 = vmatprep.subr.mxu0 0.0
    %3445 = vmatpush1.msra.mxu0 0.0
    %3446 = vmatprep.subr.mxu0 0.0
    %3447 = vmatpush1.msra.mxu0 0.0
    %3448 = vmatprep.subr.mxu0 0.0
    %3449 = vmatpush1.msra.mxu0 0.0
    %3450 = vmatprep.subr.mxu0 0.0
    %3451 = vmatpush1.msra.mxu0 0.0
    %3452 = vmatprep.subr.mxu0 0.0
    %3453 = vmatpush1.msra.mxu0 0.0
    %3454 = vmatprep.subr.mxu0 0.0
    %3455 = vmatpush1.msra.mxu0 0.0
    %3456 = vmatprep.subr.mxu0 0.0
    %3457 = vmatpush1.msra.mxu0 0.0
    %3458 = vmatprep.subr.mxu0 0.0
    %3459 = vmatpush1.msra.mxu0 0.0
    %3460 = vmatprep.subr.mxu0 0.0
    %3461 = vmatpush1.msra.mxu0 0.0
    %3462 = vmatprep.subr.mxu0 0.0
    %3463 = vmatpush1.msra.mxu0 0.0
    %3464 = vmatprep.subr.mxu0 0.0
    %3465 = vmatpush1.msra.mxu0 0.0
    %3466 = vmatprep.subr.mxu0 0.0
    %3467 = vmatpush1.msra.mxu0 0.0
    %3468 = vmatprep.subr.mxu0 0.0
    %3469 = vmatpush1.msra.mxu0 0.0
    %3470 = vmatprep.subr.mxu0 0.0
    %3471 = vmatpush1.msra.mxu0 0.0
    %3472 = vmatprep.subr.mxu0 0.0
    %3473 = vmatpush1.msra.mxu0 0.0
    %3474 = vmatprep.subr.mxu0 0.0
    %3475 = vmatpush1.msra.mxu0 0.0
    %3476 = vmatprep.subr.mxu0 0.0
    %3477 = vmatpush1.msra.mxu0 0.0
    %3478 = vmatprep.subr.mxu0 0.0
    %3479 = vmatpush1.msra.mxu0 0.0
    %3480 = vmatprep.subr.mxu0 0.0
    %3481 = vmatpush1.msra.mxu0 0.0
    %3482 = vmatprep.subr.mxu0 0.0
    %3483 = vmatpush1.msra.mxu0 0.0
    %3484 = vmatprep.mubr.f32.mxu0 0.0
    %3485 = vmatmul.mubr.f32.gmra.mrb[0].mxu0 %v3415
    %v3486 = vpop.f32.mrb[0].mxu0
    %v3487 = vadd.f32 0.0, %v3486
    %v3488 = vpop.f32.mrb[0].mxu0
    %3489 = vmatprep.mubr.f32.mxu0 0.0
    %3490 = vmatmul.mubr.f32.gmra.mrb[0].mxu0 %v3418
    %v3491 = vpop.f32.mrb[0].mxu0
    %v3492 = vadd.f32 0.0, %v3491
    %v3493 = vpop.f32.mrb[0].mxu0
    %3494 = vdwg.mxu0
    %v3496 = vsel %vm743, %v3025, 0
    %v3499 = vsel %vm743, %v3027, 0
    %3501 = vmatprep.subr.mxu0 0.0
    %3502 = vmatpush1.msra.mxu0 %v620
    %3503 = vmatprep.subr.mxu0 0.0
    %3504 = vmatpush1.msra.mxu0 %v622
    %3505 = vmatprep.subr.mxu0 0.0
    %3506 = vmatpush1.msra.mxu0 0.0
    %3507 = vmatprep.subr.mxu0 0.0
    %3508 = vmatpush1.msra.mxu0 0.0
    %3509 = vmatprep.subr.mxu0 0.0
    %3510 = vmatpush1.msra.mxu0 0.0
    %3511 = vmatprep.subr.mxu0 0.0
    %3512 = vmatpush1.msra.mxu0 0.0
    %3513 = vmatprep.subr.mxu0 0.0
    %3514 = vmatpush1.msra.mxu0 0.0
    %3515 = vmatprep.subr.mxu0 0.0
    %3516 = vmatpush1.msra.mxu0 0.0
    %3517 = vmatprep.subr.mxu0 0.0
    %3518 = vmatpush1.msra.mxu0 0.0
    %3519 = vmatprep.subr.mxu0 0.0
    %3520 = vmatpush1.msra.mxu0 0.0
    %3521 = vmatprep.subr.mxu0 0.0
    %3522 = vmatpush1.msra.mxu0 0.0
    %3523 = vmatprep.subr.mxu0 0.0
    %3524 = vmatpush1.msra.mxu0 0.0
    %3525 = vmatprep.subr.mxu0 0.0
    %3526 = vmatpush1.msra.mxu0 0.0
    %3527 = vmatprep.subr.mxu0 0.0
    %3528 = vmatpush1.msra.mxu0 0.0
    %3529 = vmatprep.subr.mxu0 0.0
    %3530 = vmatpush1.msra.mxu0 0.0
    %3531 = vmatprep.subr.mxu0 0.0
    %3532 = vmatpush1.msra.mxu0 0.0
    %3533 = vmatprep.subr.mxu0 0.0
    %3534 = vmatpush1.msra.mxu0 0.0
    %3535 = vmatprep.subr.mxu0 0.0
    %3536 = vmatpush1.msra.mxu0 0.0
    %3537 = vmatprep.subr.mxu0 0.0
    %3538 = vmatpush1.msra.mxu0 0.0
    %3539 = vmatprep.subr.mxu0 0.0
    %3540 = vmatpush1.msra.mxu0 0.0
    %3541 = vmatprep.subr.mxu0 0.0
    %3542 = vmatpush1.msra.mxu0 0.0
    %3543 = vmatprep.subr.mxu0 0.0
    %3544 = vmatpush1.msra.mxu0 0.0
    %3545 = vmatprep.subr.mxu0 0.0
    %3546 = vmatpush1.msra.mxu0 0.0
    %3547 = vmatprep.subr.mxu0 0.0
    %3548 = vmatpush1.msra.mxu0 0.0
    %3549 = vmatprep.subr.mxu0 0.0
    %3550 = vmatpush1.msra.mxu0 0.0
    %3551 = vmatprep.subr.mxu0 0.0
    %3552 = vmatpush1.msra.mxu0 0.0
    %3553 = vmatprep.subr.mxu0 0.0
    %3554 = vmatpush1.msra.mxu0 0.0
    %3555 = vmatprep.subr.mxu0 0.0
    %3556 = vmatpush1.msra.mxu0 0.0
    %3557 = vmatprep.subr.mxu0 0.0
    %3558 = vmatpush1.msra.mxu0 0.0
    %3559 = vmatprep.subr.mxu0 0.0
    %3560 = vmatpush1.msra.mxu0 0.0
    %3561 = vmatprep.subr.mxu0 0.0
    %3562 = vmatpush1.msra.mxu0 0.0
    %3563 = vmatprep.subr.mxu0 0.0
    %3564 = vmatpush1.msra.mxu0 0.0
    %3565 = vmatprep.mubr.f32.mxu0 0.0
    %3566 = vmatmul.mubr.f32.gmra.mrb[0].mxu0 %v3496
    %v3567 = vpop.f32.mrb[0].mxu0
    %v3568 = vadd.f32 0.0, %v3567
    %v3569 = vpop.f32.mrb[0].mxu0
    %3570 = vmatprep.mubr.f32.mxu0 0.0
    %3571 = vmatmul.mubr.f32.gmra.mrb[0].mxu0 %v3499
    %v3572 = vpop.f32.mrb[0].mxu0
    %v3573 = vadd.f32 0.0, %v3572
    %v3574 = vpop.f32.mrb[0].mxu0
    %3575 = vdwg.mxu0
    %v3577 = vsel %vm743, %v3029, 0
    %v3580 = vsel %vm743, %v3031, 0
    %3582 = vmatprep.subr.mxu0 0.0
    %3583 = vmatpush1.msra.mxu0 %v628
    %3584 = vmatprep.subr.mxu0 0.0
    %3585 = vmatpush1.msra.mxu0 %v630
    %3586 = vmatprep.subr.mxu0 0.0
    %3587 = vmatpush1.msra.mxu0 0.0
    %3588 = vmatprep.subr.mxu0 0.0
    %3589 = vmatpush1.msra.mxu0 0.0
    %3590 = vmatprep.subr.mxu0 0.0
    %3591 = vmatpush1.msra.mxu0 0.0
    %3592 = vmatprep.subr.mxu0 0.0
    %3593 = vmatpush1.msra.mxu0 0.0
    %3594 = vmatprep.subr.mxu0 0.0
    %3595 = vmatpush1.msra.mxu0 0.0
    %3596 = vmatprep.subr.mxu0 0.0
    %3597 = vmatpush1.msra.mxu0 0.0
    %3598 = vmatprep.subr.mxu0 0.0
    %3599 = vmatpush1.msra.mxu0 0.0
    %3600 = vmatprep.subr.mxu0 0.0
    %3601 = vmatpush1.msra.mxu0 0.0
    %3602 = vmatprep.subr.mxu0 0.0
    %3603 = vmatpush1.msra.mxu0 0.0
    %3604 = vmatprep.subr.mxu0 0.0
    %3605 = vmatpush1.msra.mxu0 0.0
    %3606 = vmatprep.subr.mxu0 0.0
    %3607 = vmatpush1.msra.mxu0 0.0
    %3608 = vmatprep.subr.mxu0 0.0
    %3609 = vmatpush1.msra.mxu0 0.0
    %3610 = vmatprep.subr.mxu0 0.0
    %3611 = vmatpush1.msra.mxu0 0.0
    %3612 = vmatprep.subr.mxu0 0.0
    %3613 = vmatpush1.msra.mxu0 0.0
    %3614 = vmatprep.subr.mxu0 0.0
    %3615 = vmatpush1.msra.mxu0 0.0
    %3616 = vmatprep.subr.mxu0 0.0
    %3617 = vmatpush1.msra.mxu0 0.0
    %3618 = vmatprep.subr.mxu0 0.0
    %3619 = vmatpush1.msra.mxu0 0.0
    %3620 = vmatprep.subr.mxu0 0.0
    %3621 = vmatpush1.msra.mxu0 0.0
    %3622 = vmatprep.subr.mxu0 0.0
    %3623 = vmatpush1.msra.mxu0 0.0
    %3624 = vmatprep.subr.mxu0 0.0
    %3625 = vmatpush1.msra.mxu0 0.0
    %3626 = vmatprep.subr.mxu0 0.0
    %3627 = vmatpush1.msra.mxu0 0.0
    %3628 = vmatprep.subr.mxu0 0.0
    %3629 = vmatpush1.msra.mxu0 0.0
    %3630 = vmatprep.subr.mxu0 0.0
    %3631 = vmatpush1.msra.mxu0 0.0
    %3632 = vmatprep.subr.mxu0 0.0
    %3633 = vmatpush1.msra.mxu0 0.0
    %3634 = vmatprep.subr.mxu0 0.0
    %3635 = vmatpush1.msra.mxu0 0.0
    %3636 = vmatprep.subr.mxu0 0.0
    %3637 = vmatpush1.msra.mxu0 0.0
    %3638 = vmatprep.subr.mxu0 0.0
    %3639 = vmatpush1.msra.mxu0 0.0
    %3640 = vmatprep.subr.mxu0 0.0
    %3641 = vmatpush1.msra.mxu0 0.0
    %3642 = vmatprep.subr.mxu0 0.0
    %3643 = vmatpush1.msra.mxu0 0.0
    %3644 = vmatprep.subr.mxu0 0.0
    %3645 = vmatpush1.msra.mxu0 0.0
    %3646 = vmatprep.mubr.f32.mxu0 0.0
    %3647 = vmatmul.mubr.f32.gmra.mrb[0].mxu0 %v3577
    %v3648 = vpop.f32.mrb[0].mxu0
    %v3649 = vadd.f32 0.0, %v3648
    %v3650 = vpop.f32.mrb[0].mxu0
    %3651 = vmatprep.mubr.f32.mxu0 0.0
    %3652 = vmatmul.mubr.f32.gmra.mrb[0].mxu0 %v3580
    %v3653 = vpop.f32.mrb[0].mxu0
    %v3654 = vadd.f32 0.0, %v3653
    %v3655 = vpop.f32.mrb[0].mxu0
    %3656 = vdwg.mxu0
    %v3658 = vsel %vm743, %v3033, 0
    %v3661 = vsel %vm743, %v3035, 0
    %3663 = vmatprep.subr.mxu0 0.0
    %3664 = vmatpush1.msra.mxu0 %v632
    %3665 = vmatprep.subr.mxu0 0.0
    %3666 = vmatpush1.msra.mxu0 %v634
    %3667 = vmatprep.subr.mxu0 0.0
    %3668 = vmatpush1.msra.mxu0 0.0
    %3669 = vmatprep.subr.mxu0 0.0
    %3670 = vmatpush1.msra.mxu0 0.0
    %3671 = vmatprep.subr.mxu0 0.0
    %3672 = vmatpush1.msra.mxu0 0.0
    %3673 = vmatprep.subr.mxu0 0.0
    %3674 = vmatpush1.msra.mxu0 0.0
    %3675 = vmatprep.subr.mxu0 0.0
    %3676 = vmatpush1.msra.mxu0 0.0
    %3677 = vmatprep.subr.mxu0 0.0
    %3678 = vmatpush1.msra.mxu0 0.0
    %3679 = vmatprep.subr.mxu0 0.0
    %3680 = vmatpush1.msra.mxu0 0.0
    %3681 = vmatprep.subr.mxu0 0.0
    %3682 = vmatpush1.msra.mxu0 0.0
    %3683 = vmatprep.subr.mxu0 0.0
    %3684 = vmatpush1.msra.mxu0 0.0
    %3685 = vmatprep.subr.mxu0 0.0
    %3686 = vmatpush1.msra.mxu0 0.0
    %3687 = vmatprep.subr.mxu0 0.0
    %3688 = vmatpush1.msra.mxu0 0.0
    %3689 = vmatprep.subr.mxu0 0.0
    %3690 = vmatpush1.msra.mxu0 0.0
    %3691 = vmatprep.subr.mxu0 0.0
    %3692 = vmatpush1.msra.mxu0 0.0
    %3693 = vmatprep.subr.mxu0 0.0
    %3694 = vmatpush1.msra.mxu0 0.0
    %3695 = vmatprep.subr.mxu0 0.0
    %3696 = vmatpush1.msra.mxu0 0.0
    %3697 = vmatprep.subr.mxu0 0.0
    %3698 = vmatpush1.msra.mxu0 0.0
    %3699 = vmatprep.subr.mxu0 0.0
    %3700 = vmatpush1.msra.mxu0 0.0
    %3701 = vmatprep.subr.mxu0 0.0
    %3702 = vmatpush1.msra.mxu0 0.0
    %3703 = vmatprep.subr.mxu0 0.0
    %3704 = vmatpush1.msra.mxu0 0.0
    %3705 = vmatprep.subr.mxu0 0.0
    %3706 = vmatpush1.msra.mxu0 0.0
    %3707 = vmatprep.subr.mxu0 0.0
    %3708 = vmatpush1.msra.mxu0 0.0
    %3709 = vmatprep.subr.mxu0 0.0
    %3710 = vmatpush1.msra.mxu0 0.0
    %3711 = vmatprep.subr.mxu0 0.0
    %3712 = vmatpush1.msra.mxu0 0.0
    %3713 = vmatprep.subr.mxu0 0.0
    %3714 = vmatpush1.msra.mxu0 0.0
    %3715 = vmatprep.subr.mxu0 0.0
    %3716 = vmatpush1.msra.mxu0 0.0
    %3717 = vmatprep.subr.mxu0 0.0
    %3718 = vmatpush1.msra.mxu0 0.0
    %3719 = vmatprep.subr.mxu0 0.0
    %3720 = vmatpush1.msra.mxu0 0.0
    %3721 = vmatprep.subr.mxu0 0.0
    %3722 = vmatpush1.msra.mxu0 0.0
    %3723 = vmatprep.subr.mxu0 0.0
    %3724 = vmatpush1.msra.mxu0 0.0
    %3725 = vmatprep.subr.mxu0 0.0
    %3726 = vmatpush1.msra.mxu0 0.0
    %3727 = vmatprep.mubr.f32.mxu0 0.0
    %3728 = vmatmul.mubr.f32.gmra.mrb[0].mxu0 %v3658
    %v3729 = vpop.f32.mrb[0].mxu0
    %v3730 = vadd.f32 0.0, %v3729
    %v3731 = vpop.f32.mrb[0].mxu0
    %3732 = vmatprep.mubr.f32.mxu0 0.0
    %3733 = vmatmul.mubr.f32.gmra.mrb[0].mxu0 %v3661
    %v3734 = vpop.f32.mrb[0].mxu0
    %v3735 = vadd.f32 0.0, %v3734
    %v3736 = vpop.f32.mrb[0].mxu0
    %3737 = vdwg.mxu0
    %v3739 = vsel %vm743, %v3037, 0
    %v3742 = vsel %vm743, %v3039, 0
    %3744 = vmatprep.subr.mxu0 0.0
    %3745 = vmatpush1.msra.mxu0 %v640
    %3746 = vmatprep.subr.mxu0 0.0
    %3747 = vmatpush1.msra.mxu0 %v642
    %3748 = vmatprep.subr.mxu0 0.0
    %3749 = vmatpush1.msra.mxu0 0.0
    %3750 = vmatprep.subr.mxu0 0.0
    %3751 = vmatpush1.msra.mxu0 0.0
    %3752 = vmatprep.subr.mxu0 0.0
    %3753 = vmatpush1.msra.mxu0 0.0
    %3754 = vmatprep.subr.mxu0 0.0
    %3755 = vmatpush1.msra.mxu0 0.0
    %3756 = vmatprep.subr.mxu0 0.0
    %3757 = vmatpush1.msra.mxu0 0.0
    %3758 = vmatprep.subr.mxu0 0.0
    %3759 = vmatpush1.msra.mxu0 0.0
    %3760 = vmatprep.subr.mxu0 0.0
    %3761 = vmatpush1.msra.mxu0 0.0
    %3762 = vmatprep.subr.mxu0 0.0
    %3763 = vmatpush1.msra.mxu0 0.0
    %3764 = vmatprep.subr.mxu0 0.0
    %3765 = vmatpush1.msra.mxu0 0.0
    %3766 = vmatprep.subr.mxu0 0.0
    %3767 = vmatpush1.msra.mxu0 0.0
    %3768 = vmatprep.subr.mxu0 0.0
    %3769 = vmatpush1.msra.mxu0 0.0
    %3770 = vmatprep.subr.mxu0 0.0
    %3771 = vmatpush1.msra.mxu0 0.0
    %3772 = vmatprep.subr.mxu0 0.0
    %3773 = vmatpush1.msra.mxu0 0.0
    %3774 = vmatprep.subr.mxu0 0.0
    %3775 = vmatpush1.msra.mxu0 0.0
    %3776 = vmatprep.subr.mxu0 0.0
    %3777 = vmatpush1.msra.mxu0 0.0
    %3778 = vmatprep.subr.mxu0 0.0
    %3779 = vmatpush1.msra.mxu0 0.0
    %3780 = vmatprep.subr.mxu0 0.0
    %3781 = vmatpush1.msra.mxu0 0.0
    %3782 = vmatprep.subr.mxu0 0.0
    %3783 = vmatpush1.msra.mxu0 0.0
    %3784 = vmatprep.subr.mxu0 0.0
    %3785 = vmatpush1.msra.mxu0 0.0
    %3786 = vmatprep.subr.mxu0 0.0
    %3787 = vmatpush1.msra.mxu0 0.0
    %3788 = vmatprep.subr.mxu0 0.0
    %3789 = vmatpush1.msra.mxu0 0.0
    %3790 = vmatprep.subr.mxu0 0.0
    %3791 = vmatpush1.msra.mxu0 0.0
    %3792 = vmatprep.subr.mxu0 0.0
    %3793 = vmatpush1.msra.mxu0 0.0
    %3794 = vmatprep.subr.mxu0 0.0
    %3795 = vmatpush1.msra.mxu0 0.0
    %3796 = vmatprep.subr.mxu0 0.0
    %3797 = vmatpush1.msra.mxu0 0.0
    %3798 = vmatprep.subr.mxu0 0.0
    %3799 = vmatpush1.msra.mxu0 0.0
    %3800 = vmatprep.subr.mxu0 0.0
    %3801 = vmatpush1.msra.mxu0 0.0
    %3802 = vmatprep.subr.mxu0 0.0
    %3803 = vmatpush1.msra.mxu0 0.0
    %3804 = vmatprep.subr.mxu0 0.0
    %3805 = vmatpush1.msra.mxu0 0.0
    %3806 = vmatprep.subr.mxu0 0.0
    %3807 = vmatpush1.msra.mxu0 0.0
    %3808 = vmatprep.mubr.f32.mxu0 0.0
    %3809 = vmatmul.mubr.f32.gmra.mrb[0].mxu0 %v3739
    %v3810 = vpop.f32.mrb[0].mxu0
    %v3811 = vadd.f32 0.0, %v3810
    %v3812 = vpop.f32.mrb[0].mxu0
    %3813 = vmatprep.mubr.f32.mxu0 0.0
    %3814 = vmatmul.mubr.f32.gmra.mrb[0].mxu0 %v3742
    %v3815 = vpop.f32.mrb[0].mxu0
    %v3816 = vadd.f32 0.0, %v3815
    %v3817 = vpop.f32.mrb[0].mxu0
    %3818 = vdwg.mxu0
    %v3820 = vsel %vm743, %v3041, 0
    %v3823 = vsel %vm743, %v3043, 0
    %3825 = vmatprep.subr.mxu0 0.0
    %3826 = vmatpush1.msra.mxu0 %v644
    %3827 = vmatprep.subr.mxu0 0.0
    %3828 = vmatpush1.msra.mxu0 %v646
    %3829 = vmatprep.subr.mxu0 0.0
    %3830 = vmatpush1.msra.mxu0 0.0
    %3831 = vmatprep.subr.mxu0 0.0
    %3832 = vmatpush1.msra.mxu0 0.0
    %3833 = vmatprep.subr.mxu0 0.0
    %3834 = vmatpush1.msra.mxu0 0.0
    %3835 = vmatprep.subr.mxu0 0.0
    %3836 = vmatpush1.msra.mxu0 0.0
    %3837 = vmatprep.subr.mxu0 0.0
    %3838 = vmatpush1.msra.mxu0 0.0
    %3839 = vmatprep.subr.mxu0 0.0
    %3840 = vmatpush1.msra.mxu0 0.0
    %3841 = vmatprep.subr.mxu0 0.0
    %3842 = vmatpush1.msra.mxu0 0.0
    %3843 = vmatprep.subr.mxu0 0.0
    %3844 = vmatpush1.msra.mxu0 0.0
    %3845 = vmatprep.subr.mxu0 0.0
    %3846 = vmatpush1.msra.mxu0 0.0
    %3847 = vmatprep.subr.mxu0 0.0
    %3848 = vmatpush1.msra.mxu0 0.0
    %3849 = vmatprep.subr.mxu0 0.0
    %3850 = vmatpush1.msra.mxu0 0.0
    %3851 = vmatprep.subr.mxu0 0.0
    %3852 = vmatpush1.msra.mxu0 0.0
    %3853 = vmatprep.subr.mxu0 0.0
    %3854 = vmatpush1.msra.mxu0 0.0
    %3855 = vmatprep.subr.mxu0 0.0
    %3856 = vmatpush1.msra.mxu0 0.0
    %3857 = vmatprep.subr.mxu0 0.0
    %3858 = vmatpush1.msra.mxu0 0.0
    %3859 = vmatprep.subr.mxu0 0.0
    %3860 = vmatpush1.msra.mxu0 0.0
    %3861 = vmatprep.subr.mxu0 0.0
    %3862 = vmatpush1.msra.mxu0 0.0
    %3863 = vmatprep.subr.mxu0 0.0
    %3864 = vmatpush1.msra.mxu0 0.0
    %3865 = vmatprep.subr.mxu0 0.0
    %3866 = vmatpush1.msra.mxu0 0.0
    %3867 = vmatprep.subr.mxu0 0.0
    %3868 = vmatpush1.msra.mxu0 0.0
    %3869 = vmatprep.subr.mxu0 0.0
    %3870 = vmatpush1.msra.mxu0 0.0
    %3871 = vmatprep.subr.mxu0 0.0
    %3872 = vmatpush1.msra.mxu0 0.0
    %3873 = vmatprep.subr.mxu0 0.0
    %3874 = vmatpush1.msra.mxu0 0.0
    %3875 = vmatprep.subr.mxu0 0.0
    %3876 = vmatpush1.msra.mxu0 0.0
    %3877 = vmatprep.subr.mxu0 0.0
    %3878 = vmatpush1.msra.mxu0 0.0
    %3879 = vmatprep.subr.mxu0 0.0
    %3880 = vmatpush1.msra.mxu0 0.0
    %3881 = vmatprep.subr.mxu0 0.0
    %3882 = vmatpush1.msra.mxu0 0.0
    %3883 = vmatprep.subr.mxu0 0.0
    %3884 = vmatpush1.msra.mxu0 0.0
    %3885 = vmatprep.subr.mxu0 0.0
    %3886 = vmatpush1.msra.mxu0 0.0
    %3887 = vmatprep.subr.mxu0 0.0
    %3888 = vmatpush1.msra.mxu0 0.0
    %3889 = vmatprep.mubr.f32.mxu0 0.0
    %3890 = vmatmul.mubr.f32.gmra.mrb[0].mxu0 %v3820
    %v3891 = vpop.f32.mrb[0].mxu0
    %v3892 = vadd.f32 0.0, %v3891
    %v3893 = vpop.f32.mrb[0].mxu0
    %3894 = vmatprep.mubr.f32.mxu0 0.0
    %3895 = vmatmul.mubr.f32.gmra.mrb[0].mxu0 %v3823
    %v3896 = vpop.f32.mrb[0].mxu0
    %v3897 = vadd.f32 0.0, %v3896
    %v3898 = vpop.f32.mrb[0].mxu0
    %3899 = vdwg.mxu0
    %v3901 = vsel %vm743, %v3045, 0
    %v3904 = vsel %vm743, %v3047, 0
    %3906 = vmatprep.subr.mxu0 0.0
    %3907 = vmatpush1.msra.mxu0 %v652
    %3908 = vmatprep.subr.mxu0 0.0
    %3909 = vmatpush1.msra.mxu0 %v654
    %3910 = vmatprep.subr.mxu0 0.0
    %3911 = vmatpush1.msra.mxu0 0.0
    %3912 = vmatprep.subr.mxu0 0.0
    %3913 = vmatpush1.msra.mxu0 0.0
    %3914 = vmatprep.subr.mxu0 0.0
    %3915 = vmatpush1.msra.mxu0 0.0
    %3916 = vmatprep.subr.mxu0 0.0
    %3917 = vmatpush1.msra.mxu0 0.0
    %3918 = vmatprep.subr.mxu0 0.0
    %3919 = vmatpush1.msra.mxu0 0.0
    %3920 = vmatprep.subr.mxu0 0.0
    %3921 = vmatpush1.msra.mxu0 0.0
    %3922 = vmatprep.subr.mxu0 0.0
    %3923 = vmatpush1.msra.mxu0 0.0
    %3924 = vmatprep.subr.mxu0 0.0
    %3925 = vmatpush1.msra.mxu0 0.0
    %3926 = vmatprep.subr.mxu0 0.0
    %3927 = vmatpush1.msra.mxu0 0.0
    %3928 = vmatprep.subr.mxu0 0.0
    %3929 = vmatpush1.msra.mxu0 0.0
    %3930 = vmatprep.subr.mxu0 0.0
    %3931 = vmatpush1.msra.mxu0 0.0
    %3932 = vmatprep.subr.mxu0 0.0
    %3933 = vmatpush1.msra.mxu0 0.0
    %3934 = vmatprep.subr.mxu0 0.0
    %3935 = vmatpush1.msra.mxu0 0.0
    %3936 = vmatprep.subr.mxu0 0.0
    %3937 = vmatpush1.msra.mxu0 0.0
    %3938 = vmatprep.subr.mxu0 0.0
    %3939 = vmatpush1.msra.mxu0 0.0
    %3940 = vmatprep.subr.mxu0 0.0
    %3941 = vmatpush1.msra.mxu0 0.0
    %3942 = vmatprep.subr.mxu0 0.0
    %3943 = vmatpush1.msra.mxu0 0.0
    %3944 = vmatprep.subr.mxu0 0.0
    %3945 = vmatpush1.msra.mxu0 0.0
    %3946 = vmatprep.subr.mxu0 0.0
    %3947 = vmatpush1.msra.mxu0 0.0
    %3948 = vmatprep.subr.mxu0 0.0
    %3949 = vmatpush1.msra.mxu0 0.0
    %3950 = vmatprep.subr.mxu0 0.0
    %3951 = vmatpush1.msra.mxu0 0.0
    %3952 = vmatprep.subr.mxu0 0.0
    %3953 = vmatpush1.msra.mxu0 0.0
    %3954 = vmatprep.subr.mxu0 0.0
    %3955 = vmatpush1.msra.mxu0 0.0
    %3956 = vmatprep.subr.mxu0 0.0
    %3957 = vmatpush1.msra.mxu0 0.0
    %3958 = vmatprep.subr.mxu0 0.0
    %3959 = vmatpush1.msra.mxu0 0.0
    %3960 = vmatprep.subr.mxu0 0.0
    %3961 = vmatpush1.msra.mxu0 0.0
    %3962 = vmatprep.subr.mxu0 0.0
    %3963 = vmatpush1.msra.mxu0 0.0
    %3964 = vmatprep.subr.mxu0 0.0
    %3965 = vmatpush1.msra.mxu0 0.0
    %3966 = vmatprep.subr.mxu0 0.0
    %3967 = vmatpush1.msra.mxu0 0.0
    %3968 = vmatprep.subr.mxu0 0.0
    %3969 = vmatpush1.msra.mxu0 0.0
    %3970 = vmatprep.mubr.f32.mxu0 0.0
    %3971 = vmatmul.mubr.f32.gmra.mrb[0].mxu0 %v3901
    %v3972 = vpop.f32.mrb[0].mxu0
    %v3973 = vadd.f32 0.0, %v3972
    %v3974 = vpop.f32.mrb[0].mxu0
    %3975 = vmatprep.mubr.f32.mxu0 0.0
    %3976 = vmatmul.mubr.f32.gmra.mrb[0].mxu0 %v3904
    %v3977 = vpop.f32.mrb[0].mxu0
    %v3978 = vadd.f32 0.0, %v3977
    %v3979 = vpop.f32.mrb[0].mxu0
    %3980 = vdwg.mxu0
    %v3982 = vsel %vm743, %v3049, 0
    %v3985 = vsel %vm743, %v3051, 0
    %3987 = vmatprep.subr.mxu0 0.0
    %3988 = vmatpush1.msra.mxu0 %v656
    %3989 = vmatprep.subr.mxu0 0.0
    %3990 = vmatpush1.msra.mxu0 %v658
    %3991 = vmatprep.subr.mxu0 0.0
    %3992 = vmatpush1.msra.mxu0 0.0
    %3993 = vmatprep.subr.mxu0 0.0
    %3994 = vmatpush1.msra.mxu0 0.0
    %3995 = vmatprep.subr.mxu0 0.0
    %3996 = vmatpush1.msra.mxu0 0.0
    %3997 = vmatprep.subr.mxu0 0.0
    %3998 = vmatpush1.msra.mxu0 0.0
    %3999 = vmatprep.subr.mxu0 0.0
    %4000 = vmatpush1.msra.mxu0 0.0
    %4001 = vmatprep.subr.mxu0 0.0
    %4002 = vmatpush1.msra.mxu0 0.0
    %4003 = vmatprep.subr.mxu0 0.0
    %4004 = vmatpush1.msra.mxu0 0.0
    %4005 = vmatprep.subr.mxu0 0.0
    %4006 = vmatpush1.msra.mxu0 0.0
    %4007 = vmatprep.subr.mxu0 0.0
    %4008 = vmatpush1.msra.mxu0 0.0
    %4009 = vmatprep.subr.mxu0 0.0
    %4010 = vmatpush1.msra.mxu0 0.0
    %4011 = vmatprep.subr.mxu0 0.0
    %4012 = vmatpush1.msra.mxu0 0.0
    %4013 = vmatprep.subr.mxu0 0.0
    %4014 = vmatpush1.msra.mxu0 0.0
    %4015 = vmatprep.subr.mxu0 0.0
    %4016 = vmatpush1.msra.mxu0 0.0
    %4017 = vmatprep.subr.mxu0 0.0
    %4018 = vmatpush1.msra.mxu0 0.0
    %4019 = vmatprep.subr.mxu0 0.0
    %4020 = vmatpush1.msra.mxu0 0.0
    %4021 = vmatprep.subr.mxu0 0.0
    %4022 = vmatpush1.msra.mxu0 0.0
    %4023 = vmatprep.subr.mxu0 0.0
    %4024 = vmatpush1.msra.mxu0 0.0
    %4025 = vmatprep.subr.mxu0 0.0
    %4026 = vmatpush1.msra.mxu0 0.0
    %4027 = vmatprep.subr.mxu0 0.0
    %4028 = vmatpush1.msra.mxu0 0.0
    %4029 = vmatprep.subr.mxu0 0.0
    %4030 = vmatpush1.msra.mxu0 0.0
    %4031 = vmatprep.subr.mxu0 0.0
    %4032 = vmatpush1.msra.mxu0 0.0
    %4033 = vmatprep.subr.mxu0 0.0
    %4034 = vmatpush1.msra.mxu0 0.0
    %4035 = vmatprep.subr.mxu0 0.0
    %4036 = vmatpush1.msra.mxu0 0.0
    %4037 = vmatprep.subr.mxu0 0.0
    %4038 = vmatpush1.msra.mxu0 0.0
    %4039 = vmatprep.subr.mxu0 0.0
    %4040 = vmatpush1.msra.mxu0 0.0
    %4041 = vmatprep.subr.mxu0 0.0
    %4042 = vmatpush1.msra.mxu0 0.0
    %4043 = vmatprep.subr.mxu0 0.0
    %4044 = vmatpush1.msra.mxu0 0.0
    %4045 = vmatprep.subr.mxu0 0.0
    %4046 = vmatpush1.msra.mxu0 0.0
    %4047 = vmatprep.subr.mxu0 0.0
    %4048 = vmatpush1.msra.mxu0 0.0
    %4049 = vmatprep.subr.mxu0 0.0
    %4050 = vmatpush1.msra.mxu0 0.0
    %4051 = vmatprep.mubr.f32.mxu0 0.0
    %4052 = vmatmul.mubr.f32.gmra.mrb[0].mxu0 %v3982
    %v4053 = vpop.f32.mrb[0].mxu0
    %v4054 = vadd.f32 0.0, %v4053
    %v4055 = vpop.f32.mrb[0].mxu0
    %4056 = vmatprep.mubr.f32.mxu0 0.0
    %4057 = vmatmul.mubr.f32.gmra.mrb[0].mxu0 %v3985
    %v4058 = vpop.f32.mrb[0].mxu0
    %v4059 = vadd.f32 0.0, %v4058
    %v4060 = vpop.f32.mrb[0].mxu0
    %4061 = vdwg.mxu0
    %v4063 = vsel %vm743, %v3053, 0
    %v4066 = vsel %vm743, %v3055, 0
    %4068 = vmatprep.subr.mxu0 0.0
    %4069 = vmatpush1.msra.mxu0 %v664
    %4070 = vmatprep.subr.mxu0 0.0
    %4071 = vmatpush1.msra.mxu0 %v666
    %4072 = vmatprep.subr.mxu0 0.0
    %4073 = vmatpush1.msra.mxu0 0.0
    %4074 = vmatprep.subr.mxu0 0.0
    %4075 = vmatpush1.msra.mxu0 0.0
    %4076 = vmatprep.subr.mxu0 0.0
    %4077 = vmatpush1.msra.mxu0 0.0
    %4078 = vmatprep.subr.mxu0 0.0
    %4079 = vmatpush1.msra.mxu0 0.0
    %4080 = vmatprep.subr.mxu0 0.0
    %4081 = vmatpush1.msra.mxu0 0.0
    %4082 = vmatprep.subr.mxu0 0.0
    %4083 = vmatpush1.msra.mxu0 0.0
    %4084 = vmatprep.subr.mxu0 0.0
    %4085 = vmatpush1.msra.mxu0 0.0
    %4086 = vmatprep.subr.mxu0 0.0
    %4087 = vmatpush1.msra.mxu0 0.0
    %4088 = vmatprep.subr.mxu0 0.0
    %4089 = vmatpush1.msra.mxu0 0.0
    %4090 = vmatprep.subr.mxu0 0.0
    %4091 = vmatpush1.msra.mxu0 0.0
    %4092 = vmatprep.subr.mxu0 0.0
    %4093 = vmatpush1.msra.mxu0 0.0
    %4094 = vmatprep.subr.mxu0 0.0
    %4095 = vmatpush1.msra.mxu0 0.0
    %4096 = vmatprep.subr.mxu0 0.0
    %4097 = vmatpush1.msra.mxu0 0.0
    %4098 = vmatprep.subr.mxu0 0.0
    %4099 = vmatpush1.msra.mxu0 0.0
    %4100 = vmatprep.subr.mxu0 0.0
    %4101 = vmatpush1.msra.mxu0 0.0
    %4102 = vmatprep.subr.mxu0 0.0
    %4103 = vmatpush1.msra.mxu0 0.0
    %4104 = vmatprep.subr.mxu0 0.0
    %4105 = vmatpush1.msra.mxu0 0.0
    %4106 = vmatprep.subr.mxu0 0.0
    %4107 = vmatpush1.msra.mxu0 0.0
    %4108 = vmatprep.subr.mxu0 0.0
    %4109 = vmatpush1.msra.mxu0 0.0
    %4110 = vmatprep.subr.mxu0 0.0
    %4111 = vmatpush1.msra.mxu0 0.0
    %4112 = vmatprep.subr.mxu0 0.0
    %4113 = vmatpush1.msra.mxu0 0.0
    %4114 = vmatprep.subr.mxu0 0.0
    %4115 = vmatpush1.msra.mxu0 0.0
    %4116 = vmatprep.subr.mxu0 0.0
    %4117 = vmatpush1.msra.mxu0 0.0
    %4118 = vmatprep.subr.mxu0 0.0
    %4119 = vmatpush1.msra.mxu0 0.0
    %4120 = vmatprep.subr.mxu0 0.0
    %4121 = vmatpush1.msra.mxu0 0.0
    %4122 = vmatprep.subr.mxu0 0.0
    %4123 = vmatpush1.msra.mxu0 0.0
    %4124 = vmatprep.subr.mxu0 0.0
    %4125 = vmatpush1.msra.mxu0 0.0
    %4126 = vmatprep.subr.mxu0 0.0
    %4127 = vmatpush1.msra.mxu0 0.0
    %4128 = vmatprep.subr.mxu0 0.0
    %4129 = vmatpush1.msra.mxu0 0.0
    %4130 = vmatprep.subr.mxu0 0.0
    %4131 = vmatpush1.msra.mxu0 0.0
    %4132 = vmatprep.mubr.f32.mxu0 0.0
    %4133 = vmatmul.mubr.f32.gmra.mrb[0].mxu0 %v4063
    %v4134 = vpop.f32.mrb[0].mxu0
    %v4135 = vadd.f32 0.0, %v4134
    %v4136 = vpop.f32.mrb[0].mxu0
    %4137 = vmatprep.mubr.f32.mxu0 0.0
    %4138 = vmatmul.mubr.f32.gmra.mrb[0].mxu0 %v4066
    %v4139 = vpop.f32.mrb[0].mxu0
    %v4140 = vadd.f32 0.0, %v4139
    %v4141 = vpop.f32.mrb[0].mxu0
    %4142 = vdwg.mxu0
    %v4144 = vsel %vm743, %v3057, 0
    %v4147 = vsel %vm743, %v3059, 0
    %4149 = vmatprep.subr.mxu0 0.0
    %4150 = vmatpush1.msra.mxu0 %v668
    %4151 = vmatprep.subr.mxu0 0.0
    %4152 = vmatpush1.msra.mxu0 %v670
    %4153 = vmatprep.subr.mxu0 0.0
    %4154 = vmatpush1.msra.mxu0 0.0
    %4155 = vmatprep.subr.mxu0 0.0
    %4156 = vmatpush1.msra.mxu0 0.0
    %4157 = vmatprep.subr.mxu0 0.0
    %4158 = vmatpush1.msra.mxu0 0.0
    %4159 = vmatprep.subr.mxu0 0.0
    %4160 = vmatpush1.msra.mxu0 0.0
    %4161 = vmatprep.subr.mxu0 0.0
    %4162 = vmatpush1.msra.mxu0 0.0
    %4163 = vmatprep.subr.mxu0 0.0
    %4164 = vmatpush1.msra.mxu0 0.0
    %4165 = vmatprep.subr.mxu0 0.0
    %4166 = vmatpush1.msra.mxu0 0.0
    %4167 = vmatprep.subr.mxu0 0.0
    %4168 = vmatpush1.msra.mxu0 0.0
    %4169 = vmatprep.subr.mxu0 0.0
    %4170 = vmatpush1.msra.mxu0 0.0
    %4171 = vmatprep.subr.mxu0 0.0
    %4172 = vmatpush1.msra.mxu0 0.0
    %4173 = vmatprep.subr.mxu0 0.0
    %4174 = vmatpush1.msra.mxu0 0.0
    %4175 = vmatprep.subr.mxu0 0.0
    %4176 = vmatpush1.msra.mxu0 0.0
    %4177 = vmatprep.subr.mxu0 0.0
    %4178 = vmatpush1.msra.mxu0 0.0
    %4179 = vmatprep.subr.mxu0 0.0
    %4180 = vmatpush1.msra.mxu0 0.0
    %4181 = vmatprep.subr.mxu0 0.0
    %4182 = vmatpush1.msra.mxu0 0.0
    %4183 = vmatprep.subr.mxu0 0.0
    %4184 = vmatpush1.msra.mxu0 0.0
    %4185 = vmatprep.subr.mxu0 0.0
    %4186 = vmatpush1.msra.mxu0 0.0
    %4187 = vmatprep.subr.mxu0 0.0
    %4188 = vmatpush1.msra.mxu0 0.0
    %4189 = vmatprep.subr.mxu0 0.0
    %4190 = vmatpush1.msra.mxu0 0.0
    %4191 = vmatprep.subr.mxu0 0.0
    %4192 = vmatpush1.msra.mxu0 0.0
    %4193 = vmatprep.subr.mxu0 0.0
    %4194 = vmatpush1.msra.mxu0 0.0
    %4195 = vmatprep.subr.mxu0 0.0
    %4196 = vmatpush1.msra.mxu0 0.0
    %4197 = vmatprep.subr.mxu0 0.0
    %4198 = vmatpush1.msra.mxu0 0.0
    %4199 = vmatprep.subr.mxu0 0.0
    %4200 = vmatpush1.msra.mxu0 0.0
    %4201 = vmatprep.subr.mxu0 0.0
    %4202 = vmatpush1.msra.mxu0 0.0
    %4203 = vmatprep.subr.mxu0 0.0
    %4204 = vmatpush1.msra.mxu0 0.0
    %4205 = vmatprep.subr.mxu0 0.0
    %4206 = vmatpush1.msra.mxu0 0.0
    %4207 = vmatprep.subr.mxu0 0.0
    %4208 = vmatpush1.msra.mxu0 0.0
    %4209 = vmatprep.subr.mxu0 0.0
    %4210 = vmatpush1.msra.mxu0 0.0
    %4211 = vmatprep.subr.mxu0 0.0
    %4212 = vmatpush1.msra.mxu0 0.0
    %4213 = vmatprep.mubr.f32.mxu0 0.0
    %4214 = vmatmul.mubr.f32.gmra.mrb[0].mxu0 %v4144
    %v4215 = vpop.f32.mrb[0].mxu0
    %v4216 = vadd.f32 0.0, %v4215
    %v4217 = vpop.f32.mrb[0].mxu0
    %4218 = vmatprep.mubr.f32.mxu0 0.0
    %4219 = vmatmul.mubr.f32.gmra.mrb[0].mxu0 %v4147
    %v4220 = vpop.f32.mrb[0].mxu0
    %v4221 = vadd.f32 0.0, %v4220
    %v4222 = vpop.f32.mrb[0].mxu0
    %4223 = vdwg.mxu0
    %v4225 = vsel %vm743, %v3061, 0
    %v4228 = vsel %vm743, %v3063, 0
    %4230 = vmatprep.subr.mxu0 0.0
    %4231 = vmatpush1.msra.mxu0 %v676
    %4232 = vmatprep.subr.mxu0 0.0
    %4233 = vmatpush1.msra.mxu0 %v678
    %4234 = vmatprep.subr.mxu0 0.0
    %4235 = vmatpush1.msra.mxu0 0.0
    %4236 = vmatprep.subr.mxu0 0.0
    %4237 = vmatpush1.msra.mxu0 0.0
    %4238 = vmatprep.subr.mxu0 0.0
    %4239 = vmatpush1.msra.mxu0 0.0
    %4240 = vmatprep.subr.mxu0 0.0
    %4241 = vmatpush1.msra.mxu0 0.0
    %4242 = vmatprep.subr.mxu0 0.0
    %4243 = vmatpush1.msra.mxu0 0.0
    %4244 = vmatprep.subr.mxu0 0.0
    %4245 = vmatpush1.msra.mxu0 0.0
    %4246 = vmatprep.subr.mxu0 0.0
    %4247 = vmatpush1.msra.mxu0 0.0
    %4248 = vmatprep.subr.mxu0 0.0
    %4249 = vmatpush1.msra.mxu0 0.0
    %4250 = vmatprep.subr.mxu0 0.0
    %4251 = vmatpush1.msra.mxu0 0.0
    %4252 = vmatprep.subr.mxu0 0.0
    %4253 = vmatpush1.msra.mxu0 0.0
    %4254 = vmatprep.subr.mxu0 0.0
    %4255 = vmatpush1.msra.mxu0 0.0
    %4256 = vmatprep.subr.mxu0 0.0
    %4257 = vmatpush1.msra.mxu0 0.0
    %4258 = vmatprep.subr.mxu0 0.0
    %4259 = vmatpush1.msra.mxu0 0.0
    %4260 = vmatprep.subr.mxu0 0.0
    %4261 = vmatpush1.msra.mxu0 0.0
    %4262 = vmatprep.subr.mxu0 0.0
    %4263 = vmatpush1.msra.mxu0 0.0
    %4264 = vmatprep.subr.mxu0 0.0
    %4265 = vmatpush1.msra.mxu0 0.0
    %4266 = vmatprep.subr.mxu0 0.0
    %4267 = vmatpush1.msra.mxu0 0.0
    %4268 = vmatprep.subr.mxu0 0.0
    %4269 = vmatpush1.msra.mxu0 0.0
    %4270 = vmatprep.subr.mxu0 0.0
    %4271 = vmatpush1.msra.mxu0 0.0
    %4272 = vmatprep.subr.mxu0 0.0
    %4273 = vmatpush1.msra.mxu0 0.0
    %4274 = vmatprep.subr.mxu0 0.0
    %4275 = vmatpush1.msra.mxu0 0.0
    %4276 = vmatprep.subr.mxu0 0.0
    %4277 = vmatpush1.msra.mxu0 0.0
    %4278 = vmatprep.subr.mxu0 0.0
    %4279 = vmatpush1.msra.mxu0 0.0
    %4280 = vmatprep.subr.mxu0 0.0
    %4281 = vmatpush1.msra.mxu0 0.0
    %4282 = vmatprep.subr.mxu0 0.0
    %4283 = vmatpush1.msra.mxu0 0.0
    %4284 = vmatprep.subr.mxu0 0.0
    %4285 = vmatpush1.msra.mxu0 0.0
    %4286 = vmatprep.subr.mxu0 0.0
    %4287 = vmatpush1.msra.mxu0 0.0
    %4288 = vmatprep.subr.mxu0 0.0
    %4289 = vmatpush1.msra.mxu0 0.0
    %4290 = vmatprep.subr.mxu0 0.0
    %4291 = vmatpush1.msra.mxu0 0.0
    %4292 = vmatprep.subr.mxu0 0.0
    %4293 = vmatpush1.msra.mxu0 0.0
    %4294 = vmatprep.mubr.f32.mxu0 0.0
    %4295 = vmatmul.mubr.f32.gmra.mrb[0].mxu0 %v4225
    %v4296 = vpop.f32.mrb[0].mxu0
    %v4297 = vadd.f32 0.0, %v4296
    %v4298 = vpop.f32.mrb[0].mxu0
    %4299 = vmatprep.mubr.f32.mxu0 0.0
    %4300 = vmatmul.mubr.f32.gmra.mrb[0].mxu0 %v4228
    %v4301 = vpop.f32.mrb[0].mxu0
    %v4302 = vadd.f32 0.0, %v4301
    %v4303 = vpop.f32.mrb[0].mxu0
    %4304 = vdwg.mxu0
    %v4306 = vsel %vm743, %v3065, 0
    %v4309 = vsel %vm743, %v3067, 0
    %4311 = vmatprep.subr.mxu0 0.0
    %4312 = vmatpush1.msra.mxu0 %v680
    %4313 = vmatprep.subr.mxu0 0.0
    %4314 = vmatpush1.msra.mxu0 %v682
    %4315 = vmatprep.subr.mxu0 0.0
    %4316 = vmatpush1.msra.mxu0 0.0
    %4317 = vmatprep.subr.mxu0 0.0
    %4318 = vmatpush1.msra.mxu0 0.0
    %4319 = vmatprep.subr.mxu0 0.0
    %4320 = vmatpush1.msra.mxu0 0.0
    %4321 = vmatprep.subr.mxu0 0.0
    %4322 = vmatpush1.msra.mxu0 0.0
    %4323 = vmatprep.subr.mxu0 0.0
    %4324 = vmatpush1.msra.mxu0 0.0
    %4325 = vmatprep.subr.mxu0 0.0
    %4326 = vmatpush1.msra.mxu0 0.0
    %4327 = vmatprep.subr.mxu0 0.0
    %4328 = vmatpush1.msra.mxu0 0.0
    %4329 = vmatprep.subr.mxu0 0.0
    %4330 = vmatpush1.msra.mxu0 0.0
    %4331 = vmatprep.subr.mxu0 0.0
    %4332 = vmatpush1.msra.mxu0 0.0
    %4333 = vmatprep.subr.mxu0 0.0
    %4334 = vmatpush1.msra.mxu0 0.0
    %4335 = vmatprep.subr.mxu0 0.0
    %4336 = vmatpush1.msra.mxu0 0.0
    %4337 = vmatprep.subr.mxu0 0.0
    %4338 = vmatpush1.msra.mxu0 0.0
    %4339 = vmatprep.subr.mxu0 0.0
    %4340 = vmatpush1.msra.mxu0 0.0
    %4341 = vmatprep.subr.mxu0 0.0
    %4342 = vmatpush1.msra.mxu0 0.0
    %4343 = vmatprep.subr.mxu0 0.0
    %4344 = vmatpush1.msra.mxu0 0.0
    %4345 = vmatprep.subr.mxu0 0.0
    %4346 = vmatpush1.msra.mxu0 0.0
    %4347 = vmatprep.subr.mxu0 0.0
    %4348 = vmatpush1.msra.mxu0 0.0
    %4349 = vmatprep.subr.mxu0 0.0
    %4350 = vmatpush1.msra.mxu0 0.0
    %4351 = vmatprep.subr.mxu0 0.0
    %4352 = vmatpush1.msra.mxu0 0.0
    %4353 = vmatprep.subr.mxu0 0.0
    %4354 = vmatpush1.msra.mxu0 0.0
    %4355 = vmatprep.subr.mxu0 0.0
    %4356 = vmatpush1.msra.mxu0 0.0
    %4357 = vmatprep.subr.mxu0 0.0
    %4358 = vmatpush1.msra.mxu0 0.0
    %4359 = vmatprep.subr.mxu0 0.0
    %4360 = vmatpush1.msra.mxu0 0.0
    %4361 = vmatprep.subr.mxu0 0.0
    %4362 = vmatpush1.msra.mxu0 0.0
    %4363 = vmatprep.subr.mxu0 0.0
    %4364 = vmatpush1.msra.mxu0 0.0
    %4365 = vmatprep.subr.mxu0 0.0
    %4366 = vmatpush1.msra.mxu0 0.0
    %4367 = vmatprep.subr.mxu0 0.0
    %4368 = vmatpush1.msra.mxu0 0.0
    %4369 = vmatprep.subr.mxu0 0.0
    %4370 = vmatpush1.msra.mxu0 0.0
    %4371 = vmatprep.subr.mxu0 0.0
    %4372 = vmatpush1.msra.mxu0 0.0
    %4373 = vmatprep.subr.mxu0 0.0
    %4374 = vmatpush1.msra.mxu0 0.0
    %4375 = vmatprep.mubr.f32.mxu0 0.0
    %4376 = vmatmul.mubr.f32.gmra.mrb[0].mxu0 %v4306
    %v4377 = vpop.f32.mrb[0].mxu0
    %v4378 = vadd.f32 0.0, %v4377
    %v4379 = vpop.f32.mrb[0].mxu0
    %4380 = vmatprep.mubr.f32.mxu0 0.0
    %4381 = vmatmul.mubr.f32.gmra.mrb[0].mxu0 %v4309
    %v4382 = vpop.f32.mrb[0].mxu0
    %v4383 = vadd.f32 0.0, %v4382
    %v4384 = vpop.f32.mrb[0].mxu0
    %4385 = vdwg.mxu0
    %v4387 = vsel %vm743, %v3069, 0
    %v4390 = vsel %vm743, %v3071, 0
    %4392 = vmatprep.subr.mxu0 0.0
    %4393 = vmatpush1.msra.mxu0 %v688
    %4394 = vmatprep.subr.mxu0 0.0
    %4395 = vmatpush1.msra.mxu0 %v690
    %4396 = vmatprep.subr.mxu0 0.0
    %4397 = vmatpush1.msra.mxu0 0.0
    %4398 = vmatprep.subr.mxu0 0.0
    %4399 = vmatpush1.msra.mxu0 0.0
    %4400 = vmatprep.subr.mxu0 0.0
    %4401 = vmatpush1.msra.mxu0 0.0
    %4402 = vmatprep.subr.mxu0 0.0
    %4403 = vmatpush1.msra.mxu0 0.0
    %4404 = vmatprep.subr.mxu0 0.0
    %4405 = vmatpush1.msra.mxu0 0.0
    %4406 = vmatprep.subr.mxu0 0.0
    %4407 = vmatpush1.msra.mxu0 0.0
    %4408 = vmatprep.subr.mxu0 0.0
    %4409 = vmatpush1.msra.mxu0 0.0
    %4410 = vmatprep.subr.mxu0 0.0
    %4411 = vmatpush1.msra.mxu0 0.0
    %4412 = vmatprep.subr.mxu0 0.0
    %4413 = vmatpush1.msra.mxu0 0.0
    %4414 = vmatprep.subr.mxu0 0.0
    %4415 = vmatpush1.msra.mxu0 0.0
    %4416 = vmatprep.subr.mxu0 0.0
    %4417 = vmatpush1.msra.mxu0 0.0
    %4418 = vmatprep.subr.mxu0 0.0
    %4419 = vmatpush1.msra.mxu0 0.0
    %4420 = vmatprep.subr.mxu0 0.0
    %4421 = vmatpush1.msra.mxu0 0.0
    %4422 = vmatprep.subr.mxu0 0.0
    %4423 = vmatpush1.msra.mxu0 0.0
    %4424 = vmatprep.subr.mxu0 0.0
    %4425 = vmatpush1.msra.mxu0 0.0
    %4426 = vmatprep.subr.mxu0 0.0
    %4427 = vmatpush1.msra.mxu0 0.0
    %4428 = vmatprep.subr.mxu0 0.0
    %4429 = vmatpush1.msra.mxu0 0.0
    %4430 = vmatprep.subr.mxu0 0.0
    %4431 = vmatpush1.msra.mxu0 0.0
    %4432 = vmatprep.subr.mxu0 0.0
    %4433 = vmatpush1.msra.mxu0 0.0
    %4434 = vmatprep.subr.mxu0 0.0
    %4435 = vmatpush1.msra.mxu0 0.0
    %4436 = vmatprep.subr.mxu0 0.0
    %4437 = vmatpush1.msra.mxu0 0.0
    %4438 = vmatprep.subr.mxu0 0.0
    %4439 = vmatpush1.msra.mxu0 0.0
    %4440 = vmatprep.subr.mxu0 0.0
    %4441 = vmatpush1.msra.mxu0 0.0
    %4442 = vmatprep.subr.mxu0 0.0
    %4443 = vmatpush1.msra.mxu0 0.0
    %4444 = vmatprep.subr.mxu0 0.0
    %4445 = vmatpush1.msra.mxu0 0.0
    %4446 = vmatprep.subr.mxu0 0.0
    %4447 = vmatpush1.msra.mxu0 0.0
    %4448 = vmatprep.subr.mxu0 0.0
    %4449 = vmatpush1.msra.mxu0 0.0
    %4450 = vmatprep.subr.mxu0 0.0
    %4451 = vmatpush1.msra.mxu0 0.0
    %4452 = vmatprep.subr.mxu0 0.0
    %4453 = vmatpush1.msra.mxu0 0.0
    %4454 = vmatprep.subr.mxu0 0.0
    %4455 = vmatpush1.msra.mxu0 0.0
    %4456 = vmatprep.mubr.f32.mxu0 0.0
    %4457 = vmatmul.mubr.f32.gmra.mrb[0].mxu0 %v4387
    %v4458 = vpop.f32.mrb[0].mxu0
    %v4459 = vadd.f32 0.0, %v4458
    %v4460 = vpop.f32.mrb[0].mxu0
    %4461 = vmatprep.mubr.f32.mxu0 0.0
    %4462 = vmatmul.mubr.f32.gmra.mrb[0].mxu0 %v4390
    %v4463 = vpop.f32.mrb[0].mxu0
    %v4464 = vadd.f32 0.0, %v4463
    %v4465 = vpop.f32.mrb[0].mxu0
    %4466 = vdwg.mxu0
    %v4468 = vsel %vm743, %v3073, 0
    %v4471 = vsel %vm743, %v3075, 0
    %4473 = vmatprep.subr.mxu0 0.0
    %4474 = vmatpush1.msra.mxu0 %v692
    %4475 = vmatprep.subr.mxu0 0.0
    %4476 = vmatpush1.msra.mxu0 %v694
    %4477 = vmatprep.subr.mxu0 0.0
    %4478 = vmatpush1.msra.mxu0 0.0
    %4479 = vmatprep.subr.mxu0 0.0
    %4480 = vmatpush1.msra.mxu0 0.0
    %4481 = vmatprep.subr.mxu0 0.0
    %4482 = vmatpush1.msra.mxu0 0.0
    %4483 = vmatprep.subr.mxu0 0.0
    %4484 = vmatpush1.msra.mxu0 0.0
    %4485 = vmatprep.subr.mxu0 0.0
    %4486 = vmatpush1.msra.mxu0 0.0
    %4487 = vmatprep.subr.mxu0 0.0
    %4488 = vmatpush1.msra.mxu0 0.0
    %4489 = vmatprep.subr.mxu0 0.0
    %4490 = vmatpush1.msra.mxu0 0.0
    %4491 = vmatprep.subr.mxu0 0.0
    %4492 = vmatpush1.msra.mxu0 0.0
    %4493 = vmatprep.subr.mxu0 0.0
    %4494 = vmatpush1.msra.mxu0 0.0
    %4495 = vmatprep.subr.mxu0 0.0
    %4496 = vmatpush1.msra.mxu0 0.0
    %4497 = vmatprep.subr.mxu0 0.0
    %4498 = vmatpush1.msra.mxu0 0.0
    %4499 = vmatprep.subr.mxu0 0.0
    %4500 = vmatpush1.msra.mxu0 0.0
    %4501 = vmatprep.subr.mxu0 0.0
    %4502 = vmatpush1.msra.mxu0 0.0
    %4503 = vmatprep.subr.mxu0 0.0
    %4504 = vmatpush1.msra.mxu0 0.0
    %4505 = vmatprep.subr.mxu0 0.0
    %4506 = vmatpush1.msra.mxu0 0.0
    %4507 = vmatprep.subr.mxu0 0.0
    %4508 = vmatpush1.msra.mxu0 0.0
    %4509 = vmatprep.subr.mxu0 0.0
    %4510 = vmatpush1.msra.mxu0 0.0
    %4511 = vmatprep.subr.mxu0 0.0
    %4512 = vmatpush1.msra.mxu0 0.0
    %4513 = vmatprep.subr.mxu0 0.0
    %4514 = vmatpush1.msra.mxu0 0.0
    %4515 = vmatprep.subr.mxu0 0.0
    %4516 = vmatpush1.msra.mxu0 0.0
    %4517 = vmatprep.subr.mxu0 0.0
    %4518 = vmatpush1.msra.mxu0 0.0
    %4519 = vmatprep.subr.mxu0 0.0
    %4520 = vmatpush1.msra.mxu0 0.0
    %4521 = vmatprep.subr.mxu0 0.0
    %4522 = vmatpush1.msra.mxu0 0.0
    %4523 = vmatprep.subr.mxu0 0.0
    %4524 = vmatpush1.msra.mxu0 0.0
    %4525 = vmatprep.subr.mxu0 0.0
    %4526 = vmatpush1.msra.mxu0 0.0
    %4527 = vmatprep.subr.mxu0 0.0
    %4528 = vmatpush1.msra.mxu0 0.0
    %4529 = vmatprep.subr.mxu0 0.0
    %4530 = vmatpush1.msra.mxu0 0.0
    %4531 = vmatprep.subr.mxu0 0.0
    %4532 = vmatpush1.msra.mxu0 0.0
    %4533 = vmatprep.subr.mxu0 0.0
    %4534 = vmatpush1.msra.mxu0 0.0
    %4535 = vmatprep.subr.mxu0 0.0
    %4536 = vmatpush1.msra.mxu0 0.0
    %4537 = vmatprep.mubr.f32.mxu0 0.0
    %4538 = vmatmul.mubr.f32.gmra.mrb[0].mxu0 %v4468
    %v4539 = vpop.f32.mrb[0].mxu0
    %v4540 = vadd.f32 0.0, %v4539
    %v4541 = vpop.f32.mrb[0].mxu0
    %4542 = vmatprep.mubr.f32.mxu0 0.0
    %4543 = vmatmul.mubr.f32.gmra.mrb[0].mxu0 %v4471
    %v4544 = vpop.f32.mrb[0].mxu0
    %v4545 = vadd.f32 0.0, %v4544
    %v4546 = vpop.f32.mrb[0].mxu0
    %4547 = vdwg.mxu0
    %v4549 = vsel %vm743, %v3077, 0
    %v4552 = vsel %vm743, %v3079, 0
    %4554 = vmatprep.subr.mxu0 0.0
    %4555 = vmatpush1.msra.mxu0 %v445
    %4556 = vmatprep.subr.mxu0 0.0
    %4557 = vmatpush1.msra.mxu0 %v450
    %4558 = vmatprep.subr.mxu0 0.0
    %4559 = vmatpush1.msra.mxu0 0.0
    %4560 = vmatprep.subr.mxu0 0.0
    %4561 = vmatpush1.msra.mxu0 0.0
    %4562 = vmatprep.subr.mxu0 0.0
    %4563 = vmatpush1.msra.mxu0 0.0
    %4564 = vmatprep.subr.mxu0 0.0
    %4565 = vmatpush1.msra.mxu0 0.0
    %4566 = vmatprep.subr.mxu0 0.0
    %4567 = vmatpush1.msra.mxu0 0.0
    %4568 = vmatprep.subr.mxu0 0.0
    %4569 = vmatpush1.msra.mxu0 0.0
    %4570 = vmatprep.subr.mxu0 0.0
    %4571 = vmatpush1.msra.mxu0 0.0
    %4572 = vmatprep.subr.mxu0 0.0
    %4573 = vmatpush1.msra.mxu0 0.0
    %4574 = vmatprep.subr.mxu0 0.0
    %4575 = vmatpush1.msra.mxu0 0.0
    %4576 = vmatprep.subr.mxu0 0.0
    %4577 = vmatpush1.msra.mxu0 0.0
    %4578 = vmatprep.subr.mxu0 0.0
    %4579 = vmatpush1.msra.mxu0 0.0
    %4580 = vmatprep.subr.mxu0 0.0
    %4581 = vmatpush1.msra.mxu0 0.0
    %4582 = vmatprep.subr.mxu0 0.0
    %4583 = vmatpush1.msra.mxu0 0.0
    %4584 = vmatprep.subr.mxu0 0.0
    %4585 = vmatpush1.msra.mxu0 0.0
    %4586 = vmatprep.subr.mxu0 0.0
    %4587 = vmatpush1.msra.mxu0 0.0
    %4588 = vmatprep.subr.mxu0 0.0
    %4589 = vmatpush1.msra.mxu0 0.0
    %4590 = vmatprep.subr.mxu0 0.0
    %4591 = vmatpush1.msra.mxu0 0.0
    %4592 = vmatprep.subr.mxu0 0.0
    %4593 = vmatpush1.msra.mxu0 0.0
    %4594 = vmatprep.subr.mxu0 0.0
    %4595 = vmatpush1.msra.mxu0 0.0
    %4596 = vmatprep.subr.mxu0 0.0
    %4597 = vmatpush1.msra.mxu0 0.0
    %4598 = vmatprep.subr.mxu0 0.0
    %4599 = vmatpush1.msra.mxu0 0.0
    %4600 = vmatprep.subr.mxu0 0.0
    %4601 = vmatpush1.msra.mxu0 0.0
    %4602 = vmatprep.subr.mxu0 0.0
    %4603 = vmatpush1.msra.mxu0 0.0
    %4604 = vmatprep.subr.mxu0 0.0
    %4605 = vmatpush1.msra.mxu0 0.0
    %4606 = vmatprep.subr.mxu0 0.0
    %4607 = vmatpush1.msra.mxu0 0.0
    %4608 = vmatprep.subr.mxu0 0.0
    %4609 = vmatpush1.msra.mxu0 0.0
    %4610 = vmatprep.subr.mxu0 0.0
    %4611 = vmatpush1.msra.mxu0 0.0
    %4612 = vmatprep.subr.mxu0 0.0
    %4613 = vmatpush1.msra.mxu0 0.0
    %4614 = vmatprep.subr.mxu0 0.0
    %4615 = vmatpush1.msra.mxu0 0.0
    %4616 = vmatprep.subr.mxu0 0.0
    %4617 = vmatpush1.msra.mxu0 0.0
    %4618 = vmatprep.mubr.f32.mxu0 0.0
    %4619 = vmatmul.mubr.f32.gmra.mrb[0].mxu0 %v4549
    %v4620 = vpop.f32.mrb[0].mxu0
    %v4621 = vadd.f32 0.0, %v4620
    %v4622 = vpop.f32.mrb[0].mxu0
    %4623 = vmatprep.mubr.f32.mxu0 0.0
    %4624 = vmatmul.mubr.f32.gmra.mrb[0].mxu0 %v4552
    %v4625 = vpop.f32.mrb[0].mxu0
    %v4626 = vadd.f32 0.0, %v4625
    %v4627 = vpop.f32.mrb[0].mxu0
    %4628 = vdwg.mxu0
    %v4630 = vsel %vm743, %v3081, 0
    %v4633 = vsel %vm743, %v3083, 0
    %4635 = vmatprep.subr.mxu0 0.0
    %4636 = vmatpush1.msra.mxu0 %v455
    %4637 = vmatprep.subr.mxu0 0.0
    %4638 = vmatpush1.msra.mxu0 %v460
    %4639 = vmatprep.subr.mxu0 0.0
    %4640 = vmatpush1.msra.mxu0 0.0
    %4641 = vmatprep.subr.mxu0 0.0
    %4642 = vmatpush1.msra.mxu0 0.0
    %4643 = vmatprep.subr.mxu0 0.0
    %4644 = vmatpush1.msra.mxu0 0.0
    %4645 = vmatprep.subr.mxu0 0.0
    %4646 = vmatpush1.msra.mxu0 0.0
    %4647 = vmatprep.subr.mxu0 0.0
    %4648 = vmatpush1.msra.mxu0 0.0
    %4649 = vmatprep.subr.mxu0 0.0
    %4650 = vmatpush1.msra.mxu0 0.0
    %4651 = vmatprep.subr.mxu0 0.0
    %4652 = vmatpush1.msra.mxu0 0.0
    %4653 = vmatprep.subr.mxu0 0.0
    %4654 = vmatpush1.msra.mxu0 0.0
    %4655 = vmatprep.subr.mxu0 0.0
    %4656 = vmatpush1.msra.mxu0 0.0
    %4657 = vmatprep.subr.mxu0 0.0
    %4658 = vmatpush1.msra.mxu0 0.0
    %4659 = vmatprep.subr.mxu0 0.0
    %4660 = vmatpush1.msra.mxu0 0.0
    %4661 = vmatprep.subr.mxu0 0.0
    %4662 = vmatpush1.msra.mxu0 0.0
    %4663 = vmatprep.subr.mxu0 0.0
    %4664 = vmatpush1.msra.mxu0 0.0
    %4665 = vmatprep.subr.mxu0 0.0
    %4666 = vmatpush1.msra.mxu0 0.0
    %4667 = vmatprep.subr.mxu0 0.0
    %4668 = vmatpush1.msra.mxu0 0.0
    %4669 = vmatprep.subr.mxu0 0.0
    %4670 = vmatpush1.msra.mxu0 0.0
    %4671 = vmatprep.subr.mxu0 0.0
    %4672 = vmatpush1.msra.mxu0 0.0
    %4673 = vmatprep.subr.mxu0 0.0
    %4674 = vmatpush1.msra.mxu0 0.0
    %4675 = vmatprep.subr.mxu0 0.0
    %4676 = vmatpush1.msra.mxu0 0.0
    %4677 = vmatprep.subr.mxu0 0.0
    %4678 = vmatpush1.msra.mxu0 0.0
    %4679 = vmatprep.subr.mxu0 0.0
    %4680 = vmatpush1.msra.mxu0 0.0
    %4681 = vmatprep.subr.mxu0 0.0
    %4682 = vmatpush1.msra.mxu0 0.0
    %4683 = vmatprep.subr.mxu0 0.0
    %4684 = vmatpush1.msra.mxu0 0.0
    %4685 = vmatprep.subr.mxu0 0.0
    %4686 = vmatpush1.msra.mxu0 0.0
    %4687 = vmatprep.subr.mxu0 0.0
    %4688 = vmatpush1.msra.mxu0 0.0
    %4689 = vmatprep.subr.mxu0 0.0
    %4690 = vmatpush1.msra.mxu0 0.0
    %4691 = vmatprep.subr.mxu0 0.0
    %4692 = vmatpush1.msra.mxu0 0.0
    %4693 = vmatprep.subr.mxu0 0.0
    %4694 = vmatpush1.msra.mxu0 0.0
    %4695 = vmatprep.subr.mxu0 0.0
    %4696 = vmatpush1.msra.mxu0 0.0
    %4697 = vmatprep.subr.mxu0 0.0
    %4698 = vmatpush1.msra.mxu0 0.0
    %4699 = vmatprep.mubr.f32.mxu0 0.0
    %4700 = vmatmul.mubr.f32.gmra.mrb[0].mxu0 %v4630
    %v4701 = vpop.f32.mrb[0].mxu0
    %v4702 = vadd.f32 0.0, %v4701
    %v4703 = vpop.f32.mrb[0].mxu0
    %4704 = vmatprep.mubr.f32.mxu0 0.0
    %4705 = vmatmul.mubr.f32.gmra.mrb[0].mxu0 %v4633
    %v4706 = vpop.f32.mrb[0].mxu0
    %v4707 = vadd.f32 0.0, %v4706
    %v4708 = vpop.f32.mrb[0].mxu0
    %4709 = vdwg.mxu0
    %v4711 = vsel %vm743, %v3085, 0
    %v4714 = vsel %vm743, %v3087, 0
    %4716 = vmatprep.subr.mxu0 0.0
    %4717 = vmatpush1.msra.mxu0 %v704
    %4718 = vmatprep.subr.mxu0 0.0
    %4719 = vmatpush1.msra.mxu0 %v706
    %4720 = vmatprep.subr.mxu0 0.0
    %4721 = vmatpush1.msra.mxu0 0.0
    %4722 = vmatprep.subr.mxu0 0.0
    %4723 = vmatpush1.msra.mxu0 0.0
    %4724 = vmatprep.subr.mxu0 0.0
    %4725 = vmatpush1.msra.mxu0 0.0
    %4726 = vmatprep.subr.mxu0 0.0
    %4727 = vmatpush1.msra.mxu0 0.0
    %4728 = vmatprep.subr.mxu0 0.0
    %4729 = vmatpush1.msra.mxu0 0.0
    %4730 = vmatprep.subr.mxu0 0.0
    %4731 = vmatpush1.msra.mxu0 0.0
    %4732 = vmatprep.subr.mxu0 0.0
    %4733 = vmatpush1.msra.mxu0 0.0
    %4734 = vmatprep.subr.mxu0 0.0
    %4735 = vmatpush1.msra.mxu0 0.0
    %4736 = vmatprep.subr.mxu0 0.0
    %4737 = vmatpush1.msra.mxu0 0.0
    %4738 = vmatprep.subr.mxu0 0.0
    %4739 = vmatpush1.msra.mxu0 0.0
    %4740 = vmatprep.subr.mxu0 0.0
    %4741 = vmatpush1.msra.mxu0 0.0
    %4742 = vmatprep.subr.mxu0 0.0
    %4743 = vmatpush1.msra.mxu0 0.0
    %4744 = vmatprep.subr.mxu0 0.0
    %4745 = vmatpush1.msra.mxu0 0.0
    %4746 = vmatprep.subr.mxu0 0.0
    %4747 = vmatpush1.msra.mxu0 0.0
    %4748 = vmatprep.subr.mxu0 0.0
    %4749 = vmatpush1.msra.mxu0 0.0
    %4750 = vmatprep.subr.mxu0 0.0
    %4751 = vmatpush1.msra.mxu0 0.0
    %4752 = vmatprep.subr.mxu0 0.0
    %4753 = vmatpush1.msra.mxu0 0.0
    %4754 = vmatprep.subr.mxu0 0.0
    %4755 = vmatpush1.msra.mxu0 0.0
    %4756 = vmatprep.subr.mxu0 0.0
    %4757 = vmatpush1.msra.mxu0 0.0
    %4758 = vmatprep.subr.mxu0 0.0
    %4759 = vmatpush1.msra.mxu0 0.0
    %4760 = vmatprep.subr.mxu0 0.0
    %4761 = vmatpush1.msra.mxu0 0.0
    %4762 = vmatprep.subr.mxu0 0.0
    %4763 = vmatpush1.msra.mxu0 0.0
    %4764 = vmatprep.subr.mxu0 0.0
    %4765 = vmatpush1.msra.mxu0 0.0
    %4766 = vmatprep.subr.mxu0 0.0
    %4767 = vmatpush1.msra.mxu0 0.0
    %4768 = vmatprep.subr.mxu0 0.0
    %4769 = vmatpush1.msra.mxu0 0.0
    %4770 = vmatprep.subr.mxu0 0.0
    %4771 = vmatpush1.msra.mxu0 0.0
    %4772 = vmatprep.subr.mxu0 0.0
    %4773 = vmatpush1.msra.mxu0 0.0
    %4774 = vmatprep.subr.mxu0 0.0
    %4775 = vmatpush1.msra.mxu0 0.0
    %4776 = vmatprep.subr.mxu0 0.0
    %4777 = vmatpush1.msra.mxu0 0.0
    %4778 = vmatprep.subr.mxu0 0.0
    %4779 = vmatpush1.msra.mxu0 0.0
    %4780 = vmatprep.mubr.f32.mxu0 0.0
    %4781 = vmatmul.mubr.f32.gmra.mrb[0].mxu0 %v4711
    %v4782 = vpop.f32.mrb[0].mxu0
    %v4783 = vadd.f32 0.0, %v4782
    %v4784 = vpop.f32.mrb[0].mxu0
    %4785 = vmatprep.mubr.f32.mxu0 0.0
    %4786 = vmatmul.mubr.f32.gmra.mrb[0].mxu0 %v4714
    %v4787 = vpop.f32.mrb[0].mxu0
    %v4788 = vadd.f32 0.0, %v4787
    %v4789 = vpop.f32.mrb[0].mxu0
    %4790 = vdwg.mxu0
    %v4792 = vsel %vm743, %v3089, 0
    %v4795 = vsel %vm743, %v3091, 0
    %4797 = vmatprep.subr.mxu0 0.0
    %4798 = vmatpush1.msra.mxu0 %v708
    %4799 = vmatprep.subr.mxu0 0.0
    %4800 = vmatpush1.msra.mxu0 %v710
    %4801 = vmatprep.subr.mxu0 0.0
    %4802 = vmatpush1.msra.mxu0 0.0
    %4803 = vmatprep.subr.mxu0 0.0
    %4804 = vmatpush1.msra.mxu0 0.0
    %4805 = vmatprep.subr.mxu0 0.0
    %4806 = vmatpush1.msra.mxu0 0.0
    %4807 = vmatprep.subr.mxu0 0.0
    %4808 = vmatpush1.msra.mxu0 0.0
    %4809 = vmatprep.subr.mxu0 0.0
    %4810 = vmatpush1.msra.mxu0 0.0
    %4811 = vmatprep.subr.mxu0 0.0
    %4812 = vmatpush1.msra.mxu0 0.0
    %4813 = vmatprep.subr.mxu0 0.0
    %4814 = vmatpush1.msra.mxu0 0.0
    %4815 = vmatprep.subr.mxu0 0.0
    %4816 = vmatpush1.msra.mxu0 0.0
    %4817 = vmatprep.subr.mxu0 0.0
    %4818 = vmatpush1.msra.mxu0 0.0
    %4819 = vmatprep.subr.mxu0 0.0
    %4820 = vmatpush1.msra.mxu0 0.0
    %4821 = vmatprep.subr.mxu0 0.0
    %4822 = vmatpush1.msra.mxu0 0.0
    %4823 = vmatprep.subr.mxu0 0.0
    %4824 = vmatpush1.msra.mxu0 0.0
    %4825 = vmatprep.subr.mxu0 0.0
    %4826 = vmatpush1.msra.mxu0 0.0
    %4827 = vmatprep.subr.mxu0 0.0
    %4828 = vmatpush1.msra.mxu0 0.0
    %4829 = vmatprep.subr.mxu0 0.0
    %4830 = vmatpush1.msra.mxu0 0.0
    %4831 = vmatprep.subr.mxu0 0.0
    %4832 = vmatpush1.msra.mxu0 0.0
    %4833 = vmatprep.subr.mxu0 0.0
    %4834 = vmatpush1.msra.mxu0 0.0
    %4835 = vmatprep.subr.mxu0 0.0
    %4836 = vmatpush1.msra.mxu0 0.0
    %4837 = vmatprep.subr.mxu0 0.0
    %4838 = vmatpush1.msra.mxu0 0.0
    %4839 = vmatprep.subr.mxu0 0.0
    %4840 = vmatpush1.msra.mxu0 0.0
    %4841 = vmatprep.subr.mxu0 0.0
    %4842 = vmatpush1.msra.mxu0 0.0
    %4843 = vmatprep.subr.mxu0 0.0
    %4844 = vmatpush1.msra.mxu0 0.0
    %4845 = vmatprep.subr.mxu0 0.0
    %4846 = vmatpush1.msra.mxu0 0.0
    %4847 = vmatprep.subr.mxu0 0.0
    %4848 = vmatpush1.msra.mxu0 0.0
    %4849 = vmatprep.subr.mxu0 0.0
    %4850 = vmatpush1.msra.mxu0 0.0
    %4851 = vmatprep.subr.mxu0 0.0
    %4852 = vmatpush1.msra.mxu0 0.0
    %4853 = vmatprep.subr.mxu0 0.0
    %4854 = vmatpush1.msra.mxu0 0.0
    %4855 = vmatprep.subr.mxu0 0.0
    %4856 = vmatpush1.msra.mxu0 0.0
    %4857 = vmatprep.subr.mxu0 0.0
    %4858 = vmatpush1.msra.mxu0 0.0
    %4859 = vmatprep.subr.mxu0 0.0
    %4860 = vmatpush1.msra.mxu0 0.0
    %4861 = vmatprep.mubr.f32.mxu0 0.0
    %4862 = vmatmul.mubr.f32.gmra.mrb[0].mxu0 %v4792
    %v4863 = vpop.f32.mrb[0].mxu0
    %v4864 = vadd.f32 0.0, %v4863
    %v4865 = vpop.f32.mrb[0].mxu0
    %4866 = vmatprep.mubr.f32.mxu0 0.0
    %4867 = vmatmul.mubr.f32.gmra.mrb[0].mxu0 %v4795
    %v4868 = vpop.f32.mrb[0].mxu0
    %v4869 = vadd.f32 0.0, %v4868
    %v4870 = vpop.f32.mrb[0].mxu0
    %4871 = vdwg.mxu0
    %v4873 = vsel %vm743, %v3093, 0
    %v4876 = vsel %vm743, %v3095, 0
    %4878 = vmatprep.subr.mxu0 0.0
    %4879 = vmatpush1.msra.mxu0 %v716
    %4880 = vmatprep.subr.mxu0 0.0
    %4881 = vmatpush1.msra.mxu0 %v718
    %4882 = vmatprep.subr.mxu0 0.0
    %4883 = vmatpush1.msra.mxu0 0.0
    %4884 = vmatprep.subr.mxu0 0.0
    %4885 = vmatpush1.msra.mxu0 0.0
    %4886 = vmatprep.subr.mxu0 0.0
    %4887 = vmatpush1.msra.mxu0 0.0
    %4888 = vmatprep.subr.mxu0 0.0
    %4889 = vmatpush1.msra.mxu0 0.0
    %4890 = vmatprep.subr.mxu0 0.0
    %4891 = vmatpush1.msra.mxu0 0.0
    %4892 = vmatprep.subr.mxu0 0.0
    %4893 = vmatpush1.msra.mxu0 0.0
    %4894 = vmatprep.subr.mxu0 0.0
    %4895 = vmatpush1.msra.mxu0 0.0
    %4896 = vmatprep.subr.mxu0 0.0
    %4897 = vmatpush1.msra.mxu0 0.0
    %4898 = vmatprep.subr.mxu0 0.0
    %4899 = vmatpush1.msra.mxu0 0.0
    %4900 = vmatprep.subr.mxu0 0.0
    %4901 = vmatpush1.msra.mxu0 0.0
    %4902 = vmatprep.subr.mxu0 0.0
    %4903 = vmatpush1.msra.mxu0 0.0
    %4904 = vmatprep.subr.mxu0 0.0
    %4905 = vmatpush1.msra.mxu0 0.0
    %4906 = vmatprep.subr.mxu0 0.0
    %4907 = vmatpush1.msra.mxu0 0.0
    %4908 = vmatprep.subr.mxu0 0.0
    %4909 = vmatpush1.msra.mxu0 0.0
    %4910 = vmatprep.subr.mxu0 0.0
    %4911 = vmatpush1.msra.mxu0 0.0
    %4912 = vmatprep.subr.mxu0 0.0
    %4913 = vmatpush1.msra.mxu0 0.0
    %4914 = vmatprep.subr.mxu0 0.0
    %4915 = vmatpush1.msra.mxu0 0.0
    %4916 = vmatprep.subr.mxu0 0.0
    %4917 = vmatpush1.msra.mxu0 0.0
    %4918 = vmatprep.subr.mxu0 0.0
    %4919 = vmatpush1.msra.mxu0 0.0
    %4920 = vmatprep.subr.mxu0 0.0
    %4921 = vmatpush1.msra.mxu0 0.0
    %4922 = vmatprep.subr.mxu0 0.0
    %4923 = vmatpush1.msra.mxu0 0.0
    %4924 = vmatprep.subr.mxu0 0.0
    %4925 = vmatpush1.msra.mxu0 0.0
    %4926 = vmatprep.subr.mxu0 0.0
    %4927 = vmatpush1.msra.mxu0 0.0
    %4928 = vmatprep.subr.mxu0 0.0
    %4929 = vmatpush1.msra.mxu0 0.0
    %4930 = vmatprep.subr.mxu0 0.0
    %4931 = vmatpush1.msra.mxu0 0.0
    %4932 = vmatprep.subr.mxu0 0.0
    %4933 = vmatpush1.msra.mxu0 0.0
    %4934 = vmatprep.subr.mxu0 0.0
    %4935 = vmatpush1.msra.mxu0 0.0
    %4936 = vmatprep.subr.mxu0 0.0
    %4937 = vmatpush1.msra.mxu0 0.0
    %4938 = vmatprep.subr.mxu0 0.0
    %4939 = vmatpush1.msra.mxu0 0.0
    %4940 = vmatprep.subr.mxu0 0.0
    %4941 = vmatpush1.msra.mxu0 0.0
    %4942 = vmatprep.mubr.f32.mxu0 0.0
    %4943 = vmatmul.mubr.f32.gmra.mrb[0].mxu0 %v4873
    %v4944 = vpop.f32.mrb[0].mxu0
    %v4945 = vadd.f32 0.0, %v4944
    %v4946 = vpop.f32.mrb[0].mxu0
    %4947 = vmatprep.mubr.f32.mxu0 0.0
    %4948 = vmatmul.mubr.f32.gmra.mrb[0].mxu0 %v4876
    %v4949 = vpop.f32.mrb[0].mxu0
    %v4950 = vadd.f32 0.0, %v4949
    %v4951 = vpop.f32.mrb[0].mxu0
    %4952 = vdwg.mxu0
    %v4954 = vsel %vm743, %v3097, 0
    %v4957 = vsel %vm743, %v3099, 0
    %4959 = vmatprep.subr.mxu0 0.0
    %4960 = vmatpush1.msra.mxu0 %v720
    %4961 = vmatprep.subr.mxu0 0.0
    %4962 = vmatpush1.msra.mxu0 %v722
    %4963 = vmatprep.subr.mxu0 0.0
    %4964 = vmatpush1.msra.mxu0 0.0
    %4965 = vmatprep.subr.mxu0 0.0
    %4966 = vmatpush1.msra.mxu0 0.0
    %4967 = vmatprep.subr.mxu0 0.0
    %4968 = vmatpush1.msra.mxu0 0.0
    %4969 = vmatprep.subr.mxu0 0.0
    %4970 = vmatpush1.msra.mxu0 0.0
    %4971 = vmatprep.subr.mxu0 0.0
    %4972 = vmatpush1.msra.mxu0 0.0
    %4973 = vmatprep.subr.mxu0 0.0
    %4974 = vmatpush1.msra.mxu0 0.0
    %4975 = vmatprep.subr.mxu0 0.0
    %4976 = vmatpush1.msra.mxu0 0.0
    %4977 = vmatprep.subr.mxu0 0.0
    %4978 = vmatpush1.msra.mxu0 0.0
    %4979 = vmatprep.subr.mxu0 0.0
    %4980 = vmatpush1.msra.mxu0 0.0
    %4981 = vmatprep.subr.mxu0 0.0
    %4982 = vmatpush1.msra.mxu0 0.0
    %4983 = vmatprep.subr.mxu0 0.0
    %4984 = vmatpush1.msra.mxu0 0.0
    %4985 = vmatprep.subr.mxu0 0.0
    %4986 = vmatpush1.msra.mxu0 0.0
    %4987 = vmatprep.subr.mxu0 0.0
    %4988 = vmatpush1.msra.mxu0 0.0
    %4989 = vmatprep.subr.mxu0 0.0
    %4990 = vmatpush1.msra.mxu0 0.0
    %4991 = vmatprep.subr.mxu0 0.0
    %4992 = vmatpush1.msra.mxu0 0.0
    %4993 = vmatprep.subr.mxu0 0.0
    %4994 = vmatpush1.msra.mxu0 0.0
    %4995 = vmatprep.subr.mxu0 0.0
    %4996 = vmatpush1.msra.mxu0 0.0
    %4997 = vmatprep.subr.mxu0 0.0
    %4998 = vmatpush1.msra.mxu0 0.0
    %4999 = vmatprep.subr.mxu0 0.0
    %5000 = vmatpush1.msra.mxu0 0.0
    %5001 = vmatprep.subr.mxu0 0.0
    %5002 = vmatpush1.msra.mxu0 0.0
    %5003 = vmatprep.subr.mxu0 0.0
    %5004 = vmatpush1.msra.mxu0 0.0
    %5005 = vmatprep.subr.mxu0 0.0
    %5006 = vmatpush1.msra.mxu0 0.0
    %5007 = vmatprep.subr.mxu0 0.0
    %5008 = vmatpush1.msra.mxu0 0.0
    %5009 = vmatprep.subr.mxu0 0.0
    %5010 = vmatpush1.msra.mxu0 0.0
    %5011 = vmatprep.subr.mxu0 0.0
    %5012 = vmatpush1.msra.mxu0 0.0
    %5013 = vmatprep.subr.mxu0 0.0
    %5014 = vmatpush1.msra.mxu0 0.0
    %5015 = vmatprep.subr.mxu0 0.0
    %5016 = vmatpush1.msra.mxu0 0.0
    %5017 = vmatprep.subr.mxu0 0.0
    %5018 = vmatpush1.msra.mxu0 0.0
    %5019 = vmatprep.subr.mxu0 0.0
    %5020 = vmatpush1.msra.mxu0 0.0
    %5021 = vmatprep.subr.mxu0 0.0
    %5022 = vmatpush1.msra.mxu0 0.0
    %5023 = vmatprep.mubr.f32.mxu0 0.0
    %5024 = vmatmul.mubr.f32.gmra.mrb[0].mxu0 %v4954
    %v5025 = vpop.f32.mrb[0].mxu0
    %v5026 = vadd.f32 0.0, %v5025
    %v5027 = vpop.f32.mrb[0].mxu0
    %5028 = vmatprep.mubr.f32.mxu0 0.0
    %5029 = vmatmul.mubr.f32.gmra.mrb[0].mxu0 %v4957
    %v5030 = vpop.f32.mrb[0].mxu0
    %v5031 = vadd.f32 0.0, %v5030
    %v5032 = vpop.f32.mrb[0].mxu0
    %5033 = vdwg.mxu0
    %v5035 = vsel %vm743, %v3101, 0
    %v5038 = vsel %vm743, %v3103, 0
    %5040 = vmatprep.subr.mxu0 0.0
    %5041 = vmatpush1.msra.mxu0 %v728
    %5042 = vmatprep.subr.mxu0 0.0
    %5043 = vmatpush1.msra.mxu0 %v730
    %5044 = vmatprep.subr.mxu0 0.0
    %5045 = vmatpush1.msra.mxu0 0.0
    %5046 = vmatprep.subr.mxu0 0.0
    %5047 = vmatpush1.msra.mxu0 0.0
    %5048 = vmatprep.subr.mxu0 0.0
    %5049 = vmatpush1.msra.mxu0 0.0
    %5050 = vmatprep.subr.mxu0 0.0
    %5051 = vmatpush1.msra.mxu0 0.0
    %5052 = vmatprep.subr.mxu0 0.0
    %5053 = vmatpush1.msra.mxu0 0.0
    %5054 = vmatprep.subr.mxu0 0.0
    %5055 = vmatpush1.msra.mxu0 0.0
    %5056 = vmatprep.subr.mxu0 0.0
    %5057 = vmatpush1.msra.mxu0 0.0
    %5058 = vmatprep.subr.mxu0 0.0
    %5059 = vmatpush1.msra.mxu0 0.0
    %5060 = vmatprep.subr.mxu0 0.0
    %5061 = vmatpush1.msra.mxu0 0.0
    %5062 = vmatprep.subr.mxu0 0.0
    %5063 = vmatpush1.msra.mxu0 0.0
    %5064 = vmatprep.subr.mxu0 0.0
    %5065 = vmatpush1.msra.mxu0 0.0
    %5066 = vmatprep.subr.mxu0 0.0
    %5067 = vmatpush1.msra.mxu0 0.0
    %5068 = vmatprep.subr.mxu0 0.0
    %5069 = vmatpush1.msra.mxu0 0.0
    %5070 = vmatprep.subr.mxu0 0.0
    %5071 = vmatpush1.msra.mxu0 0.0
    %5072 = vmatprep.subr.mxu0 0.0
    %5073 = vmatpush1.msra.mxu0 0.0
    %5074 = vmatprep.subr.mxu0 0.0
    %5075 = vmatpush1.msra.mxu0 0.0
    %5076 = vmatprep.subr.mxu0 0.0
    %5077 = vmatpush1.msra.mxu0 0.0
    %5078 = vmatprep.subr.mxu0 0.0
    %5079 = vmatpush1.msra.mxu0 0.0
    %5080 = vmatprep.subr.mxu0 0.0
    %5081 = vmatpush1.msra.mxu0 0.0
    %5082 = vmatprep.subr.mxu0 0.0
    %5083 = vmatpush1.msra.mxu0 0.0
    %5084 = vmatprep.subr.mxu0 0.0
    %5085 = vmatpush1.msra.mxu0 0.0
    %5086 = vmatprep.subr.mxu0 0.0
    %5087 = vmatpush1.msra.mxu0 0.0
    %5088 = vmatprep.subr.mxu0 0.0
    %5089 = vmatpush1.msra.mxu0 0.0
    %5090 = vmatprep.subr.mxu0 0.0
    %5091 = vmatpush1.msra.mxu0 0.0
    %5092 = vmatprep.subr.mxu0 0.0
    %5093 = vmatpush1.msra.mxu0 0.0
    %5094 = vmatprep.subr.mxu0 0.0
    %5095 = vmatpush1.msra.mxu0 0.0
    %5096 = vmatprep.subr.mxu0 0.0
    %5097 = vmatpush1.msra.mxu0 0.0
    %5098 = vmatprep.subr.mxu0 0.0
    %5099 = vmatpush1.msra.mxu0 0.0
    %5100 = vmatprep.subr.mxu0 0.0
    %5101 = vmatpush1.msra.mxu0 0.0
    %5102 = vmatprep.subr.mxu0 0.0
    %5103 = vmatpush1.msra.mxu0 0.0
    %5104 = vmatprep.mubr.f32.mxu0 0.0
    %5105 = vmatmul.mubr.f32.gmra.mrb[0].mxu0 %v5035
    %v5106 = vpop.f32.mrb[0].mxu0
    %v5107 = vadd.f32 0.0, %v5106
    %v5108 = vpop.f32.mrb[0].mxu0
    %5109 = vmatprep.mubr.f32.mxu0 0.0
    %5110 = vmatmul.mubr.f32.gmra.mrb[0].mxu0 %v5038
    %v5111 = vpop.f32.mrb[0].mxu0
    %v5112 = vadd.f32 0.0, %v5111
    %v5113 = vpop.f32.mrb[0].mxu0
    %5114 = vdwg.mxu0
    %v5116 = vsel %vm743, %v3105, 0
    %v5119 = vsel %vm743, %v3107, 0
    %5121 = vmatprep.subr.mxu0 0.0
    %5122 = vmatpush1.msra.mxu0 %v732
    %5123 = vmatprep.subr.mxu0 0.0
    %5124 = vmatpush1.msra.mxu0 %v734
    %5125 = vmatprep.subr.mxu0 0.0
    %5126 = vmatpush1.msra.mxu0 0.0
    %5127 = vmatprep.subr.mxu0 0.0
    %5128 = vmatpush1.msra.mxu0 0.0
    %5129 = vmatprep.subr.mxu0 0.0
    %5130 = vmatpush1.msra.mxu0 0.0
    %5131 = vmatprep.subr.mxu0 0.0
    %5132 = vmatpush1.msra.mxu0 0.0
    %5133 = vmatprep.subr.mxu0 0.0
    %5134 = vmatpush1.msra.mxu0 0.0
    %5135 = vmatprep.subr.mxu0 0.0
    %5136 = vmatpush1.msra.mxu0 0.0
    %5137 = vmatprep.subr.mxu0 0.0
    %5138 = vmatpush1.msra.mxu0 0.0
    %5139 = vmatprep.subr.mxu0 0.0
    %5140 = vmatpush1.msra.mxu0 0.0
    %5141 = vmatprep.subr.mxu0 0.0
    %5142 = vmatpush1.msra.mxu0 0.0
    %5143 = vmatprep.subr.mxu0 0.0
    %5144 = vmatpush1.msra.mxu0 0.0
    %5145 = vmatprep.subr.mxu0 0.0
    %5146 = vmatpush1.msra.mxu0 0.0
    %5147 = vmatprep.subr.mxu0 0.0
    %5148 = vmatpush1.msra.mxu0 0.0
    %5149 = vmatprep.subr.mxu0 0.0
    %5150 = vmatpush1.msra.mxu0 0.0
    %5151 = vmatprep.subr.mxu0 0.0
    %5152 = vmatpush1.msra.mxu0 0.0
    %5153 = vmatprep.subr.mxu0 0.0
    %5154 = vmatpush1.msra.mxu0 0.0
    %5155 = vmatprep.subr.mxu0 0.0
    %5156 = vmatpush1.msra.mxu0 0.0
    %5157 = vmatprep.subr.mxu0 0.0
    %5158 = vmatpush1.msra.mxu0 0.0
    %5159 = vmatprep.subr.mxu0 0.0
    %5160 = vmatpush1.msra.mxu0 0.0
    %5161 = vmatprep.subr.mxu0 0.0
    %5162 = vmatpush1.msra.mxu0 0.0
    %5163 = vmatprep.subr.mxu0 0.0
    %5164 = vmatpush1.msra.mxu0 0.0
    %5165 = vmatprep.subr.mxu0 0.0
    %5166 = vmatpush1.msra.mxu0 0.0
    %5167 = vmatprep.subr.mxu0 0.0
    %5168 = vmatpush1.msra.mxu0 0.0
    %5169 = vmatprep.subr.mxu0 0.0
    %5170 = vmatpush1.msra.mxu0 0.0
    %5171 = vmatprep.subr.mxu0 0.0
    %5172 = vmatpush1.msra.mxu0 0.0
    %5173 = vmatprep.subr.mxu0 0.0
    %5174 = vmatpush1.msra.mxu0 0.0
    %5175 = vmatprep.subr.mxu0 0.0
    %5176 = vmatpush1.msra.mxu0 0.0
    %5177 = vmatprep.subr.mxu0 0.0
    %5178 = vmatpush1.msra.mxu0 0.0
    %5179 = vmatprep.subr.mxu0 0.0
    %5180 = vmatpush1.msra.mxu0 0.0
    %5181 = vmatprep.subr.mxu0 0.0
    %5182 = vmatpush1.msra.mxu0 0.0
    %5183 = vmatprep.subr.mxu0 0.0
    %5184 = vmatpush1.msra.mxu0 0.0
    %5185 = vmatprep.mubr.f32.mxu0 0.0
    %5186 = vmatmul.mubr.f32.gmra.mrb[0].mxu0 %v5116
    %v5187 = vpop.f32.mrb[0].mxu0
    %v5188 = vadd.f32 0.0, %v5187
    %v5189 = vpop.f32.mrb[0].mxu0
    %5190 = vmatprep.mubr.f32.mxu0 0.0
    %5191 = vmatmul.mubr.f32.gmra.mrb[0].mxu0 %v5119
    %v5192 = vpop.f32.mrb[0].mxu0
    %v5193 = vadd.f32 0.0, %v5192
    %v5194 = vpop.f32.mrb[0].mxu0
    %5195 = vdwg.mxu0
    %v5196 = vrcp.pop %v3110
    %v5197 = vrcp.pop %v3113
    %v5198 = vrcp.pop %v3116
    %v5199 = vrcp.pop %v3119
    %v5200 = vrcp.pop %v3122
    %v5201 = vrcp.pop %v3125
    %v5202 = vrcp.pop %v3128
    %v5203 = vrcp.pop %v3131
    %v5204 = vrcp.pop %v3134
    %v5205 = vrcp.pop %v3137
    %v5206 = vrcp.pop %v3140
    %v5207 = vrcp.pop %v3143
    %v5208 = vrcp.pop %v3146
    %v5209 = vrcp.pop %v3149
    %v5210 = vrcp.pop %v3152
    %v5211 = vrcp.pop %v3155
    %v5212 = vrcp.pop %v3158
    %v5213 = vrcp.pop %v3161
    %v5214 = vrcp.pop %v3164
    %v5215 = vrcp.pop %v3167
    %v5216 = vrcp.pop %v3170
    %v5217 = vrcp.pop %v3173
    %v5218 = vrcp.pop %v3176
    %v5219 = vrcp.pop %v3179
    %v5220 = vrcp.pop %v3182
    %v5221 = vrcp.pop %v3185
    %v5222 = vrcp.pop %v3188
    %v5223 = vrcp.pop %v3191
    %v5224 = vrcp.pop %v3194
    %v5225 = vrcp.pop %v3197
    %v5226 = vrcp.pop %v3200
    %v5227 = vrcp.pop %v3203
    %v5228 = vrcp.pop %v3206
    %v5229 = vrcp.pop %v3209
    %v5230 = vrcp.pop %v3212
    %v5231 = vrcp.pop %v3215
    %v5232 = vrcp.pop %v3218
    %v5233 = vrcp.pop %v3221
    %v5234 = vrcp.pop %v3224
    %v5235 = vrcp.pop %v3227
    %v5236 = vrcp.pop %v3230
    %v5237 = vrcp.pop %v3233
    %v5238 = vrcp.pop %v3236
    %v5239 = vrcp.pop %v3239
    %v5240 = vrcp.pop %v3242
    %v5241 = vrcp.pop %v3245
    %v5242 = vrcp.pop %v3248
    %v5243 = vrcp.pop %v3251
    %v5244 = vmul.f32 %v3325, %v5196
    %v5245 = vmul.f32 %v3330, %v5197
    %v5246 = vmul.f32 %v3406, %v5198
    %v5247 = vmul.f32 %v3411, %v5199
    %v5248 = vmul.f32 %v3487, %v5200
    %v5249 = vmul.f32 %v3492, %v5201
    %v5250 = vmul.f32 %v3568, %v5202
    %v5251 = vmul.f32 %v3573, %v5203
    %v5252 = vmul.f32 %v3649, %v5204
    %v5253 = vmul.f32 %v3654, %v5205
    %v5254 = vmul.f32 %v3730, %v5206
    %v5255 = vmul.f32 %v3735, %v5207
    %v5256 = vmul.f32 %v3811, %v5208
    %v5257 = vmul.f32 %v3816, %v5209
    %v5258 = vmul.f32 %v3892, %v5210
    %v5259 = vmul.f32 %v3897, %v5211
    %v5260 = vmul.f32 %v3973, %v5212
    %v5261 = vmul.f32 %v3978, %v5213
    %v5262 = vmul.f32 %v4054, %v5214
    %v5263 = vmul.f32 %v4059, %v5215
    %v5264 = vmul.f32 %v4135, %v5216
    %v5265 = vmul.f32 %v4140, %v5217
    %v5266 = vmul.f32 %v4216, %v5218
    %v5267 = vmul.f32 %v4221, %v5219
    %v5268 = vmul.f32 %v4297, %v5220
    %v5269 = vmul.f32 %v4302, %v5221
    %v5270 = vmul.f32 %v4378, %v5222
    %v5271 = vmul.f32 %v4383, %v5223
    %v5272 = vmul.f32 %v4459, %v5224
    %v5273 = vmul.f32 %v4464, %v5225
    %v5274 = vmul.f32 %v4540, %v5226
    %v5275 = vmul.f32 %v4545, %v5227
    %v5276 = vmul.f32 %v4621, %v5228
    %v5277 = vmul.f32 %v4626, %v5229
    %v5278 = vmul.f32 %v4702, %v5230
    %v5279 = vmul.f32 %v4707, %v5231
    %v5280 = vmul.f32 %v4783, %v5232
    %v5281 = vmul.f32 %v4788, %v5233
    %v5282 = vmul.f32 %v4864, %v5234
    %v5283 = vmul.f32 %v4869, %v5235
    %v5284 = vmul.f32 %v4945, %v5236
    %v5285 = vmul.f32 %v4950, %v5237
    %v5286 = vmul.f32 %v5026, %v5238
    %v5287 = vmul.f32 %v5031, %v5239
    %v5288 = vmul.f32 %v5107, %v5240
    %v5289 = vmul.f32 %v5112, %v5241
    %v5290 = vmul.f32 %v5188, %v5242
    %v5291 = vmul.f32 %v5193, %v5243
    %v5292 = vld [vmem:[#allocation7] sm:$0xff]
    %v5293 = vld [vmem:[#allocation7 + $0x8] sm:$0xff]
    %v5294 = vld [vmem:[#allocation7 + $0x10] sm:$0xff]
    %v5295 = vld [vmem:[#allocation7 + $0x18] sm:$0xff]
    %v5296 = vld [vmem:[#allocation7 + $0x20] sm:$0xff]
    %v5297 = vld [vmem:[#allocation7 + $0x28] sm:$0xff]
    %v5298 = vld [vmem:[#allocation7 + $0x30] sm:$0xff]
    %v5299 = vld [vmem:[#allocation7 + $0x38] sm:$0xff]
    %v5300 = vld [vmem:[#allocation7 + $0x40] sm:$0xff]
    %v5301 = vld [vmem:[#allocation7 + $0x48] sm:$0xff]
    %v5302 = vld [vmem:[#allocation7 + $0x50] sm:$0xff]
    %v5303 = vld [vmem:[#allocation7 + $0x58] sm:$0xff]
    %v5304 = vld [vmem:[#allocation7 + $0x60] sm:$0xff]
    %v5305 = vld [vmem:[#allocation7 + $0x68] sm:$0xff]
    %v5306 = vld [vmem:[#allocation7 + $0x70] sm:$0xff]
    %v5307 = vld [vmem:[#allocation7 + $0x78] sm:$0xff]
    %v5308 = vld [vmem:[#allocation7 + $0x80] sm:$0xff]
    %v5309 = vld [vmem:[#allocation7 + $0x88] sm:$0xff]
    %v5310 = vld [vmem:[#allocation7 + $0x90] sm:$0xff]
    %v5311 = vld [vmem:[#allocation7 + $0x98] sm:$0xff]
    %v5312 = vld [vmem:[#allocation7 + $0xa0] sm:$0xff]
    %v5313 = vld [vmem:[#allocation7 + $0xa8] sm:$0xff]
    %v5314 = vld [vmem:[#allocation7 + $0xb0] sm:$0xff]
    %v5315 = vld [vmem:[#allocation7 + $0xb8] sm:$0xff]
    %v5316 = vld [vmem:[#allocation7 + $0xc0] sm:$0xff]
    %v5317 = vld [vmem:[#allocation7 + $0xc8] sm:$0xff]
    %v5318 = vld [vmem:[#allocation7 + $0xd0] sm:$0xff]
    %v5319 = vld [vmem:[#allocation7 + $0xd8] sm:$0xff]
    %v5320 = vld [vmem:[#allocation7 + $0xe0] sm:$0xff]
    %v5321 = vld [vmem:[#allocation7 + $0xe8] sm:$0xff]
    %v5322 = vld [vmem:[#allocation7 + $0xf0] sm:$0xff]
    %v5323 = vld [vmem:[#allocation7 + $0xf8] sm:$0xff]
    %v5324 = vld [vmem:[#allocation7 + $0x100] sm:$0xff]
    %v5325 = vld [vmem:[#allocation7 + $0x108] sm:$0xff]
    %v5326 = vld [vmem:[#allocation7 + $0x110] sm:$0xff]
    %v5327 = vld [vmem:[#allocation7 + $0x118] sm:$0xff]
    %v5328 = vld [vmem:[#allocation7 + $0x120] sm:$0xff]
    %v5329 = vld [vmem:[#allocation7 + $0x128] sm:$0xff]
    %v5330 = vld [vmem:[#allocation7 + $0x130] sm:$0xff]
    %v5331 = vld [vmem:[#allocation7 + $0x138] sm:$0xff]
    %v5332 = vld [vmem:[#allocation7 + $0x140] sm:$0xff]
    %v5333 = vld [vmem:[#allocation7 + $0x148] sm:$0xff]
    %v5334 = vld [vmem:[#allocation7 + $0x150] sm:$0xff]
    %v5335 = vld [vmem:[#allocation7 + $0x158] sm:$0xff]
    %v5336 = vld [vmem:[#allocation7 + $0x160] sm:$0xff]
    %v5337 = vld [vmem:[#allocation7 + $0x168] sm:$0xff]
    %v5338 = vld [vmem:[#allocation7 + $0x170] sm:$0xff]
    %v5339 = vld [vmem:[#allocation7 + $0x178] sm:$0xff]
    %v5341 = vsel %vm743, %v5244, 0
    %v5344 = vsel %vm743, %v5245, 0
    %v5347 = vsel %vm743, %v5246, 0
    %v5350 = vsel %vm743, %v5247, 0
    %5352 = vmatprep.subr.mxu0 %v5293
    %5353 = vmatpush1.msra.mxu0 %v5292
    %5354 = vmatprep.subr.mxu0 %v5295
    %5355 = vmatpush1.msra.mxu0 %v5294
    %5356 = vmatprep.subr.mxu0 0.0
    %5357 = vmatpush1.msra.mxu0 0.0
    %5358 = vmatprep.subr.mxu0 0.0
    %5359 = vmatpush1.msra.mxu0 0.0
    %5360 = vmatprep.subr.mxu0 0.0
    %5361 = vmatpush1.msra.mxu0 0.0
    %5362 = vmatprep.subr.mxu0 0.0
    %5363 = vmatpush1.msra.mxu0 0.0
    %5364 = vmatprep.subr.mxu0 0.0
    %5365 = vmatpush1.msra.mxu0 0.0
    %5366 = vmatprep.subr.mxu0 0.0
    %5367 = vmatpush1.msra.mxu0 0.0
    %5368 = vmatprep.subr.mxu0 0.0
    %5369 = vmatpush1.msra.mxu0 0.0
    %5370 = vmatprep.subr.mxu0 0.0
    %5371 = vmatpush1.msra.mxu0 0.0
    %5372 = vmatprep.subr.mxu0 0.0
    %5373 = vmatpush1.msra.mxu0 0.0
    %5374 = vmatprep.subr.mxu0 0.0
    %5375 = vmatpush1.msra.mxu0 0.0
    %5376 = vmatprep.subr.mxu0 0.0
    %5377 = vmatpush1.msra.mxu0 0.0
    %5378 = vmatprep.subr.mxu0 0.0
    %5379 = vmatpush1.msra.mxu0 0.0
    %5380 = vmatprep.subr.mxu0 0.0
    %5381 = vmatpush1.msra.mxu0 0.0
    %5382 = vmatprep.subr.mxu0 0.0
    %5383 = vmatpush1.msra.mxu0 0.0
    %5384 = vmatprep.subr.mxu0 0.0
    %5385 = vmatpush1.msra.mxu0 0.0
    %5386 = vmatprep.subr.mxu0 0.0
    %5387 = vmatpush1.msra.mxu0 0.0
    %5388 = vmatprep.subr.mxu0 0.0
    %5389 = vmatpush1.msra.mxu0 0.0
    %5390 = vmatprep.subr.mxu0 0.0
    %5391 = vmatpush1.msra.mxu0 0.0
    %5392 = vmatprep.subr.mxu0 0.0
    %5393 = vmatpush1.msra.mxu0 0.0
    %5394 = vmatprep.subr.mxu0 0.0
    %5395 = vmatpush1.msra.mxu0 0.0
    %5396 = vmatprep.subr.mxu0 0.0
    %5397 = vmatpush1.msra.mxu0 0.0
    %5398 = vmatprep.subr.mxu0 0.0
    %5399 = vmatpush1.msra.mxu0 0.0
    %5400 = vmatprep.subr.mxu0 0.0
    %5401 = vmatpush1.msra.mxu0 0.0
    %5402 = vmatprep.subr.mxu0 0.0
    %5403 = vmatpush1.msra.mxu0 0.0
    %5404 = vmatprep.subr.mxu0 0.0
    %5405 = vmatpush1.msra.mxu0 0.0
    %5406 = vmatprep.subr.mxu0 0.0
    %5407 = vmatpush1.msra.mxu0 0.0
    %5408 = vmatprep.subr.mxu0 0.0
    %5409 = vmatpush1.msra.mxu0 0.0
    %5410 = vmatprep.subr.mxu0 0.0
    %5411 = vmatpush1.msra.mxu0 0.0
    %5412 = vmatprep.subr.mxu0 0.0
    %5413 = vmatpush1.msra.mxu0 0.0
    %5414 = vmatprep.subr.mxu0 0.0
    %5415 = vmatpush1.msra.mxu0 0.0
    %5416 = vmatprep.mubr.f32.mxu0 0.0
    %5417 = vmatmul.mubr.f32.gmra.mrb[0].mxu0 %v5341
    %v5418 = vpop.f32.mrb[0].mxu0
    %v5419 = vadd.f32 0.0, %v5418
    %v5420 = vpop.f32.mrb[0].mxu0
    %v5421 = vadd.f32 0.0, %v5420
    %5422 = vmatprep.mubr.f32.mxu0 0.0
    %5423 = vmatmul.mubr.f32.gmra.mrb[0].mxu0 %v5344
    %v5424 = vpop.f32.mrb[0].mxu0
    %v5425 = vadd.f32 0.0, %v5424
    %v5426 = vpop.f32.mrb[0].mxu0
    %v5427 = vadd.f32 0.0, %v5426
    %5428 = vmatprep.mubr.f32.mxu0 0.0
    %5429 = vmatmul.mubr.f32.gmra.mrb[0].mxu0 %v5347
    %v5430 = vpop.f32.mrb[0].mxu0
    %v5431 = vadd.f32 0.0, %v5430
    %v5432 = vpop.f32.mrb[0].mxu0
    %v5433 = vadd.f32 0.0, %v5432
    %5434 = vmatprep.mubr.f32.mxu0 0.0
    %5435 = vmatmul.mubr.f32.gmra.mrb[0].mxu0 %v5350
    %v5436 = vpop.f32.mrb[0].mxu0
    %v5437 = vadd.f32 0.0, %v5436
    %v5438 = vpop.f32.mrb[0].mxu0
    %v5439 = vadd.f32 0.0, %v5438
    %5440 = vdwg.mxu0
    %v5442 = vsel %vm743, %v5248, 0
    %v5445 = vsel %vm743, %v5249, 0
    %v5448 = vsel %vm743, %v5250, 0
    %v5451 = vsel %vm743, %v5251, 0
    %5453 = vmatprep.subr.mxu0 %v5297
    %5454 = vmatpush1.msra.mxu0 %v5296
    %5455 = vmatprep.subr.mxu0 %v5299
    %5456 = vmatpush1.msra.mxu0 %v5298
    %5457 = vmatprep.subr.mxu0 0.0
    %5458 = vmatpush1.msra.mxu0 0.0
    %5459 = vmatprep.subr.mxu0 0.0
    %5460 = vmatpush1.msra.mxu0 0.0
    %5461 = vmatprep.subr.mxu0 0.0
    %5462 = vmatpush1.msra.mxu0 0.0
    %5463 = vmatprep.subr.mxu0 0.0
    %5464 = vmatpush1.msra.mxu0 0.0
    %5465 = vmatprep.subr.mxu0 0.0
    %5466 = vmatpush1.msra.mxu0 0.0
    %5467 = vmatprep.subr.mxu0 0.0
    %5468 = vmatpush1.msra.mxu0 0.0
    %5469 = vmatprep.subr.mxu0 0.0
    %5470 = vmatpush1.msra.mxu0 0.0
    %5471 = vmatprep.subr.mxu0 0.0
    %5472 = vmatpush1.msra.mxu0 0.0
    %5473 = vmatprep.subr.mxu0 0.0
    %5474 = vmatpush1.msra.mxu0 0.0
    %5475 = vmatprep.subr.mxu0 0.0
    %5476 = vmatpush1.msra.mxu0 0.0
    %5477 = vmatprep.subr.mxu0 0.0
    %5478 = vmatpush1.msra.mxu0 0.0
    %5479 = vmatprep.subr.mxu0 0.0
    %5480 = vmatpush1.msra.mxu0 0.0
    %5481 = vmatprep.subr.mxu0 0.0
    %5482 = vmatpush1.msra.mxu0 0.0
    %5483 = vmatprep.subr.mxu0 0.0
    %5484 = vmatpush1.msra.mxu0 0.0
    %5485 = vmatprep.subr.mxu0 0.0
    %5486 = vmatpush1.msra.mxu0 0.0
    %5487 = vmatprep.subr.mxu0 0.0
    %5488 = vmatpush1.msra.mxu0 0.0
    %5489 = vmatprep.subr.mxu0 0.0
    %5490 = vmatpush1.msra.mxu0 0.0
    %5491 = vmatprep.subr.mxu0 0.0
    %5492 = vmatpush1.msra.mxu0 0.0
    %5493 = vmatprep.subr.mxu0 0.0
    %5494 = vmatpush1.msra.mxu0 0.0
    %5495 = vmatprep.subr.mxu0 0.0
    %5496 = vmatpush1.msra.mxu0 0.0
    %5497 = vmatprep.subr.mxu0 0.0
    %5498 = vmatpush1.msra.mxu0 0.0
    %5499 = vmatprep.subr.mxu0 0.0
    %5500 = vmatpush1.msra.mxu0 0.0
    %5501 = vmatprep.subr.mxu0 0.0
    %5502 = vmatpush1.msra.mxu0 0.0
    %5503 = vmatprep.subr.mxu0 0.0
    %5504 = vmatpush1.msra.mxu0 0.0
    %5505 = vmatprep.subr.mxu0 0.0
    %5506 = vmatpush1.msra.mxu0 0.0
    %5507 = vmatprep.subr.mxu0 0.0
    %5508 = vmatpush1.msra.mxu0 0.0
    %5509 = vmatprep.subr.mxu0 0.0
    %5510 = vmatpush1.msra.mxu0 0.0
    %5511 = vmatprep.subr.mxu0 0.0
    %5512 = vmatpush1.msra.mxu0 0.0
    %5513 = vmatprep.subr.mxu0 0.0
    %5514 = vmatpush1.msra.mxu0 0.0
    %5515 = vmatprep.subr.mxu0 0.0
    %5516 = vmatpush1.msra.mxu0 0.0
    %5517 = vmatprep.mubr.f32.mxu0 0.0
    %5518 = vmatmul.mubr.f32.gmra.mrb[0].mxu0 %v5442
    %v5519 = vpop.f32.mrb[0].mxu0
    %v5520 = vadd.f32 0.0, %v5519
    %v5521 = vpop.f32.mrb[0].mxu0
    %v5522 = vadd.f32 0.0, %v5521
    %5523 = vmatprep.mubr.f32.mxu0 0.0
    %5524 = vmatmul.mubr.f32.gmra.mrb[0].mxu0 %v5445
    %v5525 = vpop.f32.mrb[0].mxu0
    %v5526 = vadd.f32 0.0, %v5525
    %v5527 = vpop.f32.mrb[0].mxu0
    %v5528 = vadd.f32 0.0, %v5527
    %5529 = vmatprep.mubr.f32.mxu0 0.0
    %5530 = vmatmul.mubr.f32.gmra.mrb[0].mxu0 %v5448
    %v5531 = vpop.f32.mrb[0].mxu0
    %v5532 = vadd.f32 0.0, %v5531
    %v5533 = vpop.f32.mrb[0].mxu0
    %v5534 = vadd.f32 0.0, %v5533
    %5535 = vmatprep.mubr.f32.mxu0 0.0
    %5536 = vmatmul.mubr.f32.gmra.mrb[0].mxu0 %v5451
    %v5537 = vpop.f32.mrb[0].mxu0
    %v5538 = vadd.f32 0.0, %v5537
    %v5539 = vpop.f32.mrb[0].mxu0
    %v5540 = vadd.f32 0.0, %v5539
    %5541 = vdwg.mxu0
    %v5543 = vsel %vm743, %v5252, 0
    %v5546 = vsel %vm743, %v5253, 0
    %v5549 = vsel %vm743, %v5254, 0
    %v5552 = vsel %vm743, %v5255, 0
    %5554 = vmatprep.subr.mxu0 %v5301
    %5555 = vmatpush1.msra.mxu0 %v5300
    %5556 = vmatprep.subr.mxu0 %v5303
    %5557 = vmatpush1.msra.mxu0 %v5302
    %5558 = vmatprep.subr.mxu0 0.0
    %5559 = vmatpush1.msra.mxu0 0.0
    %5560 = vmatprep.subr.mxu0 0.0
    %5561 = vmatpush1.msra.mxu0 0.0
    %5562 = vmatprep.subr.mxu0 0.0
    %5563 = vmatpush1.msra.mxu0 0.0
    %5564 = vmatprep.subr.mxu0 0.0
    %5565 = vmatpush1.msra.mxu0 0.0
    %5566 = vmatprep.subr.mxu0 0.0
    %5567 = vmatpush1.msra.mxu0 0.0
    %5568 = vmatprep.subr.mxu0 0.0
    %5569 = vmatpush1.msra.mxu0 0.0
    %5570 = vmatprep.subr.mxu0 0.0
    %5571 = vmatpush1.msra.mxu0 0.0
    %5572 = vmatprep.subr.mxu0 0.0
    %5573 = vmatpush1.msra.mxu0 0.0
    %5574 = vmatprep.subr.mxu0 0.0
    %5575 = vmatpush1.msra.mxu0 0.0
    %5576 = vmatprep.subr.mxu0 0.0
    %5577 = vmatpush1.msra.mxu0 0.0
    %5578 = vmatprep.subr.mxu0 0.0
    %5579 = vmatpush1.msra.mxu0 0.0
    %5580 = vmatprep.subr.mxu0 0.0
    %5581 = vmatpush1.msra.mxu0 0.0
    %5582 = vmatprep.subr.mxu0 0.0
    %5583 = vmatpush1.msra.mxu0 0.0
    %5584 = vmatprep.subr.mxu0 0.0
    %5585 = vmatpush1.msra.mxu0 0.0
    %5586 = vmatprep.subr.mxu0 0.0
    %5587 = vmatpush1.msra.mxu0 0.0
    %5588 = vmatprep.subr.mxu0 0.0
    %5589 = vmatpush1.msra.mxu0 0.0
    %5590 = vmatprep.subr.mxu0 0.0
    %5591 = vmatpush1.msra.mxu0 0.0
    %5592 = vmatprep.subr.mxu0 0.0
    %5593 = vmatpush1.msra.mxu0 0.0
    %5594 = vmatprep.subr.mxu0 0.0
    %5595 = vmatpush1.msra.mxu0 0.0
    %5596 = vmatprep.subr.mxu0 0.0
    %5597 = vmatpush1.msra.mxu0 0.0
    %5598 = vmatprep.subr.mxu0 0.0
    %5599 = vmatpush1.msra.mxu0 0.0
    %5600 = vmatprep.subr.mxu0 0.0
    %5601 = vmatpush1.msra.mxu0 0.0
    %5602 = vmatprep.subr.mxu0 0.0
    %5603 = vmatpush1.msra.mxu0 0.0
    %5604 = vmatprep.subr.mxu0 0.0
    %5605 = vmatpush1.msra.mxu0 0.0
    %5606 = vmatprep.subr.mxu0 0.0
    %5607 = vmatpush1.msra.mxu0 0.0
    %5608 = vmatprep.subr.mxu0 0.0
    %5609 = vmatpush1.msra.mxu0 0.0
    %5610 = vmatprep.subr.mxu0 0.0
    %5611 = vmatpush1.msra.mxu0 0.0
    %5612 = vmatprep.subr.mxu0 0.0
    %5613 = vmatpush1.msra.mxu0 0.0
    %5614 = vmatprep.subr.mxu0 0.0
    %5615 = vmatpush1.msra.mxu0 0.0
    %5616 = vmatprep.subr.mxu0 0.0
    %5617 = vmatpush1.msra.mxu0 0.0
    %5618 = vmatprep.mubr.f32.mxu0 0.0
    %5619 = vmatmul.mubr.f32.gmra.mrb[0].mxu0 %v5543
    %v5620 = vpop.f32.mrb[0].mxu0
    %v5621 = vadd.f32 0.0, %v5620
    %v5622 = vpop.f32.mrb[0].mxu0
    %v5623 = vadd.f32 0.0, %v5622
    %5624 = vmatprep.mubr.f32.mxu0 0.0
    %5625 = vmatmul.mubr.f32.gmra.mrb[0].mxu0 %v5546
    %v5626 = vpop.f32.mrb[0].mxu0
    %v5627 = vadd.f32 0.0, %v5626
    %v5628 = vpop.f32.mrb[0].mxu0
    %v5629 = vadd.f32 0.0, %v5628
    %5630 = vmatprep.mubr.f32.mxu0 0.0
    %5631 = vmatmul.mubr.f32.gmra.mrb[0].mxu0 %v5549
    %v5632 = vpop.f32.mrb[0].mxu0
    %v5633 = vadd.f32 0.0, %v5632
    %v5634 = vpop.f32.mrb[0].mxu0
    %v5635 = vadd.f32 0.0, %v5634
    %5636 = vmatprep.mubr.f32.mxu0 0.0
    %5637 = vmatmul.mubr.f32.gmra.mrb[0].mxu0 %v5552
    %v5638 = vpop.f32.mrb[0].mxu0
    %v5639 = vadd.f32 0.0, %v5638
    %v5640 = vpop.f32.mrb[0].mxu0
    %v5641 = vadd.f32 0.0, %v5640
    %5642 = vdwg.mxu0
    %v5644 = vsel %vm743, %v5256, 0
    %v5647 = vsel %vm743, %v5257, 0
    %v5650 = vsel %vm743, %v5258, 0
    %v5653 = vsel %vm743, %v5259, 0
    %5655 = vmatprep.subr.mxu0 %v5305
    %5656 = vmatpush1.msra.mxu0 %v5304
    %5657 = vmatprep.subr.mxu0 %v5307
    %5658 = vmatpush1.msra.mxu0 %v5306
    %5659 = vmatprep.subr.mxu0 0.0
    %5660 = vmatpush1.msra.mxu0 0.0
    %5661 = vmatprep.subr.mxu0 0.0
    %5662 = vmatpush1.msra.mxu0 0.0
    %5663 = vmatprep.subr.mxu0 0.0
    %5664 = vmatpush1.msra.mxu0 0.0
    %5665 = vmatprep.subr.mxu0 0.0
    %5666 = vmatpush1.msra.mxu0 0.0
    %5667 = vmatprep.subr.mxu0 0.0
    %5668 = vmatpush1.msra.mxu0 0.0
    %5669 = vmatprep.subr.mxu0 0.0
    %5670 = vmatpush1.msra.mxu0 0.0
    %5671 = vmatprep.subr.mxu0 0.0
    %5672 = vmatpush1.msra.mxu0 0.0
    %5673 = vmatprep.subr.mxu0 0.0
    %5674 = vmatpush1.msra.mxu0 0.0
    %5675 = vmatprep.subr.mxu0 0.0
    %5676 = vmatpush1.msra.mxu0 0.0
    %5677 = vmatprep.subr.mxu0 0.0
    %5678 = vmatpush1.msra.mxu0 0.0
    %5679 = vmatprep.subr.mxu0 0.0
    %5680 = vmatpush1.msra.mxu0 0.0
    %5681 = vmatprep.subr.mxu0 0.0
    %5682 = vmatpush1.msra.mxu0 0.0
    %5683 = vmatprep.subr.mxu0 0.0
    %5684 = vmatpush1.msra.mxu0 0.0
    %5685 = vmatprep.subr.mxu0 0.0
    %5686 = vmatpush1.msra.mxu0 0.0
    %5687 = vmatprep.subr.mxu0 0.0
    %5688 = vmatpush1.msra.mxu0 0.0
    %5689 = vmatprep.subr.mxu0 0.0
    %5690 = vmatpush1.msra.mxu0 0.0
    %5691 = vmatprep.subr.mxu0 0.0
    %5692 = vmatpush1.msra.mxu0 0.0
    %5693 = vmatprep.subr.mxu0 0.0
    %5694 = vmatpush1.msra.mxu0 0.0
    %5695 = vmatprep.subr.mxu0 0.0
    %5696 = vmatpush1.msra.mxu0 0.0
    %5697 = vmatprep.subr.mxu0 0.0
    %5698 = vmatpush1.msra.mxu0 0.0
    %5699 = vmatprep.subr.mxu0 0.0
    %5700 = vmatpush1.msra.mxu0 0.0
    %5701 = vmatprep.subr.mxu0 0.0
    %5702 = vmatpush1.msra.mxu0 0.0
    %5703 = vmatprep.subr.mxu0 0.0
    %5704 = vmatpush1.msra.mxu0 0.0
    %5705 = vmatprep.subr.mxu0 0.0
    %5706 = vmatpush1.msra.mxu0 0.0
    %5707 = vmatprep.subr.mxu0 0.0
    %5708 = vmatpush1.msra.mxu0 0.0
    %5709 = vmatprep.subr.mxu0 0.0
    %5710 = vmatpush1.msra.mxu0 0.0
    %5711 = vmatprep.subr.mxu0 0.0
    %5712 = vmatpush1.msra.mxu0 0.0
    %5713 = vmatprep.subr.mxu0 0.0
    %5714 = vmatpush1.msra.mxu0 0.0
    %5715 = vmatprep.subr.mxu0 0.0
    %5716 = vmatpush1.msra.mxu0 0.0
    %5717 = vmatprep.subr.mxu0 0.0
    %5718 = vmatpush1.msra.mxu0 0.0
    %5719 = vmatprep.mubr.f32.mxu0 0.0
    %5720 = vmatmul.mubr.f32.gmra.mrb[0].mxu0 %v5644
    %v5721 = vpop.f32.mrb[0].mxu0
    %v5722 = vadd.f32 0.0, %v5721
    %v5723 = vpop.f32.mrb[0].mxu0
    %v5724 = vadd.f32 0.0, %v5723
    %5725 = vmatprep.mubr.f32.mxu0 0.0
    %5726 = vmatmul.mubr.f32.gmra.mrb[0].mxu0 %v5647
    %v5727 = vpop.f32.mrb[0].mxu0
    %v5728 = vadd.f32 0.0, %v5727
    %v5729 = vpop.f32.mrb[0].mxu0
    %v5730 = vadd.f32 0.0, %v5729
    %5731 = vmatprep.mubr.f32.mxu0 0.0
    %5732 = vmatmul.mubr.f32.gmra.mrb[0].mxu0 %v5650
    %v5733 = vpop.f32.mrb[0].mxu0
    %v5734 = vadd.f32 0.0, %v5733
    %v5735 = vpop.f32.mrb[0].mxu0
    %v5736 = vadd.f32 0.0, %v5735
    %5737 = vmatprep.mubr.f32.mxu0 0.0
    %5738 = vmatmul.mubr.f32.gmra.mrb[0].mxu0 %v5653
    %v5739 = vpop.f32.mrb[0].mxu0
    %v5740 = vadd.f32 0.0, %v5739
    %v5741 = vpop.f32.mrb[0].mxu0
    %v5742 = vadd.f32 0.0, %v5741
    %5743 = vdwg.mxu0
    %v5745 = vsel %vm743, %v5260, 0
    %v5748 = vsel %vm743, %v5261, 0
    %v5751 = vsel %vm743, %v5262, 0
    %v5754 = vsel %vm743, %v5263, 0
    %5756 = vmatprep.subr.mxu0 %v5309
    %5757 = vmatpush1.msra.mxu0 %v5308
    %5758 = vmatprep.subr.mxu0 %v5311
    %5759 = vmatpush1.msra.mxu0 %v5310
    %5760 = vmatprep.subr.mxu0 0.0
    %5761 = vmatpush1.msra.mxu0 0.0
    %5762 = vmatprep.subr.mxu0 0.0
    %5763 = vmatpush1.msra.mxu0 0.0
    %5764 = vmatprep.subr.mxu0 0.0
    %5765 = vmatpush1.msra.mxu0 0.0
    %5766 = vmatprep.subr.mxu0 0.0
    %5767 = vmatpush1.msra.mxu0 0.0
    %5768 = vmatprep.subr.mxu0 0.0
    %5769 = vmatpush1.msra.mxu0 0.0
    %5770 = vmatprep.subr.mxu0 0.0
    %5771 = vmatpush1.msra.mxu0 0.0
    %5772 = vmatprep.subr.mxu0 0.0
    %5773 = vmatpush1.msra.mxu0 0.0
    %5774 = vmatprep.subr.mxu0 0.0
    %5775 = vmatpush1.msra.mxu0 0.0
    %5776 = vmatprep.subr.mxu0 0.0
    %5777 = vmatpush1.msra.mxu0 0.0
    %5778 = vmatprep.subr.mxu0 0.0
    %5779 = vmatpush1.msra.mxu0 0.0
    %5780 = vmatprep.subr.mxu0 0.0
    %5781 = vmatpush1.msra.mxu0 0.0
    %5782 = vmatprep.subr.mxu0 0.0
    %5783 = vmatpush1.msra.mxu0 0.0
    %5784 = vmatprep.subr.mxu0 0.0
    %5785 = vmatpush1.msra.mxu0 0.0
    %5786 = vmatprep.subr.mxu0 0.0
    %5787 = vmatpush1.msra.mxu0 0.0
    %5788 = vmatprep.subr.mxu0 0.0
    %5789 = vmatpush1.msra.mxu0 0.0
    %5790 = vmatprep.subr.mxu0 0.0
    %5791 = vmatpush1.msra.mxu0 0.0
    %5792 = vmatprep.subr.mxu0 0.0
    %5793 = vmatpush1.msra.mxu0 0.0
    %5794 = vmatprep.subr.mxu0 0.0
    %5795 = vmatpush1.msra.mxu0 0.0
    %5796 = vmatprep.subr.mxu0 0.0
    %5797 = vmatpush1.msra.mxu0 0.0
    %5798 = vmatprep.subr.mxu0 0.0
    %5799 = vmatpush1.msra.mxu0 0.0
    %5800 = vmatprep.subr.mxu0 0.0
    %5801 = vmatpush1.msra.mxu0 0.0
    %5802 = vmatprep.subr.mxu0 0.0
    %5803 = vmatpush1.msra.mxu0 0.0
    %5804 = vmatprep.subr.mxu0 0.0
    %5805 = vmatpush1.msra.mxu0 0.0
    %5806 = vmatprep.subr.mxu0 0.0
    %5807 = vmatpush1.msra.mxu0 0.0
    %5808 = vmatprep.subr.mxu0 0.0
    %5809 = vmatpush1.msra.mxu0 0.0
    %5810 = vmatprep.subr.mxu0 0.0
    %5811 = vmatpush1.msra.mxu0 0.0
    %5812 = vmatprep.subr.mxu0 0.0
    %5813 = vmatpush1.msra.mxu0 0.0
    %5814 = vmatprep.subr.mxu0 0.0
    %5815 = vmatpush1.msra.mxu0 0.0
    %5816 = vmatprep.subr.mxu0 0.0
    %5817 = vmatpush1.msra.mxu0 0.0
    %5818 = vmatprep.subr.mxu0 0.0
    %5819 = vmatpush1.msra.mxu0 0.0
    %5820 = vmatprep.mubr.f32.mxu0 0.0
    %5821 = vmatmul.mubr.f32.gmra.mrb[0].mxu0 %v5745
    %v5822 = vpop.f32.mrb[0].mxu0
    %v5823 = vadd.f32 0.0, %v5822
    %v5824 = vpop.f32.mrb[0].mxu0
    %v5825 = vadd.f32 0.0, %v5824
    %5826 = vmatprep.mubr.f32.mxu0 0.0
    %5827 = vmatmul.mubr.f32.gmra.mrb[0].mxu0 %v5748
    %v5828 = vpop.f32.mrb[0].mxu0
    %v5829 = vadd.f32 0.0, %v5828
    %v5830 = vpop.f32.mrb[0].mxu0
    %v5831 = vadd.f32 0.0, %v5830
    %5832 = vmatprep.mubr.f32.mxu0 0.0
    %5833 = vmatmul.mubr.f32.gmra.mrb[0].mxu0 %v5751
    %v5834 = vpop.f32.mrb[0].mxu0
    %v5835 = vadd.f32 0.0, %v5834
    %v5836 = vpop.f32.mrb[0].mxu0
    %v5837 = vadd.f32 0.0, %v5836
    %5838 = vmatprep.mubr.f32.mxu0 0.0
    %5839 = vmatmul.mubr.f32.gmra.mrb[0].mxu0 %v5754
    %v5840 = vpop.f32.mrb[0].mxu0
    %v5841 = vadd.f32 0.0, %v5840
    %v5842 = vpop.f32.mrb[0].mxu0
    %v5843 = vadd.f32 0.0, %v5842
    %5844 = vdwg.mxu0
    %v5846 = vsel %vm743, %v5264, 0
    %v5849 = vsel %vm743, %v5265, 0
    %v5852 = vsel %vm743, %v5266, 0
    %v5855 = vsel %vm743, %v5267, 0
    %5857 = vmatprep.subr.mxu0 %v5313
    %5858 = vmatpush1.msra.mxu0 %v5312
    %5859 = vmatprep.subr.mxu0 %v5315
    %5860 = vmatpush1.msra.mxu0 %v5314
    %5861 = vmatprep.subr.mxu0 0.0
    %5862 = vmatpush1.msra.mxu0 0.0
    %5863 = vmatprep.subr.mxu0 0.0
    %5864 = vmatpush1.msra.mxu0 0.0
    %5865 = vmatprep.subr.mxu0 0.0
    %5866 = vmatpush1.msra.mxu0 0.0
    %5867 = vmatprep.subr.mxu0 0.0
    %5868 = vmatpush1.msra.mxu0 0.0
    %5869 = vmatprep.subr.mxu0 0.0
    %5870 = vmatpush1.msra.mxu0 0.0
    %5871 = vmatprep.subr.mxu0 0.0
    %5872 = vmatpush1.msra.mxu0 0.0
    %5873 = vmatprep.subr.mxu0 0.0
    %5874 = vmatpush1.msra.mxu0 0.0
    %5875 = vmatprep.subr.mxu0 0.0
    %5876 = vmatpush1.msra.mxu0 0.0
    %5877 = vmatprep.subr.mxu0 0.0
    %5878 = vmatpush1.msra.mxu0 0.0
    %5879 = vmatprep.subr.mxu0 0.0
    %5880 = vmatpush1.msra.mxu0 0.0
    %5881 = vmatprep.subr.mxu0 0.0
    %5882 = vmatpush1.msra.mxu0 0.0
    %5883 = vmatprep.subr.mxu0 0.0
    %5884 = vmatpush1.msra.mxu0 0.0
    %5885 = vmatprep.subr.mxu0 0.0
    %5886 = vmatpush1.msra.mxu0 0.0
    %5887 = vmatprep.subr.mxu0 0.0
    %5888 = vmatpush1.msra.mxu0 0.0
    %5889 = vmatprep.subr.mxu0 0.0
    %5890 = vmatpush1.msra.mxu0 0.0
    %5891 = vmatprep.subr.mxu0 0.0
    %5892 = vmatpush1.msra.mxu0 0.0
    %5893 = vmatprep.subr.mxu0 0.0
    %5894 = vmatpush1.msra.mxu0 0.0
    %5895 = vmatprep.subr.mxu0 0.0
    %5896 = vmatpush1.msra.mxu0 0.0
    %5897 = vmatprep.subr.mxu0 0.0
    %5898 = vmatpush1.msra.mxu0 0.0
    %5899 = vmatprep.subr.mxu0 0.0
    %5900 = vmatpush1.msra.mxu0 0.0
    %5901 = vmatprep.subr.mxu0 0.0
    %5902 = vmatpush1.msra.mxu0 0.0
    %5903 = vmatprep.subr.mxu0 0.0
    %5904 = vmatpush1.msra.mxu0 0.0
    %5905 = vmatprep.subr.mxu0 0.0
    %5906 = vmatpush1.msra.mxu0 0.0
    %5907 = vmatprep.subr.mxu0 0.0
    %5908 = vmatpush1.msra.mxu0 0.0
    %5909 = vmatprep.subr.mxu0 0.0
    %5910 = vmatpush1.msra.mxu0 0.0
    %5911 = vmatprep.subr.mxu0 0.0
    %5912 = vmatpush1.msra.mxu0 0.0
    %5913 = vmatprep.subr.mxu0 0.0
    %5914 = vmatpush1.msra.mxu0 0.0
    %5915 = vmatprep.subr.mxu0 0.0
    %5916 = vmatpush1.msra.mxu0 0.0
    %5917 = vmatprep.subr.mxu0 0.0
    %5918 = vmatpush1.msra.mxu0 0.0
    %5919 = vmatprep.subr.mxu0 0.0
    %5920 = vmatpush1.msra.mxu0 0.0
    %5921 = vmatprep.mubr.f32.mxu0 0.0
    %5922 = vmatmul.mubr.f32.gmra.mrb[0].mxu0 %v5846
    %v5923 = vpop.f32.mrb[0].mxu0
    %v5924 = vadd.f32 0.0, %v5923
    %v5925 = vpop.f32.mrb[0].mxu0
    %v5926 = vadd.f32 0.0, %v5925
    %5927 = vmatprep.mubr.f32.mxu0 0.0
    %5928 = vmatmul.mubr.f32.gmra.mrb[0].mxu0 %v5849
    %v5929 = vpop.f32.mrb[0].mxu0
    %v5930 = vadd.f32 0.0, %v5929
    %v5931 = vpop.f32.mrb[0].mxu0
    %v5932 = vadd.f32 0.0, %v5931
    %5933 = vmatprep.mubr.f32.mxu0 0.0
    %5934 = vmatmul.mubr.f32.gmra.mrb[0].mxu0 %v5852
    %v5935 = vpop.f32.mrb[0].mxu0
    %v5936 = vadd.f32 0.0, %v5935
    %v5937 = vpop.f32.mrb[0].mxu0
    %v5938 = vadd.f32 0.0, %v5937
    %5939 = vmatprep.mubr.f32.mxu0 0.0
    %5940 = vmatmul.mubr.f32.gmra.mrb[0].mxu0 %v5855
    %v5941 = vpop.f32.mrb[0].mxu0
    %v5942 = vadd.f32 0.0, %v5941
    %v5943 = vpop.f32.mrb[0].mxu0
    %v5944 = vadd.f32 0.0, %v5943
    %5945 = vdwg.mxu0
    %v5947 = vsel %vm743, %v5268, 0
    %v5950 = vsel %vm743, %v5269, 0
    %v5953 = vsel %vm743, %v5270, 0
    %v5956 = vsel %vm743, %v5271, 0
    %5958 = vmatprep.subr.mxu0 %v5317
    %5959 = vmatpush1.msra.mxu0 %v5316
    %5960 = vmatprep.subr.mxu0 %v5319
    %5961 = vmatpush1.msra.mxu0 %v5318
    %5962 = vmatprep.subr.mxu0 0.0
    %5963 = vmatpush1.msra.mxu0 0.0
    %5964 = vmatprep.subr.mxu0 0.0
    %5965 = vmatpush1.msra.mxu0 0.0
    %5966 = vmatprep.subr.mxu0 0.0
    %5967 = vmatpush1.msra.mxu0 0.0
    %5968 = vmatprep.subr.mxu0 0.0
    %5969 = vmatpush1.msra.mxu0 0.0
    %5970 = vmatprep.subr.mxu0 0.0
    %5971 = vmatpush1.msra.mxu0 0.0
    %5972 = vmatprep.subr.mxu0 0.0
    %5973 = vmatpush1.msra.mxu0 0.0
    %5974 = vmatprep.subr.mxu0 0.0
    %5975 = vmatpush1.msra.mxu0 0.0
    %5976 = vmatprep.subr.mxu0 0.0
    %5977 = vmatpush1.msra.mxu0 0.0
    %5978 = vmatprep.subr.mxu0 0.0
    %5979 = vmatpush1.msra.mxu0 0.0
    %5980 = vmatprep.subr.mxu0 0.0
    %5981 = vmatpush1.msra.mxu0 0.0
    %5982 = vmatprep.subr.mxu0 0.0
    %5983 = vmatpush1.msra.mxu0 0.0
    %5984 = vmatprep.subr.mxu0 0.0
    %5985 = vmatpush1.msra.mxu0 0.0
    %5986 = vmatprep.subr.mxu0 0.0
    %5987 = vmatpush1.msra.mxu0 0.0
    %5988 = vmatprep.subr.mxu0 0.0
    %5989 = vmatpush1.msra.mxu0 0.0
    %5990 = vmatprep.subr.mxu0 0.0
    %5991 = vmatpush1.msra.mxu0 0.0
    %5992 = vmatprep.subr.mxu0 0.0
    %5993 = vmatpush1.msra.mxu0 0.0
    %5994 = vmatprep.subr.mxu0 0.0
    %5995 = vmatpush1.msra.mxu0 0.0
    %5996 = vmatprep.subr.mxu0 0.0
    %5997 = vmatpush1.msra.mxu0 0.0
    %5998 = vmatprep.subr.mxu0 0.0
    %5999 = vmatpush1.msra.mxu0 0.0
    %6000 = vmatprep.subr.mxu0 0.0
    %6001 = vmatpush1.msra.mxu0 0.0
    %6002 = vmatprep.subr.mxu0 0.0
    %6003 = vmatpush1.msra.mxu0 0.0
    %6004 = vmatprep.subr.mxu0 0.0
    %6005 = vmatpush1.msra.mxu0 0.0
    %6006 = vmatprep.subr.mxu0 0.0
    %6007 = vmatpush1.msra.mxu0 0.0
    %6008 = vmatprep.subr.mxu0 0.0
    %6009 = vmatpush1.msra.mxu0 0.0
    %6010 = vmatprep.subr.mxu0 0.0
    %6011 = vmatpush1.msra.mxu0 0.0
    %6012 = vmatprep.subr.mxu0 0.0
    %6013 = vmatpush1.msra.mxu0 0.0
    %6014 = vmatprep.subr.mxu0 0.0
    %6015 = vmatpush1.msra.mxu0 0.0
    %6016 = vmatprep.subr.mxu0 0.0
    %6017 = vmatpush1.msra.mxu0 0.0
    %6018 = vmatprep.subr.mxu0 0.0
    %6019 = vmatpush1.msra.mxu0 0.0
    %6020 = vmatprep.subr.mxu0 0.0
    %6021 = vmatpush1.msra.mxu0 0.0
    %6022 = vmatprep.mubr.f32.mxu0 0.0
    %6023 = vmatmul.mubr.f32.gmra.mrb[0].mxu0 %v5947
    %v6024 = vpop.f32.mrb[0].mxu0
    %v6025 = vadd.f32 0.0, %v6024
    %v6026 = vpop.f32.mrb[0].mxu0
    %v6027 = vadd.f32 0.0, %v6026
    %6028 = vmatprep.mubr.f32.mxu0 0.0
    %6029 = vmatmul.mubr.f32.gmra.mrb[0].mxu0 %v5950
    %v6030 = vpop.f32.mrb[0].mxu0
    %v6031 = vadd.f32 0.0, %v6030
    %v6032 = vpop.f32.mrb[0].mxu0
    %v6033 = vadd.f32 0.0, %v6032
    %6034 = vmatprep.mubr.f32.mxu0 0.0
    %6035 = vmatmul.mubr.f32.gmra.mrb[0].mxu0 %v5953
    %v6036 = vpop.f32.mrb[0].mxu0
    %v6037 = vadd.f32 0.0, %v6036
    %v6038 = vpop.f32.mrb[0].mxu0
    %v6039 = vadd.f32 0.0, %v6038
    %6040 = vmatprep.mubr.f32.mxu0 0.0
    %6041 = vmatmul.mubr.f32.gmra.mrb[0].mxu0 %v5956
    %v6042 = vpop.f32.mrb[0].mxu0
    %v6043 = vadd.f32 0.0, %v6042
    %v6044 = vpop.f32.mrb[0].mxu0
    %v6045 = vadd.f32 0.0, %v6044
    %6046 = vdwg.mxu0
    %v6048 = vsel %vm743, %v5272, 0
    %v6051 = vsel %vm743, %v5273, 0
    %v6054 = vsel %vm743, %v5274, 0
    %v6057 = vsel %vm743, %v5275, 0
    %6059 = vmatprep.subr.mxu0 %v5321
    %6060 = vmatpush1.msra.mxu0 %v5320
    %6061 = vmatprep.subr.mxu0 %v5323
    %6062 = vmatpush1.msra.mxu0 %v5322
    %6063 = vmatprep.subr.mxu0 0.0
    %6064 = vmatpush1.msra.mxu0 0.0
    %6065 = vmatprep.subr.mxu0 0.0
    %6066 = vmatpush1.msra.mxu0 0.0
    %6067 = vmatprep.subr.mxu0 0.0
    %6068 = vmatpush1.msra.mxu0 0.0
    %6069 = vmatprep.subr.mxu0 0.0
    %6070 = vmatpush1.msra.mxu0 0.0
    %6071 = vmatprep.subr.mxu0 0.0
    %6072 = vmatpush1.msra.mxu0 0.0
    %6073 = vmatprep.subr.mxu0 0.0
    %6074 = vmatpush1.msra.mxu0 0.0
    %6075 = vmatprep.subr.mxu0 0.0
    %6076 = vmatpush1.msra.mxu0 0.0
    %6077 = vmatprep.subr.mxu0 0.0
    %6078 = vmatpush1.msra.mxu0 0.0
    %6079 = vmatprep.subr.mxu0 0.0
    %6080 = vmatpush1.msra.mxu0 0.0
    %6081 = vmatprep.subr.mxu0 0.0
    %6082 = vmatpush1.msra.mxu0 0.0
    %6083 = vmatprep.subr.mxu0 0.0
    %6084 = vmatpush1.msra.mxu0 0.0
    %6085 = vmatprep.subr.mxu0 0.0
    %6086 = vmatpush1.msra.mxu0 0.0
    %6087 = vmatprep.subr.mxu0 0.0
    %6088 = vmatpush1.msra.mxu0 0.0
    %6089 = vmatprep.subr.mxu0 0.0
    %6090 = vmatpush1.msra.mxu0 0.0
    %6091 = vmatprep.subr.mxu0 0.0
    %6092 = vmatpush1.msra.mxu0 0.0
    %6093 = vmatprep.subr.mxu0 0.0
    %6094 = vmatpush1.msra.mxu0 0.0
    %6095 = vmatprep.subr.mxu0 0.0
    %6096 = vmatpush1.msra.mxu0 0.0
    %6097 = vmatprep.subr.mxu0 0.0
    %6098 = vmatpush1.msra.mxu0 0.0
    %6099 = vmatprep.subr.mxu0 0.0
    %6100 = vmatpush1.msra.mxu0 0.0
    %6101 = vmatprep.subr.mxu0 0.0
    %6102 = vmatpush1.msra.mxu0 0.0
    %6103 = vmatprep.subr.mxu0 0.0
    %6104 = vmatpush1.msra.mxu0 0.0
    %6105 = vmatprep.subr.mxu0 0.0
    %6106 = vmatpush1.msra.mxu0 0.0
    %6107 = vmatprep.subr.mxu0 0.0
    %6108 = vmatpush1.msra.mxu0 0.0
    %6109 = vmatprep.subr.mxu0 0.0
    %6110 = vmatpush1.msra.mxu0 0.0
    %6111 = vmatprep.subr.mxu0 0.0
    %6112 = vmatpush1.msra.mxu0 0.0
    %6113 = vmatprep.subr.mxu0 0.0
    %6114 = vmatpush1.msra.mxu0 0.0
    %6115 = vmatprep.subr.mxu0 0.0
    %6116 = vmatpush1.msra.mxu0 0.0
    %6117 = vmatprep.subr.mxu0 0.0
    %6118 = vmatpush1.msra.mxu0 0.0
    %6119 = vmatprep.subr.mxu0 0.0
    %6120 = vmatpush1.msra.mxu0 0.0
    %6121 = vmatprep.subr.mxu0 0.0
    %6122 = vmatpush1.msra.mxu0 0.0
    %6123 = vmatprep.mubr.f32.mxu0 0.0
    %6124 = vmatmul.mubr.f32.gmra.mrb[0].mxu0 %v6048
    %v6125 = vpop.f32.mrb[0].mxu0
    %v6126 = vadd.f32 0.0, %v6125
    %v6127 = vpop.f32.mrb[0].mxu0
    %v6128 = vadd.f32 0.0, %v6127
    %6129 = vmatprep.mubr.f32.mxu0 0.0
    %6130 = vmatmul.mubr.f32.gmra.mrb[0].mxu0 %v6051
    %v6131 = vpop.f32.mrb[0].mxu0
    %v6132 = vadd.f32 0.0, %v6131
    %v6133 = vpop.f32.mrb[0].mxu0
    %v6134 = vadd.f32 0.0, %v6133
    %6135 = vmatprep.mubr.f32.mxu0 0.0
    %6136 = vmatmul.mubr.f32.gmra.mrb[0].mxu0 %v6054
    %v6137 = vpop.f32.mrb[0].mxu0
    %v6138 = vadd.f32 0.0, %v6137
    %v6139 = vpop.f32.mrb[0].mxu0
    %v6140 = vadd.f32 0.0, %v6139
    %6141 = vmatprep.mubr.f32.mxu0 0.0
    %6142 = vmatmul.mubr.f32.gmra.mrb[0].mxu0 %v6057
    %v6143 = vpop.f32.mrb[0].mxu0
    %v6144 = vadd.f32 0.0, %v6143
    %v6145 = vpop.f32.mrb[0].mxu0
    %v6146 = vadd.f32 0.0, %v6145
    %6147 = vdwg.mxu0
    %v6149 = vsel %vm743, %v5276, 0
    %v6152 = vsel %vm743, %v5277, 0
    %v6155 = vsel %vm743, %v5278, 0
    %v6158 = vsel %vm743, %v5279, 0
    %6160 = vmatprep.subr.mxu0 %v5325
    %6161 = vmatpush1.msra.mxu0 %v5324
    %6162 = vmatprep.subr.mxu0 %v5327
    %6163 = vmatpush1.msra.mxu0 %v5326
    %6164 = vmatprep.subr.mxu0 0.0
    %6165 = vmatpush1.msra.mxu0 0.0
    %6166 = vmatprep.subr.mxu0 0.0
    %6167 = vmatpush1.msra.mxu0 0.0
    %6168 = vmatprep.subr.mxu0 0.0
    %6169 = vmatpush1.msra.mxu0 0.0
    %6170 = vmatprep.subr.mxu0 0.0
    %6171 = vmatpush1.msra.mxu0 0.0
    %6172 = vmatprep.subr.mxu0 0.0
    %6173 = vmatpush1.msra.mxu0 0.0
    %6174 = vmatprep.subr.mxu0 0.0
    %6175 = vmatpush1.msra.mxu0 0.0
    %6176 = vmatprep.subr.mxu0 0.0
    %6177 = vmatpush1.msra.mxu0 0.0
    %6178 = vmatprep.subr.mxu0 0.0
    %6179 = vmatpush1.msra.mxu0 0.0
    %6180 = vmatprep.subr.mxu0 0.0
    %6181 = vmatpush1.msra.mxu0 0.0
    %6182 = vmatprep.subr.mxu0 0.0
    %6183 = vmatpush1.msra.mxu0 0.0
    %6184 = vmatprep.subr.mxu0 0.0
    %6185 = vmatpush1.msra.mxu0 0.0
    %6186 = vmatprep.subr.mxu0 0.0
    %6187 = vmatpush1.msra.mxu0 0.0
    %6188 = vmatprep.subr.mxu0 0.0
    %6189 = vmatpush1.msra.mxu0 0.0
    %6190 = vmatprep.subr.mxu0 0.0
    %6191 = vmatpush1.msra.mxu0 0.0
    %6192 = vmatprep.subr.mxu0 0.0
    %6193 = vmatpush1.msra.mxu0 0.0
    %6194 = vmatprep.subr.mxu0 0.0
    %6195 = vmatpush1.msra.mxu0 0.0
    %6196 = vmatprep.subr.mxu0 0.0
    %6197 = vmatpush1.msra.mxu0 0.0
    %6198 = vmatprep.subr.mxu0 0.0
    %6199 = vmatpush1.msra.mxu0 0.0
    %6200 = vmatprep.subr.mxu0 0.0
    %6201 = vmatpush1.msra.mxu0 0.0
    %6202 = vmatprep.subr.mxu0 0.0
    %6203 = vmatpush1.msra.mxu0 0.0
    %6204 = vmatprep.subr.mxu0 0.0
    %6205 = vmatpush1.msra.mxu0 0.0
    %6206 = vmatprep.subr.mxu0 0.0
    %6207 = vmatpush1.msra.mxu0 0.0
    %6208 = vmatprep.subr.mxu0 0.0
    %6209 = vmatpush1.msra.mxu0 0.0
    %6210 = vmatprep.subr.mxu0 0.0
    %6211 = vmatpush1.msra.mxu0 0.0
    %6212 = vmatprep.subr.mxu0 0.0
    %6213 = vmatpush1.msra.mxu0 0.0
    %6214 = vmatprep.subr.mxu0 0.0
    %6215 = vmatpush1.msra.mxu0 0.0
    %6216 = vmatprep.subr.mxu0 0.0
    %6217 = vmatpush1.msra.mxu0 0.0
    %6218 = vmatprep.subr.mxu0 0.0
    %6219 = vmatpush1.msra.mxu0 0.0
    %6220 = vmatprep.subr.mxu0 0.0
    %6221 = vmatpush1.msra.mxu0 0.0
    %6222 = vmatprep.subr.mxu0 0.0
    %6223 = vmatpush1.msra.mxu0 0.0
    %6224 = vmatprep.mubr.f32.mxu0 0.0
    %6225 = vmatmul.mubr.f32.gmra.mrb[0].mxu0 %v6149
    %v6226 = vpop.f32.mrb[0].mxu0
    %v6227 = vadd.f32 0.0, %v6226
    %v6228 = vpop.f32.mrb[0].mxu0
    %v6229 = vadd.f32 0.0, %v6228
    %6230 = vmatprep.mubr.f32.mxu0 0.0
    %6231 = vmatmul.mubr.f32.gmra.mrb[0].mxu0 %v6152
    %v6232 = vpop.f32.mrb[0].mxu0
    %v6233 = vadd.f32 0.0, %v6232
    %v6234 = vpop.f32.mrb[0].mxu0
    %v6235 = vadd.f32 0.0, %v6234
    %6236 = vmatprep.mubr.f32.mxu0 0.0
    %6237 = vmatmul.mubr.f32.gmra.mrb[0].mxu0 %v6155
    %v6238 = vpop.f32.mrb[0].mxu0
    %v6239 = vadd.f32 0.0, %v6238
    %v6240 = vpop.f32.mrb[0].mxu0
    %v6241 = vadd.f32 0.0, %v6240
    %6242 = vmatprep.mubr.f32.mxu0 0.0
    %6243 = vmatmul.mubr.f32.gmra.mrb[0].mxu0 %v6158
    %v6244 = vpop.f32.mrb[0].mxu0
    %v6245 = vadd.f32 0.0, %v6244
    %v6246 = vpop.f32.mrb[0].mxu0
    %v6247 = vadd.f32 0.0, %v6246
    %6248 = vdwg.mxu0
    %v6250 = vsel %vm743, %v5280, 0
    %v6253 = vsel %vm743, %v5281, 0
    %v6256 = vsel %vm743, %v5282, 0
    %v6259 = vsel %vm743, %v5283, 0
    %6261 = vmatprep.subr.mxu0 %v5329
    %6262 = vmatpush1.msra.mxu0 %v5328
    %6263 = vmatprep.subr.mxu0 %v5331
    %6264 = vmatpush1.msra.mxu0 %v5330
    %6265 = vmatprep.subr.mxu0 0.0
    %6266 = vmatpush1.msra.mxu0 0.0
    %6267 = vmatprep.subr.mxu0 0.0
    %6268 = vmatpush1.msra.mxu0 0.0
    %6269 = vmatprep.subr.mxu0 0.0
    %6270 = vmatpush1.msra.mxu0 0.0
    %6271 = vmatprep.subr.mxu0 0.0
    %6272 = vmatpush1.msra.mxu0 0.0
    %6273 = vmatprep.subr.mxu0 0.0
    %6274 = vmatpush1.msra.mxu0 0.0
    %6275 = vmatprep.subr.mxu0 0.0
    %6276 = vmatpush1.msra.mxu0 0.0
    %6277 = vmatprep.subr.mxu0 0.0
    %6278 = vmatpush1.msra.mxu0 0.0
    %6279 = vmatprep.subr.mxu0 0.0
    %6280 = vmatpush1.msra.mxu0 0.0
    %6281 = vmatprep.subr.mxu0 0.0
    %6282 = vmatpush1.msra.mxu0 0.0
    %6283 = vmatprep.subr.mxu0 0.0
    %6284 = vmatpush1.msra.mxu0 0.0
    %6285 = vmatprep.subr.mxu0 0.0
    %6286 = vmatpush1.msra.mxu0 0.0
    %6287 = vmatprep.subr.mxu0 0.0
    %6288 = vmatpush1.msra.mxu0 0.0
    %6289 = vmatprep.subr.mxu0 0.0
    %6290 = vmatpush1.msra.mxu0 0.0
    %6291 = vmatprep.subr.mxu0 0.0
    %6292 = vmatpush1.msra.mxu0 0.0
    %6293 = vmatprep.subr.mxu0 0.0
    %6294 = vmatpush1.msra.mxu0 0.0
    %6295 = vmatprep.subr.mxu0 0.0
    %6296 = vmatpush1.msra.mxu0 0.0
    %6297 = vmatprep.subr.mxu0 0.0
    %6298 = vmatpush1.msra.mxu0 0.0
    %6299 = vmatprep.subr.mxu0 0.0
    %6300 = vmatpush1.msra.mxu0 0.0
    %6301 = vmatprep.subr.mxu0 0.0
    %6302 = vmatpush1.msra.mxu0 0.0
    %6303 = vmatprep.subr.mxu0 0.0
    %6304 = vmatpush1.msra.mxu0 0.0
    %6305 = vmatprep.subr.mxu0 0.0
    %6306 = vmatpush1.msra.mxu0 0.0
    %6307 = vmatprep.subr.mxu0 0.0
    %6308 = vmatpush1.msra.mxu0 0.0
    %6309 = vmatprep.subr.mxu0 0.0
    %6310 = vmatpush1.msra.mxu0 0.0
    %6311 = vmatprep.subr.mxu0 0.0
    %6312 = vmatpush1.msra.mxu0 0.0
    %6313 = vmatprep.subr.mxu0 0.0
    %6314 = vmatpush1.msra.mxu0 0.0
    %6315 = vmatprep.subr.mxu0 0.0
    %6316 = vmatpush1.msra.mxu0 0.0
    %6317 = vmatprep.subr.mxu0 0.0
    %6318 = vmatpush1.msra.mxu0 0.0
    %6319 = vmatprep.subr.mxu0 0.0
    %6320 = vmatpush1.msra.mxu0 0.0
    %6321 = vmatprep.subr.mxu0 0.0
    %6322 = vmatpush1.msra.mxu0 0.0
    %6323 = vmatprep.subr.mxu0 0.0
    %6324 = vmatpush1.msra.mxu0 0.0
    %6325 = vmatprep.mubr.f32.mxu0 0.0
    %6326 = vmatmul.mubr.f32.gmra.mrb[0].mxu0 %v6250
    %v6327 = vpop.f32.mrb[0].mxu0
    %v6328 = vadd.f32 0.0, %v6327
    %v6329 = vpop.f32.mrb[0].mxu0
    %v6330 = vadd.f32 0.0, %v6329
    %6331 = vmatprep.mubr.f32.mxu0 0.0
    %6332 = vmatmul.mubr.f32.gmra.mrb[0].mxu0 %v6253
    %v6333 = vpop.f32.mrb[0].mxu0
    %v6334 = vadd.f32 0.0, %v6333
    %v6335 = vpop.f32.mrb[0].mxu0
    %v6336 = vadd.f32 0.0, %v6335
    %6337 = vmatprep.mubr.f32.mxu0 0.0
    %6338 = vmatmul.mubr.f32.gmra.mrb[0].mxu0 %v6256
    %v6339 = vpop.f32.mrb[0].mxu0
    %v6340 = vadd.f32 0.0, %v6339
    %v6341 = vpop.f32.mrb[0].mxu0
    %v6342 = vadd.f32 0.0, %v6341
    %6343 = vmatprep.mubr.f32.mxu0 0.0
    %6344 = vmatmul.mubr.f32.gmra.mrb[0].mxu0 %v6259
    %v6345 = vpop.f32.mrb[0].mxu0
    %v6346 = vadd.f32 0.0, %v6345
    %v6347 = vpop.f32.mrb[0].mxu0
    %v6348 = vadd.f32 0.0, %v6347
    %6349 = vdwg.mxu0
    %v6351 = vsel %vm743, %v5284, 0
    %v6354 = vsel %vm743, %v5285, 0
    %v6357 = vsel %vm743, %v5286, 0
    %v6360 = vsel %vm743, %v5287, 0
    %6362 = vmatprep.subr.mxu0 %v5333
    %6363 = vmatpush1.msra.mxu0 %v5332
    %6364 = vmatprep.subr.mxu0 %v5335
    %6365 = vmatpush1.msra.mxu0 %v5334
    %6366 = vmatprep.subr.mxu0 0.0
    %6367 = vmatpush1.msra.mxu0 0.0
    %6368 = vmatprep.subr.mxu0 0.0
    %6369 = vmatpush1.msra.mxu0 0.0
    %6370 = vmatprep.subr.mxu0 0.0
    %6371 = vmatpush1.msra.mxu0 0.0
    %6372 = vmatprep.subr.mxu0 0.0
    %6373 = vmatpush1.msra.mxu0 0.0
    %6374 = vmatprep.subr.mxu0 0.0
    %6375 = vmatpush1.msra.mxu0 0.0
    %6376 = vmatprep.subr.mxu0 0.0
    %6377 = vmatpush1.msra.mxu0 0.0
    %6378 = vmatprep.subr.mxu0 0.0
    %6379 = vmatpush1.msra.mxu0 0.0
    %6380 = vmatprep.subr.mxu0 0.0
    %6381 = vmatpush1.msra.mxu0 0.0
    %6382 = vmatprep.subr.mxu0 0.0
    %6383 = vmatpush1.msra.mxu0 0.0
    %6384 = vmatprep.subr.mxu0 0.0
    %6385 = vmatpush1.msra.mxu0 0.0
    %6386 = vmatprep.subr.mxu0 0.0
    %6387 = vmatpush1.msra.mxu0 0.0
    %6388 = vmatprep.subr.mxu0 0.0
    %6389 = vmatpush1.msra.mxu0 0.0
    %6390 = vmatprep.subr.mxu0 0.0
    %6391 = vmatpush1.msra.mxu0 0.0
    %6392 = vmatprep.subr.mxu0 0.0
    %6393 = vmatpush1.msra.mxu0 0.0
    %6394 = vmatprep.subr.mxu0 0.0
    %6395 = vmatpush1.msra.mxu0 0.0
    %6396 = vmatprep.subr.mxu0 0.0
    %6397 = vmatpush1.msra.mxu0 0.0
    %6398 = vmatprep.subr.mxu0 0.0
    %6399 = vmatpush1.msra.mxu0 0.0
    %6400 = vmatprep.subr.mxu0 0.0
    %6401 = vmatpush1.msra.mxu0 0.0
    %6402 = vmatprep.subr.mxu0 0.0
    %6403 = vmatpush1.msra.mxu0 0.0
    %6404 = vmatprep.subr.mxu0 0.0
    %6405 = vmatpush1.msra.mxu0 0.0
    %6406 = vmatprep.subr.mxu0 0.0
    %6407 = vmatpush1.msra.mxu0 0.0
    %6408 = vmatprep.subr.mxu0 0.0
    %6409 = vmatpush1.msra.mxu0 0.0
    %6410 = vmatprep.subr.mxu0 0.0
    %6411 = vmatpush1.msra.mxu0 0.0
    %6412 = vmatprep.subr.mxu0 0.0
    %6413 = vmatpush1.msra.mxu0 0.0
    %6414 = vmatprep.subr.mxu0 0.0
    %6415 = vmatpush1.msra.mxu0 0.0
    %6416 = vmatprep.subr.mxu0 0.0
    %6417 = vmatpush1.msra.mxu0 0.0
    %6418 = vmatprep.subr.mxu0 0.0
    %6419 = vmatpush1.msra.mxu0 0.0
    %6420 = vmatprep.subr.mxu0 0.0
    %6421 = vmatpush1.msra.mxu0 0.0
    %6422 = vmatprep.subr.mxu0 0.0
    %6423 = vmatpush1.msra.mxu0 0.0
    %6424 = vmatprep.subr.mxu0 0.0
    %6425 = vmatpush1.msra.mxu0 0.0
    %6426 = vmatprep.mubr.f32.mxu0 0.0
    %6427 = vmatmul.mubr.f32.gmra.mrb[0].mxu0 %v6351
    %v6428 = vpop.f32.mrb[0].mxu0
    %v6429 = vadd.f32 0.0, %v6428
    %v6430 = vpop.f32.mrb[0].mxu0
    %v6431 = vadd.f32 0.0, %v6430
    %6432 = vmatprep.mubr.f32.mxu0 0.0
    %6433 = vmatmul.mubr.f32.gmra.mrb[0].mxu0 %v6354
    %v6434 = vpop.f32.mrb[0].mxu0
    %v6435 = vadd.f32 0.0, %v6434
    %v6436 = vpop.f32.mrb[0].mxu0
    %v6437 = vadd.f32 0.0, %v6436
    %6438 = vmatprep.mubr.f32.mxu0 0.0
    %6439 = vmatmul.mubr.f32.gmra.mrb[0].mxu0 %v6357
    %v6440 = vpop.f32.mrb[0].mxu0
    %v6441 = vadd.f32 0.0, %v6440
    %v6442 = vpop.f32.mrb[0].mxu0
    %v6443 = vadd.f32 0.0, %v6442
    %6444 = vmatprep.mubr.f32.mxu0 0.0
    %6445 = vmatmul.mubr.f32.gmra.mrb[0].mxu0 %v6360
    %v6446 = vpop.f32.mrb[0].mxu0
    %v6447 = vadd.f32 0.0, %v6446
    %v6448 = vpop.f32.mrb[0].mxu0
    %v6449 = vadd.f32 0.0, %v6448
    %6450 = vdwg.mxu0
    %v6452 = vsel %vm743, %v5288, 0
    %v6455 = vsel %vm743, %v5289, 0
    %v6458 = vsel %vm743, %v5290, 0
    %v6461 = vsel %vm743, %v5291, 0
    %6463 = vmatprep.subr.mxu0 %v5337
    %6464 = vmatpush1.msra.mxu0 %v5336
    %6465 = vmatprep.subr.mxu0 %v5339
    %6466 = vmatpush1.msra.mxu0 %v5338
    %6467 = vmatprep.subr.mxu0 0.0
    %6468 = vmatpush1.msra.mxu0 0.0
    %6469 = vmatprep.subr.mxu0 0.0
    %6470 = vmatpush1.msra.mxu0 0.0
    %6471 = vmatprep.subr.mxu0 0.0
    %6472 = vmatpush1.msra.mxu0 0.0
    %6473 = vmatprep.subr.mxu0 0.0
    %6474 = vmatpush1.msra.mxu0 0.0
    %6475 = vmatprep.subr.mxu0 0.0
    %6476 = vmatpush1.msra.mxu0 0.0
    %6477 = vmatprep.subr.mxu0 0.0
    %6478 = vmatpush1.msra.mxu0 0.0
    %6479 = vmatprep.subr.mxu0 0.0
    %6480 = vmatpush1.msra.mxu0 0.0
    %6481 = vmatprep.subr.mxu0 0.0
    %6482 = vmatpush1.msra.mxu0 0.0
    %6483 = vmatprep.subr.mxu0 0.0
    %6484 = vmatpush1.msra.mxu0 0.0
    %6485 = vmatprep.subr.mxu0 0.0
    %6486 = vmatpush1.msra.mxu0 0.0
    %6487 = vmatprep.subr.mxu0 0.0
    %6488 = vmatpush1.msra.mxu0 0.0
    %6489 = vmatprep.subr.mxu0 0.0
    %6490 = vmatpush1.msra.mxu0 0.0
    %6491 = vmatprep.subr.mxu0 0.0
    %6492 = vmatpush1.msra.mxu0 0.0
    %6493 = vmatprep.subr.mxu0 0.0
    %6494 = vmatpush1.msra.mxu0 0.0
    %6495 = vmatprep.subr.mxu0 0.0
    %6496 = vmatpush1.msra.mxu0 0.0
    %6497 = vmatprep.subr.mxu0 0.0
    %6498 = vmatpush1.msra.mxu0 0.0
    %6499 = vmatprep.subr.mxu0 0.0
    %6500 = vmatpush1.msra.mxu0 0.0
    %6501 = vmatprep.subr.mxu0 0.0
    %6502 = vmatpush1.msra.mxu0 0.0
    %6503 = vmatprep.subr.mxu0 0.0
    %6504 = vmatpush1.msra.mxu0 0.0
    %6505 = vmatprep.subr.mxu0 0.0
    %6506 = vmatpush1.msra.mxu0 0.0
    %6507 = vmatprep.subr.mxu0 0.0
    %6508 = vmatpush1.msra.mxu0 0.0
    %6509 = vmatprep.subr.mxu0 0.0
    %6510 = vmatpush1.msra.mxu0 0.0
    %6511 = vmatprep.subr.mxu0 0.0
    %6512 = vmatpush1.msra.mxu0 0.0
    %6513 = vmatprep.subr.mxu0 0.0
    %6514 = vmatpush1.msra.mxu0 0.0
    %6515 = vmatprep.subr.mxu0 0.0
    %6516 = vmatpush1.msra.mxu0 0.0
    %6517 = vmatprep.subr.mxu0 0.0
    %6518 = vmatpush1.msra.mxu0 0.0
    %6519 = vmatprep.subr.mxu0 0.0
    %6520 = vmatpush1.msra.mxu0 0.0
    %6521 = vmatprep.subr.mxu0 0.0
    %6522 = vmatpush1.msra.mxu0 0.0
    %6523 = vmatprep.subr.mxu0 0.0
    %6524 = vmatpush1.msra.mxu0 0.0
    %6525 = vmatprep.subr.mxu0 0.0
    %6526 = vmatpush1.msra.mxu0 0.0
    %6527 = vmatprep.mubr.f32.mxu0 0.0
    %6528 = vmatmul.mubr.f32.gmra.mrb[0].mxu0 %v6452
    %v6529 = vpop.f32.mrb[0].mxu0
    %v6530 = vadd.f32 0.0, %v6529
    %v6531 = vpop.f32.mrb[0].mxu0
    %v6532 = vadd.f32 0.0, %v6531
    %6533 = vmatprep.mubr.f32.mxu0 0.0
    %6534 = vmatmul.mubr.f32.gmra.mrb[0].mxu0 %v6455
    %v6535 = vpop.f32.mrb[0].mxu0
    %v6536 = vadd.f32 0.0, %v6535
    %v6537 = vpop.f32.mrb[0].mxu0
    %v6538 = vadd.f32 0.0, %v6537
    %6539 = vmatprep.mubr.f32.mxu0 0.0
    %6540 = vmatmul.mubr.f32.gmra.mrb[0].mxu0 %v6458
    %v6541 = vpop.f32.mrb[0].mxu0
    %v6542 = vadd.f32 0.0, %v6541
    %v6543 = vpop.f32.mrb[0].mxu0
    %v6544 = vadd.f32 0.0, %v6543
    %6545 = vmatprep.mubr.f32.mxu0 0.0
    %6546 = vmatmul.mubr.f32.gmra.mrb[0].mxu0 %v6461
    %v6547 = vpop.f32.mrb[0].mxu0
    %v6548 = vadd.f32 0.0, %v6547
    %v6549 = vpop.f32.mrb[0].mxu0
    %v6550 = vadd.f32 0.0, %v6549
    %6551 = vdwg.mxu0
    %v6552 = vadd.f32 %v5419, %v5520
    %v6553 = vadd.f32 %v6552, %v5621
    %v6554 = vadd.f32 %v6553, %v5722
    %v6555 = vadd.f32 %v6554, %v5823
    %v6556 = vadd.f32 %v6555, %v5924
    %v6557 = vadd.f32 %v6556, %v6025
    %v6558 = vadd.f32 %v6557, %v6126
    %v6559 = vadd.f32 %v6558, %v6227
    %v6560 = vadd.f32 %v6559, %v6328
    %v6561 = vadd.f32 %v6560, %v6429
    %v6562 = vadd.f32 %v6561, %v6530
    %v6563 = vsel %vm187, %v5421, 0.0
    %v6564 = vsel %vm187, %v5522, 0.0
    %v6565 = vadd.f32 %v6563, %v6564
    %v6566 = vsel %vm187, %v5623, 0.0
    %v6567 = vadd.f32 %v6565, %v6566
    %v6568 = vsel %vm187, %v5724, 0.0
    %v6569 = vadd.f32 %v6567, %v6568
    %v6570 = vsel %vm187, %v5825, 0.0
    %v6571 = vadd.f32 %v6569, %v6570
    %v6572 = vsel %vm187, %v5926, 0.0
    %v6573 = vadd.f32 %v6571, %v6572
    %v6574 = vsel %vm187, %v6027, 0.0
    %v6575 = vadd.f32 %v6573, %v6574
    %v6576 = vsel %vm187, %v6128, 0.0
    %v6577 = vadd.f32 %v6575, %v6576
    %v6578 = vsel %vm187, %v6229, 0.0
    %v6579 = vadd.f32 %v6577, %v6578
    %v6580 = vsel %vm187, %v6330, 0.0
    %v6581 = vadd.f32 %v6579, %v6580
    %v6582 = vsel %vm187, %v6431, 0.0
    %v6583 = vadd.f32 %v6581, %v6582
    %v6584 = vsel %vm187, %v6532, 0.0
    %v6585 = vadd.f32 %v6583, %v6584
    %v6586 = vadd.f32 %v5425, %v5526
    %v6587 = vadd.f32 %v6586, %v5627
    %v6588 = vadd.f32 %v6587, %v5728
    %v6589 = vadd.f32 %v6588, %v5829
    %v6590 = vadd.f32 %v6589, %v5930
    %v6591 = vadd.f32 %v6590, %v6031
    %v6592 = vadd.f32 %v6591, %v6132
    %v6593 = vadd.f32 %v6592, %v6233
    %v6594 = vadd.f32 %v6593, %v6334
    %v6595 = vadd.f32 %v6594, %v6435
    %v6596 = vadd.f32 %v6595, %v6536
    %v6597 = vsel %vm187, %v5427, 0.0
    %v6598 = vsel %vm187, %v5528, 0.0
    %v6599 = vadd.f32 %v6597, %v6598
    %v6600 = vsel %vm187, %v5629, 0.0
    %v6601 = vadd.f32 %v6599, %v6600
    %v6602 = vsel %vm187, %v5730, 0.0
    %v6603 = vadd.f32 %v6601, %v6602
    %v6604 = vsel %vm187, %v5831, 0.0
    %v6605 = vadd.f32 %v6603, %v6604
    %v6606 = vsel %vm187, %v5932, 0.0
    %v6607 = vadd.f32 %v6605, %v6606
    %v6608 = vsel %vm187, %v6033, 0.0
    %v6609 = vadd.f32 %v6607, %v6608
    %v6610 = vsel %vm187, %v6134, 0.0
    %v6611 = vadd.f32 %v6609, %v6610
    %v6612 = vsel %vm187, %v6235, 0.0
    %v6613 = vadd.f32 %v6611, %v6612
    %v6614 = vsel %vm187, %v6336, 0.0
    %v6615 = vadd.f32 %v6613, %v6614
    %v6616 = vsel %vm187, %v6437, 0.0
    %v6617 = vadd.f32 %v6615, %v6616
    %v6618 = vsel %vm187, %v6538, 0.0
    %v6619 = vadd.f32 %v6617, %v6618
    %v6620 = vadd.f32 %v5431, %v5532
    %v6621 = vadd.f32 %v6620, %v5633
    %v6622 = vadd.f32 %v6621, %v5734
    %v6623 = vadd.f32 %v6622, %v5835
    %v6624 = vadd.f32 %v6623, %v5936
    %v6625 = vadd.f32 %v6624, %v6037
    %v6626 = vadd.f32 %v6625, %v6138
    %v6627 = vadd.f32 %v6626, %v6239
    %v6628 = vadd.f32 %v6627, %v6340
    %v6629 = vadd.f32 %v6628, %v6441
    %v6630 = vadd.f32 %v6629, %v6542
    %v6631 = vsel %vm187, %v5433, 0.0
    %v6632 = vsel %vm187, %v5534, 0.0
    %v6633 = vadd.f32 %v6631, %v6632
    %v6634 = vsel %vm187, %v5635, 0.0
    %v6635 = vadd.f32 %v6633, %v6634
    %v6636 = vsel %vm187, %v5736, 0.0
    %v6637 = vadd.f32 %v6635, %v6636
    %v6638 = vsel %vm187, %v5837, 0.0
    %v6639 = vadd.f32 %v6637, %v6638
    %v6640 = vsel %vm187, %v5938, 0.0
    %v6641 = vadd.f32 %v6639, %v6640
    %v6642 = vsel %vm187, %v6039, 0.0
    %v6643 = vadd.f32 %v6641, %v6642
    %v6644 = vsel %vm187, %v6140, 0.0
    %v6645 = vadd.f32 %v6643, %v6644
    %v6646 = vsel %vm187, %v6241, 0.0
    %v6647 = vadd.f32 %v6645, %v6646
    %v6648 = vsel %vm187, %v6342, 0.0
    %v6649 = vadd.f32 %v6647, %v6648
    %v6650 = vsel %vm187, %v6443, 0.0
    %v6651 = vadd.f32 %v6649, %v6650
    %v6652 = vsel %vm187, %v6544, 0.0
    %v6653 = vadd.f32 %v6651, %v6652
    %v6654 = vadd.f32 %v5437, %v5538
    %v6655 = vadd.f32 %v6654, %v5639
    %v6656 = vadd.f32 %v6655, %v5740
    %v6657 = vadd.f32 %v6656, %v5841
    %v6658 = vadd.f32 %v6657, %v5942
    %v6659 = vadd.f32 %v6658, %v6043
    %v6660 = vadd.f32 %v6659, %v6144
    %v6661 = vadd.f32 %v6660, %v6245
    %v6662 = vadd.f32 %v6661, %v6346
    %v6663 = vadd.f32 %v6662, %v6447
    %v6664 = vadd.f32 %v6663, %v6548
    %v6665 = vsel %vm187, %v5439, 0.0
    %v6666 = vsel %vm187, %v5540, 0.0
    %v6667 = vadd.f32 %v6665, %v6666
    %v6668 = vsel %vm187, %v5641, 0.0
    %v6669 = vadd.f32 %v6667, %v6668
    %v6670 = vsel %vm187, %v5742, 0.0
    %v6671 = vadd.f32 %v6669, %v6670
    %v6672 = vsel %vm187, %v5843, 0.0
    %v6673 = vadd.f32 %v6671, %v6672
    %v6674 = vsel %vm187, %v5944, 0.0
    %v6675 = vadd.f32 %v6673, %v6674
    %v6676 = vsel %vm187, %v6045, 0.0
    %v6677 = vadd.f32 %v6675, %v6676
    %v6678 = vsel %vm187, %v6146, 0.0
    %v6679 = vadd.f32 %v6677, %v6678
    %v6680 = vsel %vm187, %v6247, 0.0
    %v6681 = vadd.f32 %v6679, %v6680
    %v6682 = vsel %vm187, %v6348, 0.0
    %v6683 = vadd.f32 %v6681, %v6682
    %v6684 = vsel %vm187, %v6449, 0.0
    %v6685 = vadd.f32 %v6683, %v6684
    %v6686 = vsel %vm187, %v6550, 0.0
    %v6687 = vadd.f32 %v6685, %v6686
    %v6688 = vld [vmem:[%s3] sm:$0x3]
    %v6690 = vlaneseq
    %v6691 = vshrl.u32 %v6690, 7
    %v6692 = vsub.s32 0, %v6691
    %v6693 = vrot.slane %v6688, %v6692
    %v6694 = vlaneseq
    %v6695 = vshrl.u32 %v6694, 7
    %v6696 = vsub.s32 1, %v6695
    %v6697 = vrot.slane %v6688, %v6696
    %v6700 = vadd.f32 %v6562, %v6693
    %v6701 = vadd.f32 %v6585, %v6697
    %v6702 = vadd.f32 %v6596, %v6693
    %v6703 = vadd.f32 %v6619, %v6697
    %v6704 = vadd.f32 %v6630, %v6693
    %v6705 = vadd.f32 %v6653, %v6697
    %v6706 = vadd.f32 %v6664, %v6693
    %v6707 = vadd.f32 %v6687, %v6697
    %6708 = vst [vmem:[#allocation8] sm:$0xff] %v6700
    %6709 = vst.msk [vmem:[#allocation8 + $0x8] sm:$0xff] %vm187, %v6701
    %6710 = vst [vmem:[#allocation8 + $0x10] sm:$0xff] %v6702
    %6711 = vst.msk [vmem:[#allocation8 + $0x18] sm:$0xff] %vm187, %v6703
    %6712 = vst [vmem:[#allocation8 + $0x20] sm:$0xff] %v6704
    %6713 = vst.msk [vmem:[#allocation8 + $0x28] sm:$0xff] %vm187, %v6705
    %6714 = vst [vmem:[#allocation8 + $0x30] sm:$0xff] %v6706
    %6715 = vst.msk [vmem:[#allocation8 + $0x38] sm:$0xff] %vm187, %v6707
    // Predicated region
    $region30: #{msa_forward.1} parent=1 // pred_check
      _
    $region31: #{msa_forward.1} parent=1 // pred_check_branch
      %6717 = sbr.rel (0) target = $region33
    $region32: #{msa_forward.1} parent=1 // pred_region
      %s6719 = ssub.s32 1024, 1024
      %6720 = vsyncadd [#allocation4], %s6719
      %s6721 = sshll.u32 [#allocation8], 4
      %s6722 = int_to_ptr.vmem [resolvable:$true] %s6721
      %6727 = dma.vmem_to_hbm [thread:$0]  %s6722, 1024, %s4, [#allocation4], 256, 256, 16
    $region33: #{msa_forward.1} parent=1 // pred_fallthru
      _
    // Predicated region
    $region34: #{msa_forward.1} parent=1 // pred_check
      _
    $region35: #{msa_forward.1} parent=1 // pred_check_branch
      %6729 = sbr.rel (0) target = $region37
    $region36: #{msa_forward.1} parent=1 // pred_region
      %6730 = dma.done [#allocation4], 1024
    $region37: #{msa_forward.1} parent=1 // pred_fallthru
      _
    %6731 = vsyncpa [#allocation3], 1
    %6732 = vsyncpa [#allocation6], 1
    %6733 = vsyncpa [#allocation4], 1

</llo_original>
